<compile_context>
chip_gen: v7x
topology: tpu7x:2x2x1
jax: 0.10.0
libtpu: 0.0.40
codegen_flags: <defaults>
</compile_context>

<pallas_src>
import functools

import jax
import jax.numpy as jnp
from jax.experimental import pallas as pl
from jax.experimental.pallas import tpu as pltpu

EPSILON = 1e-4        # ProtoRS self.epsilon
RRL_THRESHOLD = 0.5   # RRL weight-binarization threshold


def _prod_lanes(t):
    """Product over the last (lane) axis via a halving tree of elementwise multiplies.

    Pure VALU work (no EUP exp/log serialization, no reliance on a reduce_prod
    lowering). The final size-1 axis is removed with an exact single-element sum,
    which is a layout-friendly supported reduction.
    """
    k = t.shape[-1]
    while k > 1:
        half = (k + 1) // 2
        lo = t[..., :half]
        hi = t[..., half:]
        if hi.shape[-1] < half:  # odd width: pad with the multiplicative identity
            pad = jnp.ones(hi.shape[:-1] + (half - hi.shape[-1],), t.dtype)
            hi = jnp.concatenate([hi, pad], axis=-1)
        t = lo * hi
        k = half
    return jnp.sum(t, axis=-1)


# -----------------------------------------------------------------------------
# Single fused kernel: backbone + prototype similarity + binarization + MLLP
# -----------------------------------------------------------------------------
def _make_protors_kernel(num_union, eps):
    def kernel(*refs):
        x_ref, w_ref, b_ref, p_ref, thr_ref = refs[:5]
        w_refs = refs[5:5 + 2 * num_union + 2]       # [wc0, wd0, ..., lr_w, lr_b]
        out_cont_ref, out_disc_ref = refs[-2], refs[-1]

        # ---------- backbone (1x1 conv + ReLU) + prototype similarities ----------
        # Features in (D, HW) layout: the large HW axis is lane-dense.
        w = w_ref[...]                                # (D, Cin)
        bias = b_ref[...]                             # (D, 1)
        p = p_ref[...]                                # (P, D)
        p2 = jnp.sum(p * p, axis=-1, keepdims=True)   # (P, 1)

        batch = x_ref.shape[0]
        rows = []
        for b in range(batch):                        # B is tiny -> fully unrolled
            xb = x_ref[b]                             # (Cin, HW), read straight from NCHW
            f = jnp.maximum(
                jnp.dot(w, xb, preferred_element_type=jnp.float32) + bias, 0.0)  # (D, HW)
            fp = jnp.dot(p, f, preferred_element_type=jnp.float32)               # (P, HW)
            f2 = jnp.sum(f * f, axis=0, keepdims=True)                            # (1, HW)
            dist = jnp.maximum(p2 - 2.0 * fp + f2, 0.0)                           # (P, HW)
            dmin = jnp.min(dist, axis=-1)             # global min-pool on the lane axis
            rows.append(jnp.log((dmin + 1.0) / (dmin + eps))[None, :])            # (1, P)
        sims = jnp.concatenate(rows, axis=0) if batch > 1 else rows[0]            # (B, P)

        # ---------- Binarization (continuous + discrete) ----------
        thr = thr_ref[...]                            # (1, P)
        x_cont = jax.nn.sigmoid(sims - thr)
        x_disc = (sims > thr).astype(jnp.float32)

        # ---------- MLLP weights: load once, binarize once ----------
        ws = [r[...] for r in w_refs]
        union_w = [(ws[2 * i], ws[2 * i + 1]) for i in range(num_union)]
        union_w_bin = [((wc > RRL_THRESHOLD).astype(jnp.float32),
                        (wd > RRL_THRESHOLD).astype(jnp.float32))
                       for wc, wd in union_w]
        lr_w, lr_b = ws[-2], ws[-1]                   # (LRin, C), (1, C)

        def union(segs, wc, wd, binarized):
            # RRL UnionLayer = [ConjunctionLayer | DisjunctionLayer].
            # `segs` is the logical input split into column segments; wc/wd columns
            # are split to match, so no activation concatenation is materialized.
            off = 0
            con_parts, dis_parts = [], []
            for seg in segs:
                k = seg.shape[-1]
                wc_s = wc[:, off:off + k]
                wd_s = wd[:, off:off + k]
                off += k
                t_con = 1.0 - (1.0 - seg)[:, None, :] * wc_s[None, :, :]   # (B, n, k)
                t_dis = 1.0 - seg[:, None, :] * wd_s[None, :, :]
                if binarized:                         # entries are exactly {0, 1}
                    con_parts.append(jnp.min(t_con, axis=-1))
                    dis_parts.append(jnp.min(t_dis, axis=-1))
                else:
                    con_parts.append(_prod_lanes(t_con))
                    dis_parts.append(_prod_lanes(t_dis))
            if binarized:
                con = functools.reduce(jnp.minimum, con_parts)
                dis = 1.0 - functools.reduce(jnp.minimum, dis_parts)
            else:
                con = functools.reduce(jnp.multiply, con_parts)
                dis = 1.0 - functools.reduce(jnp.multiply, dis_parts)
            return [con, dis]                         # two (B, n) segments

        def mllp(x0, weights, binarized):
            segs = [x0]
            segs_res = None
            for i, (wc, wd) in enumerate(weights):
                if i <= 1:
                    segs = union(segs, wc, wd, binarized)
                else:
                    cat = segs + segs_res if segs_res is not None else segs
                    segs_res = segs
                    segs = union(cat, wc, wd, binarized)
            cat = segs + segs_res if (num_union > 1 and segs_res is not None) else segs
            # Final LRLayer: matmul split per segment (no concat, same total MACs).
            out = lr_b
            off = 0
            for seg in cat:
                k = seg.shape[-1]
                out = out + jnp.dot(seg, lr_w[off:off + k, :],
                                    preferred_element_type=jnp.float32)
                off += k
            return out

        out_cont_ref[...] = mllp(x_cont, union_w, binarized=False)
        out_disc_ref[...] = mllp(x_disc, union_w_bin, binarized=True)

    return kernel


# -----------------------------------------------------------------------------
# Wrapper
# -----------------------------------------------------------------------------
def protors_forward(x_nchw, params):
    B, Cin, H, W = x_nchw.shape
    HW = H * W
    P, D = params["prototypes"].shape
    C = params["lr_b"].shape[-1]

    # NCHW -> (B, Cin, H*W): pure merge of trailing dims (no transpose pass).
    x = x_nchw.reshape(B, Cin, HW)

    flat_w = []
    for wc, wd in params["union_weights"]:
        flat_w += [wc, wd]
    flat_w += [params["lr_w"], params["lr_b"]]
    num_union = len(params["union_weights"])

    args = (x, params["conv_w"], params["conv_b"], params["prototypes"],
            params["thresholds"], *flat_w)

    vmem = pl.BlockSpec(memory_space=pltpu.MemorySpace.VMEM)
    flops = int(B * (2 * D * Cin * HW + 2 * P * D * HW + 6 * P * HW) + 64 * B * C)
    bytes_accessed = int(sum(a.size * a.dtype.itemsize for a in args) + 2 * B * C * 4)
    cost = pl.CostEstimate(flops=flops, transcendentals=int(4 * B * P),
                           bytes_accessed=bytes_accessed)

    # Single fused, no-grid call: the whole problem fits in VMEM many times over.
    # TODO(synk): when scaling up (real feature_net / large B), reintroduce a
    #             ("parallel",) batch grid (v7x has 2 TensorCores) and tile HW with a
    #             running-min accumulator to stay inside v7x's 64 MiB VMEM.
    out_cont, out_disc = pl.pallas_call(
        _make_protors_kernel(num_union=num_union, eps=EPSILON),
        in_specs=[vmem] * len(args),
        out_specs=(vmem, vmem),
        out_shape=(jax.ShapeDtypeStruct((B, C), jnp.float32),
                   jax.ShapeDtypeStruct((B, C), jnp.float32)),
        cost_estimate=cost,
    )(*args)
    return out_cont, out_disc


# -----------------------------------------------------------------------------
# Deterministic parameter construction (shapes follow ProtoRS.__init__ / RRL MLLP)
# -----------------------------------------------------------------------------
def init_params(key, *, cin, num_features, num_prototypes, structure, num_classes,
                binarize_threshold):
    D, P = num_features, num_prototypes
    ks = jax.random.split(key, 6)

    # Conv weight stored output-major (D, Cin) so the kernel computes f = W @ x + b
    # directly in (D, HW) layout.
    conv_w = jax.random.uniform(ks[0], (D, cin), jnp.float32, -0.5, 0.5)
    conv_b = jax.random.uniform(ks[1], (D, 1), jnp.float32, -0.1, 0.1)
    prototypes = jax.random.uniform(ks[2], (P, D), jnp.float32)      # torch.rand-style
    thresholds = jnp.full((1, P), binarize_threshold, jnp.float32)

    dim_list = [P] + list(structure) + [num_classes]
    union_weights = []
    out_dims = []
    prev = dim_list[0]
    wkeys = jax.random.split(ks[3], 2 * (len(dim_list) - 2))
    for idx, n in enumerate(dim_list[1:-1]):          # UnionLayers (1-based i = idx+1)
        in_dim = prev
        if idx + 1 >= 4:                              # RRL skip connection on input dim
            in_dim += out_dims[-2]
        wc = 0.5 * jax.random.uniform(wkeys[2 * idx], (n, in_dim), jnp.float32)
        wd = 0.5 * jax.random.uniform(wkeys[2 * idx + 1], (n, in_dim), jnp.float32)
        union_weights.append((wc, wd))
        prev = 2 * n
        out_dims.append(2 * n)

    lr_in = prev + (out_dims[-2] if (len(dim_list) - 1 >= 4 and len(out_dims) >= 2) else 0)
    bound = 1.0 / (lr_in ** 0.5)
    lr_w = jax.random.uniform(ks[4], (lr_in, num_classes), jnp.float32, -bound, bound)
    lr_b = jax.random.uniform(ks[5], (1, num_classes), jnp.float32, -bound, bound)

    return dict(conv_w=conv_w, conv_b=conv_b, prototypes=prototypes,
                thresholds=thresholds, union_weights=union_weights,
                lr_w=lr_w, lr_b=lr_b)


# -----------------------------------------------------------------------------
# Pure-JAX reference (numerical sanity check)
# -----------------------------------------------------------------------------
def reference_forward(x_nchw, params):
    B, Cin, H, W = x_nchw.shape
    HW = H * W
    xf = x_nchw.reshape(B, Cin, HW)
    f = jax.nn.relu(jnp.einsum("dc,bcn->bdn", params["conv_w"], xf)
                    + params["conv_b"][None, :, :])                 # (B, D, HW)
    p = params["prototypes"]                                        # (P, D)
    f2 = jnp.sum(f * f, axis=1, keepdims=True)                      # (B, 1, HW)
    p2 = jnp.sum(p * p, axis=-1)[None, :, None]                     # (1, P, 1)
    fp = jnp.einsum("pd,bdn->bpn", p, f)                            # (B, P, HW)
    dist = jnp.maximum(p2 - 2.0 * fp + f2, 0.0)
    dmin = jnp.min(dist, axis=-1)                                   # (B, P)
    sims = jnp.log((dmin + 1.0) / (dmin + EPSILON))

    thr = params["thresholds"]
    x_cont = jax.nn.sigmoid(sims - thr)
    x_disc = (sims > thr).astype(jnp.float32)

    def union(x, wc, wd, binarized):
        if binarized:
            wc = (wc > RRL_THRESHOLD).astype(jnp.float32)
            wd = (wd > RRL_THRESHOLD).astype(jnp.float32)
        con = jnp.prod(1.0 - (1.0 - x)[:, None, :] * wc[None, :, :], axis=-1)
        dis = 1.0 - jnp.prod(1.0 - x[:, None, :] * wd[None, :, :], axis=-1)
        return jnp.concatenate([con, dis], axis=-1)

    def mllp(x, binarized):
        num_union = len(params["union_weights"])
        x_res = None
        for i, (wc, wd) in enumerate(params["union_weights"]):
            if i <= 1:
                x = union(x, wc, wd, binarized)
            else:
                x_cat = jnp.concatenate([x, x_res], axis=-1) if x_res is not None else x
                x_res = x
                x = union(x_cat, wc, wd, binarized)
        if num_union <= 1:
            x_cat = x
        else:
            x_cat = jnp.concatenate([x, x_res], axis=-1) if x_res is not None else x
        return x_cat @ params["lr_w"] + params["lr_b"]

    return mllp(x_cont, False), mllp(x_disc, True)


if __name__ == "__main__":
    # Small synthetic config (args): num_features=32, num_prototypes=16,
    # W1=H1=1, structure="8@8@8", num_classes=4, binarize_threshold=0.1
    B, Cin, H, W = 2, 4, 16, 16
    num_features = 32
    num_prototypes = 16
    structure = [8, 8, 8]
    num_classes = 4
    binarize_threshold = 0.1

    root = jax.random.PRNGKey(0)
    k_x, k_p = jax.random.split(root)
    x = jax.random.normal(k_x, (B, Cin, H, W), jnp.float32)
    params = init_params(k_p, cin=Cin, num_features=num_features,
                         num_prototypes=num_prototypes, structure=structure,
                         num_classes=num_classes,
                         binarize_threshold=binarize_threshold)

    out_cont, out_disc = jax.jit(protors_forward)(x, params)
    jax.block_until_ready((out_cont, out_disc))

    ref_cont, ref_disc = reference_forward(x, params)
    assert out_cont.shape == (B, num_classes) and out_disc.shape == (B, num_classes)
    assert jnp.allclose(out_cont, ref_cont, atol=1e-4, rtol=1e-4), "continuous path mismatch"
    assert jnp.allclose(out_disc, ref_disc, atol=1e-4, rtol=1e-4), "binarized path mismatch"

    print("KERNEL_OK")
</pallas_src>

<mosaic_0001>
module attributes {stable_mosaic.version = 11 : i64} {
  func.func @kernel(%arg0: memref<2x4x256xf32, #tpu.memory_space<vmem>>, %arg1: memref<32x4xf32, #tpu.memory_space<vmem>>, %arg2: memref<32x1xf32, #tpu.memory_space<vmem>>, %arg3: memref<16x32xf32, #tpu.memory_space<vmem>>, %arg4: memref<1x16xf32, #tpu.memory_space<vmem>>, %arg5: memref<8x16xf32, #tpu.memory_space<vmem>>, %arg6: memref<8x16xf32, #tpu.memory_space<vmem>>, %arg7: memref<8x16xf32, #tpu.memory_space<vmem>>, %arg8: memref<8x16xf32, #tpu.memory_space<vmem>>, %arg9: memref<8x16xf32, #tpu.memory_space<vmem>>, %arg10: memref<8x16xf32, #tpu.memory_space<vmem>>, %arg11: memref<32x4xf32, #tpu.memory_space<vmem>>, %arg12: memref<1x4xf32, #tpu.memory_space<vmem>>, %arg13: memref<2x4xf32, #tpu.memory_space<vmem>>, %arg14: memref<2x4xf32, #tpu.memory_space<vmem>>) attributes {dimension_semantics = [], scalar_prefetch = 0 : i64, scratch_operands = 0 : i64, tpu.core_type = #tpu.core_type<tc>} {
    %c0 = arith.constant 0 : index
    %c0_0 = arith.constant 0 : index
    %0 = vector.load %arg1[%c0, %c0_0] : memref<32x4xf32, #tpu.memory_space<vmem>>, vector<32x4xf32>
    %c0_1 = arith.constant 0 : index
    %c0_2 = arith.constant 0 : index
    %1 = vector.load %arg2[%c0_1, %c0_2] : memref<32x1xf32, #tpu.memory_space<vmem>>, vector<32x1xf32>
    %c0_3 = arith.constant 0 : index
    %c0_4 = arith.constant 0 : index
    %2 = vector.load %arg3[%c0_3, %c0_4] : memref<16x32xf32, #tpu.memory_space<vmem>>, vector<16x32xf32>
    %3 = arith.mulf %2, %2 : vector<16x32xf32>
    %cst = arith.constant dense<0.000000e+00> : vector<16xf32>
    %4 = vector.multi_reduction <add>, %3, %cst [1] : vector<16x32xf32> to vector<16xf32>
    %5 = vector.shape_cast %4 : vector<16xf32> to vector<16x1xf32>
    %c0_5 = arith.constant 0 : index
    %c0_6 = arith.constant 0 : index
    %c0_7 = arith.constant 0 : index
    %6 = vector.load %arg0[%c0_5, %c0_6, %c0_7] : memref<2x4x256xf32, #tpu.memory_space<vmem>>, vector<1x4x256xf32>
    %7 = vector.shape_cast %6 : vector<1x4x256xf32> to vector<4x256xf32>
    %cst_8 = arith.constant dense<0.000000e+00> : vector<32x256xf32>
    %8 = tpu.matmul %0, %7, %cst_8 {dimension_numbers = #tpu.dot_dimension_numbers<[1], [0], [0], [1], [0, 0, 1, 1], [], []>} : vector<32x4xf32>, vector<4x256xf32>, vector<32x256xf32> -> vector<32x256xf32>
    %9 = vector.broadcast %1 : vector<32x1xf32> to vector<32x256xf32>
    %10 = arith.addf %8, %9 : vector<32x256xf32>
    %cst_9 = arith.constant 0.000000e+00 : f32
    %11 = vector.broadcast %cst_9 : f32 to vector<32x256xf32>
    %12 = arith.maximumf %10, %11 : vector<32x256xf32>
    %cst_10 = arith.constant dense<0.000000e+00> : vector<16x256xf32>
    %13 = tpu.matmul %2, %12, %cst_10 {dimension_numbers = #tpu.dot_dimension_numbers<[1], [0], [0], [1], [0, 0, 1, 1], [], []>} : vector<16x32xf32>, vector<32x256xf32>, vector<16x256xf32> -> vector<16x256xf32>
    %14 = arith.mulf %12, %12 : vector<32x256xf32>
    %cst_11 = arith.constant dense<0.000000e+00> : vector<256xf32>
    %15 = vector.multi_reduction <add>, %14, %cst_11 [0] : vector<32x256xf32> to vector<256xf32>
    %16 = vector.shape_cast %15 : vector<256xf32> to vector<1x256xf32>
    %cst_12 = arith.constant 2.000000e+00 : f32
    %17 = vector.broadcast %cst_12 : f32 to vector<16x256xf32>
    %18 = arith.mulf %17, %13 : vector<16x256xf32>
    %19 = vector.broadcast %5 : vector<16x1xf32> to vector<16x256xf32>
    %20 = arith.subf %19, %18 : vector<16x256xf32>
    %21 = vector.broadcast %16 : vector<1x256xf32> to vector<16x256xf32>
    %22 = arith.addf %20, %21 : vector<16x256xf32>
    %cst_13 = arith.constant 0.000000e+00 : f32
    %23 = vector.broadcast %cst_13 : f32 to vector<16x256xf32>
    %24 = arith.maximumf %22, %23 : vector<16x256xf32>
    %cst_14 = arith.constant dense<0x7F800000> : vector<16xf32>
    %25 = vector.multi_reduction <minimumf>, %24, %cst_14 [1] : vector<16x256xf32> to vector<16xf32>
    %cst_15 = arith.constant 1.000000e+00 : f32
    %26 = vector.broadcast %cst_15 : f32 to vector<16xf32>
    %27 = arith.addf %25, %26 : vector<16xf32>
    %cst_16 = arith.constant 9.99999974E-5 : f32
    %28 = vector.broadcast %cst_16 : f32 to vector<16xf32>
    %29 = arith.addf %25, %28 : vector<16xf32>
    %30 = arith.divf %27, %29 : vector<16xf32>
    %31 = math.log %30 : vector<16xf32>
    %32 = vector.shape_cast %31 : vector<16xf32> to vector<1x16xf32>
    %c1 = arith.constant 1 : index
    %c0_17 = arith.constant 0 : index
    %c0_18 = arith.constant 0 : index
    %33 = vector.load %arg0[%c1, %c0_17, %c0_18] : memref<2x4x256xf32, #tpu.memory_space<vmem>>, vector<1x4x256xf32>
    %34 = vector.shape_cast %33 : vector<1x4x256xf32> to vector<4x256xf32>
    %cst_19 = arith.constant dense<0.000000e+00> : vector<32x256xf32>
    %35 = tpu.matmul %0, %34, %cst_19 {dimension_numbers = #tpu.dot_dimension_numbers<[1], [0], [0], [1], [0, 0, 1, 1], [], []>} : vector<32x4xf32>, vector<4x256xf32>, vector<32x256xf32> -> vector<32x256xf32>
    %36 = vector.broadcast %1 : vector<32x1xf32> to vector<32x256xf32>
    %37 = arith.addf %35, %36 : vector<32x256xf32>
    %cst_20 = arith.constant 0.000000e+00 : f32
    %38 = vector.broadcast %cst_20 : f32 to vector<32x256xf32>
    %39 = arith.maximumf %37, %38 : vector<32x256xf32>
    %cst_21 = arith.constant dense<0.000000e+00> : vector<16x256xf32>
    %40 = tpu.matmul %2, %39, %cst_21 {dimension_numbers = #tpu.dot_dimension_numbers<[1], [0], [0], [1], [0, 0, 1, 1], [], []>} : vector<16x32xf32>, vector<32x256xf32>, vector<16x256xf32> -> vector<16x256xf32>
    %41 = arith.mulf %39, %39 : vector<32x256xf32>
    %cst_22 = arith.constant dense<0.000000e+00> : vector<256xf32>
    %42 = vector.multi_reduction <add>, %41, %cst_22 [0] : vector<32x256xf32> to vector<256xf32>
    %43 = vector.shape_cast %42 : vector<256xf32> to vector<1x256xf32>
    %cst_23 = arith.constant 2.000000e+00 : f32
    %44 = vector.broadcast %cst_23 : f32 to vector<16x256xf32>
    %45 = arith.mulf %44, %40 : vector<16x256xf32>
    %46 = vector.broadcast %5 : vector<16x1xf32> to vector<16x256xf32>
    %47 = arith.subf %46, %45 : vector<16x256xf32>
    %48 = vector.broadcast %43 : vector<1x256xf32> to vector<16x256xf32>
    %49 = arith.addf %47, %48 : vector<16x256xf32>
    %cst_24 = arith.constant 0.000000e+00 : f32
    %50 = vector.broadcast %cst_24 : f32 to vector<16x256xf32>
    %51 = arith.maximumf %49, %50 : vector<16x256xf32>
    %cst_25 = arith.constant dense<0x7F800000> : vector<16xf32>
    %52 = vector.multi_reduction <minimumf>, %51, %cst_25 [1] : vector<16x256xf32> to vector<16xf32>
    %cst_26 = arith.constant 1.000000e+00 : f32
    %53 = vector.broadcast %cst_26 : f32 to vector<16xf32>
    %54 = arith.addf %52, %53 : vector<16xf32>
    %cst_27 = arith.constant 9.99999974E-5 : f32
    %55 = vector.broadcast %cst_27 : f32 to vector<16xf32>
    %56 = arith.addf %52, %55 : vector<16xf32>
    %57 = arith.divf %54, %56 : vector<16xf32>
    %58 = math.log %57 : vector<16xf32>
    %59 = vector.shape_cast %58 : vector<16xf32> to vector<1x16xf32>
    %60 = tpu.concatenate %32, %59 in 0 : vector<1x16xf32>, vector<1x16xf32> -> vector<2x16xf32>
    %c0_28 = arith.constant 0 : index
    %c0_29 = arith.constant 0 : index
    %61 = vector.load %arg4[%c0_28, %c0_29] : memref<1x16xf32, #tpu.memory_space<vmem>>, vector<1x16xf32>
    %62 = vector.broadcast %61 : vector<1x16xf32> to vector<2x16xf32>
    %63 = arith.subf %60, %62 : vector<2x16xf32>
    %64 = arith.negf %63 : vector<2x16xf32>
    %65 = math.exp %64 : vector<2x16xf32>
    %cst_30 = arith.constant 1.000000e+00 : f32
    %66 = vector.broadcast %cst_30 : f32 to vector<2x16xf32>
    %67 = arith.addf %66, %65 : vector<2x16xf32>
    %68 = arith.divf %66, %67 : vector<2x16xf32>
    %69 = vector.broadcast %61 : vector<1x16xf32> to vector<2x16xf32>
    %70 = arith.cmpf ogt, %60, %69 : vector<2x16xf32>
    %71 = arith.extui %70 : vector<2x16xi1> to vector<2x16xi32>
    %72 = arith.sitofp %71 : vector<2x16xi32> to vector<2x16xf32>
    %c0_31 = arith.constant 0 : index
    %c0_32 = arith.constant 0 : index
    %73 = vector.load %arg5[%c0_31, %c0_32] : memref<8x16xf32, #tpu.memory_space<vmem>>, vector<8x16xf32>
    %c0_33 = arith.constant 0 : index
    %c0_34 = arith.constant 0 : index
    %74 = vector.load %arg6[%c0_33, %c0_34] : memref<8x16xf32, #tpu.memory_space<vmem>>, vector<8x16xf32>
    %c0_35 = arith.constant 0 : index
    %c0_36 = arith.constant 0 : index
    %75 = vector.load %arg7[%c0_35, %c0_36] : memref<8x16xf32, #tpu.memory_space<vmem>>, vector<8x16xf32>
    %c0_37 = arith.constant 0 : index
    %c0_38 = arith.constant 0 : index
    %76 = vector.load %arg8[%c0_37, %c0_38] : memref<8x16xf32, #tpu.memory_space<vmem>>, vector<8x16xf32>
    %c0_39 = arith.constant 0 : index
    %c0_40 = arith.constant 0 : index
    %77 = vector.load %arg9[%c0_39, %c0_40] : memref<8x16xf32, #tpu.memory_space<vmem>>, vector<8x16xf32>
    %c0_41 = arith.constant 0 : index
    %c0_42 = arith.constant 0 : index
    %78 = vector.load %arg10[%c0_41, %c0_42] : memref<8x16xf32, #tpu.memory_space<vmem>>, vector<8x16xf32>
    %c0_43 = arith.constant 0 : index
    %c0_44 = arith.constant 0 : index
    %79 = vector.load %arg11[%c0_43, %c0_44] : memref<32x4xf32, #tpu.memory_space<vmem>>, vector<32x4xf32>
    %c0_45 = arith.constant 0 : index
    %c0_46 = arith.constant 0 : index
    %80 = vector.load %arg12[%c0_45, %c0_46] : memref<1x4xf32, #tpu.memory_space<vmem>>, vector<1x4xf32>
    %cst_47 = arith.constant 5.000000e-01 : f32
    %81 = vector.broadcast %cst_47 : f32 to vector<8x16xf32>
    %82 = arith.cmpf ogt, %73, %81 : vector<8x16xf32>
    %83 = arith.extui %82 : vector<8x16xi1> to vector<8x16xi32>
    %84 = arith.sitofp %83 : vector<8x16xi32> to vector<8x16xf32>
    %cst_48 = arith.constant 5.000000e-01 : f32
    %85 = vector.broadcast %cst_48 : f32 to vector<8x16xf32>
    %86 = arith.cmpf ogt, %74, %85 : vector<8x16xf32>
    %87 = arith.extui %86 : vector<8x16xi1> to vector<8x16xi32>
    %88 = arith.sitofp %87 : vector<8x16xi32> to vector<8x16xf32>
    %cst_49 = arith.constant 5.000000e-01 : f32
    %89 = vector.broadcast %cst_49 : f32 to vector<8x16xf32>
    %90 = arith.cmpf ogt, %75, %89 : vector<8x16xf32>
    %91 = arith.extui %90 : vector<8x16xi1> to vector<8x16xi32>
    %92 = arith.sitofp %91 : vector<8x16xi32> to vector<8x16xf32>
    %cst_50 = arith.constant 5.000000e-01 : f32
    %93 = vector.broadcast %cst_50 : f32 to vector<8x16xf32>
    %94 = arith.cmpf ogt, %76, %93 : vector<8x16xf32>
    %95 = arith.extui %94 : vector<8x16xi1> to vector<8x16xi32>
    %96 = arith.sitofp %95 : vector<8x16xi32> to vector<8x16xf32>
    %cst_51 = arith.constant 5.000000e-01 : f32
    %97 = vector.broadcast %cst_51 : f32 to vector<8x16xf32>
    %98 = arith.cmpf ogt, %77, %97 : vector<8x16xf32>
    %99 = arith.extui %98 : vector<8x16xi1> to vector<8x16xi32>
    %100 = arith.sitofp %99 : vector<8x16xi32> to vector<8x16xf32>
    %cst_52 = arith.constant 5.000000e-01 : f32
    %101 = vector.broadcast %cst_52 : f32 to vector<8x16xf32>
    %102 = arith.cmpf ogt, %78, %101 : vector<8x16xf32>
    %103 = arith.extui %102 : vector<8x16xi1> to vector<8x16xi32>
    %104 = arith.sitofp %103 : vector<8x16xi32> to vector<8x16xf32>
    %cst_53 = arith.constant 1.000000e+00 : f32
    %105 = vector.broadcast %cst_53 : f32 to vector<2x16xf32>
    %106 = arith.subf %105, %68 : vector<2x16xf32>
    %107 = vector.shape_cast %106 : vector<2x16xf32> to vector<2x1x16xf32>
    %108 = vector.shape_cast %73 : vector<8x16xf32> to vector<1x8x16xf32>
    %109 = vector.broadcast %107 : vector<2x1x16xf32> to vector<2x8x16xf32>
    %110 = vector.broadcast %108 : vector<1x8x16xf32> to vector<2x8x16xf32>
    %111 = arith.mulf %109, %110 : vector<2x8x16xf32>
    %cst_54 = arith.constant 1.000000e+00 : f32
    %112 = vector.broadcast %cst_54 : f32 to vector<2x8x16xf32>
    %113 = arith.subf %112, %111 : vector<2x8x16xf32>
    %114 = vector.shape_cast %68 : vector<2x16xf32> to vector<2x1x16xf32>
    %115 = vector.shape_cast %74 : vector<8x16xf32> to vector<1x8x16xf32>
    %116 = vector.broadcast %114 : vector<2x1x16xf32> to vector<2x8x16xf32>
    %117 = vector.broadcast %115 : vector<1x8x16xf32> to vector<2x8x16xf32>
    %118 = arith.mulf %116, %117 : vector<2x8x16xf32>
    %cst_55 = arith.constant 1.000000e+00 : f32
    %119 = vector.broadcast %cst_55 : f32 to vector<2x8x16xf32>
    %120 = arith.subf %119, %118 : vector<2x8x16xf32>
    %121 = vector.extract_strided_slice %113 {offsets = [0, 0, 0], sizes = [2, 8, 8], strides = [1, 1, 1]} : vector<2x8x16xf32> to vector<2x8x8xf32>
    %122 = vector.extract_strided_slice %113 {offsets = [0, 0, 8], sizes = [2, 8, 8], strides = [1, 1, 1]} : vector<2x8x16xf32> to vector<2x8x8xf32>
    %123 = arith.mulf %121, %122 : vector<2x8x8xf32>
    %124 = vector.extract_strided_slice %123 {offsets = [0, 0, 0], sizes = [2, 8, 4], strides = [1, 1, 1]} : vector<2x8x8xf32> to vector<2x8x4xf32>
    %125 = vector.extract_strided_slice %123 {offsets = [0, 0, 4], sizes = [2, 8, 4], strides = [1, 1, 1]} : vector<2x8x8xf32> to vector<2x8x4xf32>
    %126 = arith.mulf %124, %125 : vector<2x8x4xf32>
    %127 = vector.extract_strided_slice %126 {offsets = [0, 0, 0], sizes = [2, 8, 2], strides = [1, 1, 1]} : vector<2x8x4xf32> to vector<2x8x2xf32>
    %128 = vector.extract_strided_slice %126 {offsets = [0, 0, 2], sizes = [2, 8, 2], strides = [1, 1, 1]} : vector<2x8x4xf32> to vector<2x8x2xf32>
    %129 = arith.mulf %127, %128 : vector<2x8x2xf32>
    %130 = vector.extract_strided_slice %129 {offsets = [0, 0, 0], sizes = [2, 8, 1], strides = [1, 1, 1]} : vector<2x8x2xf32> to vector<2x8x1xf32>
    %131 = vector.extract_strided_slice %129 {offsets = [0, 0, 1], sizes = [2, 8, 1], strides = [1, 1, 1]} : vector<2x8x2xf32> to vector<2x8x1xf32>
    %132 = arith.mulf %130, %131 : vector<2x8x1xf32>
    %cst_56 = arith.constant dense<0.000000e+00> : vector<2x8xf32>
    %133 = vector.multi_reduction <add>, %132, %cst_56 [2] : vector<2x8x1xf32> to vector<2x8xf32>
    %134 = vector.extract_strided_slice %120 {offsets = [0, 0, 0], sizes = [2, 8, 8], strides = [1, 1, 1]} : vector<2x8x16xf32> to vector<2x8x8xf32>
    %135 = vector.extract_strided_slice %120 {offsets = [0, 0, 8], sizes = [2, 8, 8], strides = [1, 1, 1]} : vector<2x8x16xf32> to vector<2x8x8xf32>
    %136 = arith.mulf %134, %135 : vector<2x8x8xf32>
    %137 = vector.extract_strided_slice %136 {offsets = [0, 0, 0], sizes = [2, 8, 4], strides = [1, 1, 1]} : vector<2x8x8xf32> to vector<2x8x4xf32>
    %138 = vector.extract_strided_slice %136 {offsets = [0, 0, 4], sizes = [2, 8, 4], strides = [1, 1, 1]} : vector<2x8x8xf32> to vector<2x8x4xf32>
    %139 = arith.mulf %137, %138 : vector<2x8x4xf32>
    %140 = vector.extract_strided_slice %139 {offsets = [0, 0, 0], sizes = [2, 8, 2], strides = [1, 1, 1]} : vector<2x8x4xf32> to vector<2x8x2xf32>
    %141 = vector.extract_strided_slice %139 {offsets = [0, 0, 2], sizes = [2, 8, 2], strides = [1, 1, 1]} : vector<2x8x4xf32> to vector<2x8x2xf32>
    %142 = arith.mulf %140, %141 : vector<2x8x2xf32>
    %143 = vector.extract_strided_slice %142 {offsets = [0, 0, 0], sizes = [2, 8, 1], strides = [1, 1, 1]} : vector<2x8x2xf32> to vector<2x8x1xf32>
    %144 = vector.extract_strided_slice %142 {offsets = [0, 0, 1], sizes = [2, 8, 1], strides = [1, 1, 1]} : vector<2x8x2xf32> to vector<2x8x1xf32>
    %145 = arith.mulf %143, %144 : vector<2x8x1xf32>
    %cst_57 = arith.constant dense<0.000000e+00> : vector<2x8xf32>
    %146 = vector.multi_reduction <add>, %145, %cst_57 [2] : vector<2x8x1xf32> to vector<2x8xf32>
    %cst_58 = arith.constant 1.000000e+00 : f32
    %147 = vector.broadcast %cst_58 : f32 to vector<2x8xf32>
    %148 = arith.subf %147, %146 : vector<2x8xf32>
    %149 = vector.extract_strided_slice %75 {offsets = [0, 0], sizes = [8, 8], strides = [1, 1]} : vector<8x16xf32> to vector<8x8xf32>
    %150 = vector.extract_strided_slice %76 {offsets = [0, 0], sizes = [8, 8], strides = [1, 1]} : vector<8x16xf32> to vector<8x8xf32>
    %cst_59 = arith.constant 1.000000e+00 : f32
    %151 = vector.broadcast %cst_59 : f32 to vector<2x8xf32>
    %152 = arith.subf %151, %133 : vector<2x8xf32>
    %153 = vector.shape_cast %152 : vector<2x8xf32> to vector<2x1x8xf32>
    %154 = vector.shape_cast %149 : vector<8x8xf32> to vector<1x8x8xf32>
    %155 = vector.broadcast %153 : vector<2x1x8xf32> to vector<2x8x8xf32>
    %156 = vector.broadcast %154 : vector<1x8x8xf32> to vector<2x8x8xf32>
    %157 = arith.mulf %155, %156 : vector<2x8x8xf32>
    %cst_60 = arith.constant 1.000000e+00 : f32
    %158 = vector.broadcast %cst_60 : f32 to vector<2x8x8xf32>
    %159 = arith.subf %158, %157 : vector<2x8x8xf32>
    %160 = vector.shape_cast %133 : vector<2x8xf32> to vector<2x1x8xf32>
    %161 = vector.shape_cast %150 : vector<8x8xf32> to vector<1x8x8xf32>
    %162 = vector.broadcast %160 : vector<2x1x8xf32> to vector<2x8x8xf32>
    %163 = vector.broadcast %161 : vector<1x8x8xf32> to vector<2x8x8xf32>
    %164 = arith.mulf %162, %163 : vector<2x8x8xf32>
    %cst_61 = arith.constant 1.000000e+00 : f32
    %165 = vector.broadcast %cst_61 : f32 to vector<2x8x8xf32>
    %166 = arith.subf %165, %164 : vector<2x8x8xf32>
    %167 = vector.extract_strided_slice %159 {offsets = [0, 0, 0], sizes = [2, 8, 4], strides = [1, 1, 1]} : vector<2x8x8xf32> to vector<2x8x4xf32>
    %168 = vector.extract_strided_slice %159 {offsets = [0, 0, 4], sizes = [2, 8, 4], strides = [1, 1, 1]} : vector<2x8x8xf32> to vector<2x8x4xf32>
    %169 = arith.mulf %167, %168 : vector<2x8x4xf32>
    %170 = vector.extract_strided_slice %169 {offsets = [0, 0, 0], sizes = [2, 8, 2], strides = [1, 1, 1]} : vector<2x8x4xf32> to vector<2x8x2xf32>
    %171 = vector.extract_strided_slice %169 {offsets = [0, 0, 2], sizes = [2, 8, 2], strides = [1, 1, 1]} : vector<2x8x4xf32> to vector<2x8x2xf32>
    %172 = arith.mulf %170, %171 : vector<2x8x2xf32>
    %173 = vector.extract_strided_slice %172 {offsets = [0, 0, 0], sizes = [2, 8, 1], strides = [1, 1, 1]} : vector<2x8x2xf32> to vector<2x8x1xf32>
    %174 = vector.extract_strided_slice %172 {offsets = [0, 0, 1], sizes = [2, 8, 1], strides = [1, 1, 1]} : vector<2x8x2xf32> to vector<2x8x1xf32>
    %175 = arith.mulf %173, %174 : vector<2x8x1xf32>
    %cst_62 = arith.constant dense<0.000000e+00> : vector<2x8xf32>
    %176 = vector.multi_reduction <add>, %175, %cst_62 [2] : vector<2x8x1xf32> to vector<2x8xf32>
    %177 = vector.extract_strided_slice %166 {offsets = [0, 0, 0], sizes = [2, 8, 4], strides = [1, 1, 1]} : vector<2x8x8xf32> to vector<2x8x4xf32>
    %178 = vector.extract_strided_slice %166 {offsets = [0, 0, 4], sizes = [2, 8, 4], strides = [1, 1, 1]} : vector<2x8x8xf32> to vector<2x8x4xf32>
    %179 = arith.mulf %177, %178 : vector<2x8x4xf32>
    %180 = vector.extract_strided_slice %179 {offsets = [0, 0, 0], sizes = [2, 8, 2], strides = [1, 1, 1]} : vector<2x8x4xf32> to vector<2x8x2xf32>
    %181 = vector.extract_strided_slice %179 {offsets = [0, 0, 2], sizes = [2, 8, 2], strides = [1, 1, 1]} : vector<2x8x4xf32> to vector<2x8x2xf32>
    %182 = arith.mulf %180, %181 : vector<2x8x2xf32>
    %183 = vector.extract_strided_slice %182 {offsets = [0, 0, 0], sizes = [2, 8, 1], strides = [1, 1, 1]} : vector<2x8x2xf32> to vector<2x8x1xf32>
    %184 = vector.extract_strided_slice %182 {offsets = [0, 0, 1], sizes = [2, 8, 1], strides = [1, 1, 1]} : vector<2x8x2xf32> to vector<2x8x1xf32>
    %185 = arith.mulf %183, %184 : vector<2x8x1xf32>
    %cst_63 = arith.constant dense<0.000000e+00> : vector<2x8xf32>
    %186 = vector.multi_reduction <add>, %185, %cst_63 [2] : vector<2x8x1xf32> to vector<2x8xf32>
    %187 = vector.extract_strided_slice %75 {offsets = [0, 8], sizes = [8, 8], strides = [1, 1]} : vector<8x16xf32> to vector<8x8xf32>
    %188 = vector.extract_strided_slice %76 {offsets = [0, 8], sizes = [8, 8], strides = [1, 1]} : vector<8x16xf32> to vector<8x8xf32>
    %cst_64 = arith.constant 1.000000e+00 : f32
    %189 = vector.broadcast %cst_64 : f32 to vector<2x8xf32>
    %190 = arith.subf %189, %148 : vector<2x8xf32>
    %191 = vector.shape_cast %190 : vector<2x8xf32> to vector<2x1x8xf32>
    %192 = vector.shape_cast %187 : vector<8x8xf32> to vector<1x8x8xf32>
    %193 = vector.broadcast %191 : vector<2x1x8xf32> to vector<2x8x8xf32>
    %194 = vector.broadcast %192 : vector<1x8x8xf32> to vector<2x8x8xf32>
    %195 = arith.mulf %193, %194 : vector<2x8x8xf32>
    %cst_65 = arith.constant 1.000000e+00 : f32
    %196 = vector.broadcast %cst_65 : f32 to vector<2x8x8xf32>
    %197 = arith.subf %196, %195 : vector<2x8x8xf32>
    %198 = vector.shape_cast %148 : vector<2x8xf32> to vector<2x1x8xf32>
    %199 = vector.shape_cast %188 : vector<8x8xf32> to vector<1x8x8xf32>
    %200 = vector.broadcast %198 : vector<2x1x8xf32> to vector<2x8x8xf32>
    %201 = vector.broadcast %199 : vector<1x8x8xf32> to vector<2x8x8xf32>
    %202 = arith.mulf %200, %201 : vector<2x8x8xf32>
    %cst_66 = arith.constant 1.000000e+00 : f32
    %203 = vector.broadcast %cst_66 : f32 to vector<2x8x8xf32>
    %204 = arith.subf %203, %202 : vector<2x8x8xf32>
    %205 = vector.extract_strided_slice %197 {offsets = [0, 0, 0], sizes = [2, 8, 4], strides = [1, 1, 1]} : vector<2x8x8xf32> to vector<2x8x4xf32>
    %206 = vector.extract_strided_slice %197 {offsets = [0, 0, 4], sizes = [2, 8, 4], strides = [1, 1, 1]} : vector<2x8x8xf32> to vector<2x8x4xf32>
    %207 = arith.mulf %205, %206 : vector<2x8x4xf32>
    %208 = vector.extract_strided_slice %207 {offsets = [0, 0, 0], sizes = [2, 8, 2], strides = [1, 1, 1]} : vector<2x8x4xf32> to vector<2x8x2xf32>
    %209 = vector.extract_strided_slice %207 {offsets = [0, 0, 2], sizes = [2, 8, 2], strides = [1, 1, 1]} : vector<2x8x4xf32> to vector<2x8x2xf32>
    %210 = arith.mulf %208, %209 : vector<2x8x2xf32>
    %211 = vector.extract_strided_slice %210 {offsets = [0, 0, 0], sizes = [2, 8, 1], strides = [1, 1, 1]} : vector<2x8x2xf32> to vector<2x8x1xf32>
    %212 = vector.extract_strided_slice %210 {offsets = [0, 0, 1], sizes = [2, 8, 1], strides = [1, 1, 1]} : vector<2x8x2xf32> to vector<2x8x1xf32>
    %213 = arith.mulf %211, %212 : vector<2x8x1xf32>
    %cst_67 = arith.constant dense<0.000000e+00> : vector<2x8xf32>
    %214 = vector.multi_reduction <add>, %213, %cst_67 [2] : vector<2x8x1xf32> to vector<2x8xf32>
    %215 = vector.extract_strided_slice %204 {offsets = [0, 0, 0], sizes = [2, 8, 4], strides = [1, 1, 1]} : vector<2x8x8xf32> to vector<2x8x4xf32>
    %216 = vector.extract_strided_slice %204 {offsets = [0, 0, 4], sizes = [2, 8, 4], strides = [1, 1, 1]} : vector<2x8x8xf32> to vector<2x8x4xf32>
    %217 = arith.mulf %215, %216 : vector<2x8x4xf32>
    %218 = vector.extract_strided_slice %217 {offsets = [0, 0, 0], sizes = [2, 8, 2], strides = [1, 1, 1]} : vector<2x8x4xf32> to vector<2x8x2xf32>
    %219 = vector.extract_strided_slice %217 {offsets = [0, 0, 2], sizes = [2, 8, 2], strides = [1, 1, 1]} : vector<2x8x4xf32> to vector<2x8x2xf32>
    %220 = arith.mulf %218, %219 : vector<2x8x2xf32>
    %221 = vector.extract_strided_slice %220 {offsets = [0, 0, 0], sizes = [2, 8, 1], strides = [1, 1, 1]} : vector<2x8x2xf32> to vector<2x8x1xf32>
    %222 = vector.extract_strided_slice %220 {offsets = [0, 0, 1], sizes = [2, 8, 1], strides = [1, 1, 1]} : vector<2x8x2xf32> to vector<2x8x1xf32>
    %223 = arith.mulf %221, %222 : vector<2x8x1xf32>
    %cst_68 = arith.constant dense<0.000000e+00> : vector<2x8xf32>
    %224 = vector.multi_reduction <add>, %223, %cst_68 [2] : vector<2x8x1xf32> to vector<2x8xf32>
    %225 = arith.mulf %176, %214 : vector<2x8xf32>
    %226 = arith.mulf %186, %224 : vector<2x8xf32>
    %cst_69 = arith.constant 1.000000e+00 : f32
    %227 = vector.broadcast %cst_69 : f32 to vector<2x8xf32>
    %228 = arith.subf %227, %226 : vector<2x8xf32>
    %229 = vector.extract_strided_slice %77 {offsets = [0, 0], sizes = [8, 8], strides = [1, 1]} : vector<8x16xf32> to vector<8x8xf32>
    %230 = vector.extract_strided_slice %78 {offsets = [0, 0], sizes = [8, 8], strides = [1, 1]} : vector<8x16xf32> to vector<8x8xf32>
    %cst_70 = arith.constant 1.000000e+00 : f32
    %231 = vector.broadcast %cst_70 : f32 to vector<2x8xf32>
    %232 = arith.subf %231, %225 : vector<2x8xf32>
    %233 = vector.shape_cast %232 : vector<2x8xf32> to vector<2x1x8xf32>
    %234 = vector.shape_cast %229 : vector<8x8xf32> to vector<1x8x8xf32>
    %235 = vector.broadcast %233 : vector<2x1x8xf32> to vector<2x8x8xf32>
    %236 = vector.broadcast %234 : vector<1x8x8xf32> to vector<2x8x8xf32>
    %237 = arith.mulf %235, %236 : vector<2x8x8xf32>
    %cst_71 = arith.constant 1.000000e+00 : f32
    %238 = vector.broadcast %cst_71 : f32 to vector<2x8x8xf32>
    %239 = arith.subf %238, %237 : vector<2x8x8xf32>
    %240 = vector.shape_cast %225 : vector<2x8xf32> to vector<2x1x8xf32>
    %241 = vector.shape_cast %230 : vector<8x8xf32> to vector<1x8x8xf32>
    %242 = vector.broadcast %240 : vector<2x1x8xf32> to vector<2x8x8xf32>
    %243 = vector.broadcast %241 : vector<1x8x8xf32> to vector<2x8x8xf32>
    %244 = arith.mulf %242, %243 : vector<2x8x8xf32>
    %cst_72 = arith.constant 1.000000e+00 : f32
    %245 = vector.broadcast %cst_72 : f32 to vector<2x8x8xf32>
    %246 = arith.subf %245, %244 : vector<2x8x8xf32>
    %247 = vector.extract_strided_slice %239 {offsets = [0, 0, 0], sizes = [2, 8, 4], strides = [1, 1, 1]} : vector<2x8x8xf32> to vector<2x8x4xf32>
    %248 = vector.extract_strided_slice %239 {offsets = [0, 0, 4], sizes = [2, 8, 4], strides = [1, 1, 1]} : vector<2x8x8xf32> to vector<2x8x4xf32>
    %249 = arith.mulf %247, %248 : vector<2x8x4xf32>
    %250 = vector.extract_strided_slice %249 {offsets = [0, 0, 0], sizes = [2, 8, 2], strides = [1, 1, 1]} : vector<2x8x4xf32> to vector<2x8x2xf32>
    %251 = vector.extract_strided_slice %249 {offsets = [0, 0, 2], sizes = [2, 8, 2], strides = [1, 1, 1]} : vector<2x8x4xf32> to vector<2x8x2xf32>
    %252 = arith.mulf %250, %251 : vector<2x8x2xf32>
    %253 = vector.extract_strided_slice %252 {offsets = [0, 0, 0], sizes = [2, 8, 1], strides = [1, 1, 1]} : vector<2x8x2xf32> to vector<2x8x1xf32>
    %254 = vector.extract_strided_slice %252 {offsets = [0, 0, 1], sizes = [2, 8, 1], strides = [1, 1, 1]} : vector<2x8x2xf32> to vector<2x8x1xf32>
    %255 = arith.mulf %253, %254 : vector<2x8x1xf32>
    %cst_73 = arith.constant dense<0.000000e+00> : vector<2x8xf32>
    %256 = vector.multi_reduction <add>, %255, %cst_73 [2] : vector<2x8x1xf32> to vector<2x8xf32>
    %257 = vector.extract_strided_slice %246 {offsets = [0, 0, 0], sizes = [2, 8, 4], strides = [1, 1, 1]} : vector<2x8x8xf32> to vector<2x8x4xf32>
    %258 = vector.extract_strided_slice %246 {offsets = [0, 0, 4], sizes = [2, 8, 4], strides = [1, 1, 1]} : vector<2x8x8xf32> to vector<2x8x4xf32>
    %259 = arith.mulf %257, %258 : vector<2x8x4xf32>
    %260 = vector.extract_strided_slice %259 {offsets = [0, 0, 0], sizes = [2, 8, 2], strides = [1, 1, 1]} : vector<2x8x4xf32> to vector<2x8x2xf32>
    %261 = vector.extract_strided_slice %259 {offsets = [0, 0, 2], sizes = [2, 8, 2], strides = [1, 1, 1]} : vector<2x8x4xf32> to vector<2x8x2xf32>
    %262 = arith.mulf %260, %261 : vector<2x8x2xf32>
    %263 = vector.extract_strided_slice %262 {offsets = [0, 0, 0], sizes = [2, 8, 1], strides = [1, 1, 1]} : vector<2x8x2xf32> to vector<2x8x1xf32>
    %264 = vector.extract_strided_slice %262 {offsets = [0, 0, 1], sizes = [2, 8, 1], strides = [1, 1, 1]} : vector<2x8x2xf32> to vector<2x8x1xf32>
    %265 = arith.mulf %263, %264 : vector<2x8x1xf32>
    %cst_74 = arith.constant dense<0.000000e+00> : vector<2x8xf32>
    %266 = vector.multi_reduction <add>, %265, %cst_74 [2] : vector<2x8x1xf32> to vector<2x8xf32>
    %267 = vector.extract_strided_slice %77 {offsets = [0, 8], sizes = [8, 8], strides = [1, 1]} : vector<8x16xf32> to vector<8x8xf32>
    %268 = vector.extract_strided_slice %78 {offsets = [0, 8], sizes = [8, 8], strides = [1, 1]} : vector<8x16xf32> to vector<8x8xf32>
    %cst_75 = arith.constant 1.000000e+00 : f32
    %269 = vector.broadcast %cst_75 : f32 to vector<2x8xf32>
    %270 = arith.subf %269, %228 : vector<2x8xf32>
    %271 = vector.shape_cast %270 : vector<2x8xf32> to vector<2x1x8xf32>
    %272 = vector.shape_cast %267 : vector<8x8xf32> to vector<1x8x8xf32>
    %273 = vector.broadcast %271 : vector<2x1x8xf32> to vector<2x8x8xf32>
    %274 = vector.broadcast %272 : vector<1x8x8xf32> to vector<2x8x8xf32>
    %275 = arith.mulf %273, %274 : vector<2x8x8xf32>
    %cst_76 = arith.constant 1.000000e+00 : f32
    %276 = vector.broadcast %cst_76 : f32 to vector<2x8x8xf32>
    %277 = arith.subf %276, %275 : vector<2x8x8xf32>
    %278 = vector.shape_cast %228 : vector<2x8xf32> to vector<2x1x8xf32>
    %279 = vector.shape_cast %268 : vector<8x8xf32> to vector<1x8x8xf32>
    %280 = vector.broadcast %278 : vector<2x1x8xf32> to vector<2x8x8xf32>
    %281 = vector.broadcast %279 : vector<1x8x8xf32> to vector<2x8x8xf32>
    %282 = arith.mulf %280, %281 : vector<2x8x8xf32>
    %cst_77 = arith.constant 1.000000e+00 : f32
    %283 = vector.broadcast %cst_77 : f32 to vector<2x8x8xf32>
    %284 = arith.subf %283, %282 : vector<2x8x8xf32>
    %285 = vector.extract_strided_slice %277 {offsets = [0, 0, 0], sizes = [2, 8, 4], strides = [1, 1, 1]} : vector<2x8x8xf32> to vector<2x8x4xf32>
    %286 = vector.extract_strided_slice %277 {offsets = [0, 0, 4], sizes = [2, 8, 4], strides = [1, 1, 1]} : vector<2x8x8xf32> to vector<2x8x4xf32>
    %287 = arith.mulf %285, %286 : vector<2x8x4xf32>
    %288 = vector.extract_strided_slice %287 {offsets = [0, 0, 0], sizes = [2, 8, 2], strides = [1, 1, 1]} : vector<2x8x4xf32> to vector<2x8x2xf32>
    %289 = vector.extract_strided_slice %287 {offsets = [0, 0, 2], sizes = [2, 8, 2], strides = [1, 1, 1]} : vector<2x8x4xf32> to vector<2x8x2xf32>
    %290 = arith.mulf %288, %289 : vector<2x8x2xf32>
    %291 = vector.extract_strided_slice %290 {offsets = [0, 0, 0], sizes = [2, 8, 1], strides = [1, 1, 1]} : vector<2x8x2xf32> to vector<2x8x1xf32>
    %292 = vector.extract_strided_slice %290 {offsets = [0, 0, 1], sizes = [2, 8, 1], strides = [1, 1, 1]} : vector<2x8x2xf32> to vector<2x8x1xf32>
    %293 = arith.mulf %291, %292 : vector<2x8x1xf32>
    %cst_78 = arith.constant dense<0.000000e+00> : vector<2x8xf32>
    %294 = vector.multi_reduction <add>, %293, %cst_78 [2] : vector<2x8x1xf32> to vector<2x8xf32>
    %295 = vector.extract_strided_slice %284 {offsets = [0, 0, 0], sizes = [2, 8, 4], strides = [1, 1, 1]} : vector<2x8x8xf32> to vector<2x8x4xf32>
    %296 = vector.extract_strided_slice %284 {offsets = [0, 0, 4], sizes = [2, 8, 4], strides = [1, 1, 1]} : vector<2x8x8xf32> to vector<2x8x4xf32>
    %297 = arith.mulf %295, %296 : vector<2x8x4xf32>
    %298 = vector.extract_strided_slice %297 {offsets = [0, 0, 0], sizes = [2, 8, 2], strides = [1, 1, 1]} : vector<2x8x4xf32> to vector<2x8x2xf32>
    %299 = vector.extract_strided_slice %297 {offsets = [0, 0, 2], sizes = [2, 8, 2], strides = [1, 1, 1]} : vector<2x8x4xf32> to vector<2x8x2xf32>
    %300 = arith.mulf %298, %299 : vector<2x8x2xf32>
    %301 = vector.extract_strided_slice %300 {offsets = [0, 0, 0], sizes = [2, 8, 1], strides = [1, 1, 1]} : vector<2x8x2xf32> to vector<2x8x1xf32>
    %302 = vector.extract_strided_slice %300 {offsets = [0, 0, 1], sizes = [2, 8, 1], strides = [1, 1, 1]} : vector<2x8x2xf32> to vector<2x8x1xf32>
    %303 = arith.mulf %301, %302 : vector<2x8x1xf32>
    %cst_79 = arith.constant dense<0.000000e+00> : vector<2x8xf32>
    %304 = vector.multi_reduction <add>, %303, %cst_79 [2] : vector<2x8x1xf32> to vector<2x8xf32>
    %305 = arith.mulf %256, %294 : vector<2x8xf32>
    %306 = arith.mulf %266, %304 : vector<2x8xf32>
    %cst_80 = arith.constant 1.000000e+00 : f32
    %307 = vector.broadcast %cst_80 : f32 to vector<2x8xf32>
    %308 = arith.subf %307, %306 : vector<2x8xf32>
    %309 = vector.extract_strided_slice %79 {offsets = [0, 0], sizes = [8, 4], strides = [1, 1]} : vector<32x4xf32> to vector<8x4xf32>
    %cst_81 = arith.constant dense<0.000000e+00> : vector<2x4xf32>
    %310 = tpu.matmul %305, %309, %cst_81 {dimension_numbers = #tpu.dot_dimension_numbers<[1], [0], [0], [1], [0, 0, 1, 1], [], []>} : vector<2x8xf32>, vector<8x4xf32>, vector<2x4xf32> -> vector<2x4xf32>
    %311 = vector.broadcast %80 : vector<1x4xf32> to vector<2x4xf32>
    %312 = arith.addf %311, %310 : vector<2x4xf32>
    %313 = vector.extract_strided_slice %79 {offsets = [8, 0], sizes = [8, 4], strides = [1, 1]} : vector<32x4xf32> to vector<8x4xf32>
    %cst_82 = arith.constant dense<0.000000e+00> : vector<2x4xf32>
    %314 = tpu.matmul %308, %313, %cst_82 {dimension_numbers = #tpu.dot_dimension_numbers<[1], [0], [0], [1], [0, 0, 1, 1], [], []>} : vector<2x8xf32>, vector<8x4xf32>, vector<2x4xf32> -> vector<2x4xf32>
    %315 = arith.addf %312, %314 : vector<2x4xf32>
    %316 = vector.extract_strided_slice %79 {offsets = [16, 0], sizes = [8, 4], strides = [1, 1]} : vector<32x4xf32> to vector<8x4xf32>
    %cst_83 = arith.constant dense<0.000000e+00> : vector<2x4xf32>
    %317 = tpu.matmul %225, %316, %cst_83 {dimension_numbers = #tpu.dot_dimension_numbers<[1], [0], [0], [1], [0, 0, 1, 1], [], []>} : vector<2x8xf32>, vector<8x4xf32>, vector<2x4xf32> -> vector<2x4xf32>
    %318 = arith.addf %315, %317 : vector<2x4xf32>
    %319 = vector.extract_strided_slice %79 {offsets = [24, 0], sizes = [8, 4], strides = [1, 1]} : vector<32x4xf32> to vector<8x4xf32>
    %cst_84 = arith.constant dense<0.000000e+00> : vector<2x4xf32>
    %320 = tpu.matmul %228, %319, %cst_84 {dimension_numbers = #tpu.dot_dimension_numbers<[1], [0], [0], [1], [0, 0, 1, 1], [], []>} : vector<2x8xf32>, vector<8x4xf32>, vector<2x4xf32> -> vector<2x4xf32>
    %321 = arith.addf %318, %320 : vector<2x4xf32>
    %c0_85 = arith.constant 0 : index
    %c0_86 = arith.constant 0 : index
    %322 = vector.load %arg13[%c0_85, %c0_86] : memref<2x4xf32, #tpu.memory_space<vmem>>, vector<2x4xf32>
    tpu.vector_store %arg13[%c0_85, %c0_86], %321 {strides = array<i32>} : memref<2x4xf32, #tpu.memory_space<vmem>>, vector<2x4xf32>,
    %cst_87 = arith.constant 1.000000e+00 : f32
    %323 = vector.broadcast %cst_87 : f32 to vector<2x16xf32>
    %324 = arith.subf %323, %72 : vector<2x16xf32>
    %325 = vector.shape_cast %324 : vector<2x16xf32> to vector<2x1x16xf32>
    %326 = vector.shape_cast %84 : vector<8x16xf32> to vector<1x8x16xf32>
    %327 = vector.broadcast %325 : vector<2x1x16xf32> to vector<2x8x16xf32>
    %328 = vector.broadcast %326 : vector<1x8x16xf32> to vector<2x8x16xf32>
    %329 = arith.mulf %327, %328 : vector<2x8x16xf32>
    %cst_88 = arith.constant 1.000000e+00 : f32
    %330 = vector.broadcast %cst_88 : f32 to vector<2x8x16xf32>
    %331 = arith.subf %330, %329 : vector<2x8x16xf32>
    %332 = vector.shape_cast %72 : vector<2x16xf32> to vector<2x1x16xf32>
    %333 = vector.shape_cast %88 : vector<8x16xf32> to vector<1x8x16xf32>
    %334 = vector.broadcast %332 : vector<2x1x16xf32> to vector<2x8x16xf32>
    %335 = vector.broadcast %333 : vector<1x8x16xf32> to vector<2x8x16xf32>
    %336 = arith.mulf %334, %335 : vector<2x8x16xf32>
    %cst_89 = arith.constant 1.000000e+00 : f32
    %337 = vector.broadcast %cst_89 : f32 to vector<2x8x16xf32>
    %338 = arith.subf %337, %336 : vector<2x8x16xf32>
    %cst_90 = arith.constant dense<0x7F800000> : vector<2x8xf32>
    %339 = vector.multi_reduction <minimumf>, %331, %cst_90 [2] : vector<2x8x16xf32> to vector<2x8xf32>
    %cst_91 = arith.constant dense<0x7F800000> : vector<2x8xf32>
    %340 = vector.multi_reduction <minimumf>, %338, %cst_91 [2] : vector<2x8x16xf32> to vector<2x8xf32>
    %cst_92 = arith.constant 1.000000e+00 : f32
    %341 = vector.broadcast %cst_92 : f32 to vector<2x8xf32>
    %342 = arith.subf %341, %340 : vector<2x8xf32>
    %343 = vector.extract_strided_slice %92 {offsets = [0, 0], sizes = [8, 8], strides = [1, 1]} : vector<8x16xf32> to vector<8x8xf32>
    %344 = vector.extract_strided_slice %96 {offsets = [0, 0], sizes = [8, 8], strides = [1, 1]} : vector<8x16xf32> to vector<8x8xf32>
    %cst_93 = arith.constant 1.000000e+00 : f32
    %345 = vector.broadcast %cst_93 : f32 to vector<2x8xf32>
    %346 = arith.subf %345, %339 : vector<2x8xf32>
    %347 = vector.shape_cast %346 : vector<2x8xf32> to vector<2x1x8xf32>
    %348 = vector.shape_cast %343 : vector<8x8xf32> to vector<1x8x8xf32>
    %349 = vector.broadcast %347 : vector<2x1x8xf32> to vector<2x8x8xf32>
    %350 = vector.broadcast %348 : vector<1x8x8xf32> to vector<2x8x8xf32>
    %351 = arith.mulf %349, %350 : vector<2x8x8xf32>
    %cst_94 = arith.constant 1.000000e+00 : f32
    %352 = vector.broadcast %cst_94 : f32 to vector<2x8x8xf32>
    %353 = arith.subf %352, %351 : vector<2x8x8xf32>
    %354 = vector.shape_cast %339 : vector<2x8xf32> to vector<2x1x8xf32>
    %355 = vector.shape_cast %344 : vector<8x8xf32> to vector<1x8x8xf32>
    %356 = vector.broadcast %354 : vector<2x1x8xf32> to vector<2x8x8xf32>
    %357 = vector.broadcast %355 : vector<1x8x8xf32> to vector<2x8x8xf32>
    %358 = arith.mulf %356, %357 : vector<2x8x8xf32>
    %cst_95 = arith.constant 1.000000e+00 : f32
    %359 = vector.broadcast %cst_95 : f32 to vector<2x8x8xf32>
    %360 = arith.subf %359, %358 : vector<2x8x8xf32>
    %cst_96 = arith.constant dense<0x7F800000> : vector<2x8xf32>
    %361 = vector.multi_reduction <minimumf>, %353, %cst_96 [2] : vector<2x8x8xf32> to vector<2x8xf32>
    %cst_97 = arith.constant dense<0x7F800000> : vector<2x8xf32>
    %362 = vector.multi_reduction <minimumf>, %360, %cst_97 [2] : vector<2x8x8xf32> to vector<2x8xf32>
    %363 = vector.extract_strided_slice %92 {offsets = [0, 8], sizes = [8, 8], strides = [1, 1]} : vector<8x16xf32> to vector<8x8xf32>
    %364 = vector.extract_strided_slice %96 {offsets = [0, 8], sizes = [8, 8], strides = [1, 1]} : vector<8x16xf32> to vector<8x8xf32>
    %cst_98 = arith.constant 1.000000e+00 : f32
    %365 = vector.broadcast %cst_98 : f32 to vector<2x8xf32>
    %366 = arith.subf %365, %342 : vector<2x8xf32>
    %367 = vector.shape_cast %366 : vector<2x8xf32> to vector<2x1x8xf32>
    %368 = vector.shape_cast %363 : vector<8x8xf32> to vector<1x8x8xf32>
    %369 = vector.broadcast %367 : vector<2x1x8xf32> to vector<2x8x8xf32>
    %370 = vector.broadcast %368 : vector<1x8x8xf32> to vector<2x8x8xf32>
    %371 = arith.mulf %369, %370 : vector<2x8x8xf32>
    %cst_99 = arith.constant 1.000000e+00 : f32
    %372 = vector.broadcast %cst_99 : f32 to vector<2x8x8xf32>
    %373 = arith.subf %372, %371 : vector<2x8x8xf32>
    %374 = vector.shape_cast %342 : vector<2x8xf32> to vector<2x1x8xf32>
    %375 = vector.shape_cast %364 : vector<8x8xf32> to vector<1x8x8xf32>
    %376 = vector.broadcast %374 : vector<2x1x8xf32> to vector<2x8x8xf32>
    %377 = vector.broadcast %375 : vector<1x8x8xf32> to vector<2x8x8xf32>
    %378 = arith.mulf %376, %377 : vector<2x8x8xf32>
    %cst_100 = arith.constant 1.000000e+00 : f32
    %379 = vector.broadcast %cst_100 : f32 to vector<2x8x8xf32>
    %380 = arith.subf %379, %378 : vector<2x8x8xf32>
    %cst_101 = arith.constant dense<0x7F800000> : vector<2x8xf32>
    %381 = vector.multi_reduction <minimumf>, %373, %cst_101 [2] : vector<2x8x8xf32> to vector<2x8xf32>
    %cst_102 = arith.constant dense<0x7F800000> : vector<2x8xf32>
    %382 = vector.multi_reduction <minimumf>, %380, %cst_102 [2] : vector<2x8x8xf32> to vector<2x8xf32>
    %383 = arith.minimumf %361, %381 : vector<2x8xf32>
    %384 = arith.minimumf %362, %382 : vector<2x8xf32>
    %cst_103 = arith.constant 1.000000e+00 : f32
    %385 = vector.broadcast %cst_103 : f32 to vector<2x8xf32>
    %386 = arith.subf %385, %384 : vector<2x8xf32>
    %387 = vector.extract_strided_slice %100 {offsets = [0, 0], sizes = [8, 8], strides = [1, 1]} : vector<8x16xf32> to vector<8x8xf32>
    %388 = vector.extract_strided_slice %104 {offsets = [0, 0], sizes = [8, 8], strides = [1, 1]} : vector<8x16xf32> to vector<8x8xf32>
    %cst_104 = arith.constant 1.000000e+00 : f32
    %389 = vector.broadcast %cst_104 : f32 to vector<2x8xf32>
    %390 = arith.subf %389, %383 : vector<2x8xf32>
    %391 = vector.shape_cast %390 : vector<2x8xf32> to vector<2x1x8xf32>
    %392 = vector.shape_cast %387 : vector<8x8xf32> to vector<1x8x8xf32>
    %393 = vector.broadcast %391 : vector<2x1x8xf32> to vector<2x8x8xf32>
    %394 = vector.broadcast %392 : vector<1x8x8xf32> to vector<2x8x8xf32>
    %395 = arith.mulf %393, %394 : vector<2x8x8xf32>
    %cst_105 = arith.constant 1.000000e+00 : f32
    %396 = vector.broadcast %cst_105 : f32 to vector<2x8x8xf32>
    %397 = arith.subf %396, %395 : vector<2x8x8xf32>
    %398 = vector.shape_cast %383 : vector<2x8xf32> to vector<2x1x8xf32>
    %399 = vector.shape_cast %388 : vector<8x8xf32> to vector<1x8x8xf32>
    %400 = vector.broadcast %398 : vector<2x1x8xf32> to vector<2x8x8xf32>
    %401 = vector.broadcast %399 : vector<1x8x8xf32> to vector<2x8x8xf32>
    %402 = arith.mulf %400, %401 : vector<2x8x8xf32>
    %cst_106 = arith.constant 1.000000e+00 : f32
    %403 = vector.broadcast %cst_106 : f32 to vector<2x8x8xf32>
    %404 = arith.subf %403, %402 : vector<2x8x8xf32>
    %cst_107 = arith.constant dense<0x7F800000> : vector<2x8xf32>
    %405 = vector.multi_reduction <minimumf>, %397, %cst_107 [2] : vector<2x8x8xf32> to vector<2x8xf32>
    %cst_108 = arith.constant dense<0x7F800000> : vector<2x8xf32>
    %406 = vector.multi_reduction <minimumf>, %404, %cst_108 [2] : vector<2x8x8xf32> to vector<2x8xf32>
    %407 = vector.extract_strided_slice %100 {offsets = [0, 8], sizes = [8, 8], strides = [1, 1]} : vector<8x16xf32> to vector<8x8xf32>
    %408 = vector.extract_strided_slice %104 {offsets = [0, 8], sizes = [8, 8], strides = [1, 1]} : vector<8x16xf32> to vector<8x8xf32>
    %cst_109 = arith.constant 1.000000e+00 : f32
    %409 = vector.broadcast %cst_109 : f32 to vector<2x8xf32>
    %410 = arith.subf %409, %386 : vector<2x8xf32>
    %411 = vector.shape_cast %410 : vector<2x8xf32> to vector<2x1x8xf32>
    %412 = vector.shape_cast %407 : vector<8x8xf32> to vector<1x8x8xf32>
    %413 = vector.broadcast %411 : vector<2x1x8xf32> to vector<2x8x8xf32>
    %414 = vector.broadcast %412 : vector<1x8x8xf32> to vector<2x8x8xf32>
    %415 = arith.mulf %413, %414 : vector<2x8x8xf32>
    %cst_110 = arith.constant 1.000000e+00 : f32
    %416 = vector.broadcast %cst_110 : f32 to vector<2x8x8xf32>
    %417 = arith.subf %416, %415 : vector<2x8x8xf32>
    %418 = vector.shape_cast %386 : vector<2x8xf32> to vector<2x1x8xf32>
    %419 = vector.shape_cast %408 : vector<8x8xf32> to vector<1x8x8xf32>
    %420 = vector.broadcast %418 : vector<2x1x8xf32> to vector<2x8x8xf32>
    %421 = vector.broadcast %419 : vector<1x8x8xf32> to vector<2x8x8xf32>
    %422 = arith.mulf %420, %421 : vector<2x8x8xf32>
    %cst_111 = arith.constant 1.000000e+00 : f32
    %423 = vector.broadcast %cst_111 : f32 to vector<2x8x8xf32>
    %424 = arith.subf %423, %422 : vector<2x8x8xf32>
    %cst_112 = arith.constant dense<0x7F800000> : vector<2x8xf32>
    %425 = vector.multi_reduction <minimumf>, %417, %cst_112 [2] : vector<2x8x8xf32> to vector<2x8xf32>
    %cst_113 = arith.constant dense<0x7F800000> : vector<2x8xf32>
    %426 = vector.multi_reduction <minimumf>, %424, %cst_113 [2] : vector<2x8x8xf32> to vector<2x8xf32>
    %427 = arith.minimumf %405, %425 : vector<2x8xf32>
    %428 = arith.minimumf %406, %426 : vector<2x8xf32>
    %cst_114 = arith.constant 1.000000e+00 : f32
    %429 = vector.broadcast %cst_114 : f32 to vector<2x8xf32>
    %430 = arith.subf %429, %428 : vector<2x8xf32>
    %431 = vector.extract_strided_slice %79 {offsets = [0, 0], sizes = [8, 4], strides = [1, 1]} : vector<32x4xf32> to vector<8x4xf32>
    %cst_115 = arith.constant dense<0.000000e+00> : vector<2x4xf32>
    %432 = tpu.matmul %427, %431, %cst_115 {dimension_numbers = #tpu.dot_dimension_numbers<[1], [0], [0], [1], [0, 0, 1, 1], [], []>} : vector<2x8xf32>, vector<8x4xf32>, vector<2x4xf32> -> vector<2x4xf32>
    %433 = vector.broadcast %80 : vector<1x4xf32> to vector<2x4xf32>
    %434 = arith.addf %433, %432 : vector<2x4xf32>
    %435 = vector.extract_strided_slice %79 {offsets = [8, 0], sizes = [8, 4], strides = [1, 1]} : vector<32x4xf32> to vector<8x4xf32>
    %cst_116 = arith.constant dense<0.000000e+00> : vector<2x4xf32>
    %436 = tpu.matmul %430, %435, %cst_116 {dimension_numbers = #tpu.dot_dimension_numbers<[1], [0], [0], [1], [0, 0, 1, 1], [], []>} : vector<2x8xf32>, vector<8x4xf32>, vector<2x4xf32> -> vector<2x4xf32>
    %437 = arith.addf %434, %436 : vector<2x4xf32>
    %438 = vector.extract_strided_slice %79 {offsets = [16, 0], sizes = [8, 4], strides = [1, 1]} : vector<32x4xf32> to vector<8x4xf32>
    %cst_117 = arith.constant dense<0.000000e+00> : vector<2x4xf32>
    %439 = tpu.matmul %383, %438, %cst_117 {dimension_numbers = #tpu.dot_dimension_numbers<[1], [0], [0], [1], [0, 0, 1, 1], [], []>} : vector<2x8xf32>, vector<8x4xf32>, vector<2x4xf32> -> vector<2x4xf32>
    %440 = arith.addf %437, %439 : vector<2x4xf32>
    %441 = vector.extract_strided_slice %79 {offsets = [24, 0], sizes = [8, 4], strides = [1, 1]} : vector<32x4xf32> to vector<8x4xf32>
    %cst_118 = arith.constant dense<0.000000e+00> : vector<2x4xf32>
    %442 = tpu.matmul %386, %441, %cst_118 {dimension_numbers = #tpu.dot_dimension_numbers<[1], [0], [0], [1], [0, 0, 1, 1], [], []>} : vector<2x8xf32>, vector<8x4xf32>, vector<2x4xf32> -> vector<2x4xf32>
    %443 = arith.addf %440, %442 : vector<2x4xf32>
    %c0_119 = arith.constant 0 : index
    %c0_120 = arith.constant 0 : index
    %444 = vector.load %arg14[%c0_119, %c0_120] : memref<2x4xf32, #tpu.memory_space<vmem>>, vector<2x4xf32>
    tpu.vector_store %arg14[%c0_119, %c0_120], %443 {strides = array<i32>} : memref<2x4xf32, #tpu.memory_space<vmem>>, vector<2x4xf32>,
    return
  }
}

</mosaic_0001>

<llo_original>
// kernel: protors_forward.1
$region0: #{protors_forward.1}
  #allocation0 [shape = 'u32[]', space=smem, size = 0x4, offset = 0x4, fixed_abs, tag = 'smem constant byte address 0x4 - core index']
  #allocation1 [shape = 'u32[144,128]{1,0:T(1,128)}', space=vmem, size = 0x12000, scoped, tag = 'internal scratch']
  %s0 = inlined_call_operand.vmem [shape: f32[2,4,256], index: 0, kind: input, shape index: {}]
  %s1 = inlined_call_operand.vmem [shape: f32[32,4], index: 1, kind: input, shape index: {}]
  %s2 = inlined_call_operand.vmem [shape: f32[32,1], index: 2, kind: input, shape index: {}]
  %s3 = inlined_call_operand.vmem [shape: f32[16,32], index: 3, kind: input, shape index: {}]
  %s4 = inlined_call_operand.vmem [shape: f32[1,16], index: 4, kind: input, shape index: {}]
  %s5 = inlined_call_operand.vmem [shape: f32[8,16], index: 5, kind: input, shape index: {}]
  %s6 = inlined_call_operand.vmem [shape: f32[8,16], index: 6, kind: input, shape index: {}]
  %s7 = inlined_call_operand.vmem [shape: f32[8,16], index: 7, kind: input, shape index: {}]
  %s8 = inlined_call_operand.vmem [shape: f32[8,16], index: 8, kind: input, shape index: {}]
  %s9 = inlined_call_operand.vmem [shape: f32[8,16], index: 9, kind: input, shape index: {}]
  %s10 = inlined_call_operand.vmem [shape: f32[8,16], index: 10, kind: input, shape index: {}]
  %s11 = inlined_call_operand.vmem [shape: f32[32,4], index: 11, kind: input, shape index: {}]
  %s12 = inlined_call_operand.vmem [shape: f32[1,4], index: 12, kind: input, shape index: {}]
  %s13 = inlined_call_operand.hbm [shape: f32[2,4], index: 13, kind: output, shape index: {0}]
  %s14 = inlined_call_operand.hbm [shape: f32[2,4], index: 14, kind: output, shape index: {1}]
  %15 = xla_tuple %s13, %s14
  %s16 = sld [smem:[#allocation0]]
  $region70: #{protors_forward.1} parent=0
    _
  %s18 = ssub.s32 1, %s16
  %s19 = scalar_select 0, %s18, %s16
  $region1: #{protors_forward.1} parent=0
    #allocation2 [shape = 'u8[1024]{0}', space=vmem, size = 0x400, scoped, tag = 'output window, operand 0, single buffered']
    #allocation3 [shape = 's32[1]{0}', space=sflag, size = 0x4, scoped, tag = 'scoped memory for protors_forward.1']
    #allocation4 [shape = 'u8[1024]{0}', space=vmem, size = 0x400, scoped, tag = 'output window, operand 1, single buffered']
    #allocation5 [shape = 's32[1]{0}', space=sflag, size = 0x4, scoped, tag = 'scoped memory for protors_forward.1']
    %20 = vsyncpa [#allocation3], 0
    %21 = vsyncpa [#allocation5], 0
    // Predicated region
    $region2: #{protors_forward.1} parent=1 // pred_check
      _
    $region3: #{protors_forward.1} parent=1 // pred_check_branch
      %23 = sbr.rel (0) target = $region5
    $region4: #{protors_forward.1} parent=1 // pred_region
      _
    $region5: #{protors_forward.1} parent=1 // pred_fallthru
      _
    // Predicated region
    $region6: #{protors_forward.1} parent=1 // pred_check
      _
    $region7: #{protors_forward.1} parent=1 // pred_check_branch
      %25 = sbr.rel (0) target = $region9
    $region8: #{protors_forward.1} parent=1 // pred_region
      _
    $region9: #{protors_forward.1} parent=1 // pred_fallthru
      _
    // Predicated region
    $region10: #{protors_forward.1} parent=1 // pred_check
      _
    $region11: #{protors_forward.1} parent=1 // pred_check_branch
      %27 = sbr.rel (0) target = $region13
    $region12: #{protors_forward.1} parent=1 // pred_region
      _
    $region13: #{protors_forward.1} parent=1 // pred_fallthru
      _
    // Predicated region
    $region14: #{protors_forward.1} parent=1 // pred_check
      _
    $region15: #{protors_forward.1} parent=1 // pred_check_branch
      %29 = sbr.rel (0) target = $region17
    $region16: #{protors_forward.1} parent=1 // pred_region
      _
    $region17: #{protors_forward.1} parent=1 // pred_fallthru
      _
    // Predicated region
    $region18: #{protors_forward.1} parent=1 // pred_check
      _
    $region19: #{protors_forward.1} parent=1 // pred_check_branch
      %31 = sbr.rel (0) target = $region21
    $region20: #{protors_forward.1} parent=1 // pred_region
      _
    $region21: #{protors_forward.1} parent=1 // pred_fallthru
      _
    // Predicated region
    $region22: #{protors_forward.1} parent=1 // pred_check
      _
    $region23: #{protors_forward.1} parent=1 // pred_check_branch
      %33 = sbr.rel (0) target = $region25
    $region24: #{protors_forward.1} parent=1 // pred_region
      _
    $region25: #{protors_forward.1} parent=1 // pred_fallthru
      _
    // Predicated region
    $region26: #{protors_forward.1} parent=1 // pred_check
      _
    $region27: #{protors_forward.1} parent=1 // pred_check_branch
      %35 = sbr.rel (0) target = $region29
    $region28: #{protors_forward.1} parent=1 // pred_region
      _
    $region29: #{protors_forward.1} parent=1 // pred_fallthru
      _
    // Predicated region
    $region30: #{protors_forward.1} parent=1 // pred_check
      _
    $region31: #{protors_forward.1} parent=1 // pred_check_branch
      %37 = sbr.rel (0) target = $region33
    $region32: #{protors_forward.1} parent=1 // pred_region
      _
    $region33: #{protors_forward.1} parent=1 // pred_fallthru
      _
    // Predicated region
    $region34: #{protors_forward.1} parent=1 // pred_check
      _
    $region35: #{protors_forward.1} parent=1 // pred_check_branch
      %39 = sbr.rel (0) target = $region37
    $region36: #{protors_forward.1} parent=1 // pred_region
      _
    $region37: #{protors_forward.1} parent=1 // pred_fallthru
      _
    // Predicated region
    $region38: #{protors_forward.1} parent=1 // pred_check
      _
    $region39: #{protors_forward.1} parent=1 // pred_check_branch
      %41 = sbr.rel (0) target = $region41
    $region40: #{protors_forward.1} parent=1 // pred_region
      _
    $region41: #{protors_forward.1} parent=1 // pred_fallthru
      _
    // Predicated region
    $region42: #{protors_forward.1} parent=1 // pred_check
      _
    $region43: #{protors_forward.1} parent=1 // pred_check_branch
      %43 = sbr.rel (0) target = $region45
    $region44: #{protors_forward.1} parent=1 // pred_region
      _
    $region45: #{protors_forward.1} parent=1 // pred_fallthru
      _
    // Predicated region
    $region46: #{protors_forward.1} parent=1 // pred_check
      _
    $region47: #{protors_forward.1} parent=1 // pred_check_branch
      %45 = sbr.rel (0) target = $region49
    $region48: #{protors_forward.1} parent=1 // pred_region
      _
    $region49: #{protors_forward.1} parent=1 // pred_fallthru
      _
    // Predicated region
    $region50: #{protors_forward.1} parent=1 // pred_check
      _
    $region51: #{protors_forward.1} parent=1 // pred_check_branch
      %47 = sbr.rel (0) target = $region53
    $region52: #{protors_forward.1} parent=1 // pred_region
      _
    $region53: #{protors_forward.1} parent=1 // pred_fallthru
      _
    %v48 = vld [vmem:[%s1] sm:$0xff]
    %v49 = vld [vmem:[%s1 + $0x8] sm:$0xff]
    %v50 = vld [vmem:[%s1 + $0x10] sm:$0xff]
    %v51 = vld [vmem:[%s1 + $0x18] sm:$0xff]
    %v52 = vld [vmem:[%s2] sm:$0xff]
    %v53 = vld [vmem:[%s2 + $0x8] sm:$0xff]
    %v54 = vld [vmem:[%s2 + $0x10] sm:$0xff]
    %v55 = vld [vmem:[%s2 + $0x18] sm:$0xff]
    %v56 = vld [vmem:[%s3] sm:$0xff]
    %v57 = vld [vmem:[%s3 + $0x8] sm:$0xff]
    %v58 = vmul.f32 %v56, %v56
    %v59 = vmul.f32 %v57, %v57
    %vm60 = vcmask 261120
    %v61 = vsel %vm60, %v58, 0.0
    %62 = vadd.xlane.f32.xlu0 %v61
    %v63 = vpop.xlane.xlu0 %62
    %v64 = vsel %vm60, %v59, 0.0
    %65 = vadd.xlane.f32.xlu0 %v64
    %v66 = vpop.xlane.xlu0 %65
    %v67 = vld [vmem:[%s0] sm:$0xff]
    %69 = vset.pattern.permute.xlu0 0
    %70 = vperm.xlu0 %69, %v52
    %v71 = vpop.permute.xlu0 %70
    %74 = vset.pattern.permute.xlu0 0
    %75 = vperm.xlu0 %74, %v53
    %v76 = vpop.permute.xlu0 %75
    %79 = vset.pattern.permute.xlu0 0
    %80 = vperm.xlu0 %79, %v54
    %v81 = vpop.permute.xlu0 %80
    %84 = vset.pattern.permute.xlu0 0
    %85 = vperm.xlu0 %84, %v55
    %v86 = vpop.permute.xlu0 %85
    %v89 = vcombine.high %v67, %v67
    %vm90 = vcmask 31744
    %v92 = vsel %vm90, %v48, 0
    %v95 = vsel %vm90, %v49, 0
    %v98 = vsel %vm90, %v50, 0
    %v101 = vsel %vm90, %v51, 0
    %vm103 = vcmask 1043456
    %v104 = vsel %vm103, %v67, 0
    %v106 = vsel %vm103, %v89, 0
    %108 = vmatprep.subr.mxu0 %v106
    %109 = vmatpush1.msra.mxu0 %v104
    %110 = vmatprep.subr.mxu0 0.0
    %111 = vmatpush1.msra.mxu0 0.0
    %112 = vmatprep.subr.mxu0 0.0
    %113 = vmatpush1.msra.mxu0 0.0
    %114 = vmatprep.subr.mxu0 0.0
    %115 = vmatpush1.msra.mxu0 0.0
    %116 = vmatprep.subr.mxu0 0.0
    %117 = vmatpush1.msra.mxu0 0.0
    %118 = vmatprep.subr.mxu0 0.0
    %119 = vmatpush1.msra.mxu0 0.0
    %120 = vmatprep.subr.mxu0 0.0
    %121 = vmatpush1.msra.mxu0 0.0
    %122 = vmatprep.subr.mxu0 0.0
    %123 = vmatpush1.msra.mxu0 0.0
    %124 = vmatprep.subr.mxu0 0.0
    %125 = vmatpush1.msra.mxu0 0.0
    %126 = vmatprep.subr.mxu0 0.0
    %127 = vmatpush1.msra.mxu0 0.0
    %128 = vmatprep.subr.mxu0 0.0
    %129 = vmatpush1.msra.mxu0 0.0
    %130 = vmatprep.subr.mxu0 0.0
    %131 = vmatpush1.msra.mxu0 0.0
    %132 = vmatprep.subr.mxu0 0.0
    %133 = vmatpush1.msra.mxu0 0.0
    %134 = vmatprep.subr.mxu0 0.0
    %135 = vmatpush1.msra.mxu0 0.0
    %136 = vmatprep.subr.mxu0 0.0
    %137 = vmatpush1.msra.mxu0 0.0
    %138 = vmatprep.subr.mxu0 0.0
    %139 = vmatpush1.msra.mxu0 0.0
    %140 = vmatprep.subr.mxu0 0.0
    %141 = vmatpush1.msra.mxu0 0.0
    %142 = vmatprep.subr.mxu0 0.0
    %143 = vmatpush1.msra.mxu0 0.0
    %144 = vmatprep.subr.mxu0 0.0
    %145 = vmatpush1.msra.mxu0 0.0
    %146 = vmatprep.subr.mxu0 0.0
    %147 = vmatpush1.msra.mxu0 0.0
    %148 = vmatprep.subr.mxu0 0.0
    %149 = vmatpush1.msra.mxu0 0.0
    %150 = vmatprep.subr.mxu0 0.0
    %151 = vmatpush1.msra.mxu0 0.0
    %152 = vmatprep.subr.mxu0 0.0
    %153 = vmatpush1.msra.mxu0 0.0
    %154 = vmatprep.subr.mxu0 0.0
    %155 = vmatpush1.msra.mxu0 0.0
    %156 = vmatprep.subr.mxu0 0.0
    %157 = vmatpush1.msra.mxu0 0.0
    %158 = vmatprep.subr.mxu0 0.0
    %159 = vmatpush1.msra.mxu0 0.0
    %160 = vmatprep.subr.mxu0 0.0
    %161 = vmatpush1.msra.mxu0 0.0
    %162 = vmatprep.subr.mxu0 0.0
    %163 = vmatpush1.msra.mxu0 0.0
    %164 = vmatprep.subr.mxu0 0.0
    %165 = vmatpush1.msra.mxu0 0.0
    %166 = vmatprep.subr.mxu0 0.0
    %167 = vmatpush1.msra.mxu0 0.0
    %168 = vmatprep.subr.mxu0 0.0
    %169 = vmatpush1.msra.mxu0 0.0
    %170 = vmatprep.subr.mxu0 0.0
    %171 = vmatpush1.msra.mxu0 0.0
    %172 = vmatprep.mubr.f32.mxu0 0.0
    %173 = vmatmul.mubr.f32.gmra.mrb[0].mxu0 %v92
    %v174 = vpop.f32.mrb[0].mxu0
    %v175 = vadd.f32 %v71, %v174
    %v176 = vpop.f32.mrb[0].mxu0
    %v177 = vadd.f32 %v71, %v176
    %178 = vmatprep.mubr.f32.mxu0 0.0
    %179 = vmatmul.mubr.f32.gmra.mrb[0].mxu0 %v95
    %v180 = vpop.f32.mrb[0].mxu0
    %v181 = vadd.f32 %v76, %v180
    %v182 = vpop.f32.mrb[0].mxu0
    %v183 = vadd.f32 %v76, %v182
    %184 = vmatprep.mubr.f32.mxu0 0.0
    %185 = vmatmul.mubr.f32.gmra.mrb[0].mxu0 %v98
    %v186 = vpop.f32.mrb[0].mxu0
    %v187 = vadd.f32 %v81, %v186
    %v188 = vpop.f32.mrb[0].mxu0
    %v189 = vadd.f32 %v81, %v188
    %190 = vmatprep.mubr.f32.mxu0 0.0
    %191 = vmatmul.mubr.f32.gmra.mrb[0].mxu0 %v101
    %v192 = vpop.f32.mrb[0].mxu0
    %v193 = vadd.f32 %v86, %v192
    %v194 = vpop.f32.mrb[0].mxu0
    %v195 = vadd.f32 %v86, %v194
    %196 = vdwg.mxu0
    %v197 = vmax.f32 %v175, 0.0
    %v198 = vmax.f32 %v177, 0.0
    %v199 = vmax.f32 %v181, 0.0
    %v200 = vmax.f32 %v183, 0.0
    %v201 = vmax.f32 %v187, 0.0
    %v202 = vmax.f32 %v189, 0.0
    %v203 = vmax.f32 %v193, 0.0
    %v204 = vmax.f32 %v195, 0.0
    %v206 = vsel %vm60, %v56, 0
    %v209 = vsel %vm60, %v57, 0
    %211 = vmatprep.subr.mxu0 %v198
    %212 = vmatpush1.msra.mxu0 %v197
    %213 = vmatprep.subr.mxu0 %v200
    %214 = vmatpush1.msra.mxu0 %v199
    %215 = vmatprep.subr.mxu0 %v202
    %216 = vmatpush1.msra.mxu0 %v201
    %217 = vmatprep.subr.mxu0 %v204
    %218 = vmatpush1.msra.mxu0 %v203
    %219 = vmatprep.subr.mxu0 0.0
    %220 = vmatpush1.msra.mxu0 0.0
    %221 = vmatprep.subr.mxu0 0.0
    %222 = vmatpush1.msra.mxu0 0.0
    %223 = vmatprep.subr.mxu0 0.0
    %224 = vmatpush1.msra.mxu0 0.0
    %225 = vmatprep.subr.mxu0 0.0
    %226 = vmatpush1.msra.mxu0 0.0
    %227 = vmatprep.subr.mxu0 0.0
    %228 = vmatpush1.msra.mxu0 0.0
    %229 = vmatprep.subr.mxu0 0.0
    %230 = vmatpush1.msra.mxu0 0.0
    %231 = vmatprep.subr.mxu0 0.0
    %232 = vmatpush1.msra.mxu0 0.0
    %233 = vmatprep.subr.mxu0 0.0
    %234 = vmatpush1.msra.mxu0 0.0
    %235 = vmatprep.subr.mxu0 0.0
    %236 = vmatpush1.msra.mxu0 0.0
    %237 = vmatprep.subr.mxu0 0.0
    %238 = vmatpush1.msra.mxu0 0.0
    %239 = vmatprep.subr.mxu0 0.0
    %240 = vmatpush1.msra.mxu0 0.0
    %241 = vmatprep.subr.mxu0 0.0
    %242 = vmatpush1.msra.mxu0 0.0
    %243 = vmatprep.subr.mxu0 0.0
    %244 = vmatpush1.msra.mxu0 0.0
    %245 = vmatprep.subr.mxu0 0.0
    %246 = vmatpush1.msra.mxu0 0.0
    %247 = vmatprep.subr.mxu0 0.0
    %248 = vmatpush1.msra.mxu0 0.0
    %249 = vmatprep.subr.mxu0 0.0
    %250 = vmatpush1.msra.mxu0 0.0
    %251 = vmatprep.subr.mxu0 0.0
    %252 = vmatpush1.msra.mxu0 0.0
    %253 = vmatprep.subr.mxu0 0.0
    %254 = vmatpush1.msra.mxu0 0.0
    %255 = vmatprep.subr.mxu0 0.0
    %256 = vmatpush1.msra.mxu0 0.0
    %257 = vmatprep.subr.mxu0 0.0
    %258 = vmatpush1.msra.mxu0 0.0
    %259 = vmatprep.subr.mxu0 0.0
    %260 = vmatpush1.msra.mxu0 0.0
    %261 = vmatprep.subr.mxu0 0.0
    %262 = vmatpush1.msra.mxu0 0.0
    %263 = vmatprep.subr.mxu0 0.0
    %264 = vmatpush1.msra.mxu0 0.0
    %265 = vmatprep.subr.mxu0 0.0
    %266 = vmatpush1.msra.mxu0 0.0
    %267 = vmatprep.subr.mxu0 0.0
    %268 = vmatpush1.msra.mxu0 0.0
    %269 = vmatprep.subr.mxu0 0.0
    %270 = vmatpush1.msra.mxu0 0.0
    %271 = vmatprep.subr.mxu0 0.0
    %272 = vmatpush1.msra.mxu0 0.0
    %273 = vmatprep.subr.mxu0 0.0
    %274 = vmatpush1.msra.mxu0 0.0
    %275 = vmatprep.mubr.f32.mxu0 0.0
    %276 = vmatmul.mubr.f32.gmra.mrb[0].mxu0 %v206
    %v277 = vpop.f32.mrb[0].mxu0
    %v278 = vadd.f32 0.0, %v277
    %v279 = vpop.f32.mrb[0].mxu0
    %v280 = vadd.f32 0.0, %v279
    %281 = vmatprep.mubr.f32.mxu0 0.0
    %282 = vmatmul.mubr.f32.gmra.mrb[0].mxu0 %v209
    %v283 = vpop.f32.mrb[0].mxu0
    %v284 = vadd.f32 0.0, %v283
    %v285 = vpop.f32.mrb[0].mxu0
    %v286 = vadd.f32 0.0, %v285
    %287 = vdwg.mxu0
    %v288 = vmul.f32 %v197, %v197
    %v289 = vmul.f32 %v198, %v198
    %v290 = vmul.f32 %v199, %v199
    %v291 = vmul.f32 %v200, %v200
    %v292 = vmul.f32 %v201, %v201
    %v293 = vmul.f32 %v202, %v202
    %v294 = vmul.f32 %v203, %v203
    %v295 = vmul.f32 %v204, %v204
    %v296 = vadd.f32 %v288, %v290
    %v297 = vadd.f32 %v296, %v292
    %v298 = vadd.f32 %v297, %v294
    %v299 = vrot.slane %v298, 4
    %v300 = vadd.f32 %v298, %v299
    %v301 = vrot.slane %v300, 2
    %v302 = vadd.f32 %v300, %v301
    %v303 = vrot.slane %v302, 1
    %v304 = vadd.f32 %v302, %v303
    %v305 = vadd.f32 %v289, %v291
    %v306 = vadd.f32 %v305, %v293
    %v307 = vadd.f32 %v306, %v295
    %v308 = vrot.slane %v307, 4
    %v309 = vadd.f32 %v307, %v308
    %v310 = vrot.slane %v309, 2
    %v311 = vadd.f32 %v309, %v310
    %v312 = vrot.slane %v311, 1
    %v313 = vadd.f32 %v311, %v312
    %v314 = vmul.f32 %v278, 2.0
    %v315 = vmul.f32 %v280, 2.0
    %v316 = vmul.f32 %v284, 2.0
    %v317 = vmul.f32 %v286, 2.0
    %v318 = vsub.f32 %v63, %v314
    %v319 = vsub.f32 %v63, %v315
    %v320 = vsub.f32 %v66, %v316
    %v321 = vsub.f32 %v66, %v317
    %v322 = vadd.f32 %v318, %v304
    %v323 = vadd.f32 %v319, %v313
    %v324 = vadd.f32 %v320, %v304
    %v325 = vadd.f32 %v321, %v313
    %v326 = vmax.f32 %v322, 0.0
    %v327 = vmax.f32 %v323, 0.0
    %v328 = vmax.f32 %v324, 0.0
    %v329 = vmax.f32 %v325, 0.0
    %v330 = vmin.f32 %v326, %v327
    %331 = vmin.xlane.f32.xlu0 %v330
    %v332 = vpop.xlane.xlu0 %331
    %v333 = vmin.f32 %v328, %v329
    %334 = vmin.xlane.f32.xlu0 %v333
    %v335 = vpop.xlane.xlu0 %334
    %v336 = vadd.f32 %v332, 1.0
    %v337 = vadd.f32 %v335, 1.0
    %v338 = vadd.f32 %v332, 0.0001
    %v339 = vadd.f32 %v335, 0.0001
    %v340 = vrcp.pop %v338
    %v341 = vmul.f32 %v336, %v340
    %v342 = vrcp.pop %v339
    %v343 = vmul.f32 %v337, %v342
    %v344 = vlog2.pop %v341
    %v345 = vmul.f32 %v344, 0.6931472
    %v346 = vlog2.pop %v343
    %v347 = vmul.f32 %v346, 0.6931472
    %s348 = scalar_lea.vmem %s0, 8
    %v349 = vld [vmem:[%s348] sm:$0xff]
    %v351 = vcombine.high %v349, %v349
    %v352 = vsel %vm103, %v349, 0
    %v354 = vsel %vm103, %v351, 0
    %356 = vmatprep.subr.mxu0 %v354
    %357 = vmatpush1.msra.mxu0 %v352
    %358 = vmatprep.subr.mxu0 0.0
    %359 = vmatpush1.msra.mxu0 0.0
    %360 = vmatprep.subr.mxu0 0.0
    %361 = vmatpush1.msra.mxu0 0.0
    %362 = vmatprep.subr.mxu0 0.0
    %363 = vmatpush1.msra.mxu0 0.0
    %364 = vmatprep.subr.mxu0 0.0
    %365 = vmatpush1.msra.mxu0 0.0
    %366 = vmatprep.subr.mxu0 0.0
    %367 = vmatpush1.msra.mxu0 0.0
    %368 = vmatprep.subr.mxu0 0.0
    %369 = vmatpush1.msra.mxu0 0.0
    %370 = vmatprep.subr.mxu0 0.0
    %371 = vmatpush1.msra.mxu0 0.0
    %372 = vmatprep.subr.mxu0 0.0
    %373 = vmatpush1.msra.mxu0 0.0
    %374 = vmatprep.subr.mxu0 0.0
    %375 = vmatpush1.msra.mxu0 0.0
    %376 = vmatprep.subr.mxu0 0.0
    %377 = vmatpush1.msra.mxu0 0.0
    %378 = vmatprep.subr.mxu0 0.0
    %379 = vmatpush1.msra.mxu0 0.0
    %380 = vmatprep.subr.mxu0 0.0
    %381 = vmatpush1.msra.mxu0 0.0
    %382 = vmatprep.subr.mxu0 0.0
    %383 = vmatpush1.msra.mxu0 0.0
    %384 = vmatprep.subr.mxu0 0.0
    %385 = vmatpush1.msra.mxu0 0.0
    %386 = vmatprep.subr.mxu0 0.0
    %387 = vmatpush1.msra.mxu0 0.0
    %388 = vmatprep.subr.mxu0 0.0
    %389 = vmatpush1.msra.mxu0 0.0
    %390 = vmatprep.subr.mxu0 0.0
    %391 = vmatpush1.msra.mxu0 0.0
    %392 = vmatprep.subr.mxu0 0.0
    %393 = vmatpush1.msra.mxu0 0.0
    %394 = vmatprep.subr.mxu0 0.0
    %395 = vmatpush1.msra.mxu0 0.0
    %396 = vmatprep.subr.mxu0 0.0
    %397 = vmatpush1.msra.mxu0 0.0
    %398 = vmatprep.subr.mxu0 0.0
    %399 = vmatpush1.msra.mxu0 0.0
    %400 = vmatprep.subr.mxu0 0.0
    %401 = vmatpush1.msra.mxu0 0.0
    %402 = vmatprep.subr.mxu0 0.0
    %403 = vmatpush1.msra.mxu0 0.0
    %404 = vmatprep.subr.mxu0 0.0
    %405 = vmatpush1.msra.mxu0 0.0
    %406 = vmatprep.subr.mxu0 0.0
    %407 = vmatpush1.msra.mxu0 0.0
    %408 = vmatprep.subr.mxu0 0.0
    %409 = vmatpush1.msra.mxu0 0.0
    %410 = vmatprep.subr.mxu0 0.0
    %411 = vmatpush1.msra.mxu0 0.0
    %412 = vmatprep.subr.mxu0 0.0
    %413 = vmatpush1.msra.mxu0 0.0
    %414 = vmatprep.subr.mxu0 0.0
    %415 = vmatpush1.msra.mxu0 0.0
    %416 = vmatprep.subr.mxu0 0.0
    %417 = vmatpush1.msra.mxu0 0.0
    %418 = vmatprep.subr.mxu0 0.0
    %419 = vmatpush1.msra.mxu0 0.0
    %420 = vmatprep.mubr.f32.mxu0 0.0
    %421 = vmatmul.mubr.f32.gmra.mrb[0].mxu0 %v92
    %v422 = vpop.f32.mrb[0].mxu0
    %v423 = vadd.f32 %v71, %v422
    %v424 = vpop.f32.mrb[0].mxu0
    %v425 = vadd.f32 %v71, %v424
    %426 = vmatprep.mubr.f32.mxu0 0.0
    %427 = vmatmul.mubr.f32.gmra.mrb[0].mxu0 %v95
    %v428 = vpop.f32.mrb[0].mxu0
    %v429 = vadd.f32 %v76, %v428
    %v430 = vpop.f32.mrb[0].mxu0
    %v431 = vadd.f32 %v76, %v430
    %432 = vmatprep.mubr.f32.mxu0 0.0
    %433 = vmatmul.mubr.f32.gmra.mrb[0].mxu0 %v98
    %v434 = vpop.f32.mrb[0].mxu0
    %v435 = vadd.f32 %v81, %v434
    %v436 = vpop.f32.mrb[0].mxu0
    %v437 = vadd.f32 %v81, %v436
    %438 = vmatprep.mubr.f32.mxu0 0.0
    %439 = vmatmul.mubr.f32.gmra.mrb[0].mxu0 %v101
    %v440 = vpop.f32.mrb[0].mxu0
    %v441 = vadd.f32 %v86, %v440
    %v442 = vpop.f32.mrb[0].mxu0
    %v443 = vadd.f32 %v86, %v442
    %444 = vdwg.mxu0
    %v445 = vmax.f32 %v423, 0.0
    %v446 = vmax.f32 %v425, 0.0
    %v447 = vmax.f32 %v429, 0.0
    %v448 = vmax.f32 %v431, 0.0
    %v449 = vmax.f32 %v435, 0.0
    %v450 = vmax.f32 %v437, 0.0
    %v451 = vmax.f32 %v441, 0.0
    %v452 = vmax.f32 %v443, 0.0
    %453 = vmatprep.subr.mxu0 %v446
    %454 = vmatpush1.msra.mxu0 %v445
    %455 = vmatprep.subr.mxu0 %v448
    %456 = vmatpush1.msra.mxu0 %v447
    %457 = vmatprep.subr.mxu0 %v450
    %458 = vmatpush1.msra.mxu0 %v449
    %459 = vmatprep.subr.mxu0 %v452
    %460 = vmatpush1.msra.mxu0 %v451
    %461 = vmatprep.subr.mxu0 0.0
    %462 = vmatpush1.msra.mxu0 0.0
    %463 = vmatprep.subr.mxu0 0.0
    %464 = vmatpush1.msra.mxu0 0.0
    %465 = vmatprep.subr.mxu0 0.0
    %466 = vmatpush1.msra.mxu0 0.0
    %467 = vmatprep.subr.mxu0 0.0
    %468 = vmatpush1.msra.mxu0 0.0
    %469 = vmatprep.subr.mxu0 0.0
    %470 = vmatpush1.msra.mxu0 0.0
    %471 = vmatprep.subr.mxu0 0.0
    %472 = vmatpush1.msra.mxu0 0.0
    %473 = vmatprep.subr.mxu0 0.0
    %474 = vmatpush1.msra.mxu0 0.0
    %475 = vmatprep.subr.mxu0 0.0
    %476 = vmatpush1.msra.mxu0 0.0
    %477 = vmatprep.subr.mxu0 0.0
    %478 = vmatpush1.msra.mxu0 0.0
    %479 = vmatprep.subr.mxu0 0.0
    %480 = vmatpush1.msra.mxu0 0.0
    %481 = vmatprep.subr.mxu0 0.0
    %482 = vmatpush1.msra.mxu0 0.0
    %483 = vmatprep.subr.mxu0 0.0
    %484 = vmatpush1.msra.mxu0 0.0
    %485 = vmatprep.subr.mxu0 0.0
    %486 = vmatpush1.msra.mxu0 0.0
    %487 = vmatprep.subr.mxu0 0.0
    %488 = vmatpush1.msra.mxu0 0.0
    %489 = vmatprep.subr.mxu0 0.0
    %490 = vmatpush1.msra.mxu0 0.0
    %491 = vmatprep.subr.mxu0 0.0
    %492 = vmatpush1.msra.mxu0 0.0
    %493 = vmatprep.subr.mxu0 0.0
    %494 = vmatpush1.msra.mxu0 0.0
    %495 = vmatprep.subr.mxu0 0.0
    %496 = vmatpush1.msra.mxu0 0.0
    %497 = vmatprep.subr.mxu0 0.0
    %498 = vmatpush1.msra.mxu0 0.0
    %499 = vmatprep.subr.mxu0 0.0
    %500 = vmatpush1.msra.mxu0 0.0
    %501 = vmatprep.subr.mxu0 0.0
    %502 = vmatpush1.msra.mxu0 0.0
    %503 = vmatprep.subr.mxu0 0.0
    %504 = vmatpush1.msra.mxu0 0.0
    %505 = vmatprep.subr.mxu0 0.0
    %506 = vmatpush1.msra.mxu0 0.0
    %507 = vmatprep.subr.mxu0 0.0
    %508 = vmatpush1.msra.mxu0 0.0
    %509 = vmatprep.subr.mxu0 0.0
    %510 = vmatpush1.msra.mxu0 0.0
    %511 = vmatprep.subr.mxu0 0.0
    %512 = vmatpush1.msra.mxu0 0.0
    %513 = vmatprep.subr.mxu0 0.0
    %514 = vmatpush1.msra.mxu0 0.0
    %515 = vmatprep.subr.mxu0 0.0
    %516 = vmatpush1.msra.mxu0 0.0
    %517 = vmatprep.mubr.f32.mxu0 0.0
    %518 = vmatmul.mubr.f32.gmra.mrb[0].mxu0 %v206
    %v519 = vpop.f32.mrb[0].mxu0
    %v520 = vadd.f32 0.0, %v519
    %v521 = vpop.f32.mrb[0].mxu0
    %v522 = vadd.f32 0.0, %v521
    %523 = vmatprep.mubr.f32.mxu0 0.0
    %524 = vmatmul.mubr.f32.gmra.mrb[0].mxu0 %v209
    %v525 = vpop.f32.mrb[0].mxu0
    %v526 = vadd.f32 0.0, %v525
    %v527 = vpop.f32.mrb[0].mxu0
    %v528 = vadd.f32 0.0, %v527
    %529 = vdwg.mxu0
    %v530 = vmul.f32 %v445, %v445
    %v531 = vmul.f32 %v446, %v446
    %v532 = vmul.f32 %v447, %v447
    %v533 = vmul.f32 %v448, %v448
    %v534 = vmul.f32 %v449, %v449
    %v535 = vmul.f32 %v450, %v450
    %v536 = vmul.f32 %v451, %v451
    %v537 = vmul.f32 %v452, %v452
    %v538 = vadd.f32 %v530, %v532
    %v539 = vadd.f32 %v538, %v534
    %v540 = vadd.f32 %v539, %v536
    %v541 = vrot.slane %v540, 4
    %v542 = vadd.f32 %v540, %v541
    %v543 = vrot.slane %v542, 2
    %v544 = vadd.f32 %v542, %v543
    %v545 = vrot.slane %v544, 1
    %v546 = vadd.f32 %v544, %v545
    %v547 = vadd.f32 %v531, %v533
    %v548 = vadd.f32 %v547, %v535
    %v549 = vadd.f32 %v548, %v537
    %v550 = vrot.slane %v549, 4
    %v551 = vadd.f32 %v549, %v550
    %v552 = vrot.slane %v551, 2
    %v553 = vadd.f32 %v551, %v552
    %v554 = vrot.slane %v553, 1
    %v555 = vadd.f32 %v553, %v554
    %v556 = vmul.f32 %v520, 2.0
    %v557 = vmul.f32 %v522, 2.0
    %v558 = vmul.f32 %v526, 2.0
    %v559 = vmul.f32 %v528, 2.0
    %v560 = vsub.f32 %v63, %v556
    %v561 = vsub.f32 %v63, %v557
    %v562 = vsub.f32 %v66, %v558
    %v563 = vsub.f32 %v66, %v559
    %v564 = vadd.f32 %v560, %v546
    %v565 = vadd.f32 %v561, %v555
    %v566 = vadd.f32 %v562, %v546
    %v567 = vadd.f32 %v563, %v555
    %v568 = vmax.f32 %v564, 0.0
    %v569 = vmax.f32 %v565, 0.0
    %v570 = vmax.f32 %v566, 0.0
    %v571 = vmax.f32 %v567, 0.0
    %v572 = vmin.f32 %v568, %v569
    %573 = vmin.xlane.f32.xlu0 %v572
    %v574 = vpop.xlane.xlu0 %573
    %v575 = vmin.f32 %v570, %v571
    %576 = vmin.xlane.f32.xlu0 %v575
    %v577 = vpop.xlane.xlu0 %576
    %v578 = vadd.f32 %v574, 1.0
    %v579 = vadd.f32 %v577, 1.0
    %v580 = vadd.f32 %v574, 0.0001
    %v581 = vadd.f32 %v577, 0.0001
    %v582 = vrcp.pop %v580
    %v583 = vmul.f32 %v578, %v582
    %v584 = vrcp.pop %v581
    %v585 = vmul.f32 %v579, %v584
    %v586 = vlog2.pop %v583
    %v587 = vmul.f32 %v586, 0.6931472
    %v588 = vlog2.pop %v585
    %v589 = vmul.f32 %v588, 0.6931472
    %v592 = vlaneseq
    %v593 = vand.u32 %v592, 127
    %v594 = vlaneseq
    %v595 = vshrl.u32 %v594, 7
    %v596 = vsub.s32 %v593, %v595
    %v597 = vrot.slane %v345, %v596
    %v598 = vadd.s32 %v593, 4294967288
    %v599 = vlaneseq
    %v600 = vshrl.u32 %v599, 7
    %v601 = vsub.s32 %v598, %v600
    %v602 = vrot.slane %v347, %v601
    %vm603 = vcmask 130112
    %v604 = vsel %vm603, %v602, %v597
    %v608 = vlaneseq
    %v609 = vshrl.u32 %v608, 7
    %v610 = vsub.s32 %v593, %v609
    %v611 = vrot.slane %v587, %v610
    %v612 = vlaneseq
    %v613 = vshrl.u32 %v612, 7
    %v614 = vsub.s32 %v598, %v613
    %v615 = vrot.slane %v589, %v614
    %v616 = vsel %vm603, %v615, %v611
    %vm618 = vcmask 1040384
    %v619 = vsel %vm618, %v604, %v616
    %v620 = vld [vmem:[%s4] sm:$0x1]
    %v622 = vlaneseq
    %v623 = vshrl.u32 %v622, 7
    %v624 = vsub.s32 0, %v623
    %v625 = vrot.slane %v620, %v624
    %v627 = vsub.f32 %v619, %v625
    %v628 = vxor.u32 %v627, 2147483648
    %v629 = vmul.f32 %v628, 1.442695
    %v630 = vpow.pop %v629
    %v631 = vadd.f32 %v630, 1.0
    %v632 = vrcp.pop %v631
    %v633 = vmul.f32 1.0, %v632
    %vm634 = vcmp.gt.f32.partialorder %v619, %v625
    %v635 = vsel %vm634, 1, 0
    %v636 = vcvt.s32.f32 %v635
    %v637 = vld [vmem:[%s5] sm:$0xff]
    %v638 = vld [vmem:[%s6] sm:$0xff]
    %v639 = vld [vmem:[%s7] sm:$0xff]
    %v640 = vld [vmem:[%s8] sm:$0xff]
    %v641 = vld [vmem:[%s9] sm:$0xff]
    %v642 = vld [vmem:[%s10] sm:$0xff]
    %v643 = vld [vmem:[%s11] sm:$0xff]
    %v644 = vld [vmem:[%s11 + $0x8] sm:$0xff]
    %v645 = vld [vmem:[%s11 + $0x10] sm:$0xff]
    %v646 = vld [vmem:[%s11 + $0x18] sm:$0xff]
    %v647 = vld [vmem:[%s12] sm:$0x1]
    %vm648 = vcmp.gt.f32.partialorder %v637, 0.5
    %v649 = vsel %vm648, 1, 0
    %v650 = vcvt.s32.f32 %v649
    %vm651 = vcmp.gt.f32.partialorder %v638, 0.5
    %v652 = vsel %vm651, 1, 0
    %v653 = vcvt.s32.f32 %v652
    %vm654 = vcmp.gt.f32.partialorder %v639, 0.5
    %v655 = vsel %vm654, 1, 0
    %v656 = vcvt.s32.f32 %v655
    %vm657 = vcmp.gt.f32.partialorder %v640, 0.5
    %v658 = vsel %vm657, 1, 0
    %v659 = vcvt.s32.f32 %v658
    %vm660 = vcmp.gt.f32.partialorder %v641, 0.5
    %v661 = vsel %vm660, 1, 0
    %v662 = vcvt.s32.f32 %v661
    %vm663 = vcmp.gt.f32.partialorder %v642, 0.5
    %v664 = vsel %vm663, 1, 0
    %v665 = vcvt.s32.f32 %v664
    %v666 = vsub.f32 1.0, %v633
    %v669 = vunpack.c.l.s4 1966171168
    %v670 = vunpack.c.0.s8 %v669
    %v671 = vlaneseq
    %v672 = vshrl.u32 %v671, 7
    %v673 = vsub.s32 %v670, %v672
    %v674 = vrot.slane %v666, %v673
    %v675 = vcombine.high %v674, %v674
    %v677 = vunpack.c.l.s4 1966171168
    %v678 = vunpack.c.0.s8 %v677
    %v679 = vlaneseq
    %v680 = vshrl.u32 %v679, 7
    %v681 = vsub.s32 %v678, %v680
    %v682 = vrot.slane %v674, %v681
    %v684 = vunpack.c.l.s4 1966171168
    %v685 = vunpack.c.0.s8 %v684
    %v686 = vlaneseq
    %v687 = vshrl.u32 %v686, 7
    %v688 = vsub.s32 %v685, %v687
    %v689 = vrot.slane %v675, %v688
    %v690 = vlaneseq
    %v691 = vshrl.u32 %v690, 7
    %v692 = vsub.s32 0, %v691
    %v693 = vrot.slane %v682, %v692
    %v694 = vlaneseq
    %v695 = vshrl.u32 %v694, 7
    %v696 = vsub.s32 0, %v695
    %v697 = vrot.slane %v689, %v696
    %v700 = vmul.f32 %v693, %v637
    %v701 = vmul.f32 %v697, %v637
    %v702 = vsub.f32 1.0, %v700
    %v703 = vsub.f32 1.0, %v701
    %v706 = vunpack.c.l.s4 1966171168
    %v707 = vunpack.c.0.s8 %v706
    %v708 = vlaneseq
    %v709 = vshrl.u32 %v708, 7
    %v710 = vsub.s32 %v707, %v709
    %v711 = vrot.slane %v633, %v710
    %v712 = vcombine.high %v711, %v711
    %v714 = vunpack.c.l.s4 1966171168
    %v715 = vunpack.c.0.s8 %v714
    %v716 = vlaneseq
    %v717 = vshrl.u32 %v716, 7
    %v718 = vsub.s32 %v715, %v717
    %v719 = vrot.slane %v711, %v718
    %v721 = vunpack.c.l.s4 1966171168
    %v722 = vunpack.c.0.s8 %v721
    %v723 = vlaneseq
    %v724 = vshrl.u32 %v723, 7
    %v725 = vsub.s32 %v722, %v724
    %v726 = vrot.slane %v712, %v725
    %v727 = vlaneseq
    %v728 = vshrl.u32 %v727, 7
    %v729 = vsub.s32 0, %v728
    %v730 = vrot.slane %v719, %v729
    %v731 = vlaneseq
    %v732 = vshrl.u32 %v731, 7
    %v733 = vsub.s32 0, %v732
    %v734 = vrot.slane %v726, %v733
    %v737 = vmul.f32 %v730, %v638
    %v738 = vmul.f32 %v734, %v638
    %v739 = vsub.f32 1.0, %v737
    %v740 = vsub.f32 1.0, %v738
    %743 = vrot.lane.b32.xlu0 %v702, 120
    %v744 = vpop.permute.xlu0 %743
    %745 = vrot.lane.b32.xlu0 %v703, 120
    %v746 = vpop.permute.xlu0 %745
    %v749 = vmul.f32 %v702, %v744
    %v750 = vmul.f32 %v703, %v746
    %753 = vrot.lane.b32.xlu0 %v749, 124
    %v754 = vpop.permute.xlu0 %753
    %755 = vrot.lane.b32.xlu0 %v750, 124
    %v756 = vpop.permute.xlu0 %755
    %v759 = vmul.f32 %v749, %v754
    %v760 = vmul.f32 %v750, %v756
    %763 = vrot.lane.b32.xlu0 %v759, 126
    %v764 = vpop.permute.xlu0 %763
    %765 = vrot.lane.b32.xlu0 %v760, 126
    %v766 = vpop.permute.xlu0 %765
    %v769 = vmul.f32 %v759, %v764
    %v770 = vmul.f32 %v760, %v766
    %773 = vrot.lane.b32.xlu0 %v769, 127
    %v774 = vpop.permute.xlu0 %773
    %775 = vrot.lane.b32.xlu0 %v770, 127
    %v776 = vpop.permute.xlu0 %775
    %v779 = vmul.f32 %v769, %v774
    %v780 = vmul.f32 %v770, %v776
    %v781 = vadd.f32 %v779, 0.0
    %v782 = vadd.f32 %v780, 0.0
    %785 = vrot.lane.b32.xlu0 %v739, 120
    %v786 = vpop.permute.xlu0 %785
    %787 = vrot.lane.b32.xlu0 %v740, 120
    %v788 = vpop.permute.xlu0 %787
    %v791 = vmul.f32 %v739, %v786
    %v792 = vmul.f32 %v740, %v788
    %795 = vrot.lane.b32.xlu0 %v791, 124
    %v796 = vpop.permute.xlu0 %795
    %797 = vrot.lane.b32.xlu0 %v792, 124
    %v798 = vpop.permute.xlu0 %797
    %v801 = vmul.f32 %v791, %v796
    %v802 = vmul.f32 %v792, %v798
    %805 = vrot.lane.b32.xlu0 %v801, 126
    %v806 = vpop.permute.xlu0 %805
    %807 = vrot.lane.b32.xlu0 %v802, 126
    %v808 = vpop.permute.xlu0 %807
    %v811 = vmul.f32 %v801, %v806
    %v812 = vmul.f32 %v802, %v808
    %815 = vrot.lane.b32.xlu0 %v811, 127
    %v816 = vpop.permute.xlu0 %815
    %817 = vrot.lane.b32.xlu0 %v812, 127
    %v818 = vpop.permute.xlu0 %817
    %v821 = vmul.f32 %v811, %v816
    %v822 = vmul.f32 %v812, %v818
    %v823 = vadd.f32 %v821, 0.0
    %v824 = vadd.f32 %v822, 0.0
    %v825 = vsub.f32 1.0, %v823
    %v826 = vsub.f32 1.0, %v824
    %v827 = vsub.f32 1.0, %v781
    %v828 = vsub.f32 1.0, %v782
    %v830 = vlaneseq
    %v831 = vshrl.u32 %v830, 7
    %v832 = vsub.s32 0, %v831
    %v833 = vrot.slane %v639, %v832
    %835 = vbcast.lane.b32.xlu0 %v833, 256
    %v836 = vpop.permute.xlu0 %835
    %v837 = vlaneseq
    %v838 = vshrl.u32 %v837, 7
    %v839 = vsub.s32 1, %v838
    %v840 = vrot.slane %v639, %v839
    %842 = vbcast.lane.b32.xlu0 %v840, 256
    %v843 = vpop.permute.xlu0 %842
    %v844 = vlaneseq
    %v845 = vshrl.u32 %v844, 7
    %v846 = vsub.s32 2, %v845
    %v847 = vrot.slane %v639, %v846
    %849 = vbcast.lane.b32.xlu0 %v847, 256
    %v850 = vpop.permute.xlu0 %849
    %v851 = vlaneseq
    %v852 = vshrl.u32 %v851, 7
    %v853 = vsub.s32 3, %v852
    %v854 = vrot.slane %v639, %v853
    %856 = vbcast.lane.b32.xlu0 %v854, 256
    %v857 = vpop.permute.xlu0 %856
    %v858 = vlaneseq
    %v859 = vshrl.u32 %v858, 7
    %v860 = vsub.s32 4, %v859
    %v861 = vrot.slane %v639, %v860
    %863 = vbcast.lane.b32.xlu0 %v861, 256
    %v864 = vpop.permute.xlu0 %863
    %v865 = vlaneseq
    %v866 = vshrl.u32 %v865, 7
    %v867 = vsub.s32 5, %v866
    %v868 = vrot.slane %v639, %v867
    %870 = vbcast.lane.b32.xlu0 %v868, 256
    %v871 = vpop.permute.xlu0 %870
    %v872 = vlaneseq
    %v873 = vshrl.u32 %v872, 7
    %v874 = vsub.s32 6, %v873
    %v875 = vrot.slane %v639, %v874
    %877 = vbcast.lane.b32.xlu0 %v875, 256
    %v878 = vpop.permute.xlu0 %877
    %v879 = vlaneseq
    %v880 = vshrl.u32 %v879, 7
    %v881 = vsub.s32 7, %v880
    %v882 = vrot.slane %v639, %v881
    %884 = vbcast.lane.b32.xlu0 %v882, 256
    %v885 = vpop.permute.xlu0 %884
    %v894 = vmul.f32 %v827, %v836
    %v895 = vmul.f32 %v827, %v843
    %v896 = vmul.f32 %v827, %v850
    %v897 = vmul.f32 %v827, %v857
    %v898 = vmul.f32 %v827, %v864
    %v899 = vmul.f32 %v827, %v871
    %v900 = vmul.f32 %v827, %v878
    %v901 = vmul.f32 %v827, %v885
    %v902 = vmul.f32 %v828, %v836
    %v903 = vmul.f32 %v828, %v843
    %v904 = vmul.f32 %v828, %v850
    %v905 = vmul.f32 %v828, %v857
    %v906 = vmul.f32 %v828, %v864
    %v907 = vmul.f32 %v828, %v871
    %v908 = vmul.f32 %v828, %v878
    %v909 = vmul.f32 %v828, %v885
    %v910 = vsub.f32 1.0, %v894
    %v911 = vsub.f32 1.0, %v895
    %v912 = vsub.f32 1.0, %v896
    %v913 = vsub.f32 1.0, %v897
    %v914 = vsub.f32 1.0, %v898
    %v915 = vsub.f32 1.0, %v899
    %v916 = vsub.f32 1.0, %v900
    %v917 = vsub.f32 1.0, %v901
    %v918 = vsub.f32 1.0, %v902
    %v919 = vsub.f32 1.0, %v903
    %v920 = vsub.f32 1.0, %v904
    %v921 = vsub.f32 1.0, %v905
    %v922 = vsub.f32 1.0, %v906
    %v923 = vsub.f32 1.0, %v907
    %v924 = vsub.f32 1.0, %v908
    %v925 = vsub.f32 1.0, %v909
    %v927 = vlaneseq
    %v928 = vshrl.u32 %v927, 7
    %v929 = vsub.s32 0, %v928
    %v930 = vrot.slane %v640, %v929
    %932 = vbcast.lane.b32.xlu0 %v930, 256
    %v933 = vpop.permute.xlu0 %932
    %v934 = vlaneseq
    %v935 = vshrl.u32 %v934, 7
    %v936 = vsub.s32 1, %v935
    %v937 = vrot.slane %v640, %v936
    %939 = vbcast.lane.b32.xlu0 %v937, 256
    %v940 = vpop.permute.xlu0 %939
    %v941 = vlaneseq
    %v942 = vshrl.u32 %v941, 7
    %v943 = vsub.s32 2, %v942
    %v944 = vrot.slane %v640, %v943
    %946 = vbcast.lane.b32.xlu0 %v944, 256
    %v947 = vpop.permute.xlu0 %946
    %v948 = vlaneseq
    %v949 = vshrl.u32 %v948, 7
    %v950 = vsub.s32 3, %v949
    %v951 = vrot.slane %v640, %v950
    %953 = vbcast.lane.b32.xlu0 %v951, 256
    %v954 = vpop.permute.xlu0 %953
    %v955 = vlaneseq
    %v956 = vshrl.u32 %v955, 7
    %v957 = vsub.s32 4, %v956
    %v958 = vrot.slane %v640, %v957
    %960 = vbcast.lane.b32.xlu0 %v958, 256
    %v961 = vpop.permute.xlu0 %960
    %v962 = vlaneseq
    %v963 = vshrl.u32 %v962, 7
    %v964 = vsub.s32 5, %v963
    %v965 = vrot.slane %v640, %v964
    %967 = vbcast.lane.b32.xlu0 %v965, 256
    %v968 = vpop.permute.xlu0 %967
    %v969 = vlaneseq
    %v970 = vshrl.u32 %v969, 7
    %v971 = vsub.s32 6, %v970
    %v972 = vrot.slane %v640, %v971
    %974 = vbcast.lane.b32.xlu0 %v972, 256
    %v975 = vpop.permute.xlu0 %974
    %v976 = vlaneseq
    %v977 = vshrl.u32 %v976, 7
    %v978 = vsub.s32 7, %v977
    %v979 = vrot.slane %v640, %v978
    %981 = vbcast.lane.b32.xlu0 %v979, 256
    %v982 = vpop.permute.xlu0 %981
    %v991 = vmul.f32 %v781, %v933
    %v992 = vmul.f32 %v781, %v940
    %v993 = vmul.f32 %v781, %v947
    %v994 = vmul.f32 %v781, %v954
    %v995 = vmul.f32 %v781, %v961
    %v996 = vmul.f32 %v781, %v968
    %v997 = vmul.f32 %v781, %v975
    %v998 = vmul.f32 %v781, %v982
    %v999 = vmul.f32 %v782, %v933
    %v1000 = vmul.f32 %v782, %v940
    %v1001 = vmul.f32 %v782, %v947
    %v1002 = vmul.f32 %v782, %v954
    %v1003 = vmul.f32 %v782, %v961
    %v1004 = vmul.f32 %v782, %v968
    %v1005 = vmul.f32 %v782, %v975
    %v1006 = vmul.f32 %v782, %v982
    %v1007 = vsub.f32 1.0, %v991
    %v1008 = vsub.f32 1.0, %v992
    %v1009 = vsub.f32 1.0, %v993
    %v1010 = vsub.f32 1.0, %v994
    %v1011 = vsub.f32 1.0, %v995
    %v1012 = vsub.f32 1.0, %v996
    %v1013 = vsub.f32 1.0, %v997
    %v1014 = vsub.f32 1.0, %v998
    %v1015 = vsub.f32 1.0, %v999
    %v1016 = vsub.f32 1.0, %v1000
    %v1017 = vsub.f32 1.0, %v1001
    %v1018 = vsub.f32 1.0, %v1002
    %v1019 = vsub.f32 1.0, %v1003
    %v1020 = vsub.f32 1.0, %v1004
    %v1021 = vsub.f32 1.0, %v1005
    %v1022 = vsub.f32 1.0, %v1006
    %v1039 = vrot.slane %v910, 4
    %v1040 = vrot.slane %v911, 4
    %v1041 = vrot.slane %v912, 4
    %v1042 = vrot.slane %v913, 4
    %v1043 = vrot.slane %v914, 4
    %v1044 = vrot.slane %v915, 4
    %v1045 = vrot.slane %v916, 4
    %v1046 = vrot.slane %v917, 4
    %v1047 = vrot.slane %v918, 4
    %v1048 = vrot.slane %v919, 4
    %v1049 = vrot.slane %v920, 4
    %v1050 = vrot.slane %v921, 4
    %v1051 = vrot.slane %v922, 4
    %v1052 = vrot.slane %v923, 4
    %v1053 = vrot.slane %v924, 4
    %v1054 = vrot.slane %v925, 4
    %v1071 = vmul.f32 %v910, %v1039
    %v1072 = vmul.f32 %v911, %v1040
    %v1073 = vmul.f32 %v912, %v1041
    %v1074 = vmul.f32 %v913, %v1042
    %v1075 = vmul.f32 %v914, %v1043
    %v1076 = vmul.f32 %v915, %v1044
    %v1077 = vmul.f32 %v916, %v1045
    %v1078 = vmul.f32 %v917, %v1046
    %v1079 = vmul.f32 %v918, %v1047
    %v1080 = vmul.f32 %v919, %v1048
    %v1081 = vmul.f32 %v920, %v1049
    %v1082 = vmul.f32 %v921, %v1050
    %v1083 = vmul.f32 %v922, %v1051
    %v1084 = vmul.f32 %v923, %v1052
    %v1085 = vmul.f32 %v924, %v1053
    %v1086 = vmul.f32 %v925, %v1054
    %v1103 = vrot.slane %v1071, 2
    %v1104 = vrot.slane %v1072, 2
    %v1105 = vrot.slane %v1073, 2
    %v1106 = vrot.slane %v1074, 2
    %v1107 = vrot.slane %v1075, 2
    %v1108 = vrot.slane %v1076, 2
    %v1109 = vrot.slane %v1077, 2
    %v1110 = vrot.slane %v1078, 2
    %v1111 = vrot.slane %v1079, 2
    %v1112 = vrot.slane %v1080, 2
    %v1113 = vrot.slane %v1081, 2
    %v1114 = vrot.slane %v1082, 2
    %v1115 = vrot.slane %v1083, 2
    %v1116 = vrot.slane %v1084, 2
    %v1117 = vrot.slane %v1085, 2
    %v1118 = vrot.slane %v1086, 2
    %v1135 = vmul.f32 %v1071, %v1103
    %v1136 = vmul.f32 %v1072, %v1104
    %v1137 = vmul.f32 %v1073, %v1105
    %v1138 = vmul.f32 %v1074, %v1106
    %v1139 = vmul.f32 %v1075, %v1107
    %v1140 = vmul.f32 %v1076, %v1108
    %v1141 = vmul.f32 %v1077, %v1109
    %v1142 = vmul.f32 %v1078, %v1110
    %v1143 = vmul.f32 %v1079, %v1111
    %v1144 = vmul.f32 %v1080, %v1112
    %v1145 = vmul.f32 %v1081, %v1113
    %v1146 = vmul.f32 %v1082, %v1114
    %v1147 = vmul.f32 %v1083, %v1115
    %v1148 = vmul.f32 %v1084, %v1116
    %v1149 = vmul.f32 %v1085, %v1117
    %v1150 = vmul.f32 %v1086, %v1118
    %v1167 = vrot.slane %v1135, 1
    %v1168 = vrot.slane %v1136, 1
    %v1169 = vrot.slane %v1137, 1
    %v1170 = vrot.slane %v1138, 1
    %v1171 = vrot.slane %v1139, 1
    %v1172 = vrot.slane %v1140, 1
    %v1173 = vrot.slane %v1141, 1
    %v1174 = vrot.slane %v1142, 1
    %v1175 = vrot.slane %v1143, 1
    %v1176 = vrot.slane %v1144, 1
    %v1177 = vrot.slane %v1145, 1
    %v1178 = vrot.slane %v1146, 1
    %v1179 = vrot.slane %v1147, 1
    %v1180 = vrot.slane %v1148, 1
    %v1181 = vrot.slane %v1149, 1
    %v1182 = vrot.slane %v1150, 1
    %v1199 = vmul.f32 %v1135, %v1167
    %v1200 = vmul.f32 %v1136, %v1168
    %v1201 = vmul.f32 %v1137, %v1169
    %v1202 = vmul.f32 %v1138, %v1170
    %v1203 = vmul.f32 %v1139, %v1171
    %v1204 = vmul.f32 %v1140, %v1172
    %v1205 = vmul.f32 %v1141, %v1173
    %v1206 = vmul.f32 %v1142, %v1174
    %v1207 = vmul.f32 %v1143, %v1175
    %v1208 = vmul.f32 %v1144, %v1176
    %v1209 = vmul.f32 %v1145, %v1177
    %v1210 = vmul.f32 %v1146, %v1178
    %v1211 = vmul.f32 %v1147, %v1179
    %v1212 = vmul.f32 %v1148, %v1180
    %v1213 = vmul.f32 %v1149, %v1181
    %v1214 = vmul.f32 %v1150, %v1182
    %v1215 = vadd.f32 %v1199, 0.0
    %v1216 = vadd.f32 %v1200, 0.0
    %v1217 = vadd.f32 %v1201, 0.0
    %v1218 = vadd.f32 %v1202, 0.0
    %v1219 = vadd.f32 %v1203, 0.0
    %v1220 = vadd.f32 %v1204, 0.0
    %v1221 = vadd.f32 %v1205, 0.0
    %v1222 = vadd.f32 %v1206, 0.0
    %v1223 = vadd.f32 %v1207, 0.0
    %v1224 = vadd.f32 %v1208, 0.0
    %v1225 = vadd.f32 %v1209, 0.0
    %v1226 = vadd.f32 %v1210, 0.0
    %v1227 = vadd.f32 %v1211, 0.0
    %v1228 = vadd.f32 %v1212, 0.0
    %v1229 = vadd.f32 %v1213, 0.0
    %v1230 = vadd.f32 %v1214, 0.0
    %v1247 = vrot.slane %v1007, 4
    %v1248 = vrot.slane %v1008, 4
    %v1249 = vrot.slane %v1009, 4
    %v1250 = vrot.slane %v1010, 4
    %v1251 = vrot.slane %v1011, 4
    %v1252 = vrot.slane %v1012, 4
    %v1253 = vrot.slane %v1013, 4
    %v1254 = vrot.slane %v1014, 4
    %v1255 = vrot.slane %v1015, 4
    %v1256 = vrot.slane %v1016, 4
    %v1257 = vrot.slane %v1017, 4
    %v1258 = vrot.slane %v1018, 4
    %v1259 = vrot.slane %v1019, 4
    %v1260 = vrot.slane %v1020, 4
    %v1261 = vrot.slane %v1021, 4
    %v1262 = vrot.slane %v1022, 4
    %v1279 = vmul.f32 %v1007, %v1247
    %v1280 = vmul.f32 %v1008, %v1248
    %v1281 = vmul.f32 %v1009, %v1249
    %v1282 = vmul.f32 %v1010, %v1250
    %v1283 = vmul.f32 %v1011, %v1251
    %v1284 = vmul.f32 %v1012, %v1252
    %v1285 = vmul.f32 %v1013, %v1253
    %v1286 = vmul.f32 %v1014, %v1254
    %v1287 = vmul.f32 %v1015, %v1255
    %v1288 = vmul.f32 %v1016, %v1256
    %v1289 = vmul.f32 %v1017, %v1257
    %v1290 = vmul.f32 %v1018, %v1258
    %v1291 = vmul.f32 %v1019, %v1259
    %v1292 = vmul.f32 %v1020, %v1260
    %v1293 = vmul.f32 %v1021, %v1261
    %v1294 = vmul.f32 %v1022, %v1262
    %v1311 = vrot.slane %v1279, 2
    %v1312 = vrot.slane %v1280, 2
    %v1313 = vrot.slane %v1281, 2
    %v1314 = vrot.slane %v1282, 2
    %v1315 = vrot.slane %v1283, 2
    %v1316 = vrot.slane %v1284, 2
    %v1317 = vrot.slane %v1285, 2
    %v1318 = vrot.slane %v1286, 2
    %v1319 = vrot.slane %v1287, 2
    %v1320 = vrot.slane %v1288, 2
    %v1321 = vrot.slane %v1289, 2
    %v1322 = vrot.slane %v1290, 2
    %v1323 = vrot.slane %v1291, 2
    %v1324 = vrot.slane %v1292, 2
    %v1325 = vrot.slane %v1293, 2
    %v1326 = vrot.slane %v1294, 2
    %v1343 = vmul.f32 %v1279, %v1311
    %v1344 = vmul.f32 %v1280, %v1312
    %v1345 = vmul.f32 %v1281, %v1313
    %v1346 = vmul.f32 %v1282, %v1314
    %v1347 = vmul.f32 %v1283, %v1315
    %v1348 = vmul.f32 %v1284, %v1316
    %v1349 = vmul.f32 %v1285, %v1317
    %v1350 = vmul.f32 %v1286, %v1318
    %v1351 = vmul.f32 %v1287, %v1319
    %v1352 = vmul.f32 %v1288, %v1320
    %v1353 = vmul.f32 %v1289, %v1321
    %v1354 = vmul.f32 %v1290, %v1322
    %v1355 = vmul.f32 %v1291, %v1323
    %v1356 = vmul.f32 %v1292, %v1324
    %v1357 = vmul.f32 %v1293, %v1325
    %v1358 = vmul.f32 %v1294, %v1326
    %v1375 = vrot.slane %v1343, 1
    %v1376 = vrot.slane %v1344, 1
    %v1377 = vrot.slane %v1345, 1
    %v1378 = vrot.slane %v1346, 1
    %v1379 = vrot.slane %v1347, 1
    %v1380 = vrot.slane %v1348, 1
    %v1381 = vrot.slane %v1349, 1
    %v1382 = vrot.slane %v1350, 1
    %v1383 = vrot.slane %v1351, 1
    %v1384 = vrot.slane %v1352, 1
    %v1385 = vrot.slane %v1353, 1
    %v1386 = vrot.slane %v1354, 1
    %v1387 = vrot.slane %v1355, 1
    %v1388 = vrot.slane %v1356, 1
    %v1389 = vrot.slane %v1357, 1
    %v1390 = vrot.slane %v1358, 1
    %v1407 = vmul.f32 %v1343, %v1375
    %v1408 = vmul.f32 %v1344, %v1376
    %v1409 = vmul.f32 %v1345, %v1377
    %v1410 = vmul.f32 %v1346, %v1378
    %v1411 = vmul.f32 %v1347, %v1379
    %v1412 = vmul.f32 %v1348, %v1380
    %v1413 = vmul.f32 %v1349, %v1381
    %v1414 = vmul.f32 %v1350, %v1382
    %v1415 = vmul.f32 %v1351, %v1383
    %v1416 = vmul.f32 %v1352, %v1384
    %v1417 = vmul.f32 %v1353, %v1385
    %v1418 = vmul.f32 %v1354, %v1386
    %v1419 = vmul.f32 %v1355, %v1387
    %v1420 = vmul.f32 %v1356, %v1388
    %v1421 = vmul.f32 %v1357, %v1389
    %v1422 = vmul.f32 %v1358, %v1390
    %v1423 = vadd.f32 %v1407, 0.0
    %v1424 = vadd.f32 %v1408, 0.0
    %v1425 = vadd.f32 %v1409, 0.0
    %v1426 = vadd.f32 %v1410, 0.0
    %v1427 = vadd.f32 %v1411, 0.0
    %v1428 = vadd.f32 %v1412, 0.0
    %v1429 = vadd.f32 %v1413, 0.0
    %v1430 = vadd.f32 %v1414, 0.0
    %v1431 = vadd.f32 %v1415, 0.0
    %v1432 = vadd.f32 %v1416, 0.0
    %v1433 = vadd.f32 %v1417, 0.0
    %v1434 = vadd.f32 %v1418, 0.0
    %v1435 = vadd.f32 %v1419, 0.0
    %v1436 = vadd.f32 %v1420, 0.0
    %v1437 = vadd.f32 %v1421, 0.0
    %v1438 = vadd.f32 %v1422, 0.0
    %v1439 = vsub.f32 1.0, %v825
    %v1440 = vsub.f32 1.0, %v826
    %s1442 = sor.u32 256, 8
    %1443 = vbcast.lane.b32.xlu0 %v833, %s1442
    %v1444 = vpop.permute.xlu0 %1443
    %s1446 = sor.u32 256, 8
    %1447 = vbcast.lane.b32.xlu0 %v840, %s1446
    %v1448 = vpop.permute.xlu0 %1447
    %s1450 = sor.u32 256, 8
    %1451 = vbcast.lane.b32.xlu0 %v847, %s1450
    %v1452 = vpop.permute.xlu0 %1451
    %s1454 = sor.u32 256, 8
    %1455 = vbcast.lane.b32.xlu0 %v854, %s1454
    %v1456 = vpop.permute.xlu0 %1455
    %s1458 = sor.u32 256, 8
    %1459 = vbcast.lane.b32.xlu0 %v861, %s1458
    %v1460 = vpop.permute.xlu0 %1459
    %s1462 = sor.u32 256, 8
    %1463 = vbcast.lane.b32.xlu0 %v868, %s1462
    %v1464 = vpop.permute.xlu0 %1463
    %s1466 = sor.u32 256, 8
    %1467 = vbcast.lane.b32.xlu0 %v875, %s1466
    %v1468 = vpop.permute.xlu0 %1467
    %s1470 = sor.u32 256, 8
    %1471 = vbcast.lane.b32.xlu0 %v882, %s1470
    %v1472 = vpop.permute.xlu0 %1471
    %v1481 = vmul.f32 %v1439, %v1444
    %v1482 = vmul.f32 %v1439, %v1448
    %v1483 = vmul.f32 %v1439, %v1452
    %v1484 = vmul.f32 %v1439, %v1456
    %v1485 = vmul.f32 %v1439, %v1460
    %v1486 = vmul.f32 %v1439, %v1464
    %v1487 = vmul.f32 %v1439, %v1468
    %v1488 = vmul.f32 %v1439, %v1472
    %v1489 = vmul.f32 %v1440, %v1444
    %v1490 = vmul.f32 %v1440, %v1448
    %v1491 = vmul.f32 %v1440, %v1452
    %v1492 = vmul.f32 %v1440, %v1456
    %v1493 = vmul.f32 %v1440, %v1460
    %v1494 = vmul.f32 %v1440, %v1464
    %v1495 = vmul.f32 %v1440, %v1468
    %v1496 = vmul.f32 %v1440, %v1472
    %v1497 = vsub.f32 1.0, %v1481
    %v1498 = vsub.f32 1.0, %v1482
    %v1499 = vsub.f32 1.0, %v1483
    %v1500 = vsub.f32 1.0, %v1484
    %v1501 = vsub.f32 1.0, %v1485
    %v1502 = vsub.f32 1.0, %v1486
    %v1503 = vsub.f32 1.0, %v1487
    %v1504 = vsub.f32 1.0, %v1488
    %v1505 = vsub.f32 1.0, %v1489
    %v1506 = vsub.f32 1.0, %v1490
    %v1507 = vsub.f32 1.0, %v1491
    %v1508 = vsub.f32 1.0, %v1492
    %v1509 = vsub.f32 1.0, %v1493
    %v1510 = vsub.f32 1.0, %v1494
    %v1511 = vsub.f32 1.0, %v1495
    %v1512 = vsub.f32 1.0, %v1496
    %s1514 = sor.u32 256, 8
    %1515 = vbcast.lane.b32.xlu0 %v930, %s1514
    %v1516 = vpop.permute.xlu0 %1515
    %s1518 = sor.u32 256, 8
    %1519 = vbcast.lane.b32.xlu0 %v937, %s1518
    %v1520 = vpop.permute.xlu0 %1519
    %s1522 = sor.u32 256, 8
    %1523 = vbcast.lane.b32.xlu0 %v944, %s1522
    %v1524 = vpop.permute.xlu0 %1523
    %s1526 = sor.u32 256, 8
    %1527 = vbcast.lane.b32.xlu0 %v951, %s1526
    %v1528 = vpop.permute.xlu0 %1527
    %s1530 = sor.u32 256, 8
    %1531 = vbcast.lane.b32.xlu0 %v958, %s1530
    %v1532 = vpop.permute.xlu0 %1531
    %s1534 = sor.u32 256, 8
    %1535 = vbcast.lane.b32.xlu0 %v965, %s1534
    %v1536 = vpop.permute.xlu0 %1535
    %s1538 = sor.u32 256, 8
    %1539 = vbcast.lane.b32.xlu0 %v972, %s1538
    %v1540 = vpop.permute.xlu0 %1539
    %s1542 = sor.u32 256, 8
    %1543 = vbcast.lane.b32.xlu0 %v979, %s1542
    %v1544 = vpop.permute.xlu0 %1543
    %v1553 = vmul.f32 %v825, %v1516
    %v1554 = vmul.f32 %v825, %v1520
    %v1555 = vmul.f32 %v825, %v1524
    %v1556 = vmul.f32 %v825, %v1528
    %v1557 = vmul.f32 %v825, %v1532
    %v1558 = vmul.f32 %v825, %v1536
    %v1559 = vmul.f32 %v825, %v1540
    %v1560 = vmul.f32 %v825, %v1544
    %v1561 = vmul.f32 %v826, %v1516
    %v1562 = vmul.f32 %v826, %v1520
    %v1563 = vmul.f32 %v826, %v1524
    %v1564 = vmul.f32 %v826, %v1528
    %v1565 = vmul.f32 %v826, %v1532
    %v1566 = vmul.f32 %v826, %v1536
    %v1567 = vmul.f32 %v826, %v1540
    %v1568 = vmul.f32 %v826, %v1544
    %v1569 = vsub.f32 1.0, %v1553
    %v1570 = vsub.f32 1.0, %v1554
    %v1571 = vsub.f32 1.0, %v1555
    %v1572 = vsub.f32 1.0, %v1556
    %v1573 = vsub.f32 1.0, %v1557
    %v1574 = vsub.f32 1.0, %v1558
    %v1575 = vsub.f32 1.0, %v1559
    %v1576 = vsub.f32 1.0, %v1560
    %v1577 = vsub.f32 1.0, %v1561
    %v1578 = vsub.f32 1.0, %v1562
    %v1579 = vsub.f32 1.0, %v1563
    %v1580 = vsub.f32 1.0, %v1564
    %v1581 = vsub.f32 1.0, %v1565
    %v1582 = vsub.f32 1.0, %v1566
    %v1583 = vsub.f32 1.0, %v1567
    %v1584 = vsub.f32 1.0, %v1568
    %v1601 = vrot.slane %v1497, 4
    %v1602 = vrot.slane %v1498, 4
    %v1603 = vrot.slane %v1499, 4
    %v1604 = vrot.slane %v1500, 4
    %v1605 = vrot.slane %v1501, 4
    %v1606 = vrot.slane %v1502, 4
    %v1607 = vrot.slane %v1503, 4
    %v1608 = vrot.slane %v1504, 4
    %v1609 = vrot.slane %v1505, 4
    %v1610 = vrot.slane %v1506, 4
    %v1611 = vrot.slane %v1507, 4
    %v1612 = vrot.slane %v1508, 4
    %v1613 = vrot.slane %v1509, 4
    %v1614 = vrot.slane %v1510, 4
    %v1615 = vrot.slane %v1511, 4
    %v1616 = vrot.slane %v1512, 4
    %v1633 = vmul.f32 %v1497, %v1601
    %v1634 = vmul.f32 %v1498, %v1602
    %v1635 = vmul.f32 %v1499, %v1603
    %v1636 = vmul.f32 %v1500, %v1604
    %v1637 = vmul.f32 %v1501, %v1605
    %v1638 = vmul.f32 %v1502, %v1606
    %v1639 = vmul.f32 %v1503, %v1607
    %v1640 = vmul.f32 %v1504, %v1608
    %v1641 = vmul.f32 %v1505, %v1609
    %v1642 = vmul.f32 %v1506, %v1610
    %v1643 = vmul.f32 %v1507, %v1611
    %v1644 = vmul.f32 %v1508, %v1612
    %v1645 = vmul.f32 %v1509, %v1613
    %v1646 = vmul.f32 %v1510, %v1614
    %v1647 = vmul.f32 %v1511, %v1615
    %v1648 = vmul.f32 %v1512, %v1616
    %v1665 = vrot.slane %v1633, 2
    %v1666 = vrot.slane %v1634, 2
    %v1667 = vrot.slane %v1635, 2
    %v1668 = vrot.slane %v1636, 2
    %v1669 = vrot.slane %v1637, 2
    %v1670 = vrot.slane %v1638, 2
    %v1671 = vrot.slane %v1639, 2
    %v1672 = vrot.slane %v1640, 2
    %v1673 = vrot.slane %v1641, 2
    %v1674 = vrot.slane %v1642, 2
    %v1675 = vrot.slane %v1643, 2
    %v1676 = vrot.slane %v1644, 2
    %v1677 = vrot.slane %v1645, 2
    %v1678 = vrot.slane %v1646, 2
    %v1679 = vrot.slane %v1647, 2
    %v1680 = vrot.slane %v1648, 2
    %v1697 = vmul.f32 %v1633, %v1665
    %v1698 = vmul.f32 %v1634, %v1666
    %v1699 = vmul.f32 %v1635, %v1667
    %v1700 = vmul.f32 %v1636, %v1668
    %v1701 = vmul.f32 %v1637, %v1669
    %v1702 = vmul.f32 %v1638, %v1670
    %v1703 = vmul.f32 %v1639, %v1671
    %v1704 = vmul.f32 %v1640, %v1672
    %v1705 = vmul.f32 %v1641, %v1673
    %v1706 = vmul.f32 %v1642, %v1674
    %v1707 = vmul.f32 %v1643, %v1675
    %v1708 = vmul.f32 %v1644, %v1676
    %v1709 = vmul.f32 %v1645, %v1677
    %v1710 = vmul.f32 %v1646, %v1678
    %v1711 = vmul.f32 %v1647, %v1679
    %v1712 = vmul.f32 %v1648, %v1680
    %v1729 = vrot.slane %v1697, 1
    %v1730 = vrot.slane %v1698, 1
    %v1731 = vrot.slane %v1699, 1
    %v1732 = vrot.slane %v1700, 1
    %v1733 = vrot.slane %v1701, 1
    %v1734 = vrot.slane %v1702, 1
    %v1735 = vrot.slane %v1703, 1
    %v1736 = vrot.slane %v1704, 1
    %v1737 = vrot.slane %v1705, 1
    %v1738 = vrot.slane %v1706, 1
    %v1739 = vrot.slane %v1707, 1
    %v1740 = vrot.slane %v1708, 1
    %v1741 = vrot.slane %v1709, 1
    %v1742 = vrot.slane %v1710, 1
    %v1743 = vrot.slane %v1711, 1
    %v1744 = vrot.slane %v1712, 1
    %v1761 = vmul.f32 %v1697, %v1729
    %v1762 = vmul.f32 %v1698, %v1730
    %v1763 = vmul.f32 %v1699, %v1731
    %v1764 = vmul.f32 %v1700, %v1732
    %v1765 = vmul.f32 %v1701, %v1733
    %v1766 = vmul.f32 %v1702, %v1734
    %v1767 = vmul.f32 %v1703, %v1735
    %v1768 = vmul.f32 %v1704, %v1736
    %v1769 = vmul.f32 %v1705, %v1737
    %v1770 = vmul.f32 %v1706, %v1738
    %v1771 = vmul.f32 %v1707, %v1739
    %v1772 = vmul.f32 %v1708, %v1740
    %v1773 = vmul.f32 %v1709, %v1741
    %v1774 = vmul.f32 %v1710, %v1742
    %v1775 = vmul.f32 %v1711, %v1743
    %v1776 = vmul.f32 %v1712, %v1744
    %v1777 = vadd.f32 %v1761, 0.0
    %v1778 = vadd.f32 %v1762, 0.0
    %v1779 = vadd.f32 %v1763, 0.0
    %v1780 = vadd.f32 %v1764, 0.0
    %v1781 = vadd.f32 %v1765, 0.0
    %v1782 = vadd.f32 %v1766, 0.0
    %v1783 = vadd.f32 %v1767, 0.0
    %v1784 = vadd.f32 %v1768, 0.0
    %v1785 = vadd.f32 %v1769, 0.0
    %v1786 = vadd.f32 %v1770, 0.0
    %v1787 = vadd.f32 %v1771, 0.0
    %v1788 = vadd.f32 %v1772, 0.0
    %v1789 = vadd.f32 %v1773, 0.0
    %v1790 = vadd.f32 %v1774, 0.0
    %v1791 = vadd.f32 %v1775, 0.0
    %v1792 = vadd.f32 %v1776, 0.0
    %v1809 = vrot.slane %v1569, 4
    %v1810 = vrot.slane %v1570, 4
    %v1811 = vrot.slane %v1571, 4
    %v1812 = vrot.slane %v1572, 4
    %v1813 = vrot.slane %v1573, 4
    %v1814 = vrot.slane %v1574, 4
    %v1815 = vrot.slane %v1575, 4
    %v1816 = vrot.slane %v1576, 4
    %v1817 = vrot.slane %v1577, 4
    %v1818 = vrot.slane %v1578, 4
    %v1819 = vrot.slane %v1579, 4
    %v1820 = vrot.slane %v1580, 4
    %v1821 = vrot.slane %v1581, 4
    %v1822 = vrot.slane %v1582, 4
    %v1823 = vrot.slane %v1583, 4
    %v1824 = vrot.slane %v1584, 4
    %v1841 = vmul.f32 %v1569, %v1809
    %v1842 = vmul.f32 %v1570, %v1810
    %v1843 = vmul.f32 %v1571, %v1811
    %v1844 = vmul.f32 %v1572, %v1812
    %v1845 = vmul.f32 %v1573, %v1813
    %v1846 = vmul.f32 %v1574, %v1814
    %v1847 = vmul.f32 %v1575, %v1815
    %v1848 = vmul.f32 %v1576, %v1816
    %v1849 = vmul.f32 %v1577, %v1817
    %v1850 = vmul.f32 %v1578, %v1818
    %v1851 = vmul.f32 %v1579, %v1819
    %v1852 = vmul.f32 %v1580, %v1820
    %v1853 = vmul.f32 %v1581, %v1821
    %v1854 = vmul.f32 %v1582, %v1822
    %v1855 = vmul.f32 %v1583, %v1823
    %v1856 = vmul.f32 %v1584, %v1824
    %v1873 = vrot.slane %v1841, 2
    %v1874 = vrot.slane %v1842, 2
    %v1875 = vrot.slane %v1843, 2
    %v1876 = vrot.slane %v1844, 2
    %v1877 = vrot.slane %v1845, 2
    %v1878 = vrot.slane %v1846, 2
    %v1879 = vrot.slane %v1847, 2
    %v1880 = vrot.slane %v1848, 2
    %v1881 = vrot.slane %v1849, 2
    %v1882 = vrot.slane %v1850, 2
    %v1883 = vrot.slane %v1851, 2
    %v1884 = vrot.slane %v1852, 2
    %v1885 = vrot.slane %v1853, 2
    %v1886 = vrot.slane %v1854, 2
    %v1887 = vrot.slane %v1855, 2
    %v1888 = vrot.slane %v1856, 2
    %v1905 = vmul.f32 %v1841, %v1873
    %v1906 = vmul.f32 %v1842, %v1874
    %v1907 = vmul.f32 %v1843, %v1875
    %v1908 = vmul.f32 %v1844, %v1876
    %v1909 = vmul.f32 %v1845, %v1877
    %v1910 = vmul.f32 %v1846, %v1878
    %v1911 = vmul.f32 %v1847, %v1879
    %v1912 = vmul.f32 %v1848, %v1880
    %v1913 = vmul.f32 %v1849, %v1881
    %v1914 = vmul.f32 %v1850, %v1882
    %v1915 = vmul.f32 %v1851, %v1883
    %v1916 = vmul.f32 %v1852, %v1884
    %v1917 = vmul.f32 %v1853, %v1885
    %v1918 = vmul.f32 %v1854, %v1886
    %v1919 = vmul.f32 %v1855, %v1887
    %v1920 = vmul.f32 %v1856, %v1888
    %v1937 = vrot.slane %v1905, 1
    %v1938 = vrot.slane %v1906, 1
    %v1939 = vrot.slane %v1907, 1
    %v1940 = vrot.slane %v1908, 1
    %v1941 = vrot.slane %v1909, 1
    %v1942 = vrot.slane %v1910, 1
    %v1943 = vrot.slane %v1911, 1
    %v1944 = vrot.slane %v1912, 1
    %v1945 = vrot.slane %v1913, 1
    %v1946 = vrot.slane %v1914, 1
    %v1947 = vrot.slane %v1915, 1
    %v1948 = vrot.slane %v1916, 1
    %v1949 = vrot.slane %v1917, 1
    %v1950 = vrot.slane %v1918, 1
    %v1951 = vrot.slane %v1919, 1
    %v1952 = vrot.slane %v1920, 1
    %v1969 = vmul.f32 %v1905, %v1937
    %v1970 = vmul.f32 %v1906, %v1938
    %v1971 = vmul.f32 %v1907, %v1939
    %v1972 = vmul.f32 %v1908, %v1940
    %v1973 = vmul.f32 %v1909, %v1941
    %v1974 = vmul.f32 %v1910, %v1942
    %v1975 = vmul.f32 %v1911, %v1943
    %v1976 = vmul.f32 %v1912, %v1944
    %v1977 = vmul.f32 %v1913, %v1945
    %v1978 = vmul.f32 %v1914, %v1946
    %v1979 = vmul.f32 %v1915, %v1947
    %v1980 = vmul.f32 %v1916, %v1948
    %v1981 = vmul.f32 %v1917, %v1949
    %v1982 = vmul.f32 %v1918, %v1950
    %v1983 = vmul.f32 %v1919, %v1951
    %v1984 = vmul.f32 %v1920, %v1952
    %v1985 = vadd.f32 %v1969, 0.0
    %v1986 = vadd.f32 %v1970, 0.0
    %v1987 = vadd.f32 %v1971, 0.0
    %v1988 = vadd.f32 %v1972, 0.0
    %v1989 = vadd.f32 %v1973, 0.0
    %v1990 = vadd.f32 %v1974, 0.0
    %v1991 = vadd.f32 %v1975, 0.0
    %v1992 = vadd.f32 %v1976, 0.0
    %v1993 = vadd.f32 %v1977, 0.0
    %v1994 = vadd.f32 %v1978, 0.0
    %v1995 = vadd.f32 %v1979, 0.0
    %v1996 = vadd.f32 %v1980, 0.0
    %v1997 = vadd.f32 %v1981, 0.0
    %v1998 = vadd.f32 %v1982, 0.0
    %v1999 = vadd.f32 %v1983, 0.0
    %v2000 = vadd.f32 %v1984, 0.0
    %v2001 = vmul.f32 %v1215, %v1777
    %v2002 = vmul.f32 %v1216, %v1778
    %v2003 = vmul.f32 %v1217, %v1779
    %v2004 = vmul.f32 %v1218, %v1780
    %v2005 = vmul.f32 %v1219, %v1781
    %v2006 = vmul.f32 %v1220, %v1782
    %v2007 = vmul.f32 %v1221, %v1783
    %v2008 = vmul.f32 %v1222, %v1784
    %v2009 = vmul.f32 %v1223, %v1785
    %v2010 = vmul.f32 %v1224, %v1786
    %v2011 = vmul.f32 %v1225, %v1787
    %v2012 = vmul.f32 %v1226, %v1788
    %v2013 = vmul.f32 %v1227, %v1789
    %v2014 = vmul.f32 %v1228, %v1790
    %v2015 = vmul.f32 %v1229, %v1791
    %v2016 = vmul.f32 %v1230, %v1792
    %v2017 = vmul.f32 %v1423, %v1985
    %v2018 = vmul.f32 %v1424, %v1986
    %v2019 = vmul.f32 %v1425, %v1987
    %v2020 = vmul.f32 %v1426, %v1988
    %v2021 = vmul.f32 %v1427, %v1989
    %v2022 = vmul.f32 %v1428, %v1990
    %v2023 = vmul.f32 %v1429, %v1991
    %v2024 = vmul.f32 %v1430, %v1992
    %v2025 = vmul.f32 %v1431, %v1993
    %v2026 = vmul.f32 %v1432, %v1994
    %v2027 = vmul.f32 %v1433, %v1995
    %v2028 = vmul.f32 %v1434, %v1996
    %v2029 = vmul.f32 %v1435, %v1997
    %v2030 = vmul.f32 %v1436, %v1998
    %v2031 = vmul.f32 %v1437, %v1999
    %v2032 = vmul.f32 %v1438, %v2000
    %v2033 = vsub.f32 1.0, %v2017
    %v2034 = vsub.f32 1.0, %v2018
    %v2035 = vsub.f32 1.0, %v2019
    %v2036 = vsub.f32 1.0, %v2020
    %v2037 = vsub.f32 1.0, %v2021
    %v2038 = vsub.f32 1.0, %v2022
    %v2039 = vsub.f32 1.0, %v2023
    %v2040 = vsub.f32 1.0, %v2024
    %v2041 = vsub.f32 1.0, %v2025
    %v2042 = vsub.f32 1.0, %v2026
    %v2043 = vsub.f32 1.0, %v2027
    %v2044 = vsub.f32 1.0, %v2028
    %v2045 = vsub.f32 1.0, %v2029
    %v2046 = vsub.f32 1.0, %v2030
    %v2047 = vsub.f32 1.0, %v2031
    %v2048 = vsub.f32 1.0, %v2032
    %v2049 = vsub.f32 1.0, %v2001
    %v2050 = vsub.f32 1.0, %v2002
    %v2051 = vsub.f32 1.0, %v2003
    %v2052 = vsub.f32 1.0, %v2004
    %v2053 = vsub.f32 1.0, %v2005
    %v2054 = vsub.f32 1.0, %v2006
    %v2055 = vsub.f32 1.0, %v2007
    %v2056 = vsub.f32 1.0, %v2008
    %v2057 = vsub.f32 1.0, %v2009
    %v2058 = vsub.f32 1.0, %v2010
    %v2059 = vsub.f32 1.0, %v2011
    %v2060 = vsub.f32 1.0, %v2012
    %v2061 = vsub.f32 1.0, %v2013
    %v2062 = vsub.f32 1.0, %v2014
    %v2063 = vsub.f32 1.0, %v2015
    %v2064 = vsub.f32 1.0, %v2016
    %v2066 = vlaneseq
    %v2067 = vshrl.u32 %v2066, 7
    %v2068 = vsub.s32 0, %v2067
    %v2069 = vrot.slane %v641, %v2068
    %2071 = vbcast.lane.b32.xlu0 %v2069, 256
    %v2072 = vpop.permute.xlu0 %2071
    %v2073 = vlaneseq
    %v2074 = vshrl.u32 %v2073, 7
    %v2075 = vsub.s32 1, %v2074
    %v2076 = vrot.slane %v641, %v2075
    %2078 = vbcast.lane.b32.xlu0 %v2076, 256
    %v2079 = vpop.permute.xlu0 %2078
    %v2080 = vlaneseq
    %v2081 = vshrl.u32 %v2080, 7
    %v2082 = vsub.s32 2, %v2081
    %v2083 = vrot.slane %v641, %v2082
    %2085 = vbcast.lane.b32.xlu0 %v2083, 256
    %v2086 = vpop.permute.xlu0 %2085
    %v2087 = vlaneseq
    %v2088 = vshrl.u32 %v2087, 7
    %v2089 = vsub.s32 3, %v2088
    %v2090 = vrot.slane %v641, %v2089
    %2092 = vbcast.lane.b32.xlu0 %v2090, 256
    %v2093 = vpop.permute.xlu0 %2092
    %v2094 = vlaneseq
    %v2095 = vshrl.u32 %v2094, 7
    %v2096 = vsub.s32 4, %v2095
    %v2097 = vrot.slane %v641, %v2096
    %2099 = vbcast.lane.b32.xlu0 %v2097, 256
    %v2100 = vpop.permute.xlu0 %2099
    %v2101 = vlaneseq
    %v2102 = vshrl.u32 %v2101, 7
    %v2103 = vsub.s32 5, %v2102
    %v2104 = vrot.slane %v641, %v2103
    %2106 = vbcast.lane.b32.xlu0 %v2104, 256
    %v2107 = vpop.permute.xlu0 %2106
    %v2108 = vlaneseq
    %v2109 = vshrl.u32 %v2108, 7
    %v2110 = vsub.s32 6, %v2109
    %v2111 = vrot.slane %v641, %v2110
    %2113 = vbcast.lane.b32.xlu0 %v2111, 256
    %v2114 = vpop.permute.xlu0 %2113
    %v2115 = vlaneseq
    %v2116 = vshrl.u32 %v2115, 7
    %v2117 = vsub.s32 7, %v2116
    %v2118 = vrot.slane %v641, %v2117
    %2120 = vbcast.lane.b32.xlu0 %v2118, 256
    %v2121 = vpop.permute.xlu0 %2120
    %v2122 = vlaneseq
    %v2123 = vshrl.u32 %v2122, 7
    %v2124 = vsub.s32 0, %v2123
    %v2125 = vrot.slane %v2072, %v2124
    %2127 = vbcast.lane.b32.xlu0 %v2125, 256
    %v2128 = vpop.permute.xlu0 %2127
    %v2129 = vlaneseq
    %v2130 = vshrl.u32 %v2129, 7
    %v2131 = vsub.s32 1, %v2130
    %v2132 = vrot.slane %v2072, %v2131
    %2134 = vbcast.lane.b32.xlu0 %v2132, 256
    %v2135 = vpop.permute.xlu0 %2134
    %v2136 = vlaneseq
    %v2137 = vshrl.u32 %v2136, 7
    %v2138 = vsub.s32 2, %v2137
    %v2139 = vrot.slane %v2072, %v2138
    %2141 = vbcast.lane.b32.xlu0 %v2139, 256
    %v2142 = vpop.permute.xlu0 %2141
    %v2143 = vlaneseq
    %v2144 = vshrl.u32 %v2143, 7
    %v2145 = vsub.s32 3, %v2144
    %v2146 = vrot.slane %v2072, %v2145
    %2148 = vbcast.lane.b32.xlu0 %v2146, 256
    %v2149 = vpop.permute.xlu0 %2148
    %v2150 = vlaneseq
    %v2151 = vshrl.u32 %v2150, 7
    %v2152 = vsub.s32 4, %v2151
    %v2153 = vrot.slane %v2072, %v2152
    %2155 = vbcast.lane.b32.xlu0 %v2153, 256
    %v2156 = vpop.permute.xlu0 %2155
    %v2157 = vlaneseq
    %v2158 = vshrl.u32 %v2157, 7
    %v2159 = vsub.s32 5, %v2158
    %v2160 = vrot.slane %v2072, %v2159
    %2162 = vbcast.lane.b32.xlu0 %v2160, 256
    %v2163 = vpop.permute.xlu0 %2162
    %v2164 = vlaneseq
    %v2165 = vshrl.u32 %v2164, 7
    %v2166 = vsub.s32 6, %v2165
    %v2167 = vrot.slane %v2072, %v2166
    %2169 = vbcast.lane.b32.xlu0 %v2167, 256
    %v2170 = vpop.permute.xlu0 %2169
    %v2171 = vlaneseq
    %v2172 = vshrl.u32 %v2171, 7
    %v2173 = vsub.s32 7, %v2172
    %v2174 = vrot.slane %v2072, %v2173
    %2176 = vbcast.lane.b32.xlu0 %v2174, 256
    %v2177 = vpop.permute.xlu0 %2176
    %v2178 = vlaneseq
    %v2179 = vshrl.u32 %v2178, 7
    %v2180 = vsub.s32 0, %v2179
    %v2181 = vrot.slane %v2079, %v2180
    %2183 = vbcast.lane.b32.xlu0 %v2181, 256
    %v2184 = vpop.permute.xlu0 %2183
    %v2185 = vlaneseq
    %v2186 = vshrl.u32 %v2185, 7
    %v2187 = vsub.s32 1, %v2186
    %v2188 = vrot.slane %v2079, %v2187
    %2190 = vbcast.lane.b32.xlu0 %v2188, 256
    %v2191 = vpop.permute.xlu0 %2190
    %v2192 = vlaneseq
    %v2193 = vshrl.u32 %v2192, 7
    %v2194 = vsub.s32 2, %v2193
    %v2195 = vrot.slane %v2079, %v2194
    %2197 = vbcast.lane.b32.xlu0 %v2195, 256
    %v2198 = vpop.permute.xlu0 %2197
    %v2199 = vlaneseq
    %v2200 = vshrl.u32 %v2199, 7
    %v2201 = vsub.s32 3, %v2200
    %v2202 = vrot.slane %v2079, %v2201
    %2204 = vbcast.lane.b32.xlu0 %v2202, 256
    %v2205 = vpop.permute.xlu0 %2204
    %v2206 = vlaneseq
    %v2207 = vshrl.u32 %v2206, 7
    %v2208 = vsub.s32 4, %v2207
    %v2209 = vrot.slane %v2079, %v2208
    %2211 = vbcast.lane.b32.xlu0 %v2209, 256
    %v2212 = vpop.permute.xlu0 %2211
    %v2213 = vlaneseq
    %v2214 = vshrl.u32 %v2213, 7
    %v2215 = vsub.s32 5, %v2214
    %v2216 = vrot.slane %v2079, %v2215
    %2218 = vbcast.lane.b32.xlu0 %v2216, 256
    %v2219 = vpop.permute.xlu0 %2218
    %v2220 = vlaneseq
    %v2221 = vshrl.u32 %v2220, 7
    %v2222 = vsub.s32 6, %v2221
    %v2223 = vrot.slane %v2079, %v2222
    %2225 = vbcast.lane.b32.xlu0 %v2223, 256
    %v2226 = vpop.permute.xlu0 %2225
    %v2227 = vlaneseq
    %v2228 = vshrl.u32 %v2227, 7
    %v2229 = vsub.s32 7, %v2228
    %v2230 = vrot.slane %v2079, %v2229
    %2232 = vbcast.lane.b32.xlu0 %v2230, 256
    %v2233 = vpop.permute.xlu0 %2232
    %v2234 = vlaneseq
    %v2235 = vshrl.u32 %v2234, 7
    %v2236 = vsub.s32 0, %v2235
    %v2237 = vrot.slane %v2086, %v2236
    %2239 = vbcast.lane.b32.xlu0 %v2237, 256
    %v2240 = vpop.permute.xlu0 %2239
    %v2241 = vlaneseq
    %v2242 = vshrl.u32 %v2241, 7
    %v2243 = vsub.s32 1, %v2242
    %v2244 = vrot.slane %v2086, %v2243
    %2246 = vbcast.lane.b32.xlu0 %v2244, 256
    %v2247 = vpop.permute.xlu0 %2246
    %v2248 = vlaneseq
    %v2249 = vshrl.u32 %v2248, 7
    %v2250 = vsub.s32 2, %v2249
    %v2251 = vrot.slane %v2086, %v2250
    %2253 = vbcast.lane.b32.xlu0 %v2251, 256
    %v2254 = vpop.permute.xlu0 %2253
    %v2255 = vlaneseq
    %v2256 = vshrl.u32 %v2255, 7
    %v2257 = vsub.s32 3, %v2256
    %v2258 = vrot.slane %v2086, %v2257
    %2260 = vbcast.lane.b32.xlu0 %v2258, 256
    %v2261 = vpop.permute.xlu0 %2260
    %v2262 = vlaneseq
    %v2263 = vshrl.u32 %v2262, 7
    %v2264 = vsub.s32 4, %v2263
    %v2265 = vrot.slane %v2086, %v2264
    %2267 = vbcast.lane.b32.xlu0 %v2265, 256
    %v2268 = vpop.permute.xlu0 %2267
    %v2269 = vlaneseq
    %v2270 = vshrl.u32 %v2269, 7
    %v2271 = vsub.s32 5, %v2270
    %v2272 = vrot.slane %v2086, %v2271
    %2274 = vbcast.lane.b32.xlu0 %v2272, 256
    %v2275 = vpop.permute.xlu0 %2274
    %v2276 = vlaneseq
    %v2277 = vshrl.u32 %v2276, 7
    %v2278 = vsub.s32 6, %v2277
    %v2279 = vrot.slane %v2086, %v2278
    %2281 = vbcast.lane.b32.xlu0 %v2279, 256
    %v2282 = vpop.permute.xlu0 %2281
    %v2283 = vlaneseq
    %v2284 = vshrl.u32 %v2283, 7
    %v2285 = vsub.s32 7, %v2284
    %v2286 = vrot.slane %v2086, %v2285
    %2288 = vbcast.lane.b32.xlu0 %v2286, 256
    %v2289 = vpop.permute.xlu0 %2288
    %v2290 = vlaneseq
    %v2291 = vshrl.u32 %v2290, 7
    %v2292 = vsub.s32 0, %v2291
    %v2293 = vrot.slane %v2093, %v2292
    %2295 = vbcast.lane.b32.xlu0 %v2293, 256
    %v2296 = vpop.permute.xlu0 %2295
    %v2297 = vlaneseq
    %v2298 = vshrl.u32 %v2297, 7
    %v2299 = vsub.s32 1, %v2298
    %v2300 = vrot.slane %v2093, %v2299
    %2302 = vbcast.lane.b32.xlu0 %v2300, 256
    %v2303 = vpop.permute.xlu0 %2302
    %v2304 = vlaneseq
    %v2305 = vshrl.u32 %v2304, 7
    %v2306 = vsub.s32 2, %v2305
    %v2307 = vrot.slane %v2093, %v2306
    %2309 = vbcast.lane.b32.xlu0 %v2307, 256
    %v2310 = vpop.permute.xlu0 %2309
    %v2311 = vlaneseq
    %v2312 = vshrl.u32 %v2311, 7
    %v2313 = vsub.s32 3, %v2312
    %v2314 = vrot.slane %v2093, %v2313
    %2316 = vbcast.lane.b32.xlu0 %v2314, 256
    %v2317 = vpop.permute.xlu0 %2316
    %v2318 = vlaneseq
    %v2319 = vshrl.u32 %v2318, 7
    %v2320 = vsub.s32 4, %v2319
    %v2321 = vrot.slane %v2093, %v2320
    %2323 = vbcast.lane.b32.xlu0 %v2321, 256
    %v2324 = vpop.permute.xlu0 %2323
    %v2325 = vlaneseq
    %v2326 = vshrl.u32 %v2325, 7
    %v2327 = vsub.s32 5, %v2326
    %v2328 = vrot.slane %v2093, %v2327
    %2330 = vbcast.lane.b32.xlu0 %v2328, 256
    %v2331 = vpop.permute.xlu0 %2330
    %v2332 = vlaneseq
    %v2333 = vshrl.u32 %v2332, 7
    %v2334 = vsub.s32 6, %v2333
    %v2335 = vrot.slane %v2093, %v2334
    %2337 = vbcast.lane.b32.xlu0 %v2335, 256
    %v2338 = vpop.permute.xlu0 %2337
    %v2339 = vlaneseq
    %v2340 = vshrl.u32 %v2339, 7
    %v2341 = vsub.s32 7, %v2340
    %v2342 = vrot.slane %v2093, %v2341
    %2344 = vbcast.lane.b32.xlu0 %v2342, 256
    %v2345 = vpop.permute.xlu0 %2344
    %v2346 = vlaneseq
    %v2347 = vshrl.u32 %v2346, 7
    %v2348 = vsub.s32 0, %v2347
    %v2349 = vrot.slane %v2100, %v2348
    %2351 = vbcast.lane.b32.xlu0 %v2349, 256
    %v2352 = vpop.permute.xlu0 %2351
    %v2353 = vlaneseq
    %v2354 = vshrl.u32 %v2353, 7
    %v2355 = vsub.s32 1, %v2354
    %v2356 = vrot.slane %v2100, %v2355
    %2358 = vbcast.lane.b32.xlu0 %v2356, 256
    %v2359 = vpop.permute.xlu0 %2358
    %v2360 = vlaneseq
    %v2361 = vshrl.u32 %v2360, 7
    %v2362 = vsub.s32 2, %v2361
    %v2363 = vrot.slane %v2100, %v2362
    %2365 = vbcast.lane.b32.xlu0 %v2363, 256
    %v2366 = vpop.permute.xlu0 %2365
    %v2367 = vlaneseq
    %v2368 = vshrl.u32 %v2367, 7
    %v2369 = vsub.s32 3, %v2368
    %v2370 = vrot.slane %v2100, %v2369
    %2372 = vbcast.lane.b32.xlu0 %v2370, 256
    %v2373 = vpop.permute.xlu0 %2372
    %v2374 = vlaneseq
    %v2375 = vshrl.u32 %v2374, 7
    %v2376 = vsub.s32 4, %v2375
    %v2377 = vrot.slane %v2100, %v2376
    %2379 = vbcast.lane.b32.xlu0 %v2377, 256
    %v2380 = vpop.permute.xlu0 %2379
    %v2381 = vlaneseq
    %v2382 = vshrl.u32 %v2381, 7
    %v2383 = vsub.s32 5, %v2382
    %v2384 = vrot.slane %v2100, %v2383
    %2386 = vbcast.lane.b32.xlu0 %v2384, 256
    %v2387 = vpop.permute.xlu0 %2386
    %v2388 = vlaneseq
    %v2389 = vshrl.u32 %v2388, 7
    %v2390 = vsub.s32 6, %v2389
    %v2391 = vrot.slane %v2100, %v2390
    %2393 = vbcast.lane.b32.xlu0 %v2391, 256
    %v2394 = vpop.permute.xlu0 %2393
    %v2395 = vlaneseq
    %v2396 = vshrl.u32 %v2395, 7
    %v2397 = vsub.s32 7, %v2396
    %v2398 = vrot.slane %v2100, %v2397
    %2400 = vbcast.lane.b32.xlu0 %v2398, 256
    %v2401 = vpop.permute.xlu0 %2400
    %v2402 = vlaneseq
    %v2403 = vshrl.u32 %v2402, 7
    %v2404 = vsub.s32 0, %v2403
    %v2405 = vrot.slane %v2107, %v2404
    %2407 = vbcast.lane.b32.xlu0 %v2405, 256
    %v2408 = vpop.permute.xlu0 %2407
    %v2409 = vlaneseq
    %v2410 = vshrl.u32 %v2409, 7
    %v2411 = vsub.s32 1, %v2410
    %v2412 = vrot.slane %v2107, %v2411
    %2414 = vbcast.lane.b32.xlu0 %v2412, 256
    %v2415 = vpop.permute.xlu0 %2414
    %v2416 = vlaneseq
    %v2417 = vshrl.u32 %v2416, 7
    %v2418 = vsub.s32 2, %v2417
    %v2419 = vrot.slane %v2107, %v2418
    %2421 = vbcast.lane.b32.xlu0 %v2419, 256
    %v2422 = vpop.permute.xlu0 %2421
    %v2423 = vlaneseq
    %v2424 = vshrl.u32 %v2423, 7
    %v2425 = vsub.s32 3, %v2424
    %v2426 = vrot.slane %v2107, %v2425
    %2428 = vbcast.lane.b32.xlu0 %v2426, 256
    %v2429 = vpop.permute.xlu0 %2428
    %v2430 = vlaneseq
    %v2431 = vshrl.u32 %v2430, 7
    %v2432 = vsub.s32 4, %v2431
    %v2433 = vrot.slane %v2107, %v2432
    %2435 = vbcast.lane.b32.xlu0 %v2433, 256
    %v2436 = vpop.permute.xlu0 %2435
    %v2437 = vlaneseq
    %v2438 = vshrl.u32 %v2437, 7
    %v2439 = vsub.s32 5, %v2438
    %v2440 = vrot.slane %v2107, %v2439
    %2442 = vbcast.lane.b32.xlu0 %v2440, 256
    %v2443 = vpop.permute.xlu0 %2442
    %v2444 = vlaneseq
    %v2445 = vshrl.u32 %v2444, 7
    %v2446 = vsub.s32 6, %v2445
    %v2447 = vrot.slane %v2107, %v2446
    %2449 = vbcast.lane.b32.xlu0 %v2447, 256
    %v2450 = vpop.permute.xlu0 %2449
    %v2451 = vlaneseq
    %v2452 = vshrl.u32 %v2451, 7
    %v2453 = vsub.s32 7, %v2452
    %v2454 = vrot.slane %v2107, %v2453
    %2456 = vbcast.lane.b32.xlu0 %v2454, 256
    %v2457 = vpop.permute.xlu0 %2456
    %v2458 = vlaneseq
    %v2459 = vshrl.u32 %v2458, 7
    %v2460 = vsub.s32 0, %v2459
    %v2461 = vrot.slane %v2114, %v2460
    %2463 = vbcast.lane.b32.xlu0 %v2461, 256
    %v2464 = vpop.permute.xlu0 %2463
    %v2465 = vlaneseq
    %v2466 = vshrl.u32 %v2465, 7
    %v2467 = vsub.s32 1, %v2466
    %v2468 = vrot.slane %v2114, %v2467
    %2470 = vbcast.lane.b32.xlu0 %v2468, 256
    %v2471 = vpop.permute.xlu0 %2470
    %v2472 = vlaneseq
    %v2473 = vshrl.u32 %v2472, 7
    %v2474 = vsub.s32 2, %v2473
    %v2475 = vrot.slane %v2114, %v2474
    %2477 = vbcast.lane.b32.xlu0 %v2475, 256
    %v2478 = vpop.permute.xlu0 %2477
    %v2479 = vlaneseq
    %v2480 = vshrl.u32 %v2479, 7
    %v2481 = vsub.s32 3, %v2480
    %v2482 = vrot.slane %v2114, %v2481
    %2484 = vbcast.lane.b32.xlu0 %v2482, 256
    %v2485 = vpop.permute.xlu0 %2484
    %v2486 = vlaneseq
    %v2487 = vshrl.u32 %v2486, 7
    %v2488 = vsub.s32 4, %v2487
    %v2489 = vrot.slane %v2114, %v2488
    %2491 = vbcast.lane.b32.xlu0 %v2489, 256
    %v2492 = vpop.permute.xlu0 %2491
    %v2493 = vlaneseq
    %v2494 = vshrl.u32 %v2493, 7
    %v2495 = vsub.s32 5, %v2494
    %v2496 = vrot.slane %v2114, %v2495
    %2498 = vbcast.lane.b32.xlu0 %v2496, 256
    %v2499 = vpop.permute.xlu0 %2498
    %v2500 = vlaneseq
    %v2501 = vshrl.u32 %v2500, 7
    %v2502 = vsub.s32 6, %v2501
    %v2503 = vrot.slane %v2114, %v2502
    %2505 = vbcast.lane.b32.xlu0 %v2503, 256
    %v2506 = vpop.permute.xlu0 %2505
    %v2507 = vlaneseq
    %v2508 = vshrl.u32 %v2507, 7
    %v2509 = vsub.s32 7, %v2508
    %v2510 = vrot.slane %v2114, %v2509
    %2512 = vbcast.lane.b32.xlu0 %v2510, 256
    %v2513 = vpop.permute.xlu0 %2512
    %v2514 = vlaneseq
    %v2515 = vshrl.u32 %v2514, 7
    %v2516 = vsub.s32 0, %v2515
    %v2517 = vrot.slane %v2121, %v2516
    %2519 = vbcast.lane.b32.xlu0 %v2517, 256
    %v2520 = vpop.permute.xlu0 %2519
    %v2521 = vlaneseq
    %v2522 = vshrl.u32 %v2521, 7
    %v2523 = vsub.s32 1, %v2522
    %v2524 = vrot.slane %v2121, %v2523
    %2526 = vbcast.lane.b32.xlu0 %v2524, 256
    %v2527 = vpop.permute.xlu0 %2526
    %v2528 = vlaneseq
    %v2529 = vshrl.u32 %v2528, 7
    %v2530 = vsub.s32 2, %v2529
    %v2531 = vrot.slane %v2121, %v2530
    %2533 = vbcast.lane.b32.xlu0 %v2531, 256
    %v2534 = vpop.permute.xlu0 %2533
    %v2535 = vlaneseq
    %v2536 = vshrl.u32 %v2535, 7
    %v2537 = vsub.s32 3, %v2536
    %v2538 = vrot.slane %v2121, %v2537
    %2540 = vbcast.lane.b32.xlu0 %v2538, 256
    %v2541 = vpop.permute.xlu0 %2540
    %v2542 = vlaneseq
    %v2543 = vshrl.u32 %v2542, 7
    %v2544 = vsub.s32 4, %v2543
    %v2545 = vrot.slane %v2121, %v2544
    %2547 = vbcast.lane.b32.xlu0 %v2545, 256
    %v2548 = vpop.permute.xlu0 %2547
    %v2549 = vlaneseq
    %v2550 = vshrl.u32 %v2549, 7
    %v2551 = vsub.s32 5, %v2550
    %v2552 = vrot.slane %v2121, %v2551
    %2554 = vbcast.lane.b32.xlu0 %v2552, 256
    %v2555 = vpop.permute.xlu0 %2554
    %v2556 = vlaneseq
    %v2557 = vshrl.u32 %v2556, 7
    %v2558 = vsub.s32 6, %v2557
    %v2559 = vrot.slane %v2121, %v2558
    %2561 = vbcast.lane.b32.xlu0 %v2559, 256
    %v2562 = vpop.permute.xlu0 %2561
    %v2563 = vlaneseq
    %v2564 = vshrl.u32 %v2563, 7
    %v2565 = vsub.s32 7, %v2564
    %v2566 = vrot.slane %v2121, %v2565
    %2568 = vbcast.lane.b32.xlu0 %v2566, 256
    %v2569 = vpop.permute.xlu0 %2568
    %v2634 = vmul.f32 %v2049, %v2128
    %v2635 = vmul.f32 %v2050, %v2135
    %v2636 = vmul.f32 %v2051, %v2142
    %v2637 = vmul.f32 %v2052, %v2149
    %v2638 = vmul.f32 %v2053, %v2156
    %v2639 = vmul.f32 %v2054, %v2163
    %v2640 = vmul.f32 %v2055, %v2170
    %v2641 = vmul.f32 %v2056, %v2177
    %v2642 = vmul.f32 %v2049, %v2184
    %v2643 = vmul.f32 %v2050, %v2191
    %v2644 = vmul.f32 %v2051, %v2198
    %v2645 = vmul.f32 %v2052, %v2205
    %v2646 = vmul.f32 %v2053, %v2212
    %v2647 = vmul.f32 %v2054, %v2219
    %v2648 = vmul.f32 %v2055, %v2226
    %v2649 = vmul.f32 %v2056, %v2233
    %v2650 = vmul.f32 %v2049, %v2240
    %v2651 = vmul.f32 %v2050, %v2247
    %v2652 = vmul.f32 %v2051, %v2254
    %v2653 = vmul.f32 %v2052, %v2261
    %v2654 = vmul.f32 %v2053, %v2268
    %v2655 = vmul.f32 %v2054, %v2275
    %v2656 = vmul.f32 %v2055, %v2282
    %v2657 = vmul.f32 %v2056, %v2289
    %v2658 = vmul.f32 %v2049, %v2296
    %v2659 = vmul.f32 %v2050, %v2303
    %v2660 = vmul.f32 %v2051, %v2310
    %v2661 = vmul.f32 %v2052, %v2317
    %v2662 = vmul.f32 %v2053, %v2324
    %v2663 = vmul.f32 %v2054, %v2331
    %v2664 = vmul.f32 %v2055, %v2338
    %v2665 = vmul.f32 %v2056, %v2345
    %v2666 = vmul.f32 %v2049, %v2352
    %v2667 = vmul.f32 %v2050, %v2359
    %v2668 = vmul.f32 %v2051, %v2366
    %v2669 = vmul.f32 %v2052, %v2373
    %v2670 = vmul.f32 %v2053, %v2380
    %v2671 = vmul.f32 %v2054, %v2387
    %v2672 = vmul.f32 %v2055, %v2394
    %v2673 = vmul.f32 %v2056, %v2401
    %v2674 = vmul.f32 %v2049, %v2408
    %v2675 = vmul.f32 %v2050, %v2415
    %v2676 = vmul.f32 %v2051, %v2422
    %v2677 = vmul.f32 %v2052, %v2429
    %v2678 = vmul.f32 %v2053, %v2436
    %v2679 = vmul.f32 %v2054, %v2443
    %v2680 = vmul.f32 %v2055, %v2450
    %v2681 = vmul.f32 %v2056, %v2457
    %v2682 = vmul.f32 %v2049, %v2464
    %v2683 = vmul.f32 %v2050, %v2471
    %v2684 = vmul.f32 %v2051, %v2478
    %v2685 = vmul.f32 %v2052, %v2485
    %v2686 = vmul.f32 %v2053, %v2492
    %v2687 = vmul.f32 %v2054, %v2499
    %v2688 = vmul.f32 %v2055, %v2506
    %v2689 = vmul.f32 %v2056, %v2513
    %v2690 = vmul.f32 %v2049, %v2520
    %v2691 = vmul.f32 %v2050, %v2527
    %v2692 = vmul.f32 %v2051, %v2534
    %v2693 = vmul.f32 %v2052, %v2541
    %v2694 = vmul.f32 %v2053, %v2548
    %v2695 = vmul.f32 %v2054, %v2555
    %v2696 = vmul.f32 %v2055, %v2562
    %v2697 = vmul.f32 %v2056, %v2569
    %v2698 = vmul.f32 %v2057, %v2128
    %v2699 = vmul.f32 %v2058, %v2135
    %v2700 = vmul.f32 %v2059, %v2142
    %v2701 = vmul.f32 %v2060, %v2149
    %v2702 = vmul.f32 %v2061, %v2156
    %v2703 = vmul.f32 %v2062, %v2163
    %v2704 = vmul.f32 %v2063, %v2170
    %v2705 = vmul.f32 %v2064, %v2177
    %v2706 = vmul.f32 %v2057, %v2184
    %v2707 = vmul.f32 %v2058, %v2191
    %v2708 = vmul.f32 %v2059, %v2198
    %v2709 = vmul.f32 %v2060, %v2205
    %v2710 = vmul.f32 %v2061, %v2212
    %v2711 = vmul.f32 %v2062, %v2219
    %v2712 = vmul.f32 %v2063, %v2226
    %v2713 = vmul.f32 %v2064, %v2233
    %v2714 = vmul.f32 %v2057, %v2240
    %v2715 = vmul.f32 %v2058, %v2247
    %v2716 = vmul.f32 %v2059, %v2254
    %v2717 = vmul.f32 %v2060, %v2261
    %v2718 = vmul.f32 %v2061, %v2268
    %v2719 = vmul.f32 %v2062, %v2275
    %v2720 = vmul.f32 %v2063, %v2282
    %v2721 = vmul.f32 %v2064, %v2289
    %v2722 = vmul.f32 %v2057, %v2296
    %v2723 = vmul.f32 %v2058, %v2303
    %v2724 = vmul.f32 %v2059, %v2310
    %v2725 = vmul.f32 %v2060, %v2317
    %v2726 = vmul.f32 %v2061, %v2324
    %v2727 = vmul.f32 %v2062, %v2331
    %v2728 = vmul.f32 %v2063, %v2338
    %v2729 = vmul.f32 %v2064, %v2345
    %v2730 = vmul.f32 %v2057, %v2352
    %v2731 = vmul.f32 %v2058, %v2359
    %v2732 = vmul.f32 %v2059, %v2366
    %v2733 = vmul.f32 %v2060, %v2373
    %v2734 = vmul.f32 %v2061, %v2380
    %v2735 = vmul.f32 %v2062, %v2387
    %v2736 = vmul.f32 %v2063, %v2394
    %v2737 = vmul.f32 %v2064, %v2401
    %v2738 = vmul.f32 %v2057, %v2408
    %v2739 = vmul.f32 %v2058, %v2415
    %v2740 = vmul.f32 %v2059, %v2422
    %v2741 = vmul.f32 %v2060, %v2429
    %v2742 = vmul.f32 %v2061, %v2436
    %v2743 = vmul.f32 %v2062, %v2443
    %v2744 = vmul.f32 %v2063, %v2450
    %v2745 = vmul.f32 %v2064, %v2457
    %v2746 = vmul.f32 %v2057, %v2464
    %v2747 = vmul.f32 %v2058, %v2471
    %v2748 = vmul.f32 %v2059, %v2478
    %v2749 = vmul.f32 %v2060, %v2485
    %v2750 = vmul.f32 %v2061, %v2492
    %v2751 = vmul.f32 %v2062, %v2499
    %v2752 = vmul.f32 %v2063, %v2506
    %v2753 = vmul.f32 %v2064, %v2513
    %v2754 = vmul.f32 %v2057, %v2520
    %v2755 = vmul.f32 %v2058, %v2527
    %v2756 = vmul.f32 %v2059, %v2534
    %v2757 = vmul.f32 %v2060, %v2541
    %v2758 = vmul.f32 %v2061, %v2548
    %v2759 = vmul.f32 %v2062, %v2555
    %v2760 = vmul.f32 %v2063, %v2562
    %v2761 = vmul.f32 %v2064, %v2569
    %v2762 = vsub.f32 1.0, %v2634
    %v2763 = vsub.f32 1.0, %v2635
    %v2764 = vsub.f32 1.0, %v2636
    %v2765 = vsub.f32 1.0, %v2637
    %v2766 = vsub.f32 1.0, %v2638
    %v2767 = vsub.f32 1.0, %v2639
    %v2768 = vsub.f32 1.0, %v2640
    %v2769 = vsub.f32 1.0, %v2641
    %v2770 = vsub.f32 1.0, %v2642
    %v2771 = vsub.f32 1.0, %v2643
    %v2772 = vsub.f32 1.0, %v2644
    %v2773 = vsub.f32 1.0, %v2645
    %v2774 = vsub.f32 1.0, %v2646
    %v2775 = vsub.f32 1.0, %v2647
    %v2776 = vsub.f32 1.0, %v2648
    %v2777 = vsub.f32 1.0, %v2649
    %v2778 = vsub.f32 1.0, %v2650
    %v2779 = vsub.f32 1.0, %v2651
    %v2780 = vsub.f32 1.0, %v2652
    %v2781 = vsub.f32 1.0, %v2653
    %v2782 = vsub.f32 1.0, %v2654
    %v2783 = vsub.f32 1.0, %v2655
    %v2784 = vsub.f32 1.0, %v2656
    %v2785 = vsub.f32 1.0, %v2657
    %v2786 = vsub.f32 1.0, %v2658
    %v2787 = vsub.f32 1.0, %v2659
    %v2788 = vsub.f32 1.0, %v2660
    %v2789 = vsub.f32 1.0, %v2661
    %v2790 = vsub.f32 1.0, %v2662
    %v2791 = vsub.f32 1.0, %v2663
    %v2792 = vsub.f32 1.0, %v2664
    %v2793 = vsub.f32 1.0, %v2665
    %v2794 = vsub.f32 1.0, %v2666
    %v2795 = vsub.f32 1.0, %v2667
    %v2796 = vsub.f32 1.0, %v2668
    %v2797 = vsub.f32 1.0, %v2669
    %v2798 = vsub.f32 1.0, %v2670
    %v2799 = vsub.f32 1.0, %v2671
    %v2800 = vsub.f32 1.0, %v2672
    %v2801 = vsub.f32 1.0, %v2673
    %v2802 = vsub.f32 1.0, %v2674
    %v2803 = vsub.f32 1.0, %v2675
    %v2804 = vsub.f32 1.0, %v2676
    %v2805 = vsub.f32 1.0, %v2677
    %v2806 = vsub.f32 1.0, %v2678
    %v2807 = vsub.f32 1.0, %v2679
    %v2808 = vsub.f32 1.0, %v2680
    %v2809 = vsub.f32 1.0, %v2681
    %v2810 = vsub.f32 1.0, %v2682
    %v2811 = vsub.f32 1.0, %v2683
    %v2812 = vsub.f32 1.0, %v2684
    %v2813 = vsub.f32 1.0, %v2685
    %v2814 = vsub.f32 1.0, %v2686
    %v2815 = vsub.f32 1.0, %v2687
    %v2816 = vsub.f32 1.0, %v2688
    %v2817 = vsub.f32 1.0, %v2689
    %v2818 = vsub.f32 1.0, %v2690
    %v2819 = vsub.f32 1.0, %v2691
    %v2820 = vsub.f32 1.0, %v2692
    %v2821 = vsub.f32 1.0, %v2693
    %v2822 = vsub.f32 1.0, %v2694
    %v2823 = vsub.f32 1.0, %v2695
    %v2824 = vsub.f32 1.0, %v2696
    %v2825 = vsub.f32 1.0, %v2697
    %v2826 = vsub.f32 1.0, %v2698
    %v2827 = vsub.f32 1.0, %v2699
    %v2828 = vsub.f32 1.0, %v2700
    %v2829 = vsub.f32 1.0, %v2701
    %v2830 = vsub.f32 1.0, %v2702
    %v2831 = vsub.f32 1.0, %v2703
    %v2832 = vsub.f32 1.0, %v2704
    %v2833 = vsub.f32 1.0, %v2705
    %v2834 = vsub.f32 1.0, %v2706
    %v2835 = vsub.f32 1.0, %v2707
    %v2836 = vsub.f32 1.0, %v2708
    %v2837 = vsub.f32 1.0, %v2709
    %v2838 = vsub.f32 1.0, %v2710
    %v2839 = vsub.f32 1.0, %v2711
    %v2840 = vsub.f32 1.0, %v2712
    %v2841 = vsub.f32 1.0, %v2713
    %v2842 = vsub.f32 1.0, %v2714
    %v2843 = vsub.f32 1.0, %v2715
    %v2844 = vsub.f32 1.0, %v2716
    %v2845 = vsub.f32 1.0, %v2717
    %v2846 = vsub.f32 1.0, %v2718
    %v2847 = vsub.f32 1.0, %v2719
    %v2848 = vsub.f32 1.0, %v2720
    %v2849 = vsub.f32 1.0, %v2721
    %v2850 = vsub.f32 1.0, %v2722
    %v2851 = vsub.f32 1.0, %v2723
    %v2852 = vsub.f32 1.0, %v2724
    %v2853 = vsub.f32 1.0, %v2725
    %v2854 = vsub.f32 1.0, %v2726
    %v2855 = vsub.f32 1.0, %v2727
    %v2856 = vsub.f32 1.0, %v2728
    %v2857 = vsub.f32 1.0, %v2729
    %v2858 = vsub.f32 1.0, %v2730
    %v2859 = vsub.f32 1.0, %v2731
    %v2860 = vsub.f32 1.0, %v2732
    %v2861 = vsub.f32 1.0, %v2733
    %v2862 = vsub.f32 1.0, %v2734
    %v2863 = vsub.f32 1.0, %v2735
    %v2864 = vsub.f32 1.0, %v2736
    %v2865 = vsub.f32 1.0, %v2737
    %v2866 = vsub.f32 1.0, %v2738
    %v2867 = vsub.f32 1.0, %v2739
    %v2868 = vsub.f32 1.0, %v2740
    %v2869 = vsub.f32 1.0, %v2741
    %v2870 = vsub.f32 1.0, %v2742
    %v2871 = vsub.f32 1.0, %v2743
    %v2872 = vsub.f32 1.0, %v2744
    %v2873 = vsub.f32 1.0, %v2745
    %v2874 = vsub.f32 1.0, %v2746
    %v2875 = vsub.f32 1.0, %v2747
    %v2876 = vsub.f32 1.0, %v2748
    %v2877 = vsub.f32 1.0, %v2749
    %v2878 = vsub.f32 1.0, %v2750
    %v2879 = vsub.f32 1.0, %v2751
    %v2880 = vsub.f32 1.0, %v2752
    %v2881 = vsub.f32 1.0, %v2753
    %v2882 = vsub.f32 1.0, %v2754
    %v2883 = vsub.f32 1.0, %v2755
    %v2884 = vsub.f32 1.0, %v2756
    %v2885 = vsub.f32 1.0, %v2757
    %v2886 = vsub.f32 1.0, %v2758
    %v2887 = vsub.f32 1.0, %v2759
    %v2888 = vsub.f32 1.0, %v2760
    %v2889 = vsub.f32 1.0, %v2761
    %v2891 = vlaneseq
    %v2892 = vshrl.u32 %v2891, 7
    %v2893 = vsub.s32 0, %v2892
    %v2894 = vrot.slane %v642, %v2893
    %2896 = vbcast.lane.b32.xlu0 %v2894, 256
    %v2897 = vpop.permute.xlu0 %2896
    %v2898 = vlaneseq
    %v2899 = vshrl.u32 %v2898, 7
    %v2900 = vsub.s32 1, %v2899
    %v2901 = vrot.slane %v642, %v2900
    %2903 = vbcast.lane.b32.xlu0 %v2901, 256
    %v2904 = vpop.permute.xlu0 %2903
    %v2905 = vlaneseq
    %v2906 = vshrl.u32 %v2905, 7
    %v2907 = vsub.s32 2, %v2906
    %v2908 = vrot.slane %v642, %v2907
    %2910 = vbcast.lane.b32.xlu0 %v2908, 256
    %v2911 = vpop.permute.xlu0 %2910
    %v2912 = vlaneseq
    %v2913 = vshrl.u32 %v2912, 7
    %v2914 = vsub.s32 3, %v2913
    %v2915 = vrot.slane %v642, %v2914
    %2917 = vbcast.lane.b32.xlu0 %v2915, 256
    %v2918 = vpop.permute.xlu0 %2917
    %v2919 = vlaneseq
    %v2920 = vshrl.u32 %v2919, 7
    %v2921 = vsub.s32 4, %v2920
    %v2922 = vrot.slane %v642, %v2921
    %2924 = vbcast.lane.b32.xlu0 %v2922, 256
    %v2925 = vpop.permute.xlu0 %2924
    %v2926 = vlaneseq
    %v2927 = vshrl.u32 %v2926, 7
    %v2928 = vsub.s32 5, %v2927
    %v2929 = vrot.slane %v642, %v2928
    %2931 = vbcast.lane.b32.xlu0 %v2929, 256
    %v2932 = vpop.permute.xlu0 %2931
    %v2933 = vlaneseq
    %v2934 = vshrl.u32 %v2933, 7
    %v2935 = vsub.s32 6, %v2934
    %v2936 = vrot.slane %v642, %v2935
    %2938 = vbcast.lane.b32.xlu0 %v2936, 256
    %v2939 = vpop.permute.xlu0 %2938
    %v2940 = vlaneseq
    %v2941 = vshrl.u32 %v2940, 7
    %v2942 = vsub.s32 7, %v2941
    %v2943 = vrot.slane %v642, %v2942
    %2945 = vbcast.lane.b32.xlu0 %v2943, 256
    %v2946 = vpop.permute.xlu0 %2945
    %v2947 = vlaneseq
    %v2948 = vshrl.u32 %v2947, 7
    %v2949 = vsub.s32 0, %v2948
    %v2950 = vrot.slane %v2897, %v2949
    %2952 = vbcast.lane.b32.xlu0 %v2950, 256
    %v2953 = vpop.permute.xlu0 %2952
    %v2954 = vlaneseq
    %v2955 = vshrl.u32 %v2954, 7
    %v2956 = vsub.s32 1, %v2955
    %v2957 = vrot.slane %v2897, %v2956
    %2959 = vbcast.lane.b32.xlu0 %v2957, 256
    %v2960 = vpop.permute.xlu0 %2959
    %v2961 = vlaneseq
    %v2962 = vshrl.u32 %v2961, 7
    %v2963 = vsub.s32 2, %v2962
    %v2964 = vrot.slane %v2897, %v2963
    %2966 = vbcast.lane.b32.xlu0 %v2964, 256
    %v2967 = vpop.permute.xlu0 %2966
    %v2968 = vlaneseq
    %v2969 = vshrl.u32 %v2968, 7
    %v2970 = vsub.s32 3, %v2969
    %v2971 = vrot.slane %v2897, %v2970
    %2973 = vbcast.lane.b32.xlu0 %v2971, 256
    %v2974 = vpop.permute.xlu0 %2973
    %v2975 = vlaneseq
    %v2976 = vshrl.u32 %v2975, 7
    %v2977 = vsub.s32 4, %v2976
    %v2978 = vrot.slane %v2897, %v2977
    %2980 = vbcast.lane.b32.xlu0 %v2978, 256
    %v2981 = vpop.permute.xlu0 %2980
    %v2982 = vlaneseq
    %v2983 = vshrl.u32 %v2982, 7
    %v2984 = vsub.s32 5, %v2983
    %v2985 = vrot.slane %v2897, %v2984
    %2987 = vbcast.lane.b32.xlu0 %v2985, 256
    %v2988 = vpop.permute.xlu0 %2987
    %v2989 = vlaneseq
    %v2990 = vshrl.u32 %v2989, 7
    %v2991 = vsub.s32 6, %v2990
    %v2992 = vrot.slane %v2897, %v2991
    %2994 = vbcast.lane.b32.xlu0 %v2992, 256
    %v2995 = vpop.permute.xlu0 %2994
    %v2996 = vlaneseq
    %v2997 = vshrl.u32 %v2996, 7
    %v2998 = vsub.s32 7, %v2997
    %v2999 = vrot.slane %v2897, %v2998
    %3001 = vbcast.lane.b32.xlu0 %v2999, 256
    %v3002 = vpop.permute.xlu0 %3001
    %v3003 = vlaneseq
    %v3004 = vshrl.u32 %v3003, 7
    %v3005 = vsub.s32 0, %v3004
    %v3006 = vrot.slane %v2904, %v3005
    %3008 = vbcast.lane.b32.xlu0 %v3006, 256
    %v3009 = vpop.permute.xlu0 %3008
    %v3010 = vlaneseq
    %v3011 = vshrl.u32 %v3010, 7
    %v3012 = vsub.s32 1, %v3011
    %v3013 = vrot.slane %v2904, %v3012
    %3015 = vbcast.lane.b32.xlu0 %v3013, 256
    %v3016 = vpop.permute.xlu0 %3015
    %v3017 = vlaneseq
    %v3018 = vshrl.u32 %v3017, 7
    %v3019 = vsub.s32 2, %v3018
    %v3020 = vrot.slane %v2904, %v3019
    %3022 = vbcast.lane.b32.xlu0 %v3020, 256
    %v3023 = vpop.permute.xlu0 %3022
    %v3024 = vlaneseq
    %v3025 = vshrl.u32 %v3024, 7
    %v3026 = vsub.s32 3, %v3025
    %v3027 = vrot.slane %v2904, %v3026
    %3029 = vbcast.lane.b32.xlu0 %v3027, 256
    %v3030 = vpop.permute.xlu0 %3029
    %v3031 = vlaneseq
    %v3032 = vshrl.u32 %v3031, 7
    %v3033 = vsub.s32 4, %v3032
    %v3034 = vrot.slane %v2904, %v3033
    %3036 = vbcast.lane.b32.xlu0 %v3034, 256
    %v3037 = vpop.permute.xlu0 %3036
    %v3038 = vlaneseq
    %v3039 = vshrl.u32 %v3038, 7
    %v3040 = vsub.s32 5, %v3039
    %v3041 = vrot.slane %v2904, %v3040
    %3043 = vbcast.lane.b32.xlu0 %v3041, 256
    %v3044 = vpop.permute.xlu0 %3043
    %v3045 = vlaneseq
    %v3046 = vshrl.u32 %v3045, 7
    %v3047 = vsub.s32 6, %v3046
    %v3048 = vrot.slane %v2904, %v3047
    %3050 = vbcast.lane.b32.xlu0 %v3048, 256
    %v3051 = vpop.permute.xlu0 %3050
    %v3052 = vlaneseq
    %v3053 = vshrl.u32 %v3052, 7
    %v3054 = vsub.s32 7, %v3053
    %v3055 = vrot.slane %v2904, %v3054
    %3057 = vbcast.lane.b32.xlu0 %v3055, 256
    %v3058 = vpop.permute.xlu0 %3057
    %v3059 = vlaneseq
    %v3060 = vshrl.u32 %v3059, 7
    %v3061 = vsub.s32 0, %v3060
    %v3062 = vrot.slane %v2911, %v3061
    %3064 = vbcast.lane.b32.xlu0 %v3062, 256
    %v3065 = vpop.permute.xlu0 %3064
    %v3066 = vlaneseq
    %v3067 = vshrl.u32 %v3066, 7
    %v3068 = vsub.s32 1, %v3067
    %v3069 = vrot.slane %v2911, %v3068
    %3071 = vbcast.lane.b32.xlu0 %v3069, 256
    %v3072 = vpop.permute.xlu0 %3071
    %v3073 = vlaneseq
    %v3074 = vshrl.u32 %v3073, 7
    %v3075 = vsub.s32 2, %v3074
    %v3076 = vrot.slane %v2911, %v3075
    %3078 = vbcast.lane.b32.xlu0 %v3076, 256
    %v3079 = vpop.permute.xlu0 %3078
    %v3080 = vlaneseq
    %v3081 = vshrl.u32 %v3080, 7
    %v3082 = vsub.s32 3, %v3081
    %v3083 = vrot.slane %v2911, %v3082
    %3085 = vbcast.lane.b32.xlu0 %v3083, 256
    %v3086 = vpop.permute.xlu0 %3085
    %v3087 = vlaneseq
    %v3088 = vshrl.u32 %v3087, 7
    %v3089 = vsub.s32 4, %v3088
    %v3090 = vrot.slane %v2911, %v3089
    %3092 = vbcast.lane.b32.xlu0 %v3090, 256
    %v3093 = vpop.permute.xlu0 %3092
    %v3094 = vlaneseq
    %v3095 = vshrl.u32 %v3094, 7
    %v3096 = vsub.s32 5, %v3095
    %v3097 = vrot.slane %v2911, %v3096
    %3099 = vbcast.lane.b32.xlu0 %v3097, 256
    %v3100 = vpop.permute.xlu0 %3099
    %v3101 = vlaneseq
    %v3102 = vshrl.u32 %v3101, 7
    %v3103 = vsub.s32 6, %v3102
    %v3104 = vrot.slane %v2911, %v3103
    %3106 = vbcast.lane.b32.xlu0 %v3104, 256
    %v3107 = vpop.permute.xlu0 %3106
    %v3108 = vlaneseq
    %v3109 = vshrl.u32 %v3108, 7
    %v3110 = vsub.s32 7, %v3109
    %v3111 = vrot.slane %v2911, %v3110
    %3113 = vbcast.lane.b32.xlu0 %v3111, 256
    %v3114 = vpop.permute.xlu0 %3113
    %v3115 = vlaneseq
    %v3116 = vshrl.u32 %v3115, 7
    %v3117 = vsub.s32 0, %v3116
    %v3118 = vrot.slane %v2918, %v3117
    %3120 = vbcast.lane.b32.xlu0 %v3118, 256
    %v3121 = vpop.permute.xlu0 %3120
    %v3122 = vlaneseq
    %v3123 = vshrl.u32 %v3122, 7
    %v3124 = vsub.s32 1, %v3123
    %v3125 = vrot.slane %v2918, %v3124
    %3127 = vbcast.lane.b32.xlu0 %v3125, 256
    %v3128 = vpop.permute.xlu0 %3127
    %v3129 = vlaneseq
    %v3130 = vshrl.u32 %v3129, 7
    %v3131 = vsub.s32 2, %v3130
    %v3132 = vrot.slane %v2918, %v3131
    %3134 = vbcast.lane.b32.xlu0 %v3132, 256
    %v3135 = vpop.permute.xlu0 %3134
    %v3136 = vlaneseq
    %v3137 = vshrl.u32 %v3136, 7
    %v3138 = vsub.s32 3, %v3137
    %v3139 = vrot.slane %v2918, %v3138
    %3141 = vbcast.lane.b32.xlu0 %v3139, 256
    %v3142 = vpop.permute.xlu0 %3141
    %v3143 = vlaneseq
    %v3144 = vshrl.u32 %v3143, 7
    %v3145 = vsub.s32 4, %v3144
    %v3146 = vrot.slane %v2918, %v3145
    %3148 = vbcast.lane.b32.xlu0 %v3146, 256
    %v3149 = vpop.permute.xlu0 %3148
    %v3150 = vlaneseq
    %v3151 = vshrl.u32 %v3150, 7
    %v3152 = vsub.s32 5, %v3151
    %v3153 = vrot.slane %v2918, %v3152
    %3155 = vbcast.lane.b32.xlu0 %v3153, 256
    %v3156 = vpop.permute.xlu0 %3155
    %v3157 = vlaneseq
    %v3158 = vshrl.u32 %v3157, 7
    %v3159 = vsub.s32 6, %v3158
    %v3160 = vrot.slane %v2918, %v3159
    %3162 = vbcast.lane.b32.xlu0 %v3160, 256
    %v3163 = vpop.permute.xlu0 %3162
    %v3164 = vlaneseq
    %v3165 = vshrl.u32 %v3164, 7
    %v3166 = vsub.s32 7, %v3165
    %v3167 = vrot.slane %v2918, %v3166
    %3169 = vbcast.lane.b32.xlu0 %v3167, 256
    %v3170 = vpop.permute.xlu0 %3169
    %v3171 = vlaneseq
    %v3172 = vshrl.u32 %v3171, 7
    %v3173 = vsub.s32 0, %v3172
    %v3174 = vrot.slane %v2925, %v3173
    %3176 = vbcast.lane.b32.xlu0 %v3174, 256
    %v3177 = vpop.permute.xlu0 %3176
    %v3178 = vlaneseq
    %v3179 = vshrl.u32 %v3178, 7
    %v3180 = vsub.s32 1, %v3179
    %v3181 = vrot.slane %v2925, %v3180
    %3183 = vbcast.lane.b32.xlu0 %v3181, 256
    %v3184 = vpop.permute.xlu0 %3183
    %v3185 = vlaneseq
    %v3186 = vshrl.u32 %v3185, 7
    %v3187 = vsub.s32 2, %v3186
    %v3188 = vrot.slane %v2925, %v3187
    %3190 = vbcast.lane.b32.xlu0 %v3188, 256
    %v3191 = vpop.permute.xlu0 %3190
    %v3192 = vlaneseq
    %v3193 = vshrl.u32 %v3192, 7
    %v3194 = vsub.s32 3, %v3193
    %v3195 = vrot.slane %v2925, %v3194
    %3197 = vbcast.lane.b32.xlu0 %v3195, 256
    %v3198 = vpop.permute.xlu0 %3197
    %v3199 = vlaneseq
    %v3200 = vshrl.u32 %v3199, 7
    %v3201 = vsub.s32 4, %v3200
    %v3202 = vrot.slane %v2925, %v3201
    %3204 = vbcast.lane.b32.xlu0 %v3202, 256
    %v3205 = vpop.permute.xlu0 %3204
    %v3206 = vlaneseq
    %v3207 = vshrl.u32 %v3206, 7
    %v3208 = vsub.s32 5, %v3207
    %v3209 = vrot.slane %v2925, %v3208
    %3211 = vbcast.lane.b32.xlu0 %v3209, 256
    %v3212 = vpop.permute.xlu0 %3211
    %v3213 = vlaneseq
    %v3214 = vshrl.u32 %v3213, 7
    %v3215 = vsub.s32 6, %v3214
    %v3216 = vrot.slane %v2925, %v3215
    %3218 = vbcast.lane.b32.xlu0 %v3216, 256
    %v3219 = vpop.permute.xlu0 %3218
    %v3220 = vlaneseq
    %v3221 = vshrl.u32 %v3220, 7
    %v3222 = vsub.s32 7, %v3221
    %v3223 = vrot.slane %v2925, %v3222
    %3225 = vbcast.lane.b32.xlu0 %v3223, 256
    %v3226 = vpop.permute.xlu0 %3225
    %v3227 = vlaneseq
    %v3228 = vshrl.u32 %v3227, 7
    %v3229 = vsub.s32 0, %v3228
    %v3230 = vrot.slane %v2932, %v3229
    %3232 = vbcast.lane.b32.xlu0 %v3230, 256
    %v3233 = vpop.permute.xlu0 %3232
    %v3234 = vlaneseq
    %v3235 = vshrl.u32 %v3234, 7
    %v3236 = vsub.s32 1, %v3235
    %v3237 = vrot.slane %v2932, %v3236
    %3239 = vbcast.lane.b32.xlu0 %v3237, 256
    %v3240 = vpop.permute.xlu0 %3239
    %v3241 = vlaneseq
    %v3242 = vshrl.u32 %v3241, 7
    %v3243 = vsub.s32 2, %v3242
    %v3244 = vrot.slane %v2932, %v3243
    %3246 = vbcast.lane.b32.xlu0 %v3244, 256
    %v3247 = vpop.permute.xlu0 %3246
    %v3248 = vlaneseq
    %v3249 = vshrl.u32 %v3248, 7
    %v3250 = vsub.s32 3, %v3249
    %v3251 = vrot.slane %v2932, %v3250
    %3253 = vbcast.lane.b32.xlu0 %v3251, 256
    %v3254 = vpop.permute.xlu0 %3253
    %v3255 = vlaneseq
    %v3256 = vshrl.u32 %v3255, 7
    %v3257 = vsub.s32 4, %v3256
    %v3258 = vrot.slane %v2932, %v3257
    %3260 = vbcast.lane.b32.xlu0 %v3258, 256
    %v3261 = vpop.permute.xlu0 %3260
    %v3262 = vlaneseq
    %v3263 = vshrl.u32 %v3262, 7
    %v3264 = vsub.s32 5, %v3263
    %v3265 = vrot.slane %v2932, %v3264
    %3267 = vbcast.lane.b32.xlu0 %v3265, 256
    %v3268 = vpop.permute.xlu0 %3267
    %v3269 = vlaneseq
    %v3270 = vshrl.u32 %v3269, 7
    %v3271 = vsub.s32 6, %v3270
    %v3272 = vrot.slane %v2932, %v3271
    %3274 = vbcast.lane.b32.xlu0 %v3272, 256
    %v3275 = vpop.permute.xlu0 %3274
    %v3276 = vlaneseq
    %v3277 = vshrl.u32 %v3276, 7
    %v3278 = vsub.s32 7, %v3277
    %v3279 = vrot.slane %v2932, %v3278
    %3281 = vbcast.lane.b32.xlu0 %v3279, 256
    %v3282 = vpop.permute.xlu0 %3281
    %v3283 = vlaneseq
    %v3284 = vshrl.u32 %v3283, 7
    %v3285 = vsub.s32 0, %v3284
    %v3286 = vrot.slane %v2939, %v3285
    %3288 = vbcast.lane.b32.xlu0 %v3286, 256
    %v3289 = vpop.permute.xlu0 %3288
    %v3290 = vlaneseq
    %v3291 = vshrl.u32 %v3290, 7
    %v3292 = vsub.s32 1, %v3291
    %v3293 = vrot.slane %v2939, %v3292
    %3295 = vbcast.lane.b32.xlu0 %v3293, 256
    %v3296 = vpop.permute.xlu0 %3295
    %v3297 = vlaneseq
    %v3298 = vshrl.u32 %v3297, 7
    %v3299 = vsub.s32 2, %v3298
    %v3300 = vrot.slane %v2939, %v3299
    %3302 = vbcast.lane.b32.xlu0 %v3300, 256
    %v3303 = vpop.permute.xlu0 %3302
    %v3304 = vlaneseq
    %v3305 = vshrl.u32 %v3304, 7
    %v3306 = vsub.s32 3, %v3305
    %v3307 = vrot.slane %v2939, %v3306
    %3309 = vbcast.lane.b32.xlu0 %v3307, 256
    %v3310 = vpop.permute.xlu0 %3309
    %v3311 = vlaneseq
    %v3312 = vshrl.u32 %v3311, 7
    %v3313 = vsub.s32 4, %v3312
    %v3314 = vrot.slane %v2939, %v3313
    %3316 = vbcast.lane.b32.xlu0 %v3314, 256
    %v3317 = vpop.permute.xlu0 %3316
    %v3318 = vlaneseq
    %v3319 = vshrl.u32 %v3318, 7
    %v3320 = vsub.s32 5, %v3319
    %v3321 = vrot.slane %v2939, %v3320
    %3323 = vbcast.lane.b32.xlu0 %v3321, 256
    %v3324 = vpop.permute.xlu0 %3323
    %v3325 = vlaneseq
    %v3326 = vshrl.u32 %v3325, 7
    %v3327 = vsub.s32 6, %v3326
    %v3328 = vrot.slane %v2939, %v3327
    %3330 = vbcast.lane.b32.xlu0 %v3328, 256
    %v3331 = vpop.permute.xlu0 %3330
    %v3332 = vlaneseq
    %v3333 = vshrl.u32 %v3332, 7
    %v3334 = vsub.s32 7, %v3333
    %v3335 = vrot.slane %v2939, %v3334
    %3337 = vbcast.lane.b32.xlu0 %v3335, 256
    %v3338 = vpop.permute.xlu0 %3337
    %v3339 = vlaneseq
    %v3340 = vshrl.u32 %v3339, 7
    %v3341 = vsub.s32 0, %v3340
    %v3342 = vrot.slane %v2946, %v3341
    %3344 = vbcast.lane.b32.xlu0 %v3342, 256
    %v3345 = vpop.permute.xlu0 %3344
    %v3346 = vlaneseq
    %v3347 = vshrl.u32 %v3346, 7
    %v3348 = vsub.s32 1, %v3347
    %v3349 = vrot.slane %v2946, %v3348
    %3351 = vbcast.lane.b32.xlu0 %v3349, 256
    %v3352 = vpop.permute.xlu0 %3351
    %v3353 = vlaneseq
    %v3354 = vshrl.u32 %v3353, 7
    %v3355 = vsub.s32 2, %v3354
    %v3356 = vrot.slane %v2946, %v3355
    %3358 = vbcast.lane.b32.xlu0 %v3356, 256
    %v3359 = vpop.permute.xlu0 %3358
    %v3360 = vlaneseq
    %v3361 = vshrl.u32 %v3360, 7
    %v3362 = vsub.s32 3, %v3361
    %v3363 = vrot.slane %v2946, %v3362
    %3365 = vbcast.lane.b32.xlu0 %v3363, 256
    %v3366 = vpop.permute.xlu0 %3365
    %v3367 = vlaneseq
    %v3368 = vshrl.u32 %v3367, 7
    %v3369 = vsub.s32 4, %v3368
    %v3370 = vrot.slane %v2946, %v3369
    %3372 = vbcast.lane.b32.xlu0 %v3370, 256
    %v3373 = vpop.permute.xlu0 %3372
    %v3374 = vlaneseq
    %v3375 = vshrl.u32 %v3374, 7
    %v3376 = vsub.s32 5, %v3375
    %v3377 = vrot.slane %v2946, %v3376
    %3379 = vbcast.lane.b32.xlu0 %v3377, 256
    %v3380 = vpop.permute.xlu0 %3379
    %v3381 = vlaneseq
    %v3382 = vshrl.u32 %v3381, 7
    %v3383 = vsub.s32 6, %v3382
    %v3384 = vrot.slane %v2946, %v3383
    %3386 = vbcast.lane.b32.xlu0 %v3384, 256
    %v3387 = vpop.permute.xlu0 %3386
    %v3388 = vlaneseq
    %v3389 = vshrl.u32 %v3388, 7
    %v3390 = vsub.s32 7, %v3389
    %v3391 = vrot.slane %v2946, %v3390
    %3393 = vbcast.lane.b32.xlu0 %v3391, 256
    %v3394 = vpop.permute.xlu0 %3393
    %v3459 = vmul.f32 %v2001, %v2953
    %v3460 = vmul.f32 %v2002, %v2960
    %v3461 = vmul.f32 %v2003, %v2967
    %v3462 = vmul.f32 %v2004, %v2974
    %v3463 = vmul.f32 %v2005, %v2981
    %v3464 = vmul.f32 %v2006, %v2988
    %v3465 = vmul.f32 %v2007, %v2995
    %v3466 = vmul.f32 %v2008, %v3002
    %v3467 = vmul.f32 %v2001, %v3009
    %v3468 = vmul.f32 %v2002, %v3016
    %v3469 = vmul.f32 %v2003, %v3023
    %v3470 = vmul.f32 %v2004, %v3030
    %v3471 = vmul.f32 %v2005, %v3037
    %v3472 = vmul.f32 %v2006, %v3044
    %v3473 = vmul.f32 %v2007, %v3051
    %v3474 = vmul.f32 %v2008, %v3058
    %v3475 = vmul.f32 %v2001, %v3065
    %v3476 = vmul.f32 %v2002, %v3072
    %v3477 = vmul.f32 %v2003, %v3079
    %v3478 = vmul.f32 %v2004, %v3086
    %v3479 = vmul.f32 %v2005, %v3093
    %v3480 = vmul.f32 %v2006, %v3100
    %v3481 = vmul.f32 %v2007, %v3107
    %v3482 = vmul.f32 %v2008, %v3114
    %v3483 = vmul.f32 %v2001, %v3121
    %v3484 = vmul.f32 %v2002, %v3128
    %v3485 = vmul.f32 %v2003, %v3135
    %v3486 = vmul.f32 %v2004, %v3142
    %v3487 = vmul.f32 %v2005, %v3149
    %v3488 = vmul.f32 %v2006, %v3156
    %v3489 = vmul.f32 %v2007, %v3163
    %v3490 = vmul.f32 %v2008, %v3170
    %v3491 = vmul.f32 %v2001, %v3177
    %v3492 = vmul.f32 %v2002, %v3184
    %v3493 = vmul.f32 %v2003, %v3191
    %v3494 = vmul.f32 %v2004, %v3198
    %v3495 = vmul.f32 %v2005, %v3205
    %v3496 = vmul.f32 %v2006, %v3212
    %v3497 = vmul.f32 %v2007, %v3219
    %v3498 = vmul.f32 %v2008, %v3226
    %v3499 = vmul.f32 %v2001, %v3233
    %v3500 = vmul.f32 %v2002, %v3240
    %v3501 = vmul.f32 %v2003, %v3247
    %v3502 = vmul.f32 %v2004, %v3254
    %v3503 = vmul.f32 %v2005, %v3261
    %v3504 = vmul.f32 %v2006, %v3268
    %v3505 = vmul.f32 %v2007, %v3275
    %v3506 = vmul.f32 %v2008, %v3282
    %v3507 = vmul.f32 %v2001, %v3289
    %v3508 = vmul.f32 %v2002, %v3296
    %v3509 = vmul.f32 %v2003, %v3303
    %v3510 = vmul.f32 %v2004, %v3310
    %v3511 = vmul.f32 %v2005, %v3317
    %v3512 = vmul.f32 %v2006, %v3324
    %v3513 = vmul.f32 %v2007, %v3331
    %v3514 = vmul.f32 %v2008, %v3338
    %v3515 = vmul.f32 %v2001, %v3345
    %v3516 = vmul.f32 %v2002, %v3352
    %v3517 = vmul.f32 %v2003, %v3359
    %v3518 = vmul.f32 %v2004, %v3366
    %v3519 = vmul.f32 %v2005, %v3373
    %v3520 = vmul.f32 %v2006, %v3380
    %v3521 = vmul.f32 %v2007, %v3387
    %v3522 = vmul.f32 %v2008, %v3394
    %v3523 = vmul.f32 %v2009, %v2953
    %v3524 = vmul.f32 %v2010, %v2960
    %v3525 = vmul.f32 %v2011, %v2967
    %v3526 = vmul.f32 %v2012, %v2974
    %v3527 = vmul.f32 %v2013, %v2981
    %v3528 = vmul.f32 %v2014, %v2988
    %v3529 = vmul.f32 %v2015, %v2995
    %v3530 = vmul.f32 %v2016, %v3002
    %v3531 = vmul.f32 %v2009, %v3009
    %v3532 = vmul.f32 %v2010, %v3016
    %v3533 = vmul.f32 %v2011, %v3023
    %v3534 = vmul.f32 %v2012, %v3030
    %v3535 = vmul.f32 %v2013, %v3037
    %v3536 = vmul.f32 %v2014, %v3044
    %v3537 = vmul.f32 %v2015, %v3051
    %v3538 = vmul.f32 %v2016, %v3058
    %v3539 = vmul.f32 %v2009, %v3065
    %v3540 = vmul.f32 %v2010, %v3072
    %v3541 = vmul.f32 %v2011, %v3079
    %v3542 = vmul.f32 %v2012, %v3086
    %v3543 = vmul.f32 %v2013, %v3093
    %v3544 = vmul.f32 %v2014, %v3100
    %v3545 = vmul.f32 %v2015, %v3107
    %v3546 = vmul.f32 %v2016, %v3114
    %v3547 = vmul.f32 %v2009, %v3121
    %v3548 = vmul.f32 %v2010, %v3128
    %v3549 = vmul.f32 %v2011, %v3135
    %v3550 = vmul.f32 %v2012, %v3142
    %v3551 = vmul.f32 %v2013, %v3149
    %v3552 = vmul.f32 %v2014, %v3156
    %v3553 = vmul.f32 %v2015, %v3163
    %v3554 = vmul.f32 %v2016, %v3170
    %v3555 = vmul.f32 %v2009, %v3177
    %v3556 = vmul.f32 %v2010, %v3184
    %v3557 = vmul.f32 %v2011, %v3191
    %v3558 = vmul.f32 %v2012, %v3198
    %v3559 = vmul.f32 %v2013, %v3205
    %v3560 = vmul.f32 %v2014, %v3212
    %v3561 = vmul.f32 %v2015, %v3219
    %v3562 = vmul.f32 %v2016, %v3226
    %v3563 = vmul.f32 %v2009, %v3233
    %v3564 = vmul.f32 %v2010, %v3240
    %v3565 = vmul.f32 %v2011, %v3247
    %v3566 = vmul.f32 %v2012, %v3254
    %v3567 = vmul.f32 %v2013, %v3261
    %v3568 = vmul.f32 %v2014, %v3268
    %v3569 = vmul.f32 %v2015, %v3275
    %v3570 = vmul.f32 %v2016, %v3282
    %v3571 = vmul.f32 %v2009, %v3289
    %v3572 = vmul.f32 %v2010, %v3296
    %v3573 = vmul.f32 %v2011, %v3303
    %v3574 = vmul.f32 %v2012, %v3310
    %v3575 = vmul.f32 %v2013, %v3317
    %v3576 = vmul.f32 %v2014, %v3324
    %v3577 = vmul.f32 %v2015, %v3331
    %v3578 = vmul.f32 %v2016, %v3338
    %v3579 = vmul.f32 %v2009, %v3345
    %v3580 = vmul.f32 %v2010, %v3352
    %v3581 = vmul.f32 %v2011, %v3359
    %v3582 = vmul.f32 %v2012, %v3366
    %v3583 = vmul.f32 %v2013, %v3373
    %v3584 = vmul.f32 %v2014, %v3380
    %v3585 = vmul.f32 %v2015, %v3387
    %v3586 = vmul.f32 %v2016, %v3394
    %v3587 = vsub.f32 1.0, %v3459
    %v3588 = vsub.f32 1.0, %v3460
    %v3589 = vsub.f32 1.0, %v3461
    %v3590 = vsub.f32 1.0, %v3462
    %v3591 = vsub.f32 1.0, %v3463
    %v3592 = vsub.f32 1.0, %v3464
    %v3593 = vsub.f32 1.0, %v3465
    %v3594 = vsub.f32 1.0, %v3466
    %v3595 = vsub.f32 1.0, %v3467
    %v3596 = vsub.f32 1.0, %v3468
    %v3597 = vsub.f32 1.0, %v3469
    %v3598 = vsub.f32 1.0, %v3470
    %v3599 = vsub.f32 1.0, %v3471
    %v3600 = vsub.f32 1.0, %v3472
    %v3601 = vsub.f32 1.0, %v3473
    %v3602 = vsub.f32 1.0, %v3474
    %v3603 = vsub.f32 1.0, %v3475
    %v3604 = vsub.f32 1.0, %v3476
    %v3605 = vsub.f32 1.0, %v3477
    %v3606 = vsub.f32 1.0, %v3478
    %v3607 = vsub.f32 1.0, %v3479
    %v3608 = vsub.f32 1.0, %v3480
    %v3609 = vsub.f32 1.0, %v3481
    %v3610 = vsub.f32 1.0, %v3482
    %v3611 = vsub.f32 1.0, %v3483
    %v3612 = vsub.f32 1.0, %v3484
    %v3613 = vsub.f32 1.0, %v3485
    %v3614 = vsub.f32 1.0, %v3486
    %v3615 = vsub.f32 1.0, %v3487
    %v3616 = vsub.f32 1.0, %v3488
    %v3617 = vsub.f32 1.0, %v3489
    %v3618 = vsub.f32 1.0, %v3490
    %v3619 = vsub.f32 1.0, %v3491
    %v3620 = vsub.f32 1.0, %v3492
    %v3621 = vsub.f32 1.0, %v3493
    %v3622 = vsub.f32 1.0, %v3494
    %v3623 = vsub.f32 1.0, %v3495
    %v3624 = vsub.f32 1.0, %v3496
    %v3625 = vsub.f32 1.0, %v3497
    %v3626 = vsub.f32 1.0, %v3498
    %v3627 = vsub.f32 1.0, %v3499
    %v3628 = vsub.f32 1.0, %v3500
    %v3629 = vsub.f32 1.0, %v3501
    %v3630 = vsub.f32 1.0, %v3502
    %v3631 = vsub.f32 1.0, %v3503
    %v3632 = vsub.f32 1.0, %v3504
    %v3633 = vsub.f32 1.0, %v3505
    %v3634 = vsub.f32 1.0, %v3506
    %v3635 = vsub.f32 1.0, %v3507
    %v3636 = vsub.f32 1.0, %v3508
    %v3637 = vsub.f32 1.0, %v3509
    %v3638 = vsub.f32 1.0, %v3510
    %v3639 = vsub.f32 1.0, %v3511
    %v3640 = vsub.f32 1.0, %v3512
    %v3641 = vsub.f32 1.0, %v3513
    %v3642 = vsub.f32 1.0, %v3514
    %v3643 = vsub.f32 1.0, %v3515
    %v3644 = vsub.f32 1.0, %v3516
    %v3645 = vsub.f32 1.0, %v3517
    %v3646 = vsub.f32 1.0, %v3518
    %v3647 = vsub.f32 1.0, %v3519
    %v3648 = vsub.f32 1.0, %v3520
    %v3649 = vsub.f32 1.0, %v3521
    %v3650 = vsub.f32 1.0, %v3522
    %v3651 = vsub.f32 1.0, %v3523
    %v3652 = vsub.f32 1.0, %v3524
    %v3653 = vsub.f32 1.0, %v3525
    %v3654 = vsub.f32 1.0, %v3526
    %v3655 = vsub.f32 1.0, %v3527
    %v3656 = vsub.f32 1.0, %v3528
    %v3657 = vsub.f32 1.0, %v3529
    %v3658 = vsub.f32 1.0, %v3530
    %v3659 = vsub.f32 1.0, %v3531
    %v3660 = vsub.f32 1.0, %v3532
    %v3661 = vsub.f32 1.0, %v3533
    %v3662 = vsub.f32 1.0, %v3534
    %v3663 = vsub.f32 1.0, %v3535
    %v3664 = vsub.f32 1.0, %v3536
    %v3665 = vsub.f32 1.0, %v3537
    %v3666 = vsub.f32 1.0, %v3538
    %v3667 = vsub.f32 1.0, %v3539
    %v3668 = vsub.f32 1.0, %v3540
    %v3669 = vsub.f32 1.0, %v3541
    %v3670 = vsub.f32 1.0, %v3542
    %v3671 = vsub.f32 1.0, %v3543
    %v3672 = vsub.f32 1.0, %v3544
    %v3673 = vsub.f32 1.0, %v3545
    %v3674 = vsub.f32 1.0, %v3546
    %v3675 = vsub.f32 1.0, %v3547
    %v3676 = vsub.f32 1.0, %v3548
    %v3677 = vsub.f32 1.0, %v3549
    %v3678 = vsub.f32 1.0, %v3550
    %v3679 = vsub.f32 1.0, %v3551
    %v3680 = vsub.f32 1.0, %v3552
    %v3681 = vsub.f32 1.0, %v3553
    %v3682 = vsub.f32 1.0, %v3554
    %v3683 = vsub.f32 1.0, %v3555
    %v3684 = vsub.f32 1.0, %v3556
    %v3685 = vsub.f32 1.0, %v3557
    %v3686 = vsub.f32 1.0, %v3558
    %v3687 = vsub.f32 1.0, %v3559
    %v3688 = vsub.f32 1.0, %v3560
    %v3689 = vsub.f32 1.0, %v3561
    %v3690 = vsub.f32 1.0, %v3562
    %v3691 = vsub.f32 1.0, %v3563
    %v3692 = vsub.f32 1.0, %v3564
    %v3693 = vsub.f32 1.0, %v3565
    %v3694 = vsub.f32 1.0, %v3566
    %v3695 = vsub.f32 1.0, %v3567
    %v3696 = vsub.f32 1.0, %v3568
    %v3697 = vsub.f32 1.0, %v3569
    %v3698 = vsub.f32 1.0, %v3570
    %v3699 = vsub.f32 1.0, %v3571
    %v3700 = vsub.f32 1.0, %v3572
    %v3701 = vsub.f32 1.0, %v3573
    %v3702 = vsub.f32 1.0, %v3574
    %v3703 = vsub.f32 1.0, %v3575
    %v3704 = vsub.f32 1.0, %v3576
    %v3705 = vsub.f32 1.0, %v3577
    %v3706 = vsub.f32 1.0, %v3578
    %v3707 = vsub.f32 1.0, %v3579
    %v3708 = vsub.f32 1.0, %v3580
    %v3709 = vsub.f32 1.0, %v3581
    %v3710 = vsub.f32 1.0, %v3582
    %v3711 = vsub.f32 1.0, %v3583
    %v3712 = vsub.f32 1.0, %v3584
    %v3713 = vsub.f32 1.0, %v3585
    %v3714 = vsub.f32 1.0, %v3586
    %v3715 = vmul.f32 %v2762, %v2766
    %v3716 = vmul.f32 %v2763, %v2767
    %v3717 = vmul.f32 %v2764, %v2768
    %v3718 = vmul.f32 %v2765, %v2769
    %v3719 = vmul.f32 %v2770, %v2774
    %v3720 = vmul.f32 %v2771, %v2775
    %v3721 = vmul.f32 %v2772, %v2776
    %v3722 = vmul.f32 %v2773, %v2777
    %v3723 = vmul.f32 %v2778, %v2782
    %v3724 = vmul.f32 %v2779, %v2783
    %v3725 = vmul.f32 %v2780, %v2784
    %v3726 = vmul.f32 %v2781, %v2785
    %v3727 = vmul.f32 %v2786, %v2790
    %v3728 = vmul.f32 %v2787, %v2791
    %v3729 = vmul.f32 %v2788, %v2792
    %v3730 = vmul.f32 %v2789, %v2793
    %v3731 = vmul.f32 %v2794, %v2798
    %v3732 = vmul.f32 %v2795, %v2799
    %v3733 = vmul.f32 %v2796, %v2800
    %v3734 = vmul.f32 %v2797, %v2801
    %v3735 = vmul.f32 %v2802, %v2806
    %v3736 = vmul.f32 %v2803, %v2807
    %v3737 = vmul.f32 %v2804, %v2808
    %v3738 = vmul.f32 %v2805, %v2809
    %v3739 = vmul.f32 %v2810, %v2814
    %v3740 = vmul.f32 %v2811, %v2815
    %v3741 = vmul.f32 %v2812, %v2816
    %v3742 = vmul.f32 %v2813, %v2817
    %v3743 = vmul.f32 %v2818, %v2822
    %v3744 = vmul.f32 %v2819, %v2823
    %v3745 = vmul.f32 %v2820, %v2824
    %v3746 = vmul.f32 %v2821, %v2825
    %v3747 = vmul.f32 %v2826, %v2830
    %v3748 = vmul.f32 %v2827, %v2831
    %v3749 = vmul.f32 %v2828, %v2832
    %v3750 = vmul.f32 %v2829, %v2833
    %v3751 = vmul.f32 %v2834, %v2838
    %v3752 = vmul.f32 %v2835, %v2839
    %v3753 = vmul.f32 %v2836, %v2840
    %v3754 = vmul.f32 %v2837, %v2841
    %v3755 = vmul.f32 %v2842, %v2846
    %v3756 = vmul.f32 %v2843, %v2847
    %v3757 = vmul.f32 %v2844, %v2848
    %v3758 = vmul.f32 %v2845, %v2849
    %v3759 = vmul.f32 %v2850, %v2854
    %v3760 = vmul.f32 %v2851, %v2855
    %v3761 = vmul.f32 %v2852, %v2856
    %v3762 = vmul.f32 %v2853, %v2857
    %v3763 = vmul.f32 %v2858, %v2862
    %v3764 = vmul.f32 %v2859, %v2863
    %v3765 = vmul.f32 %v2860, %v2864
    %v3766 = vmul.f32 %v2861, %v2865
    %v3767 = vmul.f32 %v2866, %v2870
    %v3768 = vmul.f32 %v2867, %v2871
    %v3769 = vmul.f32 %v2868, %v2872
    %v3770 = vmul.f32 %v2869, %v2873
    %v3771 = vmul.f32 %v2874, %v2878
    %v3772 = vmul.f32 %v2875, %v2879
    %v3773 = vmul.f32 %v2876, %v2880
    %v3774 = vmul.f32 %v2877, %v2881
    %v3775 = vmul.f32 %v2882, %v2886
    %v3776 = vmul.f32 %v2883, %v2887
    %v3777 = vmul.f32 %v2884, %v2888
    %v3778 = vmul.f32 %v2885, %v2889
    %v3779 = vmul.f32 %v3715, %v3717
    %v3780 = vmul.f32 %v3716, %v3718
    %v3781 = vmul.f32 %v3719, %v3721
    %v3782 = vmul.f32 %v3720, %v3722
    %v3783 = vmul.f32 %v3723, %v3725
    %v3784 = vmul.f32 %v3724, %v3726
    %v3785 = vmul.f32 %v3727, %v3729
    %v3786 = vmul.f32 %v3728, %v3730
    %v3787 = vmul.f32 %v3731, %v3733
    %v3788 = vmul.f32 %v3732, %v3734
    %v3789 = vmul.f32 %v3735, %v3737
    %v3790 = vmul.f32 %v3736, %v3738
    %v3791 = vmul.f32 %v3739, %v3741
    %v3792 = vmul.f32 %v3740, %v3742
    %v3793 = vmul.f32 %v3743, %v3745
    %v3794 = vmul.f32 %v3744, %v3746
    %v3795 = vmul.f32 %v3747, %v3749
    %v3796 = vmul.f32 %v3748, %v3750
    %v3797 = vmul.f32 %v3751, %v3753
    %v3798 = vmul.f32 %v3752, %v3754
    %v3799 = vmul.f32 %v3755, %v3757
    %v3800 = vmul.f32 %v3756, %v3758
    %v3801 = vmul.f32 %v3759, %v3761
    %v3802 = vmul.f32 %v3760, %v3762
    %v3803 = vmul.f32 %v3763, %v3765
    %v3804 = vmul.f32 %v3764, %v3766
    %v3805 = vmul.f32 %v3767, %v3769
    %v3806 = vmul.f32 %v3768, %v3770
    %v3807 = vmul.f32 %v3771, %v3773
    %v3808 = vmul.f32 %v3772, %v3774
    %v3809 = vmul.f32 %v3775, %v3777
    %v3810 = vmul.f32 %v3776, %v3778
    %v3811 = vmul.f32 %v3779, %v3780
    %v3812 = vmul.f32 %v3781, %v3782
    %v3813 = vmul.f32 %v3783, %v3784
    %v3814 = vmul.f32 %v3785, %v3786
    %v3815 = vmul.f32 %v3787, %v3788
    %v3816 = vmul.f32 %v3789, %v3790
    %v3817 = vmul.f32 %v3791, %v3792
    %v3818 = vmul.f32 %v3793, %v3794
    %v3819 = vmul.f32 %v3795, %v3796
    %v3820 = vmul.f32 %v3797, %v3798
    %v3821 = vmul.f32 %v3799, %v3800
    %v3822 = vmul.f32 %v3801, %v3802
    %v3823 = vmul.f32 %v3803, %v3804
    %v3824 = vmul.f32 %v3805, %v3806
    %v3825 = vmul.f32 %v3807, %v3808
    %v3826 = vmul.f32 %v3809, %v3810
    %v3827 = vadd.f32 %v3811, 0.0
    %v3828 = vadd.f32 %v3812, 0.0
    %v3829 = vadd.f32 %v3813, 0.0
    %v3830 = vadd.f32 %v3814, 0.0
    %v3831 = vadd.f32 %v3815, 0.0
    %v3832 = vadd.f32 %v3816, 0.0
    %v3833 = vadd.f32 %v3817, 0.0
    %v3834 = vadd.f32 %v3818, 0.0
    %v3835 = vadd.f32 %v3819, 0.0
    %v3836 = vadd.f32 %v3820, 0.0
    %v3837 = vadd.f32 %v3821, 0.0
    %v3838 = vadd.f32 %v3822, 0.0
    %v3839 = vadd.f32 %v3823, 0.0
    %v3840 = vadd.f32 %v3824, 0.0
    %v3841 = vadd.f32 %v3825, 0.0
    %v3842 = vadd.f32 %v3826, 0.0
    %v3843 = vmul.f32 %v3587, %v3591
    %v3844 = vmul.f32 %v3588, %v3592
    %v3845 = vmul.f32 %v3589, %v3593
    %v3846 = vmul.f32 %v3590, %v3594
    %v3847 = vmul.f32 %v3595, %v3599
    %v3848 = vmul.f32 %v3596, %v3600
    %v3849 = vmul.f32 %v3597, %v3601
    %v3850 = vmul.f32 %v3598, %v3602
    %v3851 = vmul.f32 %v3603, %v3607
    %v3852 = vmul.f32 %v3604, %v3608
    %v3853 = vmul.f32 %v3605, %v3609
    %v3854 = vmul.f32 %v3606, %v3610
    %v3855 = vmul.f32 %v3611, %v3615
    %v3856 = vmul.f32 %v3612, %v3616
    %v3857 = vmul.f32 %v3613, %v3617
    %v3858 = vmul.f32 %v3614, %v3618
    %v3859 = vmul.f32 %v3619, %v3623
    %v3860 = vmul.f32 %v3620, %v3624
    %v3861 = vmul.f32 %v3621, %v3625
    %v3862 = vmul.f32 %v3622, %v3626
    %v3863 = vmul.f32 %v3627, %v3631
    %v3864 = vmul.f32 %v3628, %v3632
    %v3865 = vmul.f32 %v3629, %v3633
    %v3866 = vmul.f32 %v3630, %v3634
    %v3867 = vmul.f32 %v3635, %v3639
    %v3868 = vmul.f32 %v3636, %v3640
    %v3869 = vmul.f32 %v3637, %v3641
    %v3870 = vmul.f32 %v3638, %v3642
    %v3871 = vmul.f32 %v3643, %v3647
    %v3872 = vmul.f32 %v3644, %v3648
    %v3873 = vmul.f32 %v3645, %v3649
    %v3874 = vmul.f32 %v3646, %v3650
    %v3875 = vmul.f32 %v3651, %v3655
    %v3876 = vmul.f32 %v3652, %v3656
    %v3877 = vmul.f32 %v3653, %v3657
    %v3878 = vmul.f32 %v3654, %v3658
    %v3879 = vmul.f32 %v3659, %v3663
    %v3880 = vmul.f32 %v3660, %v3664
    %v3881 = vmul.f32 %v3661, %v3665
    %v3882 = vmul.f32 %v3662, %v3666
    %v3883 = vmul.f32 %v3667, %v3671
    %v3884 = vmul.f32 %v3668, %v3672
    %v3885 = vmul.f32 %v3669, %v3673
    %v3886 = vmul.f32 %v3670, %v3674
    %v3887 = vmul.f32 %v3675, %v3679
    %v3888 = vmul.f32 %v3676, %v3680
    %v3889 = vmul.f32 %v3677, %v3681
    %v3890 = vmul.f32 %v3678, %v3682
    %v3891 = vmul.f32 %v3683, %v3687
    %v3892 = vmul.f32 %v3684, %v3688
    %v3893 = vmul.f32 %v3685, %v3689
    %v3894 = vmul.f32 %v3686, %v3690
    %v3895 = vmul.f32 %v3691, %v3695
    %v3896 = vmul.f32 %v3692, %v3696
    %v3897 = vmul.f32 %v3693, %v3697
    %v3898 = vmul.f32 %v3694, %v3698
    %v3899 = vmul.f32 %v3699, %v3703
    %v3900 = vmul.f32 %v3700, %v3704
    %v3901 = vmul.f32 %v3701, %v3705
    %v3902 = vmul.f32 %v3702, %v3706
    %v3903 = vmul.f32 %v3707, %v3711
    %v3904 = vmul.f32 %v3708, %v3712
    %v3905 = vmul.f32 %v3709, %v3713
    %v3906 = vmul.f32 %v3710, %v3714
    %v3907 = vmul.f32 %v3843, %v3845
    %v3908 = vmul.f32 %v3844, %v3846
    %v3909 = vmul.f32 %v3847, %v3849
    %v3910 = vmul.f32 %v3848, %v3850
    %v3911 = vmul.f32 %v3851, %v3853
    %v3912 = vmul.f32 %v3852, %v3854
    %v3913 = vmul.f32 %v3855, %v3857
    %v3914 = vmul.f32 %v3856, %v3858
    %v3915 = vmul.f32 %v3859, %v3861
    %v3916 = vmul.f32 %v3860, %v3862
    %v3917 = vmul.f32 %v3863, %v3865
    %v3918 = vmul.f32 %v3864, %v3866
    %v3919 = vmul.f32 %v3867, %v3869
    %v3920 = vmul.f32 %v3868, %v3870
    %v3921 = vmul.f32 %v3871, %v3873
    %v3922 = vmul.f32 %v3872, %v3874
    %v3923 = vmul.f32 %v3875, %v3877
    %v3924 = vmul.f32 %v3876, %v3878
    %v3925 = vmul.f32 %v3879, %v3881
    %v3926 = vmul.f32 %v3880, %v3882
    %v3927 = vmul.f32 %v3883, %v3885
    %v3928 = vmul.f32 %v3884, %v3886
    %v3929 = vmul.f32 %v3887, %v3889
    %v3930 = vmul.f32 %v3888, %v3890
    %v3931 = vmul.f32 %v3891, %v3893
    %v3932 = vmul.f32 %v3892, %v3894
    %v3933 = vmul.f32 %v3895, %v3897
    %v3934 = vmul.f32 %v3896, %v3898
    %v3935 = vmul.f32 %v3899, %v3901
    %v3936 = vmul.f32 %v3900, %v3902
    %v3937 = vmul.f32 %v3903, %v3905
    %v3938 = vmul.f32 %v3904, %v3906
    %v3939 = vmul.f32 %v3907, %v3908
    %v3940 = vmul.f32 %v3909, %v3910
    %v3941 = vmul.f32 %v3911, %v3912
    %v3942 = vmul.f32 %v3913, %v3914
    %v3943 = vmul.f32 %v3915, %v3916
    %v3944 = vmul.f32 %v3917, %v3918
    %v3945 = vmul.f32 %v3919, %v3920
    %v3946 = vmul.f32 %v3921, %v3922
    %v3947 = vmul.f32 %v3923, %v3924
    %v3948 = vmul.f32 %v3925, %v3926
    %v3949 = vmul.f32 %v3927, %v3928
    %v3950 = vmul.f32 %v3929, %v3930
    %v3951 = vmul.f32 %v3931, %v3932
    %v3952 = vmul.f32 %v3933, %v3934
    %v3953 = vmul.f32 %v3935, %v3936
    %v3954 = vmul.f32 %v3937, %v3938
    %v3955 = vadd.f32 %v3939, 0.0
    %v3956 = vadd.f32 %v3940, 0.0
    %v3957 = vadd.f32 %v3941, 0.0
    %v3958 = vadd.f32 %v3942, 0.0
    %v3959 = vadd.f32 %v3943, 0.0
    %v3960 = vadd.f32 %v3944, 0.0
    %v3961 = vadd.f32 %v3945, 0.0
    %v3962 = vadd.f32 %v3946, 0.0
    %v3963 = vadd.f32 %v3947, 0.0
    %v3964 = vadd.f32 %v3948, 0.0
    %v3965 = vadd.f32 %v3949, 0.0
    %v3966 = vadd.f32 %v3950, 0.0
    %v3967 = vadd.f32 %v3951, 0.0
    %v3968 = vadd.f32 %v3952, 0.0
    %v3969 = vadd.f32 %v3953, 0.0
    %v3970 = vadd.f32 %v3954, 0.0
    %v3971 = vsub.f32 1.0, %v2033
    %v3972 = vsub.f32 1.0, %v2034
    %v3973 = vsub.f32 1.0, %v2035
    %v3974 = vsub.f32 1.0, %v2036
    %v3975 = vsub.f32 1.0, %v2037
    %v3976 = vsub.f32 1.0, %v2038
    %v3977 = vsub.f32 1.0, %v2039
    %v3978 = vsub.f32 1.0, %v2040
    %v3979 = vsub.f32 1.0, %v2041
    %v3980 = vsub.f32 1.0, %v2042
    %v3981 = vsub.f32 1.0, %v2043
    %v3982 = vsub.f32 1.0, %v2044
    %v3983 = vsub.f32 1.0, %v2045
    %v3984 = vsub.f32 1.0, %v2046
    %v3985 = vsub.f32 1.0, %v2047
    %v3986 = vsub.f32 1.0, %v2048
    %s3988 = sor.u32 256, 8
    %3989 = vbcast.lane.b32.xlu0 %v2069, %s3988
    %v3990 = vpop.permute.xlu0 %3989
    %s3992 = sor.u32 256, 8
    %3993 = vbcast.lane.b32.xlu0 %v2076, %s3992
    %v3994 = vpop.permute.xlu0 %3993
    %s3996 = sor.u32 256, 8
    %3997 = vbcast.lane.b32.xlu0 %v2083, %s3996
    %v3998 = vpop.permute.xlu0 %3997
    %s4000 = sor.u32 256, 8
    %4001 = vbcast.lane.b32.xlu0 %v2090, %s4000
    %v4002 = vpop.permute.xlu0 %4001
    %s4004 = sor.u32 256, 8
    %4005 = vbcast.lane.b32.xlu0 %v2097, %s4004
    %v4006 = vpop.permute.xlu0 %4005
    %s4008 = sor.u32 256, 8
    %4009 = vbcast.lane.b32.xlu0 %v2104, %s4008
    %v4010 = vpop.permute.xlu0 %4009
    %s4012 = sor.u32 256, 8
    %4013 = vbcast.lane.b32.xlu0 %v2111, %s4012
    %v4014 = vpop.permute.xlu0 %4013
    %s4016 = sor.u32 256, 8
    %4017 = vbcast.lane.b32.xlu0 %v2118, %s4016
    %v4018 = vpop.permute.xlu0 %4017
    %v4019 = vlaneseq
    %v4020 = vshrl.u32 %v4019, 7
    %v4021 = vsub.s32 0, %v4020
    %v4022 = vrot.slane %v3990, %v4021
    %4024 = vbcast.lane.b32.xlu0 %v4022, 256
    %v4025 = vpop.permute.xlu0 %4024
    %v4026 = vlaneseq
    %v4027 = vshrl.u32 %v4026, 7
    %v4028 = vsub.s32 1, %v4027
    %v4029 = vrot.slane %v3990, %v4028
    %4031 = vbcast.lane.b32.xlu0 %v4029, 256
    %v4032 = vpop.permute.xlu0 %4031
    %v4033 = vlaneseq
    %v4034 = vshrl.u32 %v4033, 7
    %v4035 = vsub.s32 2, %v4034
    %v4036 = vrot.slane %v3990, %v4035
    %4038 = vbcast.lane.b32.xlu0 %v4036, 256
    %v4039 = vpop.permute.xlu0 %4038
    %v4040 = vlaneseq
    %v4041 = vshrl.u32 %v4040, 7
    %v4042 = vsub.s32 3, %v4041
    %v4043 = vrot.slane %v3990, %v4042
    %4045 = vbcast.lane.b32.xlu0 %v4043, 256
    %v4046 = vpop.permute.xlu0 %4045
    %v4047 = vlaneseq
    %v4048 = vshrl.u32 %v4047, 7
    %v4049 = vsub.s32 4, %v4048
    %v4050 = vrot.slane %v3990, %v4049
    %4052 = vbcast.lane.b32.xlu0 %v4050, 256
    %v4053 = vpop.permute.xlu0 %4052
    %v4054 = vlaneseq
    %v4055 = vshrl.u32 %v4054, 7
    %v4056 = vsub.s32 5, %v4055
    %v4057 = vrot.slane %v3990, %v4056
    %4059 = vbcast.lane.b32.xlu0 %v4057, 256
    %v4060 = vpop.permute.xlu0 %4059
    %v4061 = vlaneseq
    %v4062 = vshrl.u32 %v4061, 7
    %v4063 = vsub.s32 6, %v4062
    %v4064 = vrot.slane %v3990, %v4063
    %4066 = vbcast.lane.b32.xlu0 %v4064, 256
    %v4067 = vpop.permute.xlu0 %4066
    %v4068 = vlaneseq
    %v4069 = vshrl.u32 %v4068, 7
    %v4070 = vsub.s32 7, %v4069
    %v4071 = vrot.slane %v3990, %v4070
    %4073 = vbcast.lane.b32.xlu0 %v4071, 256
    %v4074 = vpop.permute.xlu0 %4073
    %v4075 = vlaneseq
    %v4076 = vshrl.u32 %v4075, 7
    %v4077 = vsub.s32 0, %v4076
    %v4078 = vrot.slane %v3994, %v4077
    %4080 = vbcast.lane.b32.xlu0 %v4078, 256
    %v4081 = vpop.permute.xlu0 %4080
    %v4082 = vlaneseq
    %v4083 = vshrl.u32 %v4082, 7
    %v4084 = vsub.s32 1, %v4083
    %v4085 = vrot.slane %v3994, %v4084
    %4087 = vbcast.lane.b32.xlu0 %v4085, 256
    %v4088 = vpop.permute.xlu0 %4087
    %v4089 = vlaneseq
    %v4090 = vshrl.u32 %v4089, 7
    %v4091 = vsub.s32 2, %v4090
    %v4092 = vrot.slane %v3994, %v4091
    %4094 = vbcast.lane.b32.xlu0 %v4092, 256
    %v4095 = vpop.permute.xlu0 %4094
    %v4096 = vlaneseq
    %v4097 = vshrl.u32 %v4096, 7
    %v4098 = vsub.s32 3, %v4097
    %v4099 = vrot.slane %v3994, %v4098
    %4101 = vbcast.lane.b32.xlu0 %v4099, 256
    %v4102 = vpop.permute.xlu0 %4101
    %v4103 = vlaneseq
    %v4104 = vshrl.u32 %v4103, 7
    %v4105 = vsub.s32 4, %v4104
    %v4106 = vrot.slane %v3994, %v4105
    %4108 = vbcast.lane.b32.xlu0 %v4106, 256
    %v4109 = vpop.permute.xlu0 %4108
    %v4110 = vlaneseq
    %v4111 = vshrl.u32 %v4110, 7
    %v4112 = vsub.s32 5, %v4111
    %v4113 = vrot.slane %v3994, %v4112
    %4115 = vbcast.lane.b32.xlu0 %v4113, 256
    %v4116 = vpop.permute.xlu0 %4115
    %v4117 = vlaneseq
    %v4118 = vshrl.u32 %v4117, 7
    %v4119 = vsub.s32 6, %v4118
    %v4120 = vrot.slane %v3994, %v4119
    %4122 = vbcast.lane.b32.xlu0 %v4120, 256
    %v4123 = vpop.permute.xlu0 %4122
    %v4124 = vlaneseq
    %v4125 = vshrl.u32 %v4124, 7
    %v4126 = vsub.s32 7, %v4125
    %v4127 = vrot.slane %v3994, %v4126
    %4129 = vbcast.lane.b32.xlu0 %v4127, 256
    %v4130 = vpop.permute.xlu0 %4129
    %v4131 = vlaneseq
    %v4132 = vshrl.u32 %v4131, 7
    %v4133 = vsub.s32 0, %v4132
    %v4134 = vrot.slane %v3998, %v4133
    %4136 = vbcast.lane.b32.xlu0 %v4134, 256
    %v4137 = vpop.permute.xlu0 %4136
    %v4138 = vlaneseq
    %v4139 = vshrl.u32 %v4138, 7
    %v4140 = vsub.s32 1, %v4139
    %v4141 = vrot.slane %v3998, %v4140
    %4143 = vbcast.lane.b32.xlu0 %v4141, 256
    %v4144 = vpop.permute.xlu0 %4143
    %v4145 = vlaneseq
    %v4146 = vshrl.u32 %v4145, 7
    %v4147 = vsub.s32 2, %v4146
    %v4148 = vrot.slane %v3998, %v4147
    %4150 = vbcast.lane.b32.xlu0 %v4148, 256
    %v4151 = vpop.permute.xlu0 %4150
    %v4152 = vlaneseq
    %v4153 = vshrl.u32 %v4152, 7
    %v4154 = vsub.s32 3, %v4153
    %v4155 = vrot.slane %v3998, %v4154
    %4157 = vbcast.lane.b32.xlu0 %v4155, 256
    %v4158 = vpop.permute.xlu0 %4157
    %v4159 = vlaneseq
    %v4160 = vshrl.u32 %v4159, 7
    %v4161 = vsub.s32 4, %v4160
    %v4162 = vrot.slane %v3998, %v4161
    %4164 = vbcast.lane.b32.xlu0 %v4162, 256
    %v4165 = vpop.permute.xlu0 %4164
    %v4166 = vlaneseq
    %v4167 = vshrl.u32 %v4166, 7
    %v4168 = vsub.s32 5, %v4167
    %v4169 = vrot.slane %v3998, %v4168
    %4171 = vbcast.lane.b32.xlu0 %v4169, 256
    %v4172 = vpop.permute.xlu0 %4171
    %v4173 = vlaneseq
    %v4174 = vshrl.u32 %v4173, 7
    %v4175 = vsub.s32 6, %v4174
    %v4176 = vrot.slane %v3998, %v4175
    %4178 = vbcast.lane.b32.xlu0 %v4176, 256
    %v4179 = vpop.permute.xlu0 %4178
    %v4180 = vlaneseq
    %v4181 = vshrl.u32 %v4180, 7
    %v4182 = vsub.s32 7, %v4181
    %v4183 = vrot.slane %v3998, %v4182
    %4185 = vbcast.lane.b32.xlu0 %v4183, 256
    %v4186 = vpop.permute.xlu0 %4185
    %v4187 = vlaneseq
    %v4188 = vshrl.u32 %v4187, 7
    %v4189 = vsub.s32 0, %v4188
    %v4190 = vrot.slane %v4002, %v4189
    %4192 = vbcast.lane.b32.xlu0 %v4190, 256
    %v4193 = vpop.permute.xlu0 %4192
    %v4194 = vlaneseq
    %v4195 = vshrl.u32 %v4194, 7
    %v4196 = vsub.s32 1, %v4195
    %v4197 = vrot.slane %v4002, %v4196
    %4199 = vbcast.lane.b32.xlu0 %v4197, 256
    %v4200 = vpop.permute.xlu0 %4199
    %v4201 = vlaneseq
    %v4202 = vshrl.u32 %v4201, 7
    %v4203 = vsub.s32 2, %v4202
    %v4204 = vrot.slane %v4002, %v4203
    %4206 = vbcast.lane.b32.xlu0 %v4204, 256
    %v4207 = vpop.permute.xlu0 %4206
    %v4208 = vlaneseq
    %v4209 = vshrl.u32 %v4208, 7
    %v4210 = vsub.s32 3, %v4209
    %v4211 = vrot.slane %v4002, %v4210
    %4213 = vbcast.lane.b32.xlu0 %v4211, 256
    %v4214 = vpop.permute.xlu0 %4213
    %v4215 = vlaneseq
    %v4216 = vshrl.u32 %v4215, 7
    %v4217 = vsub.s32 4, %v4216
    %v4218 = vrot.slane %v4002, %v4217
    %4220 = vbcast.lane.b32.xlu0 %v4218, 256
    %v4221 = vpop.permute.xlu0 %4220
    %v4222 = vlaneseq
    %v4223 = vshrl.u32 %v4222, 7
    %v4224 = vsub.s32 5, %v4223
    %v4225 = vrot.slane %v4002, %v4224
    %4227 = vbcast.lane.b32.xlu0 %v4225, 256
    %v4228 = vpop.permute.xlu0 %4227
    %v4229 = vlaneseq
    %v4230 = vshrl.u32 %v4229, 7
    %v4231 = vsub.s32 6, %v4230
    %v4232 = vrot.slane %v4002, %v4231
    %4234 = vbcast.lane.b32.xlu0 %v4232, 256
    %v4235 = vpop.permute.xlu0 %4234
    %v4236 = vlaneseq
    %v4237 = vshrl.u32 %v4236, 7
    %v4238 = vsub.s32 7, %v4237
    %v4239 = vrot.slane %v4002, %v4238
    %4241 = vbcast.lane.b32.xlu0 %v4239, 256
    %v4242 = vpop.permute.xlu0 %4241
    %v4243 = vlaneseq
    %v4244 = vshrl.u32 %v4243, 7
    %v4245 = vsub.s32 0, %v4244
    %v4246 = vrot.slane %v4006, %v4245
    %4248 = vbcast.lane.b32.xlu0 %v4246, 256
    %v4249 = vpop.permute.xlu0 %4248
    %v4250 = vlaneseq
    %v4251 = vshrl.u32 %v4250, 7
    %v4252 = vsub.s32 1, %v4251
    %v4253 = vrot.slane %v4006, %v4252
    %4255 = vbcast.lane.b32.xlu0 %v4253, 256
    %v4256 = vpop.permute.xlu0 %4255
    %v4257 = vlaneseq
    %v4258 = vshrl.u32 %v4257, 7
    %v4259 = vsub.s32 2, %v4258
    %v4260 = vrot.slane %v4006, %v4259
    %4262 = vbcast.lane.b32.xlu0 %v4260, 256
    %v4263 = vpop.permute.xlu0 %4262
    %v4264 = vlaneseq
    %v4265 = vshrl.u32 %v4264, 7
    %v4266 = vsub.s32 3, %v4265
    %v4267 = vrot.slane %v4006, %v4266
    %4269 = vbcast.lane.b32.xlu0 %v4267, 256
    %v4270 = vpop.permute.xlu0 %4269
    %v4271 = vlaneseq
    %v4272 = vshrl.u32 %v4271, 7
    %v4273 = vsub.s32 4, %v4272
    %v4274 = vrot.slane %v4006, %v4273
    %4276 = vbcast.lane.b32.xlu0 %v4274, 256
    %v4277 = vpop.permute.xlu0 %4276
    %v4278 = vlaneseq
    %v4279 = vshrl.u32 %v4278, 7
    %v4280 = vsub.s32 5, %v4279
    %v4281 = vrot.slane %v4006, %v4280
    %4283 = vbcast.lane.b32.xlu0 %v4281, 256
    %v4284 = vpop.permute.xlu0 %4283
    %v4285 = vlaneseq
    %v4286 = vshrl.u32 %v4285, 7
    %v4287 = vsub.s32 6, %v4286
    %v4288 = vrot.slane %v4006, %v4287
    %4290 = vbcast.lane.b32.xlu0 %v4288, 256
    %v4291 = vpop.permute.xlu0 %4290
    %v4292 = vlaneseq
    %v4293 = vshrl.u32 %v4292, 7
    %v4294 = vsub.s32 7, %v4293
    %v4295 = vrot.slane %v4006, %v4294
    %4297 = vbcast.lane.b32.xlu0 %v4295, 256
    %v4298 = vpop.permute.xlu0 %4297
    %v4299 = vlaneseq
    %v4300 = vshrl.u32 %v4299, 7
    %v4301 = vsub.s32 0, %v4300
    %v4302 = vrot.slane %v4010, %v4301
    %4304 = vbcast.lane.b32.xlu0 %v4302, 256
    %v4305 = vpop.permute.xlu0 %4304
    %v4306 = vlaneseq
    %v4307 = vshrl.u32 %v4306, 7
    %v4308 = vsub.s32 1, %v4307
    %v4309 = vrot.slane %v4010, %v4308
    %4311 = vbcast.lane.b32.xlu0 %v4309, 256
    %v4312 = vpop.permute.xlu0 %4311
    %v4313 = vlaneseq
    %v4314 = vshrl.u32 %v4313, 7
    %v4315 = vsub.s32 2, %v4314
    %v4316 = vrot.slane %v4010, %v4315
    %4318 = vbcast.lane.b32.xlu0 %v4316, 256
    %v4319 = vpop.permute.xlu0 %4318
    %v4320 = vlaneseq
    %v4321 = vshrl.u32 %v4320, 7
    %v4322 = vsub.s32 3, %v4321
    %v4323 = vrot.slane %v4010, %v4322
    %4325 = vbcast.lane.b32.xlu0 %v4323, 256
    %v4326 = vpop.permute.xlu0 %4325
    %v4327 = vlaneseq
    %v4328 = vshrl.u32 %v4327, 7
    %v4329 = vsub.s32 4, %v4328
    %v4330 = vrot.slane %v4010, %v4329
    %4332 = vbcast.lane.b32.xlu0 %v4330, 256
    %v4333 = vpop.permute.xlu0 %4332
    %v4334 = vlaneseq
    %v4335 = vshrl.u32 %v4334, 7
    %v4336 = vsub.s32 5, %v4335
    %v4337 = vrot.slane %v4010, %v4336
    %4339 = vbcast.lane.b32.xlu0 %v4337, 256
    %v4340 = vpop.permute.xlu0 %4339
    %v4341 = vlaneseq
    %v4342 = vshrl.u32 %v4341, 7
    %v4343 = vsub.s32 6, %v4342
    %v4344 = vrot.slane %v4010, %v4343
    %4346 = vbcast.lane.b32.xlu0 %v4344, 256
    %v4347 = vpop.permute.xlu0 %4346
    %v4348 = vlaneseq
    %v4349 = vshrl.u32 %v4348, 7
    %v4350 = vsub.s32 7, %v4349
    %v4351 = vrot.slane %v4010, %v4350
    %4353 = vbcast.lane.b32.xlu0 %v4351, 256
    %v4354 = vpop.permute.xlu0 %4353
    %v4355 = vlaneseq
    %v4356 = vshrl.u32 %v4355, 7
    %v4357 = vsub.s32 0, %v4356
    %v4358 = vrot.slane %v4014, %v4357
    %4360 = vbcast.lane.b32.xlu0 %v4358, 256
    %v4361 = vpop.permute.xlu0 %4360
    %v4362 = vlaneseq
    %v4363 = vshrl.u32 %v4362, 7
    %v4364 = vsub.s32 1, %v4363
    %v4365 = vrot.slane %v4014, %v4364
    %4367 = vbcast.lane.b32.xlu0 %v4365, 256
    %v4368 = vpop.permute.xlu0 %4367
    %v4369 = vlaneseq
    %v4370 = vshrl.u32 %v4369, 7
    %v4371 = vsub.s32 2, %v4370
    %v4372 = vrot.slane %v4014, %v4371
    %4374 = vbcast.lane.b32.xlu0 %v4372, 256
    %v4375 = vpop.permute.xlu0 %4374
    %v4376 = vlaneseq
    %v4377 = vshrl.u32 %v4376, 7
    %v4378 = vsub.s32 3, %v4377
    %v4379 = vrot.slane %v4014, %v4378
    %4381 = vbcast.lane.b32.xlu0 %v4379, 256
    %v4382 = vpop.permute.xlu0 %4381
    %v4383 = vlaneseq
    %v4384 = vshrl.u32 %v4383, 7
    %v4385 = vsub.s32 4, %v4384
    %v4386 = vrot.slane %v4014, %v4385
    %4388 = vbcast.lane.b32.xlu0 %v4386, 256
    %v4389 = vpop.permute.xlu0 %4388
    %v4390 = vlaneseq
    %v4391 = vshrl.u32 %v4390, 7
    %v4392 = vsub.s32 5, %v4391
    %v4393 = vrot.slane %v4014, %v4392
    %4395 = vbcast.lane.b32.xlu0 %v4393, 256
    %v4396 = vpop.permute.xlu0 %4395
    %v4397 = vlaneseq
    %v4398 = vshrl.u32 %v4397, 7
    %v4399 = vsub.s32 6, %v4398
    %v4400 = vrot.slane %v4014, %v4399
    %4402 = vbcast.lane.b32.xlu0 %v4400, 256
    %v4403 = vpop.permute.xlu0 %4402
    %v4404 = vlaneseq
    %v4405 = vshrl.u32 %v4404, 7
    %v4406 = vsub.s32 7, %v4405
    %v4407 = vrot.slane %v4014, %v4406
    %4409 = vbcast.lane.b32.xlu0 %v4407, 256
    %v4410 = vpop.permute.xlu0 %4409
    %v4411 = vlaneseq
    %v4412 = vshrl.u32 %v4411, 7
    %v4413 = vsub.s32 0, %v4412
    %v4414 = vrot.slane %v4018, %v4413
    %4416 = vbcast.lane.b32.xlu0 %v4414, 256
    %v4417 = vpop.permute.xlu0 %4416
    %v4418 = vlaneseq
    %v4419 = vshrl.u32 %v4418, 7
    %v4420 = vsub.s32 1, %v4419
    %v4421 = vrot.slane %v4018, %v4420
    %4423 = vbcast.lane.b32.xlu0 %v4421, 256
    %v4424 = vpop.permute.xlu0 %4423
    %v4425 = vlaneseq
    %v4426 = vshrl.u32 %v4425, 7
    %v4427 = vsub.s32 2, %v4426
    %v4428 = vrot.slane %v4018, %v4427
    %4430 = vbcast.lane.b32.xlu0 %v4428, 256
    %v4431 = vpop.permute.xlu0 %4430
    %v4432 = vlaneseq
    %v4433 = vshrl.u32 %v4432, 7
    %v4434 = vsub.s32 3, %v4433
    %v4435 = vrot.slane %v4018, %v4434
    %4437 = vbcast.lane.b32.xlu0 %v4435, 256
    %v4438 = vpop.permute.xlu0 %4437
    %v4439 = vlaneseq
    %v4440 = vshrl.u32 %v4439, 7
    %v4441 = vsub.s32 4, %v4440
    %v4442 = vrot.slane %v4018, %v4441
    %4444 = vbcast.lane.b32.xlu0 %v4442, 256
    %v4445 = vpop.permute.xlu0 %4444
    %v4446 = vlaneseq
    %v4447 = vshrl.u32 %v4446, 7
    %v4448 = vsub.s32 5, %v4447
    %v4449 = vrot.slane %v4018, %v4448
    %4451 = vbcast.lane.b32.xlu0 %v4449, 256
    %v4452 = vpop.permute.xlu0 %4451
    %v4453 = vlaneseq
    %v4454 = vshrl.u32 %v4453, 7
    %v4455 = vsub.s32 6, %v4454
    %v4456 = vrot.slane %v4018, %v4455
    %4458 = vbcast.lane.b32.xlu0 %v4456, 256
    %v4459 = vpop.permute.xlu0 %4458
    %v4460 = vlaneseq
    %v4461 = vshrl.u32 %v4460, 7
    %v4462 = vsub.s32 7, %v4461
    %v4463 = vrot.slane %v4018, %v4462
    %4465 = vbcast.lane.b32.xlu0 %v4463, 256
    %v4466 = vpop.permute.xlu0 %4465
    %v4531 = vmul.f32 %v3971, %v4025
    %v4532 = vmul.f32 %v3972, %v4032
    %v4533 = vmul.f32 %v3973, %v4039
    %v4534 = vmul.f32 %v3974, %v4046
    %v4535 = vmul.f32 %v3975, %v4053
    %v4536 = vmul.f32 %v3976, %v4060
    %v4537 = vmul.f32 %v3977, %v4067
    %v4538 = vmul.f32 %v3978, %v4074
    %v4539 = vmul.f32 %v3971, %v4081
    %v4540 = vmul.f32 %v3972, %v4088
    %v4541 = vmul.f32 %v3973, %v4095
    %v4542 = vmul.f32 %v3974, %v4102
    %v4543 = vmul.f32 %v3975, %v4109
    %v4544 = vmul.f32 %v3976, %v4116
    %v4545 = vmul.f32 %v3977, %v4123
    %v4546 = vmul.f32 %v3978, %v4130
    %v4547 = vmul.f32 %v3971, %v4137
    %v4548 = vmul.f32 %v3972, %v4144
    %v4549 = vmul.f32 %v3973, %v4151
    %v4550 = vmul.f32 %v3974, %v4158
    %v4551 = vmul.f32 %v3975, %v4165
    %v4552 = vmul.f32 %v3976, %v4172
    %v4553 = vmul.f32 %v3977, %v4179
    %v4554 = vmul.f32 %v3978, %v4186
    %v4555 = vmul.f32 %v3971, %v4193
    %v4556 = vmul.f32 %v3972, %v4200
    %v4557 = vmul.f32 %v3973, %v4207
    %v4558 = vmul.f32 %v3974, %v4214
    %v4559 = vmul.f32 %v3975, %v4221
    %v4560 = vmul.f32 %v3976, %v4228
    %v4561 = vmul.f32 %v3977, %v4235
    %v4562 = vmul.f32 %v3978, %v4242
    %v4563 = vmul.f32 %v3971, %v4249
    %v4564 = vmul.f32 %v3972, %v4256
    %v4565 = vmul.f32 %v3973, %v4263
    %v4566 = vmul.f32 %v3974, %v4270
    %v4567 = vmul.f32 %v3975, %v4277
    %v4568 = vmul.f32 %v3976, %v4284
    %v4569 = vmul.f32 %v3977, %v4291
    %v4570 = vmul.f32 %v3978, %v4298
    %v4571 = vmul.f32 %v3971, %v4305
    %v4572 = vmul.f32 %v3972, %v4312
    %v4573 = vmul.f32 %v3973, %v4319
    %v4574 = vmul.f32 %v3974, %v4326
    %v4575 = vmul.f32 %v3975, %v4333
    %v4576 = vmul.f32 %v3976, %v4340
    %v4577 = vmul.f32 %v3977, %v4347
    %v4578 = vmul.f32 %v3978, %v4354
    %v4579 = vmul.f32 %v3971, %v4361
    %v4580 = vmul.f32 %v3972, %v4368
    %v4581 = vmul.f32 %v3973, %v4375
    %v4582 = vmul.f32 %v3974, %v4382
    %v4583 = vmul.f32 %v3975, %v4389
    %v4584 = vmul.f32 %v3976, %v4396
    %v4585 = vmul.f32 %v3977, %v4403
    %v4586 = vmul.f32 %v3978, %v4410
    %v4587 = vmul.f32 %v3971, %v4417
    %v4588 = vmul.f32 %v3972, %v4424
    %v4589 = vmul.f32 %v3973, %v4431
    %v4590 = vmul.f32 %v3974, %v4438
    %v4591 = vmul.f32 %v3975, %v4445
    %v4592 = vmul.f32 %v3976, %v4452
    %v4593 = vmul.f32 %v3977, %v4459
    %v4594 = vmul.f32 %v3978, %v4466
    %v4595 = vmul.f32 %v3979, %v4025
    %v4596 = vmul.f32 %v3980, %v4032
    %v4597 = vmul.f32 %v3981, %v4039
    %v4598 = vmul.f32 %v3982, %v4046
    %v4599 = vmul.f32 %v3983, %v4053
    %v4600 = vmul.f32 %v3984, %v4060
    %v4601 = vmul.f32 %v3985, %v4067
    %v4602 = vmul.f32 %v3986, %v4074
    %v4603 = vmul.f32 %v3979, %v4081
    %v4604 = vmul.f32 %v3980, %v4088
    %v4605 = vmul.f32 %v3981, %v4095
    %v4606 = vmul.f32 %v3982, %v4102
    %v4607 = vmul.f32 %v3983, %v4109
    %v4608 = vmul.f32 %v3984, %v4116
    %v4609 = vmul.f32 %v3985, %v4123
    %v4610 = vmul.f32 %v3986, %v4130
    %v4611 = vmul.f32 %v3979, %v4137
    %v4612 = vmul.f32 %v3980, %v4144
    %v4613 = vmul.f32 %v3981, %v4151
    %v4614 = vmul.f32 %v3982, %v4158
    %v4615 = vmul.f32 %v3983, %v4165
    %v4616 = vmul.f32 %v3984, %v4172
    %v4617 = vmul.f32 %v3985, %v4179
    %v4618 = vmul.f32 %v3986, %v4186
    %v4619 = vmul.f32 %v3979, %v4193
    %v4620 = vmul.f32 %v3980, %v4200
    %v4621 = vmul.f32 %v3981, %v4207
    %v4622 = vmul.f32 %v3982, %v4214
    %v4623 = vmul.f32 %v3983, %v4221
    %v4624 = vmul.f32 %v3984, %v4228
    %v4625 = vmul.f32 %v3985, %v4235
    %v4626 = vmul.f32 %v3986, %v4242
    %v4627 = vmul.f32 %v3979, %v4249
    %v4628 = vmul.f32 %v3980, %v4256
    %v4629 = vmul.f32 %v3981, %v4263
    %v4630 = vmul.f32 %v3982, %v4270
    %v4631 = vmul.f32 %v3983, %v4277
    %v4632 = vmul.f32 %v3984, %v4284
    %v4633 = vmul.f32 %v3985, %v4291
    %v4634 = vmul.f32 %v3986, %v4298
    %v4635 = vmul.f32 %v3979, %v4305
    %v4636 = vmul.f32 %v3980, %v4312
    %v4637 = vmul.f32 %v3981, %v4319
    %v4638 = vmul.f32 %v3982, %v4326
    %v4639 = vmul.f32 %v3983, %v4333
    %v4640 = vmul.f32 %v3984, %v4340
    %v4641 = vmul.f32 %v3985, %v4347
    %v4642 = vmul.f32 %v3986, %v4354
    %v4643 = vmul.f32 %v3979, %v4361
    %v4644 = vmul.f32 %v3980, %v4368
    %v4645 = vmul.f32 %v3981, %v4375
    %v4646 = vmul.f32 %v3982, %v4382
    %v4647 = vmul.f32 %v3983, %v4389
    %v4648 = vmul.f32 %v3984, %v4396
    %v4649 = vmul.f32 %v3985, %v4403
    %v4650 = vmul.f32 %v3986, %v4410
    %v4651 = vmul.f32 %v3979, %v4417
    %v4652 = vmul.f32 %v3980, %v4424
    %v4653 = vmul.f32 %v3981, %v4431
    %v4654 = vmul.f32 %v3982, %v4438
    %v4655 = vmul.f32 %v3983, %v4445
    %v4656 = vmul.f32 %v3984, %v4452
    %v4657 = vmul.f32 %v3985, %v4459
    %v4658 = vmul.f32 %v3986, %v4466
    %v4659 = vsub.f32 1.0, %v4531
    %v4660 = vsub.f32 1.0, %v4532
    %v4661 = vsub.f32 1.0, %v4533
    %v4662 = vsub.f32 1.0, %v4534
    %v4663 = vsub.f32 1.0, %v4535
    %v4664 = vsub.f32 1.0, %v4536
    %v4665 = vsub.f32 1.0, %v4537
    %v4666 = vsub.f32 1.0, %v4538
    %v4667 = vsub.f32 1.0, %v4539
    %v4668 = vsub.f32 1.0, %v4540
    %v4669 = vsub.f32 1.0, %v4541
    %v4670 = vsub.f32 1.0, %v4542
    %v4671 = vsub.f32 1.0, %v4543
    %v4672 = vsub.f32 1.0, %v4544
    %v4673 = vsub.f32 1.0, %v4545
    %v4674 = vsub.f32 1.0, %v4546
    %v4675 = vsub.f32 1.0, %v4547
    %v4676 = vsub.f32 1.0, %v4548
    %v4677 = vsub.f32 1.0, %v4549
    %v4678 = vsub.f32 1.0, %v4550
    %v4679 = vsub.f32 1.0, %v4551
    %v4680 = vsub.f32 1.0, %v4552
    %v4681 = vsub.f32 1.0, %v4553
    %v4682 = vsub.f32 1.0, %v4554
    %v4683 = vsub.f32 1.0, %v4555
    %v4684 = vsub.f32 1.0, %v4556
    %v4685 = vsub.f32 1.0, %v4557
    %v4686 = vsub.f32 1.0, %v4558
    %v4687 = vsub.f32 1.0, %v4559
    %v4688 = vsub.f32 1.0, %v4560
    %v4689 = vsub.f32 1.0, %v4561
    %v4690 = vsub.f32 1.0, %v4562
    %v4691 = vsub.f32 1.0, %v4563
    %v4692 = vsub.f32 1.0, %v4564
    %v4693 = vsub.f32 1.0, %v4565
    %v4694 = vsub.f32 1.0, %v4566
    %v4695 = vsub.f32 1.0, %v4567
    %v4696 = vsub.f32 1.0, %v4568
    %v4697 = vsub.f32 1.0, %v4569
    %v4698 = vsub.f32 1.0, %v4570
    %v4699 = vsub.f32 1.0, %v4571
    %v4700 = vsub.f32 1.0, %v4572
    %v4701 = vsub.f32 1.0, %v4573
    %v4702 = vsub.f32 1.0, %v4574
    %v4703 = vsub.f32 1.0, %v4575
    %v4704 = vsub.f32 1.0, %v4576
    %v4705 = vsub.f32 1.0, %v4577
    %v4706 = vsub.f32 1.0, %v4578
    %v4707 = vsub.f32 1.0, %v4579
    %v4708 = vsub.f32 1.0, %v4580
    %v4709 = vsub.f32 1.0, %v4581
    %v4710 = vsub.f32 1.0, %v4582
    %v4711 = vsub.f32 1.0, %v4583
    %v4712 = vsub.f32 1.0, %v4584
    %v4713 = vsub.f32 1.0, %v4585
    %v4714 = vsub.f32 1.0, %v4586
    %v4715 = vsub.f32 1.0, %v4587
    %v4716 = vsub.f32 1.0, %v4588
    %v4717 = vsub.f32 1.0, %v4589
    %v4718 = vsub.f32 1.0, %v4590
    %v4719 = vsub.f32 1.0, %v4591
    %v4720 = vsub.f32 1.0, %v4592
    %v4721 = vsub.f32 1.0, %v4593
    %v4722 = vsub.f32 1.0, %v4594
    %v4723 = vsub.f32 1.0, %v4595
    %v4724 = vsub.f32 1.0, %v4596
    %v4725 = vsub.f32 1.0, %v4597
    %v4726 = vsub.f32 1.0, %v4598
    %v4727 = vsub.f32 1.0, %v4599
    %v4728 = vsub.f32 1.0, %v4600
    %v4729 = vsub.f32 1.0, %v4601
    %v4730 = vsub.f32 1.0, %v4602
    %v4731 = vsub.f32 1.0, %v4603
    %v4732 = vsub.f32 1.0, %v4604
    %v4733 = vsub.f32 1.0, %v4605
    %v4734 = vsub.f32 1.0, %v4606
    %v4735 = vsub.f32 1.0, %v4607
    %v4736 = vsub.f32 1.0, %v4608
    %v4737 = vsub.f32 1.0, %v4609
    %v4738 = vsub.f32 1.0, %v4610
    %v4739 = vsub.f32 1.0, %v4611
    %v4740 = vsub.f32 1.0, %v4612
    %v4741 = vsub.f32 1.0, %v4613
    %v4742 = vsub.f32 1.0, %v4614
    %v4743 = vsub.f32 1.0, %v4615
    %v4744 = vsub.f32 1.0, %v4616
    %v4745 = vsub.f32 1.0, %v4617
    %v4746 = vsub.f32 1.0, %v4618
    %v4747 = vsub.f32 1.0, %v4619
    %v4748 = vsub.f32 1.0, %v4620
    %v4749 = vsub.f32 1.0, %v4621
    %v4750 = vsub.f32 1.0, %v4622
    %v4751 = vsub.f32 1.0, %v4623
    %v4752 = vsub.f32 1.0, %v4624
    %v4753 = vsub.f32 1.0, %v4625
    %v4754 = vsub.f32 1.0, %v4626
    %v4755 = vsub.f32 1.0, %v4627
    %v4756 = vsub.f32 1.0, %v4628
    %v4757 = vsub.f32 1.0, %v4629
    %v4758 = vsub.f32 1.0, %v4630
    %v4759 = vsub.f32 1.0, %v4631
    %v4760 = vsub.f32 1.0, %v4632
    %v4761 = vsub.f32 1.0, %v4633
    %v4762 = vsub.f32 1.0, %v4634
    %v4763 = vsub.f32 1.0, %v4635
    %v4764 = vsub.f32 1.0, %v4636
    %v4765 = vsub.f32 1.0, %v4637
    %v4766 = vsub.f32 1.0, %v4638
    %v4767 = vsub.f32 1.0, %v4639
    %v4768 = vsub.f32 1.0, %v4640
    %v4769 = vsub.f32 1.0, %v4641
    %v4770 = vsub.f32 1.0, %v4642
    %v4771 = vsub.f32 1.0, %v4643
    %v4772 = vsub.f32 1.0, %v4644
    %v4773 = vsub.f32 1.0, %v4645
    %v4774 = vsub.f32 1.0, %v4646
    %v4775 = vsub.f32 1.0, %v4647
    %v4776 = vsub.f32 1.0, %v4648
    %v4777 = vsub.f32 1.0, %v4649
    %v4778 = vsub.f32 1.0, %v4650
    %v4779 = vsub.f32 1.0, %v4651
    %v4780 = vsub.f32 1.0, %v4652
    %v4781 = vsub.f32 1.0, %v4653
    %v4782 = vsub.f32 1.0, %v4654
    %v4783 = vsub.f32 1.0, %v4655
    %v4784 = vsub.f32 1.0, %v4656
    %v4785 = vsub.f32 1.0, %v4657
    %v4786 = vsub.f32 1.0, %v4658
    %s4788 = sor.u32 256, 8
    %4789 = vbcast.lane.b32.xlu0 %v2894, %s4788
    %v4790 = vpop.permute.xlu0 %4789
    %s4792 = sor.u32 256, 8
    %4793 = vbcast.lane.b32.xlu0 %v2901, %s4792
    %v4794 = vpop.permute.xlu0 %4793
    %s4796 = sor.u32 256, 8
    %4797 = vbcast.lane.b32.xlu0 %v2908, %s4796
    %v4798 = vpop.permute.xlu0 %4797
    %s4800 = sor.u32 256, 8
    %4801 = vbcast.lane.b32.xlu0 %v2915, %s4800
    %v4802 = vpop.permute.xlu0 %4801
    %s4804 = sor.u32 256, 8
    %4805 = vbcast.lane.b32.xlu0 %v2922, %s4804
    %v4806 = vpop.permute.xlu0 %4805
    %s4808 = sor.u32 256, 8
    %4809 = vbcast.lane.b32.xlu0 %v2929, %s4808
    %v4810 = vpop.permute.xlu0 %4809
    %s4812 = sor.u32 256, 8
    %4813 = vbcast.lane.b32.xlu0 %v2936, %s4812
    %v4814 = vpop.permute.xlu0 %4813
    %s4816 = sor.u32 256, 8
    %4817 = vbcast.lane.b32.xlu0 %v2943, %s4816
    %v4818 = vpop.permute.xlu0 %4817
    %v4819 = vlaneseq
    %v4820 = vshrl.u32 %v4819, 7
    %v4821 = vsub.s32 0, %v4820
    %v4822 = vrot.slane %v4790, %v4821
    %4824 = vbcast.lane.b32.xlu0 %v4822, 256
    %v4825 = vpop.permute.xlu0 %4824
    %v4826 = vlaneseq
    %v4827 = vshrl.u32 %v4826, 7
    %v4828 = vsub.s32 1, %v4827
    %v4829 = vrot.slane %v4790, %v4828
    %4831 = vbcast.lane.b32.xlu0 %v4829, 256
    %v4832 = vpop.permute.xlu0 %4831
    %v4833 = vlaneseq
    %v4834 = vshrl.u32 %v4833, 7
    %v4835 = vsub.s32 2, %v4834
    %v4836 = vrot.slane %v4790, %v4835
    %4838 = vbcast.lane.b32.xlu0 %v4836, 256
    %v4839 = vpop.permute.xlu0 %4838
    %v4840 = vlaneseq
    %v4841 = vshrl.u32 %v4840, 7
    %v4842 = vsub.s32 3, %v4841
    %v4843 = vrot.slane %v4790, %v4842
    %4845 = vbcast.lane.b32.xlu0 %v4843, 256
    %v4846 = vpop.permute.xlu0 %4845
    %v4847 = vlaneseq
    %v4848 = vshrl.u32 %v4847, 7
    %v4849 = vsub.s32 4, %v4848
    %v4850 = vrot.slane %v4790, %v4849
    %4852 = vbcast.lane.b32.xlu0 %v4850, 256
    %v4853 = vpop.permute.xlu0 %4852
    %v4854 = vlaneseq
    %v4855 = vshrl.u32 %v4854, 7
    %v4856 = vsub.s32 5, %v4855
    %v4857 = vrot.slane %v4790, %v4856
    %4859 = vbcast.lane.b32.xlu0 %v4857, 256
    %v4860 = vpop.permute.xlu0 %4859
    %v4861 = vlaneseq
    %v4862 = vshrl.u32 %v4861, 7
    %v4863 = vsub.s32 6, %v4862
    %v4864 = vrot.slane %v4790, %v4863
    %4866 = vbcast.lane.b32.xlu0 %v4864, 256
    %v4867 = vpop.permute.xlu0 %4866
    %v4868 = vlaneseq
    %v4869 = vshrl.u32 %v4868, 7
    %v4870 = vsub.s32 7, %v4869
    %v4871 = vrot.slane %v4790, %v4870
    %4873 = vbcast.lane.b32.xlu0 %v4871, 256
    %v4874 = vpop.permute.xlu0 %4873
    %v4875 = vlaneseq
    %v4876 = vshrl.u32 %v4875, 7
    %v4877 = vsub.s32 0, %v4876
    %v4878 = vrot.slane %v4794, %v4877
    %4880 = vbcast.lane.b32.xlu0 %v4878, 256
    %v4881 = vpop.permute.xlu0 %4880
    %v4882 = vlaneseq
    %v4883 = vshrl.u32 %v4882, 7
    %v4884 = vsub.s32 1, %v4883
    %v4885 = vrot.slane %v4794, %v4884
    %4887 = vbcast.lane.b32.xlu0 %v4885, 256
    %v4888 = vpop.permute.xlu0 %4887
    %v4889 = vlaneseq
    %v4890 = vshrl.u32 %v4889, 7
    %v4891 = vsub.s32 2, %v4890
    %v4892 = vrot.slane %v4794, %v4891
    %4894 = vbcast.lane.b32.xlu0 %v4892, 256
    %v4895 = vpop.permute.xlu0 %4894
    %v4896 = vlaneseq
    %v4897 = vshrl.u32 %v4896, 7
    %v4898 = vsub.s32 3, %v4897
    %v4899 = vrot.slane %v4794, %v4898
    %4901 = vbcast.lane.b32.xlu0 %v4899, 256
    %v4902 = vpop.permute.xlu0 %4901
    %v4903 = vlaneseq
    %v4904 = vshrl.u32 %v4903, 7
    %v4905 = vsub.s32 4, %v4904
    %v4906 = vrot.slane %v4794, %v4905
    %4908 = vbcast.lane.b32.xlu0 %v4906, 256
    %v4909 = vpop.permute.xlu0 %4908
    %v4910 = vlaneseq
    %v4911 = vshrl.u32 %v4910, 7
    %v4912 = vsub.s32 5, %v4911
    %v4913 = vrot.slane %v4794, %v4912
    %4915 = vbcast.lane.b32.xlu0 %v4913, 256
    %v4916 = vpop.permute.xlu0 %4915
    %v4917 = vlaneseq
    %v4918 = vshrl.u32 %v4917, 7
    %v4919 = vsub.s32 6, %v4918
    %v4920 = vrot.slane %v4794, %v4919
    %4922 = vbcast.lane.b32.xlu0 %v4920, 256
    %v4923 = vpop.permute.xlu0 %4922
    %v4924 = vlaneseq
    %v4925 = vshrl.u32 %v4924, 7
    %v4926 = vsub.s32 7, %v4925
    %v4927 = vrot.slane %v4794, %v4926
    %4929 = vbcast.lane.b32.xlu0 %v4927, 256
    %v4930 = vpop.permute.xlu0 %4929
    %v4931 = vlaneseq
    %v4932 = vshrl.u32 %v4931, 7
    %v4933 = vsub.s32 0, %v4932
    %v4934 = vrot.slane %v4798, %v4933
    %4936 = vbcast.lane.b32.xlu0 %v4934, 256
    %v4937 = vpop.permute.xlu0 %4936
    %v4938 = vlaneseq
    %v4939 = vshrl.u32 %v4938, 7
    %v4940 = vsub.s32 1, %v4939
    %v4941 = vrot.slane %v4798, %v4940
    %4943 = vbcast.lane.b32.xlu0 %v4941, 256
    %v4944 = vpop.permute.xlu0 %4943
    %v4945 = vlaneseq
    %v4946 = vshrl.u32 %v4945, 7
    %v4947 = vsub.s32 2, %v4946
    %v4948 = vrot.slane %v4798, %v4947
    %4950 = vbcast.lane.b32.xlu0 %v4948, 256
    %v4951 = vpop.permute.xlu0 %4950
    %v4952 = vlaneseq
    %v4953 = vshrl.u32 %v4952, 7
    %v4954 = vsub.s32 3, %v4953
    %v4955 = vrot.slane %v4798, %v4954
    %4957 = vbcast.lane.b32.xlu0 %v4955, 256
    %v4958 = vpop.permute.xlu0 %4957
    %v4959 = vlaneseq
    %v4960 = vshrl.u32 %v4959, 7
    %v4961 = vsub.s32 4, %v4960
    %v4962 = vrot.slane %v4798, %v4961
    %4964 = vbcast.lane.b32.xlu0 %v4962, 256
    %v4965 = vpop.permute.xlu0 %4964
    %v4966 = vlaneseq
    %v4967 = vshrl.u32 %v4966, 7
    %v4968 = vsub.s32 5, %v4967
    %v4969 = vrot.slane %v4798, %v4968
    %4971 = vbcast.lane.b32.xlu0 %v4969, 256
    %v4972 = vpop.permute.xlu0 %4971
    %v4973 = vlaneseq
    %v4974 = vshrl.u32 %v4973, 7
    %v4975 = vsub.s32 6, %v4974
    %v4976 = vrot.slane %v4798, %v4975
    %4978 = vbcast.lane.b32.xlu0 %v4976, 256
    %v4979 = vpop.permute.xlu0 %4978
    %v4980 = vlaneseq
    %v4981 = vshrl.u32 %v4980, 7
    %v4982 = vsub.s32 7, %v4981
    %v4983 = vrot.slane %v4798, %v4982
    %4985 = vbcast.lane.b32.xlu0 %v4983, 256
    %v4986 = vpop.permute.xlu0 %4985
    %v4987 = vlaneseq
    %v4988 = vshrl.u32 %v4987, 7
    %v4989 = vsub.s32 0, %v4988
    %v4990 = vrot.slane %v4802, %v4989
    %4992 = vbcast.lane.b32.xlu0 %v4990, 256
    %v4993 = vpop.permute.xlu0 %4992
    %v4994 = vlaneseq
    %v4995 = vshrl.u32 %v4994, 7
    %v4996 = vsub.s32 1, %v4995
    %v4997 = vrot.slane %v4802, %v4996
    %4999 = vbcast.lane.b32.xlu0 %v4997, 256
    %v5000 = vpop.permute.xlu0 %4999
    %v5001 = vlaneseq
    %v5002 = vshrl.u32 %v5001, 7
    %v5003 = vsub.s32 2, %v5002
    %v5004 = vrot.slane %v4802, %v5003
    %5006 = vbcast.lane.b32.xlu0 %v5004, 256
    %v5007 = vpop.permute.xlu0 %5006
    %v5008 = vlaneseq
    %v5009 = vshrl.u32 %v5008, 7
    %v5010 = vsub.s32 3, %v5009
    %v5011 = vrot.slane %v4802, %v5010
    %5013 = vbcast.lane.b32.xlu0 %v5011, 256
    %v5014 = vpop.permute.xlu0 %5013
    %v5015 = vlaneseq
    %v5016 = vshrl.u32 %v5015, 7
    %v5017 = vsub.s32 4, %v5016
    %v5018 = vrot.slane %v4802, %v5017
    %5020 = vbcast.lane.b32.xlu0 %v5018, 256
    %v5021 = vpop.permute.xlu0 %5020
    %v5022 = vlaneseq
    %v5023 = vshrl.u32 %v5022, 7
    %v5024 = vsub.s32 5, %v5023
    %v5025 = vrot.slane %v4802, %v5024
    %5027 = vbcast.lane.b32.xlu0 %v5025, 256
    %v5028 = vpop.permute.xlu0 %5027
    %v5029 = vlaneseq
    %v5030 = vshrl.u32 %v5029, 7
    %v5031 = vsub.s32 6, %v5030
    %v5032 = vrot.slane %v4802, %v5031
    %5034 = vbcast.lane.b32.xlu0 %v5032, 256
    %v5035 = vpop.permute.xlu0 %5034
    %v5036 = vlaneseq
    %v5037 = vshrl.u32 %v5036, 7
    %v5038 = vsub.s32 7, %v5037
    %v5039 = vrot.slane %v4802, %v5038
    %5041 = vbcast.lane.b32.xlu0 %v5039, 256
    %v5042 = vpop.permute.xlu0 %5041
    %v5043 = vlaneseq
    %v5044 = vshrl.u32 %v5043, 7
    %v5045 = vsub.s32 0, %v5044
    %v5046 = vrot.slane %v4806, %v5045
    %5048 = vbcast.lane.b32.xlu0 %v5046, 256
    %v5049 = vpop.permute.xlu0 %5048
    %v5050 = vlaneseq
    %v5051 = vshrl.u32 %v5050, 7
    %v5052 = vsub.s32 1, %v5051
    %v5053 = vrot.slane %v4806, %v5052
    %5055 = vbcast.lane.b32.xlu0 %v5053, 256
    %v5056 = vpop.permute.xlu0 %5055
    %v5057 = vlaneseq
    %v5058 = vshrl.u32 %v5057, 7
    %v5059 = vsub.s32 2, %v5058
    %v5060 = vrot.slane %v4806, %v5059
    %5062 = vbcast.lane.b32.xlu0 %v5060, 256
    %v5063 = vpop.permute.xlu0 %5062
    %v5064 = vlaneseq
    %v5065 = vshrl.u32 %v5064, 7
    %v5066 = vsub.s32 3, %v5065
    %v5067 = vrot.slane %v4806, %v5066
    %5069 = vbcast.lane.b32.xlu0 %v5067, 256
    %v5070 = vpop.permute.xlu0 %5069
    %v5071 = vlaneseq
    %v5072 = vshrl.u32 %v5071, 7
    %v5073 = vsub.s32 4, %v5072
    %v5074 = vrot.slane %v4806, %v5073
    %5076 = vbcast.lane.b32.xlu0 %v5074, 256
    %v5077 = vpop.permute.xlu0 %5076
    %v5078 = vlaneseq
    %v5079 = vshrl.u32 %v5078, 7
    %v5080 = vsub.s32 5, %v5079
    %v5081 = vrot.slane %v4806, %v5080
    %5083 = vbcast.lane.b32.xlu0 %v5081, 256
    %v5084 = vpop.permute.xlu0 %5083
    %v5085 = vlaneseq
    %v5086 = vshrl.u32 %v5085, 7
    %v5087 = vsub.s32 6, %v5086
    %v5088 = vrot.slane %v4806, %v5087
    %5090 = vbcast.lane.b32.xlu0 %v5088, 256
    %v5091 = vpop.permute.xlu0 %5090
    %v5092 = vlaneseq
    %v5093 = vshrl.u32 %v5092, 7
    %v5094 = vsub.s32 7, %v5093
    %v5095 = vrot.slane %v4806, %v5094
    %5097 = vbcast.lane.b32.xlu0 %v5095, 256
    %v5098 = vpop.permute.xlu0 %5097
    %v5099 = vlaneseq
    %v5100 = vshrl.u32 %v5099, 7
    %v5101 = vsub.s32 0, %v5100
    %v5102 = vrot.slane %v4810, %v5101
    %5104 = vbcast.lane.b32.xlu0 %v5102, 256
    %v5105 = vpop.permute.xlu0 %5104
    %v5106 = vlaneseq
    %v5107 = vshrl.u32 %v5106, 7
    %v5108 = vsub.s32 1, %v5107
    %v5109 = vrot.slane %v4810, %v5108
    %5111 = vbcast.lane.b32.xlu0 %v5109, 256
    %v5112 = vpop.permute.xlu0 %5111
    %v5113 = vlaneseq
    %v5114 = vshrl.u32 %v5113, 7
    %v5115 = vsub.s32 2, %v5114
    %v5116 = vrot.slane %v4810, %v5115
    %5118 = vbcast.lane.b32.xlu0 %v5116, 256
    %v5119 = vpop.permute.xlu0 %5118
    %v5120 = vlaneseq
    %v5121 = vshrl.u32 %v5120, 7
    %v5122 = vsub.s32 3, %v5121
    %v5123 = vrot.slane %v4810, %v5122
    %5125 = vbcast.lane.b32.xlu0 %v5123, 256
    %v5126 = vpop.permute.xlu0 %5125
    %v5127 = vlaneseq
    %v5128 = vshrl.u32 %v5127, 7
    %v5129 = vsub.s32 4, %v5128
    %v5130 = vrot.slane %v4810, %v5129
    %5132 = vbcast.lane.b32.xlu0 %v5130, 256
    %v5133 = vpop.permute.xlu0 %5132
    %v5134 = vlaneseq
    %v5135 = vshrl.u32 %v5134, 7
    %v5136 = vsub.s32 5, %v5135
    %v5137 = vrot.slane %v4810, %v5136
    %5139 = vbcast.lane.b32.xlu0 %v5137, 256
    %v5140 = vpop.permute.xlu0 %5139
    %v5141 = vlaneseq
    %v5142 = vshrl.u32 %v5141, 7
    %v5143 = vsub.s32 6, %v5142
    %v5144 = vrot.slane %v4810, %v5143
    %5146 = vbcast.lane.b32.xlu0 %v5144, 256
    %v5147 = vpop.permute.xlu0 %5146
    %v5148 = vlaneseq
    %v5149 = vshrl.u32 %v5148, 7
    %v5150 = vsub.s32 7, %v5149
    %v5151 = vrot.slane %v4810, %v5150
    %5153 = vbcast.lane.b32.xlu0 %v5151, 256
    %v5154 = vpop.permute.xlu0 %5153
    %v5155 = vlaneseq
    %v5156 = vshrl.u32 %v5155, 7
    %v5157 = vsub.s32 0, %v5156
    %v5158 = vrot.slane %v4814, %v5157
    %5160 = vbcast.lane.b32.xlu0 %v5158, 256
    %v5161 = vpop.permute.xlu0 %5160
    %v5162 = vlaneseq
    %v5163 = vshrl.u32 %v5162, 7
    %v5164 = vsub.s32 1, %v5163
    %v5165 = vrot.slane %v4814, %v5164
    %5167 = vbcast.lane.b32.xlu0 %v5165, 256
    %v5168 = vpop.permute.xlu0 %5167
    %v5169 = vlaneseq
    %v5170 = vshrl.u32 %v5169, 7
    %v5171 = vsub.s32 2, %v5170
    %v5172 = vrot.slane %v4814, %v5171
    %5174 = vbcast.lane.b32.xlu0 %v5172, 256
    %v5175 = vpop.permute.xlu0 %5174
    %v5176 = vlaneseq
    %v5177 = vshrl.u32 %v5176, 7
    %v5178 = vsub.s32 3, %v5177
    %v5179 = vrot.slane %v4814, %v5178
    %5181 = vbcast.lane.b32.xlu0 %v5179, 256
    %v5182 = vpop.permute.xlu0 %5181
    %v5183 = vlaneseq
    %v5184 = vshrl.u32 %v5183, 7
    %v5185 = vsub.s32 4, %v5184
    %v5186 = vrot.slane %v4814, %v5185
    %5188 = vbcast.lane.b32.xlu0 %v5186, 256
    %v5189 = vpop.permute.xlu0 %5188
    %v5190 = vlaneseq
    %v5191 = vshrl.u32 %v5190, 7
    %v5192 = vsub.s32 5, %v5191
    %v5193 = vrot.slane %v4814, %v5192
    %5195 = vbcast.lane.b32.xlu0 %v5193, 256
    %v5196 = vpop.permute.xlu0 %5195
    %v5197 = vlaneseq
    %v5198 = vshrl.u32 %v5197, 7
    %v5199 = vsub.s32 6, %v5198
    %v5200 = vrot.slane %v4814, %v5199
    %5202 = vbcast.lane.b32.xlu0 %v5200, 256
    %v5203 = vpop.permute.xlu0 %5202
    %v5204 = vlaneseq
    %v5205 = vshrl.u32 %v5204, 7
    %v5206 = vsub.s32 7, %v5205
    %v5207 = vrot.slane %v4814, %v5206
    %5209 = vbcast.lane.b32.xlu0 %v5207, 256
    %v5210 = vpop.permute.xlu0 %5209
    %v5211 = vlaneseq
    %v5212 = vshrl.u32 %v5211, 7
    %v5213 = vsub.s32 0, %v5212
    %v5214 = vrot.slane %v4818, %v5213
    %5216 = vbcast.lane.b32.xlu0 %v5214, 256
    %v5217 = vpop.permute.xlu0 %5216
    %v5218 = vlaneseq
    %v5219 = vshrl.u32 %v5218, 7
    %v5220 = vsub.s32 1, %v5219
    %v5221 = vrot.slane %v4818, %v5220
    %5223 = vbcast.lane.b32.xlu0 %v5221, 256
    %v5224 = vpop.permute.xlu0 %5223
    %v5225 = vlaneseq
    %v5226 = vshrl.u32 %v5225, 7
    %v5227 = vsub.s32 2, %v5226
    %v5228 = vrot.slane %v4818, %v5227
    %5230 = vbcast.lane.b32.xlu0 %v5228, 256
    %v5231 = vpop.permute.xlu0 %5230
    %v5232 = vlaneseq
    %v5233 = vshrl.u32 %v5232, 7
    %v5234 = vsub.s32 3, %v5233
    %v5235 = vrot.slane %v4818, %v5234
    %5237 = vbcast.lane.b32.xlu0 %v5235, 256
    %v5238 = vpop.permute.xlu0 %5237
    %v5239 = vlaneseq
    %v5240 = vshrl.u32 %v5239, 7
    %v5241 = vsub.s32 4, %v5240
    %v5242 = vrot.slane %v4818, %v5241
    %5244 = vbcast.lane.b32.xlu0 %v5242, 256
    %v5245 = vpop.permute.xlu0 %5244
    %v5246 = vlaneseq
    %v5247 = vshrl.u32 %v5246, 7
    %v5248 = vsub.s32 5, %v5247
    %v5249 = vrot.slane %v4818, %v5248
    %5251 = vbcast.lane.b32.xlu0 %v5249, 256
    %v5252 = vpop.permute.xlu0 %5251
    %v5253 = vlaneseq
    %v5254 = vshrl.u32 %v5253, 7
    %v5255 = vsub.s32 6, %v5254
    %v5256 = vrot.slane %v4818, %v5255
    %5258 = vbcast.lane.b32.xlu0 %v5256, 256
    %v5259 = vpop.permute.xlu0 %5258
    %v5260 = vlaneseq
    %v5261 = vshrl.u32 %v5260, 7
    %v5262 = vsub.s32 7, %v5261
    %v5263 = vrot.slane %v4818, %v5262
    %5265 = vbcast.lane.b32.xlu0 %v5263, 256
    %v5266 = vpop.permute.xlu0 %5265
    %v5331 = vmul.f32 %v2033, %v4825
    %v5332 = vmul.f32 %v2034, %v4832
    %v5333 = vmul.f32 %v2035, %v4839
    %v5334 = vmul.f32 %v2036, %v4846
    %v5335 = vmul.f32 %v2037, %v4853
    %v5336 = vmul.f32 %v2038, %v4860
    %v5337 = vmul.f32 %v2039, %v4867
    %v5338 = vmul.f32 %v2040, %v4874
    %v5339 = vmul.f32 %v2033, %v4881
    %v5340 = vmul.f32 %v2034, %v4888
    %v5341 = vmul.f32 %v2035, %v4895
    %v5342 = vmul.f32 %v2036, %v4902
    %v5343 = vmul.f32 %v2037, %v4909
    %v5344 = vmul.f32 %v2038, %v4916
    %v5345 = vmul.f32 %v2039, %v4923
    %v5346 = vmul.f32 %v2040, %v4930
    %v5347 = vmul.f32 %v2033, %v4937
    %v5348 = vmul.f32 %v2034, %v4944
    %v5349 = vmul.f32 %v2035, %v4951
    %v5350 = vmul.f32 %v2036, %v4958
    %v5351 = vmul.f32 %v2037, %v4965
    %v5352 = vmul.f32 %v2038, %v4972
    %v5353 = vmul.f32 %v2039, %v4979
    %v5354 = vmul.f32 %v2040, %v4986
    %v5355 = vmul.f32 %v2033, %v4993
    %v5356 = vmul.f32 %v2034, %v5000
    %v5357 = vmul.f32 %v2035, %v5007
    %v5358 = vmul.f32 %v2036, %v5014
    %v5359 = vmul.f32 %v2037, %v5021
    %v5360 = vmul.f32 %v2038, %v5028
    %v5361 = vmul.f32 %v2039, %v5035
    %v5362 = vmul.f32 %v2040, %v5042
    %v5363 = vmul.f32 %v2033, %v5049
    %v5364 = vmul.f32 %v2034, %v5056
    %v5365 = vmul.f32 %v2035, %v5063
    %v5366 = vmul.f32 %v2036, %v5070
    %v5367 = vmul.f32 %v2037, %v5077
    %v5368 = vmul.f32 %v2038, %v5084
    %v5369 = vmul.f32 %v2039, %v5091
    %v5370 = vmul.f32 %v2040, %v5098
    %v5371 = vmul.f32 %v2033, %v5105
    %v5372 = vmul.f32 %v2034, %v5112
    %v5373 = vmul.f32 %v2035, %v5119
    %v5374 = vmul.f32 %v2036, %v5126
    %v5375 = vmul.f32 %v2037, %v5133
    %v5376 = vmul.f32 %v2038, %v5140
    %v5377 = vmul.f32 %v2039, %v5147
    %v5378 = vmul.f32 %v2040, %v5154
    %v5379 = vmul.f32 %v2033, %v5161
    %v5380 = vmul.f32 %v2034, %v5168
    %v5381 = vmul.f32 %v2035, %v5175
    %v5382 = vmul.f32 %v2036, %v5182
    %v5383 = vmul.f32 %v2037, %v5189
    %v5384 = vmul.f32 %v2038, %v5196
    %v5385 = vmul.f32 %v2039, %v5203
    %v5386 = vmul.f32 %v2040, %v5210
    %v5387 = vmul.f32 %v2033, %v5217
    %v5388 = vmul.f32 %v2034, %v5224
    %v5389 = vmul.f32 %v2035, %v5231
    %v5390 = vmul.f32 %v2036, %v5238
    %v5391 = vmul.f32 %v2037, %v5245
    %v5392 = vmul.f32 %v2038, %v5252
    %v5393 = vmul.f32 %v2039, %v5259
    %v5394 = vmul.f32 %v2040, %v5266
    %v5395 = vmul.f32 %v2041, %v4825
    %v5396 = vmul.f32 %v2042, %v4832
    %v5397 = vmul.f32 %v2043, %v4839
    %v5398 = vmul.f32 %v2044, %v4846
    %v5399 = vmul.f32 %v2045, %v4853
    %v5400 = vmul.f32 %v2046, %v4860
    %v5401 = vmul.f32 %v2047, %v4867
    %v5402 = vmul.f32 %v2048, %v4874
    %v5403 = vmul.f32 %v2041, %v4881
    %v5404 = vmul.f32 %v2042, %v4888
    %v5405 = vmul.f32 %v2043, %v4895
    %v5406 = vmul.f32 %v2044, %v4902
    %v5407 = vmul.f32 %v2045, %v4909
    %v5408 = vmul.f32 %v2046, %v4916
    %v5409 = vmul.f32 %v2047, %v4923
    %v5410 = vmul.f32 %v2048, %v4930
    %v5411 = vmul.f32 %v2041, %v4937
    %v5412 = vmul.f32 %v2042, %v4944
    %v5413 = vmul.f32 %v2043, %v4951
    %v5414 = vmul.f32 %v2044, %v4958
    %v5415 = vmul.f32 %v2045, %v4965
    %v5416 = vmul.f32 %v2046, %v4972
    %v5417 = vmul.f32 %v2047, %v4979
    %v5418 = vmul.f32 %v2048, %v4986
    %v5419 = vmul.f32 %v2041, %v4993
    %v5420 = vmul.f32 %v2042, %v5000
    %v5421 = vmul.f32 %v2043, %v5007
    %v5422 = vmul.f32 %v2044, %v5014
    %v5423 = vmul.f32 %v2045, %v5021
    %v5424 = vmul.f32 %v2046, %v5028
    %v5425 = vmul.f32 %v2047, %v5035
    %v5426 = vmul.f32 %v2048, %v5042
    %v5427 = vmul.f32 %v2041, %v5049
    %v5428 = vmul.f32 %v2042, %v5056
    %v5429 = vmul.f32 %v2043, %v5063
    %v5430 = vmul.f32 %v2044, %v5070
    %v5431 = vmul.f32 %v2045, %v5077
    %v5432 = vmul.f32 %v2046, %v5084
    %v5433 = vmul.f32 %v2047, %v5091
    %v5434 = vmul.f32 %v2048, %v5098
    %v5435 = vmul.f32 %v2041, %v5105
    %v5436 = vmul.f32 %v2042, %v5112
    %v5437 = vmul.f32 %v2043, %v5119
    %v5438 = vmul.f32 %v2044, %v5126
    %v5439 = vmul.f32 %v2045, %v5133
    %v5440 = vmul.f32 %v2046, %v5140
    %v5441 = vmul.f32 %v2047, %v5147
    %v5442 = vmul.f32 %v2048, %v5154
    %v5443 = vmul.f32 %v2041, %v5161
    %v5444 = vmul.f32 %v2042, %v5168
    %v5445 = vmul.f32 %v2043, %v5175
    %v5446 = vmul.f32 %v2044, %v5182
    %v5447 = vmul.f32 %v2045, %v5189
    %v5448 = vmul.f32 %v2046, %v5196
    %v5449 = vmul.f32 %v2047, %v5203
    %v5450 = vmul.f32 %v2048, %v5210
    %v5451 = vmul.f32 %v2041, %v5217
    %v5452 = vmul.f32 %v2042, %v5224
    %v5453 = vmul.f32 %v2043, %v5231
    %v5454 = vmul.f32 %v2044, %v5238
    %v5455 = vmul.f32 %v2045, %v5245
    %v5456 = vmul.f32 %v2046, %v5252
    %v5457 = vmul.f32 %v2047, %v5259
    %v5458 = vmul.f32 %v2048, %v5266
    %v5459 = vsub.f32 1.0, %v5331
    %v5460 = vsub.f32 1.0, %v5332
    %v5461 = vsub.f32 1.0, %v5333
    %v5462 = vsub.f32 1.0, %v5334
    %v5463 = vsub.f32 1.0, %v5335
    %v5464 = vsub.f32 1.0, %v5336
    %v5465 = vsub.f32 1.0, %v5337
    %v5466 = vsub.f32 1.0, %v5338
    %v5467 = vsub.f32 1.0, %v5339
    %v5468 = vsub.f32 1.0, %v5340
    %v5469 = vsub.f32 1.0, %v5341
    %v5470 = vsub.f32 1.0, %v5342
    %v5471 = vsub.f32 1.0, %v5343
    %v5472 = vsub.f32 1.0, %v5344
    %v5473 = vsub.f32 1.0, %v5345
    %v5474 = vsub.f32 1.0, %v5346
    %v5475 = vsub.f32 1.0, %v5347
    %v5476 = vsub.f32 1.0, %v5348
    %v5477 = vsub.f32 1.0, %v5349
    %v5478 = vsub.f32 1.0, %v5350
    %v5479 = vsub.f32 1.0, %v5351
    %v5480 = vsub.f32 1.0, %v5352
    %v5481 = vsub.f32 1.0, %v5353
    %v5482 = vsub.f32 1.0, %v5354
    %v5483 = vsub.f32 1.0, %v5355
    %v5484 = vsub.f32 1.0, %v5356
    %v5485 = vsub.f32 1.0, %v5357
    %v5486 = vsub.f32 1.0, %v5358
    %v5487 = vsub.f32 1.0, %v5359
    %v5488 = vsub.f32 1.0, %v5360
    %v5489 = vsub.f32 1.0, %v5361
    %v5490 = vsub.f32 1.0, %v5362
    %v5491 = vsub.f32 1.0, %v5363
    %v5492 = vsub.f32 1.0, %v5364
    %v5493 = vsub.f32 1.0, %v5365
    %v5494 = vsub.f32 1.0, %v5366
    %v5495 = vsub.f32 1.0, %v5367
    %v5496 = vsub.f32 1.0, %v5368
    %v5497 = vsub.f32 1.0, %v5369
    %v5498 = vsub.f32 1.0, %v5370
    %v5499 = vsub.f32 1.0, %v5371
    %v5500 = vsub.f32 1.0, %v5372
    %v5501 = vsub.f32 1.0, %v5373
    %v5502 = vsub.f32 1.0, %v5374
    %v5503 = vsub.f32 1.0, %v5375
    %v5504 = vsub.f32 1.0, %v5376
    %v5505 = vsub.f32 1.0, %v5377
    %v5506 = vsub.f32 1.0, %v5378
    %v5507 = vsub.f32 1.0, %v5379
    %v5508 = vsub.f32 1.0, %v5380
    %v5509 = vsub.f32 1.0, %v5381
    %v5510 = vsub.f32 1.0, %v5382
    %v5511 = vsub.f32 1.0, %v5383
    %v5512 = vsub.f32 1.0, %v5384
    %v5513 = vsub.f32 1.0, %v5385
    %v5514 = vsub.f32 1.0, %v5386
    %v5515 = vsub.f32 1.0, %v5387
    %v5516 = vsub.f32 1.0, %v5388
    %v5517 = vsub.f32 1.0, %v5389
    %v5518 = vsub.f32 1.0, %v5390
    %v5519 = vsub.f32 1.0, %v5391
    %v5520 = vsub.f32 1.0, %v5392
    %v5521 = vsub.f32 1.0, %v5393
    %v5522 = vsub.f32 1.0, %v5394
    %v5523 = vsub.f32 1.0, %v5395
    %v5524 = vsub.f32 1.0, %v5396
    %v5525 = vsub.f32 1.0, %v5397
    %v5526 = vsub.f32 1.0, %v5398
    %v5527 = vsub.f32 1.0, %v5399
    %v5528 = vsub.f32 1.0, %v5400
    %v5529 = vsub.f32 1.0, %v5401
    %v5530 = vsub.f32 1.0, %v5402
    %v5531 = vsub.f32 1.0, %v5403
    %v5532 = vsub.f32 1.0, %v5404
    %v5533 = vsub.f32 1.0, %v5405
    %v5534 = vsub.f32 1.0, %v5406
    %v5535 = vsub.f32 1.0, %v5407
    %v5536 = vsub.f32 1.0, %v5408
    %v5537 = vsub.f32 1.0, %v5409
    %v5538 = vsub.f32 1.0, %v5410
    %v5539 = vsub.f32 1.0, %v5411
    %v5540 = vsub.f32 1.0, %v5412
    %v5541 = vsub.f32 1.0, %v5413
    %v5542 = vsub.f32 1.0, %v5414
    %v5543 = vsub.f32 1.0, %v5415
    %v5544 = vsub.f32 1.0, %v5416
    %v5545 = vsub.f32 1.0, %v5417
    %v5546 = vsub.f32 1.0, %v5418
    %v5547 = vsub.f32 1.0, %v5419
    %v5548 = vsub.f32 1.0, %v5420
    %v5549 = vsub.f32 1.0, %v5421
    %v5550 = vsub.f32 1.0, %v5422
    %v5551 = vsub.f32 1.0, %v5423
    %v5552 = vsub.f32 1.0, %v5424
    %v5553 = vsub.f32 1.0, %v5425
    %v5554 = vsub.f32 1.0, %v5426
    %v5555 = vsub.f32 1.0, %v5427
    %v5556 = vsub.f32 1.0, %v5428
    %v5557 = vsub.f32 1.0, %v5429
    %v5558 = vsub.f32 1.0, %v5430
    %v5559 = vsub.f32 1.0, %v5431
    %v5560 = vsub.f32 1.0, %v5432
    %v5561 = vsub.f32 1.0, %v5433
    %v5562 = vsub.f32 1.0, %v5434
    %v5563 = vsub.f32 1.0, %v5435
    %v5564 = vsub.f32 1.0, %v5436
    %v5565 = vsub.f32 1.0, %v5437
    %v5566 = vsub.f32 1.0, %v5438
    %v5567 = vsub.f32 1.0, %v5439
    %v5568 = vsub.f32 1.0, %v5440
    %v5569 = vsub.f32 1.0, %v5441
    %v5570 = vsub.f32 1.0, %v5442
    %v5571 = vsub.f32 1.0, %v5443
    %v5572 = vsub.f32 1.0, %v5444
    %v5573 = vsub.f32 1.0, %v5445
    %v5574 = vsub.f32 1.0, %v5446
    %v5575 = vsub.f32 1.0, %v5447
    %v5576 = vsub.f32 1.0, %v5448
    %v5577 = vsub.f32 1.0, %v5449
    %v5578 = vsub.f32 1.0, %v5450
    %v5579 = vsub.f32 1.0, %v5451
    %v5580 = vsub.f32 1.0, %v5452
    %v5581 = vsub.f32 1.0, %v5453
    %v5582 = vsub.f32 1.0, %v5454
    %v5583 = vsub.f32 1.0, %v5455
    %v5584 = vsub.f32 1.0, %v5456
    %v5585 = vsub.f32 1.0, %v5457
    %v5586 = vsub.f32 1.0, %v5458
    %v5587 = vmul.f32 %v4659, %v4663
    %v5588 = vmul.f32 %v4660, %v4664
    %v5589 = vmul.f32 %v4661, %v4665
    %v5590 = vmul.f32 %v4662, %v4666
    %v5591 = vmul.f32 %v4667, %v4671
    %v5592 = vmul.f32 %v4668, %v4672
    %v5593 = vmul.f32 %v4669, %v4673
    %v5594 = vmul.f32 %v4670, %v4674
    %v5595 = vmul.f32 %v4675, %v4679
    %v5596 = vmul.f32 %v4676, %v4680
    %v5597 = vmul.f32 %v4677, %v4681
    %v5598 = vmul.f32 %v4678, %v4682
    %v5599 = vmul.f32 %v4683, %v4687
    %v5600 = vmul.f32 %v4684, %v4688
    %v5601 = vmul.f32 %v4685, %v4689
    %v5602 = vmul.f32 %v4686, %v4690
    %v5603 = vmul.f32 %v4691, %v4695
    %v5604 = vmul.f32 %v4692, %v4696
    %v5605 = vmul.f32 %v4693, %v4697
    %v5606 = vmul.f32 %v4694, %v4698
    %v5607 = vmul.f32 %v4699, %v4703
    %v5608 = vmul.f32 %v4700, %v4704
    %v5609 = vmul.f32 %v4701, %v4705
    %v5610 = vmul.f32 %v4702, %v4706
    %v5611 = vmul.f32 %v4707, %v4711
    %v5612 = vmul.f32 %v4708, %v4712
    %v5613 = vmul.f32 %v4709, %v4713
    %v5614 = vmul.f32 %v4710, %v4714
    %v5615 = vmul.f32 %v4715, %v4719
    %v5616 = vmul.f32 %v4716, %v4720
    %v5617 = vmul.f32 %v4717, %v4721
    %v5618 = vmul.f32 %v4718, %v4722
    %v5619 = vmul.f32 %v4723, %v4727
    %v5620 = vmul.f32 %v4724, %v4728
    %v5621 = vmul.f32 %v4725, %v4729
    %v5622 = vmul.f32 %v4726, %v4730
    %v5623 = vmul.f32 %v4731, %v4735
    %v5624 = vmul.f32 %v4732, %v4736
    %v5625 = vmul.f32 %v4733, %v4737
    %v5626 = vmul.f32 %v4734, %v4738
    %v5627 = vmul.f32 %v4739, %v4743
    %v5628 = vmul.f32 %v4740, %v4744
    %v5629 = vmul.f32 %v4741, %v4745
    %v5630 = vmul.f32 %v4742, %v4746
    %v5631 = vmul.f32 %v4747, %v4751
    %v5632 = vmul.f32 %v4748, %v4752
    %v5633 = vmul.f32 %v4749, %v4753
    %v5634 = vmul.f32 %v4750, %v4754
    %v5635 = vmul.f32 %v4755, %v4759
    %v5636 = vmul.f32 %v4756, %v4760
    %v5637 = vmul.f32 %v4757, %v4761
    %v5638 = vmul.f32 %v4758, %v4762
    %v5639 = vmul.f32 %v4763, %v4767
    %v5640 = vmul.f32 %v4764, %v4768
    %v5641 = vmul.f32 %v4765, %v4769
    %v5642 = vmul.f32 %v4766, %v4770
    %v5643 = vmul.f32 %v4771, %v4775
    %v5644 = vmul.f32 %v4772, %v4776
    %v5645 = vmul.f32 %v4773, %v4777
    %v5646 = vmul.f32 %v4774, %v4778
    %v5647 = vmul.f32 %v4779, %v4783
    %v5648 = vmul.f32 %v4780, %v4784
    %v5649 = vmul.f32 %v4781, %v4785
    %v5650 = vmul.f32 %v4782, %v4786
    %v5651 = vmul.f32 %v5587, %v5589
    %v5652 = vmul.f32 %v5588, %v5590
    %v5653 = vmul.f32 %v5591, %v5593
    %v5654 = vmul.f32 %v5592, %v5594
    %v5655 = vmul.f32 %v5595, %v5597
    %v5656 = vmul.f32 %v5596, %v5598
    %v5657 = vmul.f32 %v5599, %v5601
    %v5658 = vmul.f32 %v5600, %v5602
    %v5659 = vmul.f32 %v5603, %v5605
    %v5660 = vmul.f32 %v5604, %v5606
    %v5661 = vmul.f32 %v5607, %v5609
    %v5662 = vmul.f32 %v5608, %v5610
    %v5663 = vmul.f32 %v5611, %v5613
    %v5664 = vmul.f32 %v5612, %v5614
    %v5665 = vmul.f32 %v5615, %v5617
    %v5666 = vmul.f32 %v5616, %v5618
    %v5667 = vmul.f32 %v5619, %v5621
    %v5668 = vmul.f32 %v5620, %v5622
    %v5669 = vmul.f32 %v5623, %v5625
    %v5670 = vmul.f32 %v5624, %v5626
    %v5671 = vmul.f32 %v5627, %v5629
    %v5672 = vmul.f32 %v5628, %v5630
    %v5673 = vmul.f32 %v5631, %v5633
    %v5674 = vmul.f32 %v5632, %v5634
    %v5675 = vmul.f32 %v5635, %v5637
    %v5676 = vmul.f32 %v5636, %v5638
    %v5677 = vmul.f32 %v5639, %v5641
    %v5678 = vmul.f32 %v5640, %v5642
    %v5679 = vmul.f32 %v5643, %v5645
    %v5680 = vmul.f32 %v5644, %v5646
    %v5681 = vmul.f32 %v5647, %v5649
    %v5682 = vmul.f32 %v5648, %v5650
    %v5683 = vmul.f32 %v5651, %v5652
    %v5684 = vmul.f32 %v5653, %v5654
    %v5685 = vmul.f32 %v5655, %v5656
    %v5686 = vmul.f32 %v5657, %v5658
    %v5687 = vmul.f32 %v5659, %v5660
    %v5688 = vmul.f32 %v5661, %v5662
    %v5689 = vmul.f32 %v5663, %v5664
    %v5690 = vmul.f32 %v5665, %v5666
    %v5691 = vmul.f32 %v5667, %v5668
    %v5692 = vmul.f32 %v5669, %v5670
    %v5693 = vmul.f32 %v5671, %v5672
    %v5694 = vmul.f32 %v5673, %v5674
    %v5695 = vmul.f32 %v5675, %v5676
    %v5696 = vmul.f32 %v5677, %v5678
    %v5697 = vmul.f32 %v5679, %v5680
    %v5698 = vmul.f32 %v5681, %v5682
    %v5699 = vadd.f32 %v5683, 0.0
    %v5700 = vadd.f32 %v5684, 0.0
    %v5701 = vadd.f32 %v5685, 0.0
    %v5702 = vadd.f32 %v5686, 0.0
    %v5703 = vadd.f32 %v5687, 0.0
    %v5704 = vadd.f32 %v5688, 0.0
    %v5705 = vadd.f32 %v5689, 0.0
    %v5706 = vadd.f32 %v5690, 0.0
    %v5707 = vadd.f32 %v5691, 0.0
    %v5708 = vadd.f32 %v5692, 0.0
    %v5709 = vadd.f32 %v5693, 0.0
    %v5710 = vadd.f32 %v5694, 0.0
    %v5711 = vadd.f32 %v5695, 0.0
    %v5712 = vadd.f32 %v5696, 0.0
    %v5713 = vadd.f32 %v5697, 0.0
    %v5714 = vadd.f32 %v5698, 0.0
    %v5715 = vmul.f32 %v5459, %v5463
    %v5716 = vmul.f32 %v5460, %v5464
    %v5717 = vmul.f32 %v5461, %v5465
    %v5718 = vmul.f32 %v5462, %v5466
    %v5719 = vmul.f32 %v5467, %v5471
    %v5720 = vmul.f32 %v5468, %v5472
    %v5721 = vmul.f32 %v5469, %v5473
    %v5722 = vmul.f32 %v5470, %v5474
    %v5723 = vmul.f32 %v5475, %v5479
    %v5724 = vmul.f32 %v5476, %v5480
    %v5725 = vmul.f32 %v5477, %v5481
    %v5726 = vmul.f32 %v5478, %v5482
    %v5727 = vmul.f32 %v5483, %v5487
    %v5728 = vmul.f32 %v5484, %v5488
    %v5729 = vmul.f32 %v5485, %v5489
    %v5730 = vmul.f32 %v5486, %v5490
    %v5731 = vmul.f32 %v5491, %v5495
    %v5732 = vmul.f32 %v5492, %v5496
    %v5733 = vmul.f32 %v5493, %v5497
    %v5734 = vmul.f32 %v5494, %v5498
    %v5735 = vmul.f32 %v5499, %v5503
    %v5736 = vmul.f32 %v5500, %v5504
    %v5737 = vmul.f32 %v5501, %v5505
    %v5738 = vmul.f32 %v5502, %v5506
    %v5739 = vmul.f32 %v5507, %v5511
    %v5740 = vmul.f32 %v5508, %v5512
    %v5741 = vmul.f32 %v5509, %v5513
    %v5742 = vmul.f32 %v5510, %v5514
    %v5743 = vmul.f32 %v5515, %v5519
    %v5744 = vmul.f32 %v5516, %v5520
    %v5745 = vmul.f32 %v5517, %v5521
    %v5746 = vmul.f32 %v5518, %v5522
    %v5747 = vmul.f32 %v5523, %v5527
    %v5748 = vmul.f32 %v5524, %v5528
    %v5749 = vmul.f32 %v5525, %v5529
    %v5750 = vmul.f32 %v5526, %v5530
    %v5751 = vmul.f32 %v5531, %v5535
    %v5752 = vmul.f32 %v5532, %v5536
    %v5753 = vmul.f32 %v5533, %v5537
    %v5754 = vmul.f32 %v5534, %v5538
    %v5755 = vmul.f32 %v5539, %v5543
    %v5756 = vmul.f32 %v5540, %v5544
    %v5757 = vmul.f32 %v5541, %v5545
    %v5758 = vmul.f32 %v5542, %v5546
    %v5759 = vmul.f32 %v5547, %v5551
    %v5760 = vmul.f32 %v5548, %v5552
    %v5761 = vmul.f32 %v5549, %v5553
    %v5762 = vmul.f32 %v5550, %v5554
    %v5763 = vmul.f32 %v5555, %v5559
    %v5764 = vmul.f32 %v5556, %v5560
    %v5765 = vmul.f32 %v5557, %v5561
    %v5766 = vmul.f32 %v5558, %v5562
    %v5767 = vmul.f32 %v5563, %v5567
    %v5768 = vmul.f32 %v5564, %v5568
    %v5769 = vmul.f32 %v5565, %v5569
    %v5770 = vmul.f32 %v5566, %v5570
    %v5771 = vmul.f32 %v5571, %v5575
    %v5772 = vmul.f32 %v5572, %v5576
    %v5773 = vmul.f32 %v5573, %v5577
    %v5774 = vmul.f32 %v5574, %v5578
    %v5775 = vmul.f32 %v5579, %v5583
    %v5776 = vmul.f32 %v5580, %v5584
    %v5777 = vmul.f32 %v5581, %v5585
    %v5778 = vmul.f32 %v5582, %v5586
    %v5779 = vmul.f32 %v5715, %v5717
    %v5780 = vmul.f32 %v5716, %v5718
    %v5781 = vmul.f32 %v5719, %v5721
    %v5782 = vmul.f32 %v5720, %v5722
    %v5783 = vmul.f32 %v5723, %v5725
    %v5784 = vmul.f32 %v5724, %v5726
    %v5785 = vmul.f32 %v5727, %v5729
    %v5786 = vmul.f32 %v5728, %v5730
    %v5787 = vmul.f32 %v5731, %v5733
    %v5788 = vmul.f32 %v5732, %v5734
    %v5789 = vmul.f32 %v5735, %v5737
    %v5790 = vmul.f32 %v5736, %v5738
    %v5791 = vmul.f32 %v5739, %v5741
    %v5792 = vmul.f32 %v5740, %v5742
    %v5793 = vmul.f32 %v5743, %v5745
    %v5794 = vmul.f32 %v5744, %v5746
    %v5795 = vmul.f32 %v5747, %v5749
    %v5796 = vmul.f32 %v5748, %v5750
    %v5797 = vmul.f32 %v5751, %v5753
    %v5798 = vmul.f32 %v5752, %v5754
    %v5799 = vmul.f32 %v5755, %v5757
    %v5800 = vmul.f32 %v5756, %v5758
    %v5801 = vmul.f32 %v5759, %v5761
    %v5802 = vmul.f32 %v5760, %v5762
    %v5803 = vmul.f32 %v5763, %v5765
    %v5804 = vmul.f32 %v5764, %v5766
    %v5805 = vmul.f32 %v5767, %v5769
    %v5806 = vmul.f32 %v5768, %v5770
    %v5807 = vmul.f32 %v5771, %v5773
    %v5808 = vmul.f32 %v5772, %v5774
    %v5809 = vmul.f32 %v5775, %v5777
    %v5810 = vmul.f32 %v5776, %v5778
    %v5811 = vmul.f32 %v5779, %v5780
    %v5812 = vmul.f32 %v5781, %v5782
    %v5813 = vmul.f32 %v5783, %v5784
    %v5814 = vmul.f32 %v5785, %v5786
    %v5815 = vmul.f32 %v5787, %v5788
    %v5816 = vmul.f32 %v5789, %v5790
    %v5817 = vmul.f32 %v5791, %v5792
    %v5818 = vmul.f32 %v5793, %v5794
    %v5819 = vmul.f32 %v5795, %v5796
    %v5820 = vmul.f32 %v5797, %v5798
    %v5821 = vmul.f32 %v5799, %v5800
    %v5822 = vmul.f32 %v5801, %v5802
    %v5823 = vmul.f32 %v5803, %v5804
    %v5824 = vmul.f32 %v5805, %v5806
    %v5825 = vmul.f32 %v5807, %v5808
    %v5826 = vmul.f32 %v5809, %v5810
    %v5827 = vadd.f32 %v5811, 0.0
    %v5828 = vadd.f32 %v5812, 0.0
    %v5829 = vadd.f32 %v5813, 0.0
    %v5830 = vadd.f32 %v5814, 0.0
    %v5831 = vadd.f32 %v5815, 0.0
    %v5832 = vadd.f32 %v5816, 0.0
    %v5833 = vadd.f32 %v5817, 0.0
    %v5834 = vadd.f32 %v5818, 0.0
    %v5835 = vadd.f32 %v5819, 0.0
    %v5836 = vadd.f32 %v5820, 0.0
    %v5837 = vadd.f32 %v5821, 0.0
    %v5838 = vadd.f32 %v5822, 0.0
    %v5839 = vadd.f32 %v5823, 0.0
    %v5840 = vadd.f32 %v5824, 0.0
    %v5841 = vadd.f32 %v5825, 0.0
    %v5842 = vadd.f32 %v5826, 0.0
    %v5843 = vmul.f32 %v3827, %v5699
    %v5844 = vmul.f32 %v3828, %v5700
    %v5845 = vmul.f32 %v3829, %v5701
    %v5846 = vmul.f32 %v3830, %v5702
    %v5847 = vmul.f32 %v3831, %v5703
    %v5848 = vmul.f32 %v3832, %v5704
    %v5849 = vmul.f32 %v3833, %v5705
    %v5850 = vmul.f32 %v3834, %v5706
    %v5851 = vmul.f32 %v3835, %v5707
    %v5852 = vmul.f32 %v3836, %v5708
    %v5853 = vmul.f32 %v3837, %v5709
    %v5854 = vmul.f32 %v3838, %v5710
    %v5855 = vmul.f32 %v3839, %v5711
    %v5856 = vmul.f32 %v3840, %v5712
    %v5857 = vmul.f32 %v3841, %v5713
    %v5858 = vmul.f32 %v3842, %v5714
    %v5859 = vmul.f32 %v3955, %v5827
    %v5860 = vmul.f32 %v3956, %v5828
    %v5861 = vmul.f32 %v3957, %v5829
    %v5862 = vmul.f32 %v3958, %v5830
    %v5863 = vmul.f32 %v3959, %v5831
    %v5864 = vmul.f32 %v3960, %v5832
    %v5865 = vmul.f32 %v3961, %v5833
    %v5866 = vmul.f32 %v3962, %v5834
    %v5867 = vmul.f32 %v3963, %v5835
    %v5868 = vmul.f32 %v3964, %v5836
    %v5869 = vmul.f32 %v3965, %v5837
    %v5870 = vmul.f32 %v3966, %v5838
    %v5871 = vmul.f32 %v3967, %v5839
    %v5872 = vmul.f32 %v3968, %v5840
    %v5873 = vmul.f32 %v3969, %v5841
    %v5874 = vmul.f32 %v3970, %v5842
    %v5875 = vsub.f32 1.0, %v5859
    %v5876 = vsub.f32 1.0, %v5860
    %v5877 = vsub.f32 1.0, %v5861
    %v5878 = vsub.f32 1.0, %v5862
    %v5879 = vsub.f32 1.0, %v5863
    %v5880 = vsub.f32 1.0, %v5864
    %v5881 = vsub.f32 1.0, %v5865
    %v5882 = vsub.f32 1.0, %v5866
    %v5883 = vsub.f32 1.0, %v5867
    %v5884 = vsub.f32 1.0, %v5868
    %v5885 = vsub.f32 1.0, %v5869
    %v5886 = vsub.f32 1.0, %v5870
    %v5887 = vsub.f32 1.0, %v5871
    %v5888 = vsub.f32 1.0, %v5872
    %v5889 = vsub.f32 1.0, %v5873
    %v5890 = vsub.f32 1.0, %v5874
    %v5907 = vrot.slane %v5844, 7
    %vm5908 = vcmask 1041409
    %v5909 = vsel %vm5908, %v5907, %v5843
    %v5910 = vrot.slane %v5845, 6
    %vm5911 = vcmask 1042434
    %v5912 = vsel %vm5911, %v5910, %v5909
    %v5913 = vrot.slane %v5846, 5
    %vm5914 = vcmask 1043459
    %v5915 = vsel %vm5914, %v5913, %v5912
    %v5916 = vrot.slane %v5847, 4
    %vm5917 = vcmask 1044484
    %v5918 = vsel %vm5917, %v5916, %v5915
    %v5919 = vrot.slane %v5848, 3
    %vm5920 = vcmask 1045509
    %v5921 = vsel %vm5920, %v5919, %v5918
    %v5922 = vrot.slane %v5849, 2
    %vm5923 = vcmask 1046534
    %v5924 = vsel %vm5923, %v5922, %v5921
    %v5925 = vrot.slane %v5850, 1
    %vm5926 = vcmask 1047559
    %v5927 = vsel %vm5926, %v5925, %v5924
    %v5928 = vrot.slane %v5852, 7
    %v5929 = vsel %vm5908, %v5928, %v5851
    %v5930 = vrot.slane %v5853, 6
    %v5931 = vsel %vm5911, %v5930, %v5929
    %v5932 = vrot.slane %v5854, 5
    %v5933 = vsel %vm5914, %v5932, %v5931
    %v5934 = vrot.slane %v5855, 4
    %v5935 = vsel %vm5917, %v5934, %v5933
    %v5936 = vrot.slane %v5856, 3
    %v5937 = vsel %vm5920, %v5936, %v5935
    %v5938 = vrot.slane %v5857, 2
    %v5939 = vsel %vm5923, %v5938, %v5937
    %v5940 = vrot.slane %v5858, 1
    %v5941 = vsel %vm5926, %v5940, %v5939
    %5942 = vset.pattern.permute.xlu0 0
    %5943 = vperm.xlu0 %5942, %v5927
    %v5944 = vpop.permute.xlu0 %5943
    %5945 = vset.pattern.permute.xlu0 0
    %5946 = vperm.xlu0 %5945, %v5941
    %v5947 = vpop.permute.xlu0 %5946
    %v5948 = vlaneseq
    %v5949 = vshrl.u32 %v5948, 7
    %v5950 = vsub.s32 %v593, %v5949
    %v5951 = vrot.slane %v5944, %v5950
    %v5952 = vlaneseq
    %v5953 = vshrl.u32 %v5952, 7
    %v5954 = vsub.s32 %v593, %v5953
    %v5955 = vrot.slane %v5947, %v5954
    %v5956 = vsel %vm5908, %v5955, %v5951
    %vm5957 = vcmask 64512
    %v5958 = vsel %vm5957, %v5956, 0
    %5960 = vmatprep.subr.mxu0 0.0
    %5961 = vmatpush1.msra.mxu0 %v643
    %5962 = vmatprep.subr.mxu0 0.0
    %5963 = vmatpush1.msra.mxu0 0.0
    %5964 = vmatprep.subr.mxu0 0.0
    %5965 = vmatpush1.msra.mxu0 0.0
    %5966 = vmatprep.subr.mxu0 0.0
    %5967 = vmatpush1.msra.mxu0 0.0
    %5968 = vmatprep.subr.mxu0 0.0
    %5969 = vmatpush1.msra.mxu0 0.0
    %5970 = vmatprep.subr.mxu0 0.0
    %5971 = vmatpush1.msra.mxu0 0.0
    %5972 = vmatprep.subr.mxu0 0.0
    %5973 = vmatpush1.msra.mxu0 0.0
    %5974 = vmatprep.subr.mxu0 0.0
    %5975 = vmatpush1.msra.mxu0 0.0
    %5976 = vmatprep.subr.mxu0 0.0
    %5977 = vmatpush1.msra.mxu0 0.0
    %5978 = vmatprep.subr.mxu0 0.0
    %5979 = vmatpush1.msra.mxu0 0.0
    %5980 = vmatprep.subr.mxu0 0.0
    %5981 = vmatpush1.msra.mxu0 0.0
    %5982 = vmatprep.subr.mxu0 0.0
    %5983 = vmatpush1.msra.mxu0 0.0
    %5984 = vmatprep.subr.mxu0 0.0
    %5985 = vmatpush1.msra.mxu0 0.0
    %5986 = vmatprep.subr.mxu0 0.0
    %5987 = vmatpush1.msra.mxu0 0.0
    %5988 = vmatprep.subr.mxu0 0.0
    %5989 = vmatpush1.msra.mxu0 0.0
    %5990 = vmatprep.subr.mxu0 0.0
    %5991 = vmatpush1.msra.mxu0 0.0
    %5992 = vmatprep.subr.mxu0 0.0
    %5993 = vmatpush1.msra.mxu0 0.0
    %5994 = vmatprep.subr.mxu0 0.0
    %5995 = vmatpush1.msra.mxu0 0.0
    %5996 = vmatprep.subr.mxu0 0.0
    %5997 = vmatpush1.msra.mxu0 0.0
    %5998 = vmatprep.subr.mxu0 0.0
    %5999 = vmatpush1.msra.mxu0 0.0
    %6000 = vmatprep.subr.mxu0 0.0
    %6001 = vmatpush1.msra.mxu0 0.0
    %6002 = vmatprep.subr.mxu0 0.0
    %6003 = vmatpush1.msra.mxu0 0.0
    %6004 = vmatprep.subr.mxu0 0.0
    %6005 = vmatpush1.msra.mxu0 0.0
    %6006 = vmatprep.subr.mxu0 0.0
    %6007 = vmatpush1.msra.mxu0 0.0
    %6008 = vmatprep.subr.mxu0 0.0
    %6009 = vmatpush1.msra.mxu0 0.0
    %6010 = vmatprep.subr.mxu0 0.0
    %6011 = vmatpush1.msra.mxu0 0.0
    %6012 = vmatprep.subr.mxu0 0.0
    %6013 = vmatpush1.msra.mxu0 0.0
    %6014 = vmatprep.subr.mxu0 0.0
    %6015 = vmatpush1.msra.mxu0 0.0
    %6016 = vmatprep.subr.mxu0 0.0
    %6017 = vmatpush1.msra.mxu0 0.0
    %6018 = vmatprep.subr.mxu0 0.0
    %6019 = vmatpush1.msra.mxu0 0.0
    %6020 = vmatprep.subr.mxu0 0.0
    %6021 = vmatpush1.msra.mxu0 0.0
    %6022 = vmatprep.subr.mxu0 0.0
    %6023 = vmatpush1.msra.mxu0 0.0
    %6024 = vmatprep.mubr.f32.mxu0 0.0
    %6025 = vmatmul.mubr.f32.gmra.mrb[0].mxu0 %v5958
    %v6026 = vpop.f32.mrb[0].mxu0
    %v6027 = vadd.f32 0.0, %v6026
    %v6028 = vpop.f32.mrb[0].mxu0
    %6029 = vdwg.mxu0
    %v6031 = vlaneseq
    %v6032 = vshrl.u32 %v6031, 7
    %v6033 = vsub.s32 0, %v6032
    %v6034 = vrot.slane %v647, %v6033
    %v6036 = vadd.f32 %v6034, %v6027
    %v6053 = vrot.slane %v5876, 7
    %v6054 = vsel %vm5908, %v6053, %v5875
    %v6055 = vrot.slane %v5877, 6
    %v6056 = vsel %vm5911, %v6055, %v6054
    %v6057 = vrot.slane %v5878, 5
    %v6058 = vsel %vm5914, %v6057, %v6056
    %v6059 = vrot.slane %v5879, 4
    %v6060 = vsel %vm5917, %v6059, %v6058
    %v6061 = vrot.slane %v5880, 3
    %v6062 = vsel %vm5920, %v6061, %v6060
    %v6063 = vrot.slane %v5881, 2
    %v6064 = vsel %vm5923, %v6063, %v6062
    %v6065 = vrot.slane %v5882, 1
    %v6066 = vsel %vm5926, %v6065, %v6064
    %v6067 = vrot.slane %v5884, 7
    %v6068 = vsel %vm5908, %v6067, %v5883
    %v6069 = vrot.slane %v5885, 6
    %v6070 = vsel %vm5911, %v6069, %v6068
    %v6071 = vrot.slane %v5886, 5
    %v6072 = vsel %vm5914, %v6071, %v6070
    %v6073 = vrot.slane %v5887, 4
    %v6074 = vsel %vm5917, %v6073, %v6072
    %v6075 = vrot.slane %v5888, 3
    %v6076 = vsel %vm5920, %v6075, %v6074
    %v6077 = vrot.slane %v5889, 2
    %v6078 = vsel %vm5923, %v6077, %v6076
    %v6079 = vrot.slane %v5890, 1
    %v6080 = vsel %vm5926, %v6079, %v6078
    %6081 = vset.pattern.permute.xlu0 0
    %6082 = vperm.xlu0 %6081, %v6066
    %v6083 = vpop.permute.xlu0 %6082
    %6084 = vset.pattern.permute.xlu0 0
    %6085 = vperm.xlu0 %6084, %v6080
    %v6086 = vpop.permute.xlu0 %6085
    %v6087 = vlaneseq
    %v6088 = vshrl.u32 %v6087, 7
    %v6089 = vsub.s32 %v593, %v6088
    %v6090 = vrot.slane %v6083, %v6089
    %v6091 = vlaneseq
    %v6092 = vshrl.u32 %v6091, 7
    %v6093 = vsub.s32 %v593, %v6092
    %v6094 = vrot.slane %v6086, %v6093
    %v6095 = vsel %vm5908, %v6094, %v6090
    %v6096 = vsel %vm5957, %v6095, 0
    %6098 = vmatprep.subr.mxu0 0.0
    %6099 = vmatpush1.msra.mxu0 %v644
    %6100 = vmatprep.subr.mxu0 0.0
    %6101 = vmatpush1.msra.mxu0 0.0
    %6102 = vmatprep.subr.mxu0 0.0
    %6103 = vmatpush1.msra.mxu0 0.0
    %6104 = vmatprep.subr.mxu0 0.0
    %6105 = vmatpush1.msra.mxu0 0.0
    %6106 = vmatprep.subr.mxu0 0.0
    %6107 = vmatpush1.msra.mxu0 0.0
    %6108 = vmatprep.subr.mxu0 0.0
    %6109 = vmatpush1.msra.mxu0 0.0
    %6110 = vmatprep.subr.mxu0 0.0
    %6111 = vmatpush1.msra.mxu0 0.0
    %6112 = vmatprep.subr.mxu0 0.0
    %6113 = vmatpush1.msra.mxu0 0.0
    %6114 = vmatprep.subr.mxu0 0.0
    %6115 = vmatpush1.msra.mxu0 0.0
    %6116 = vmatprep.subr.mxu0 0.0
    %6117 = vmatpush1.msra.mxu0 0.0
    %6118 = vmatprep.subr.mxu0 0.0
    %6119 = vmatpush1.msra.mxu0 0.0
    %6120 = vmatprep.subr.mxu0 0.0
    %6121 = vmatpush1.msra.mxu0 0.0
    %6122 = vmatprep.subr.mxu0 0.0
    %6123 = vmatpush1.msra.mxu0 0.0
    %6124 = vmatprep.subr.mxu0 0.0
    %6125 = vmatpush1.msra.mxu0 0.0
    %6126 = vmatprep.subr.mxu0 0.0
    %6127 = vmatpush1.msra.mxu0 0.0
    %6128 = vmatprep.subr.mxu0 0.0
    %6129 = vmatpush1.msra.mxu0 0.0
    %6130 = vmatprep.subr.mxu0 0.0
    %6131 = vmatpush1.msra.mxu0 0.0
    %6132 = vmatprep.subr.mxu0 0.0
    %6133 = vmatpush1.msra.mxu0 0.0
    %6134 = vmatprep.subr.mxu0 0.0
    %6135 = vmatpush1.msra.mxu0 0.0
    %6136 = vmatprep.subr.mxu0 0.0
    %6137 = vmatpush1.msra.mxu0 0.0
    %6138 = vmatprep.subr.mxu0 0.0
    %6139 = vmatpush1.msra.mxu0 0.0
    %6140 = vmatprep.subr.mxu0 0.0
    %6141 = vmatpush1.msra.mxu0 0.0
    %6142 = vmatprep.subr.mxu0 0.0
    %6143 = vmatpush1.msra.mxu0 0.0
    %6144 = vmatprep.subr.mxu0 0.0
    %6145 = vmatpush1.msra.mxu0 0.0
    %6146 = vmatprep.subr.mxu0 0.0
    %6147 = vmatpush1.msra.mxu0 0.0
    %6148 = vmatprep.subr.mxu0 0.0
    %6149 = vmatpush1.msra.mxu0 0.0
    %6150 = vmatprep.subr.mxu0 0.0
    %6151 = vmatpush1.msra.mxu0 0.0
    %6152 = vmatprep.subr.mxu0 0.0
    %6153 = vmatpush1.msra.mxu0 0.0
    %6154 = vmatprep.subr.mxu0 0.0
    %6155 = vmatpush1.msra.mxu0 0.0
    %6156 = vmatprep.subr.mxu0 0.0
    %6157 = vmatpush1.msra.mxu0 0.0
    %6158 = vmatprep.subr.mxu0 0.0
    %6159 = vmatpush1.msra.mxu0 0.0
    %6160 = vmatprep.subr.mxu0 0.0
    %6161 = vmatpush1.msra.mxu0 0.0
    %6162 = vmatprep.mubr.f32.mxu0 0.0
    %6163 = vmatmul.mubr.f32.gmra.mrb[0].mxu0 %v6096
    %v6164 = vpop.f32.mrb[0].mxu0
    %v6165 = vadd.f32 0.0, %v6164
    %v6166 = vpop.f32.mrb[0].mxu0
    %6167 = vdwg.mxu0
    %v6168 = vadd.f32 %v6036, %v6165
    %v6185 = vrot.slane %v2002, 7
    %v6186 = vsel %vm5908, %v6185, %v2001
    %v6187 = vrot.slane %v2003, 6
    %v6188 = vsel %vm5911, %v6187, %v6186
    %v6189 = vrot.slane %v2004, 5
    %v6190 = vsel %vm5914, %v6189, %v6188
    %v6191 = vrot.slane %v2005, 4
    %v6192 = vsel %vm5917, %v6191, %v6190
    %v6193 = vrot.slane %v2006, 3
    %v6194 = vsel %vm5920, %v6193, %v6192
    %v6195 = vrot.slane %v2007, 2
    %v6196 = vsel %vm5923, %v6195, %v6194
    %v6197 = vrot.slane %v2008, 1
    %v6198 = vsel %vm5926, %v6197, %v6196
    %v6199 = vrot.slane %v2010, 7
    %v6200 = vsel %vm5908, %v6199, %v2009
    %v6201 = vrot.slane %v2011, 6
    %v6202 = vsel %vm5911, %v6201, %v6200
    %v6203 = vrot.slane %v2012, 5
    %v6204 = vsel %vm5914, %v6203, %v6202
    %v6205 = vrot.slane %v2013, 4
    %v6206 = vsel %vm5917, %v6205, %v6204
    %v6207 = vrot.slane %v2014, 3
    %v6208 = vsel %vm5920, %v6207, %v6206
    %v6209 = vrot.slane %v2015, 2
    %v6210 = vsel %vm5923, %v6209, %v6208
    %v6211 = vrot.slane %v2016, 1
    %v6212 = vsel %vm5926, %v6211, %v6210
    %6213 = vset.pattern.permute.xlu0 0
    %6214 = vperm.xlu0 %6213, %v6198
    %v6215 = vpop.permute.xlu0 %6214
    %6216 = vset.pattern.permute.xlu0 0
    %6217 = vperm.xlu0 %6216, %v6212
    %v6218 = vpop.permute.xlu0 %6217
    %v6219 = vlaneseq
    %v6220 = vshrl.u32 %v6219, 7
    %v6221 = vsub.s32 %v593, %v6220
    %v6222 = vrot.slane %v6215, %v6221
    %v6223 = vlaneseq
    %v6224 = vshrl.u32 %v6223, 7
    %v6225 = vsub.s32 %v593, %v6224
    %v6226 = vrot.slane %v6218, %v6225
    %v6227 = vsel %vm5908, %v6226, %v6222
    %v6228 = vsel %vm5957, %v6227, 0
    %6230 = vmatprep.subr.mxu0 0.0
    %6231 = vmatpush1.msra.mxu0 %v645
    %6232 = vmatprep.subr.mxu0 0.0
    %6233 = vmatpush1.msra.mxu0 0.0
    %6234 = vmatprep.subr.mxu0 0.0
    %6235 = vmatpush1.msra.mxu0 0.0
    %6236 = vmatprep.subr.mxu0 0.0
    %6237 = vmatpush1.msra.mxu0 0.0
    %6238 = vmatprep.subr.mxu0 0.0
    %6239 = vmatpush1.msra.mxu0 0.0
    %6240 = vmatprep.subr.mxu0 0.0
    %6241 = vmatpush1.msra.mxu0 0.0
    %6242 = vmatprep.subr.mxu0 0.0
    %6243 = vmatpush1.msra.mxu0 0.0
    %6244 = vmatprep.subr.mxu0 0.0
    %6245 = vmatpush1.msra.mxu0 0.0
    %6246 = vmatprep.subr.mxu0 0.0
    %6247 = vmatpush1.msra.mxu0 0.0
    %6248 = vmatprep.subr.mxu0 0.0
    %6249 = vmatpush1.msra.mxu0 0.0
    %6250 = vmatprep.subr.mxu0 0.0
    %6251 = vmatpush1.msra.mxu0 0.0
    %6252 = vmatprep.subr.mxu0 0.0
    %6253 = vmatpush1.msra.mxu0 0.0
    %6254 = vmatprep.subr.mxu0 0.0
    %6255 = vmatpush1.msra.mxu0 0.0
    %6256 = vmatprep.subr.mxu0 0.0
    %6257 = vmatpush1.msra.mxu0 0.0
    %6258 = vmatprep.subr.mxu0 0.0
    %6259 = vmatpush1.msra.mxu0 0.0
    %6260 = vmatprep.subr.mxu0 0.0
    %6261 = vmatpush1.msra.mxu0 0.0
    %6262 = vmatprep.subr.mxu0 0.0
    %6263 = vmatpush1.msra.mxu0 0.0
    %6264 = vmatprep.subr.mxu0 0.0
    %6265 = vmatpush1.msra.mxu0 0.0
    %6266 = vmatprep.subr.mxu0 0.0
    %6267 = vmatpush1.msra.mxu0 0.0
    %6268 = vmatprep.subr.mxu0 0.0
    %6269 = vmatpush1.msra.mxu0 0.0
    %6270 = vmatprep.subr.mxu0 0.0
    %6271 = vmatpush1.msra.mxu0 0.0
    %6272 = vmatprep.subr.mxu0 0.0
    %6273 = vmatpush1.msra.mxu0 0.0
    %6274 = vmatprep.subr.mxu0 0.0
    %6275 = vmatpush1.msra.mxu0 0.0
    %6276 = vmatprep.subr.mxu0 0.0
    %6277 = vmatpush1.msra.mxu0 0.0
    %6278 = vmatprep.subr.mxu0 0.0
    %6279 = vmatpush1.msra.mxu0 0.0
    %6280 = vmatprep.subr.mxu0 0.0
    %6281 = vmatpush1.msra.mxu0 0.0
    %6282 = vmatprep.subr.mxu0 0.0
    %6283 = vmatpush1.msra.mxu0 0.0
    %6284 = vmatprep.subr.mxu0 0.0
    %6285 = vmatpush1.msra.mxu0 0.0
    %6286 = vmatprep.subr.mxu0 0.0
    %6287 = vmatpush1.msra.mxu0 0.0
    %6288 = vmatprep.subr.mxu0 0.0
    %6289 = vmatpush1.msra.mxu0 0.0
    %6290 = vmatprep.subr.mxu0 0.0
    %6291 = vmatpush1.msra.mxu0 0.0
    %6292 = vmatprep.subr.mxu0 0.0
    %6293 = vmatpush1.msra.mxu0 0.0
    %6294 = vmatprep.mubr.f32.mxu0 0.0
    %6295 = vmatmul.mubr.f32.gmra.mrb[0].mxu0 %v6228
    %v6296 = vpop.f32.mrb[0].mxu0
    %v6297 = vadd.f32 0.0, %v6296
    %v6298 = vpop.f32.mrb[0].mxu0
    %6299 = vdwg.mxu0
    %v6300 = vadd.f32 %v6168, %v6297
    %v6317 = vrot.slane %v2034, 7
    %v6318 = vsel %vm5908, %v6317, %v2033
    %v6319 = vrot.slane %v2035, 6
    %v6320 = vsel %vm5911, %v6319, %v6318
    %v6321 = vrot.slane %v2036, 5
    %v6322 = vsel %vm5914, %v6321, %v6320
    %v6323 = vrot.slane %v2037, 4
    %v6324 = vsel %vm5917, %v6323, %v6322
    %v6325 = vrot.slane %v2038, 3
    %v6326 = vsel %vm5920, %v6325, %v6324
    %v6327 = vrot.slane %v2039, 2
    %v6328 = vsel %vm5923, %v6327, %v6326
    %v6329 = vrot.slane %v2040, 1
    %v6330 = vsel %vm5926, %v6329, %v6328
    %v6331 = vrot.slane %v2042, 7
    %v6332 = vsel %vm5908, %v6331, %v2041
    %v6333 = vrot.slane %v2043, 6
    %v6334 = vsel %vm5911, %v6333, %v6332
    %v6335 = vrot.slane %v2044, 5
    %v6336 = vsel %vm5914, %v6335, %v6334
    %v6337 = vrot.slane %v2045, 4
    %v6338 = vsel %vm5917, %v6337, %v6336
    %v6339 = vrot.slane %v2046, 3
    %v6340 = vsel %vm5920, %v6339, %v6338
    %v6341 = vrot.slane %v2047, 2
    %v6342 = vsel %vm5923, %v6341, %v6340
    %v6343 = vrot.slane %v2048, 1
    %v6344 = vsel %vm5926, %v6343, %v6342
    %6345 = vset.pattern.permute.xlu0 0
    %6346 = vperm.xlu0 %6345, %v6330
    %v6347 = vpop.permute.xlu0 %6346
    %6348 = vset.pattern.permute.xlu0 0
    %6349 = vperm.xlu0 %6348, %v6344
    %v6350 = vpop.permute.xlu0 %6349
    %v6351 = vlaneseq
    %v6352 = vshrl.u32 %v6351, 7
    %v6353 = vsub.s32 %v593, %v6352
    %v6354 = vrot.slane %v6347, %v6353
    %v6355 = vlaneseq
    %v6356 = vshrl.u32 %v6355, 7
    %v6357 = vsub.s32 %v593, %v6356
    %v6358 = vrot.slane %v6350, %v6357
    %v6359 = vsel %vm5908, %v6358, %v6354
    %v6360 = vsel %vm5957, %v6359, 0
    %6362 = vmatprep.subr.mxu0 0.0
    %6363 = vmatpush1.msra.mxu0 %v646
    %6364 = vmatprep.subr.mxu0 0.0
    %6365 = vmatpush1.msra.mxu0 0.0
    %6366 = vmatprep.subr.mxu0 0.0
    %6367 = vmatpush1.msra.mxu0 0.0
    %6368 = vmatprep.subr.mxu0 0.0
    %6369 = vmatpush1.msra.mxu0 0.0
    %6370 = vmatprep.subr.mxu0 0.0
    %6371 = vmatpush1.msra.mxu0 0.0
    %6372 = vmatprep.subr.mxu0 0.0
    %6373 = vmatpush1.msra.mxu0 0.0
    %6374 = vmatprep.subr.mxu0 0.0
    %6375 = vmatpush1.msra.mxu0 0.0
    %6376 = vmatprep.subr.mxu0 0.0
    %6377 = vmatpush1.msra.mxu0 0.0
    %6378 = vmatprep.subr.mxu0 0.0
    %6379 = vmatpush1.msra.mxu0 0.0
    %6380 = vmatprep.subr.mxu0 0.0
    %6381 = vmatpush1.msra.mxu0 0.0
    %6382 = vmatprep.subr.mxu0 0.0
    %6383 = vmatpush1.msra.mxu0 0.0
    %6384 = vmatprep.subr.mxu0 0.0
    %6385 = vmatpush1.msra.mxu0 0.0
    %6386 = vmatprep.subr.mxu0 0.0
    %6387 = vmatpush1.msra.mxu0 0.0
    %6388 = vmatprep.subr.mxu0 0.0
    %6389 = vmatpush1.msra.mxu0 0.0
    %6390 = vmatprep.subr.mxu0 0.0
    %6391 = vmatpush1.msra.mxu0 0.0
    %6392 = vmatprep.subr.mxu0 0.0
    %6393 = vmatpush1.msra.mxu0 0.0
    %6394 = vmatprep.subr.mxu0 0.0
    %6395 = vmatpush1.msra.mxu0 0.0
    %6396 = vmatprep.subr.mxu0 0.0
    %6397 = vmatpush1.msra.mxu0 0.0
    %6398 = vmatprep.subr.mxu0 0.0
    %6399 = vmatpush1.msra.mxu0 0.0
    %6400 = vmatprep.subr.mxu0 0.0
    %6401 = vmatpush1.msra.mxu0 0.0
    %6402 = vmatprep.subr.mxu0 0.0
    %6403 = vmatpush1.msra.mxu0 0.0
    %6404 = vmatprep.subr.mxu0 0.0
    %6405 = vmatpush1.msra.mxu0 0.0
    %6406 = vmatprep.subr.mxu0 0.0
    %6407 = vmatpush1.msra.mxu0 0.0
    %6408 = vmatprep.subr.mxu0 0.0
    %6409 = vmatpush1.msra.mxu0 0.0
    %6410 = vmatprep.subr.mxu0 0.0
    %6411 = vmatpush1.msra.mxu0 0.0
    %6412 = vmatprep.subr.mxu0 0.0
    %6413 = vmatpush1.msra.mxu0 0.0
    %6414 = vmatprep.subr.mxu0 0.0
    %6415 = vmatpush1.msra.mxu0 0.0
    %6416 = vmatprep.subr.mxu0 0.0
    %6417 = vmatpush1.msra.mxu0 0.0
    %6418 = vmatprep.subr.mxu0 0.0
    %6419 = vmatpush1.msra.mxu0 0.0
    %6420 = vmatprep.subr.mxu0 0.0
    %6421 = vmatpush1.msra.mxu0 0.0
    %6422 = vmatprep.subr.mxu0 0.0
    %6423 = vmatpush1.msra.mxu0 0.0
    %6424 = vmatprep.subr.mxu0 0.0
    %6425 = vmatpush1.msra.mxu0 0.0
    %6426 = vmatprep.mubr.f32.mxu0 0.0
    %6427 = vmatmul.mubr.f32.gmra.mrb[0].mxu0 %v6360
    %v6428 = vpop.f32.mrb[0].mxu0
    %v6429 = vadd.f32 0.0, %v6428
    %v6430 = vpop.f32.mrb[0].mxu0
    %6431 = vdwg.mxu0
    %v6432 = vadd.f32 %v6300, %v6429
    %vm6433 = vcmask 25600
    %6434 = vst.msk [vmem:[#allocation2] sm:$0x3] %vm6433, %v6432
    %v6435 = vsub.f32 1.0, %v636
    %v6438 = vunpack.c.l.s4 1966171168
    %v6439 = vunpack.c.0.s8 %v6438
    %v6440 = vlaneseq
    %v6441 = vshrl.u32 %v6440, 7
    %v6442 = vsub.s32 %v6439, %v6441
    %v6443 = vrot.slane %v6435, %v6442
    %v6444 = vcombine.high %v6443, %v6443
    %v6446 = vunpack.c.l.s4 1966171168
    %v6447 = vunpack.c.0.s8 %v6446
    %v6448 = vlaneseq
    %v6449 = vshrl.u32 %v6448, 7
    %v6450 = vsub.s32 %v6447, %v6449
    %v6451 = vrot.slane %v6443, %v6450
    %v6453 = vunpack.c.l.s4 1966171168
    %v6454 = vunpack.c.0.s8 %v6453
    %v6455 = vlaneseq
    %v6456 = vshrl.u32 %v6455, 7
    %v6457 = vsub.s32 %v6454, %v6456
    %v6458 = vrot.slane %v6444, %v6457
    %v6459 = vlaneseq
    %v6460 = vshrl.u32 %v6459, 7
    %v6461 = vsub.s32 0, %v6460
    %v6462 = vrot.slane %v6451, %v6461
    %v6463 = vlaneseq
    %v6464 = vshrl.u32 %v6463, 7
    %v6465 = vsub.s32 0, %v6464
    %v6466 = vrot.slane %v6458, %v6465
    %v6469 = vmul.f32 %v6462, %v650
    %v6470 = vmul.f32 %v6466, %v650
    %v6471 = vsub.f32 1.0, %v6469
    %v6472 = vsub.f32 1.0, %v6470
    %v6475 = vunpack.c.l.s4 1966171168
    %v6476 = vunpack.c.0.s8 %v6475
    %v6477 = vlaneseq
    %v6478 = vshrl.u32 %v6477, 7
    %v6479 = vsub.s32 %v6476, %v6478
    %v6480 = vrot.slane %v636, %v6479
    %v6481 = vcombine.high %v6480, %v6480
    %v6483 = vunpack.c.l.s4 1966171168
    %v6484 = vunpack.c.0.s8 %v6483
    %v6485 = vlaneseq
    %v6486 = vshrl.u32 %v6485, 7
    %v6487 = vsub.s32 %v6484, %v6486
    %v6488 = vrot.slane %v6480, %v6487
    %v6490 = vunpack.c.l.s4 1966171168
    %v6491 = vunpack.c.0.s8 %v6490
    %v6492 = vlaneseq
    %v6493 = vshrl.u32 %v6492, 7
    %v6494 = vsub.s32 %v6491, %v6493
    %v6495 = vrot.slane %v6481, %v6494
    %v6496 = vlaneseq
    %v6497 = vshrl.u32 %v6496, 7
    %v6498 = vsub.s32 0, %v6497
    %v6499 = vrot.slane %v6488, %v6498
    %v6500 = vlaneseq
    %v6501 = vshrl.u32 %v6500, 7
    %v6502 = vsub.s32 0, %v6501
    %v6503 = vrot.slane %v6495, %v6502
    %v6506 = vmul.f32 %v6499, %v653
    %v6507 = vmul.f32 %v6503, %v653
    %v6508 = vsub.f32 1.0, %v6506
    %v6509 = vsub.f32 1.0, %v6507
    %vm6510 = vcmask 130048
    %v6511 = vsel %vm6510, %v6471, inf
    %6512 = vmin.xlane.f32.xlu0 %v6511
    %v6513 = vpop.xlane.xlu0 %6512
    %v6514 = vsel %vm6510, %v6472, inf
    %6515 = vmin.xlane.f32.xlu0 %v6514
    %v6516 = vpop.xlane.xlu0 %6515
    %v6517 = vsel %vm6510, %v6508, inf
    %6518 = vmin.xlane.f32.xlu0 %v6517
    %v6519 = vpop.xlane.xlu0 %6518
    %v6520 = vsel %vm6510, %v6509, inf
    %6521 = vmin.xlane.f32.xlu0 %v6520
    %v6522 = vpop.xlane.xlu0 %6521
    %v6523 = vsub.f32 1.0, %v6519
    %v6524 = vsub.f32 1.0, %v6522
    %v6525 = vsub.f32 1.0, %v6513
    %v6526 = vsub.f32 1.0, %v6516
    %v6528 = vlaneseq
    %v6529 = vshrl.u32 %v6528, 7
    %v6530 = vsub.s32 0, %v6529
    %v6531 = vrot.slane %v656, %v6530
    %6533 = vbcast.lane.b32.xlu0 %v6531, 256
    %v6534 = vpop.permute.xlu0 %6533
    %v6535 = vlaneseq
    %v6536 = vshrl.u32 %v6535, 7
    %v6537 = vsub.s32 1, %v6536
    %v6538 = vrot.slane %v656, %v6537
    %6540 = vbcast.lane.b32.xlu0 %v6538, 256
    %v6541 = vpop.permute.xlu0 %6540
    %v6542 = vlaneseq
    %v6543 = vshrl.u32 %v6542, 7
    %v6544 = vsub.s32 2, %v6543
    %v6545 = vrot.slane %v656, %v6544
    %6547 = vbcast.lane.b32.xlu0 %v6545, 256
    %v6548 = vpop.permute.xlu0 %6547
    %v6549 = vlaneseq
    %v6550 = vshrl.u32 %v6549, 7
    %v6551 = vsub.s32 3, %v6550
    %v6552 = vrot.slane %v656, %v6551
    %6554 = vbcast.lane.b32.xlu0 %v6552, 256
    %v6555 = vpop.permute.xlu0 %6554
    %v6556 = vlaneseq
    %v6557 = vshrl.u32 %v6556, 7
    %v6558 = vsub.s32 4, %v6557
    %v6559 = vrot.slane %v656, %v6558
    %6561 = vbcast.lane.b32.xlu0 %v6559, 256
    %v6562 = vpop.permute.xlu0 %6561
    %v6563 = vlaneseq
    %v6564 = vshrl.u32 %v6563, 7
    %v6565 = vsub.s32 5, %v6564
    %v6566 = vrot.slane %v656, %v6565
    %6568 = vbcast.lane.b32.xlu0 %v6566, 256
    %v6569 = vpop.permute.xlu0 %6568
    %v6570 = vlaneseq
    %v6571 = vshrl.u32 %v6570, 7
    %v6572 = vsub.s32 6, %v6571
    %v6573 = vrot.slane %v656, %v6572
    %6575 = vbcast.lane.b32.xlu0 %v6573, 256
    %v6576 = vpop.permute.xlu0 %6575
    %v6577 = vlaneseq
    %v6578 = vshrl.u32 %v6577, 7
    %v6579 = vsub.s32 7, %v6578
    %v6580 = vrot.slane %v656, %v6579
    %6582 = vbcast.lane.b32.xlu0 %v6580, 256
    %v6583 = vpop.permute.xlu0 %6582
    %v6592 = vmul.f32 %v6525, %v6534
    %v6593 = vmul.f32 %v6525, %v6541
    %v6594 = vmul.f32 %v6525, %v6548
    %v6595 = vmul.f32 %v6525, %v6555
    %v6596 = vmul.f32 %v6525, %v6562
    %v6597 = vmul.f32 %v6525, %v6569
    %v6598 = vmul.f32 %v6525, %v6576
    %v6599 = vmul.f32 %v6525, %v6583
    %v6600 = vmul.f32 %v6526, %v6534
    %v6601 = vmul.f32 %v6526, %v6541
    %v6602 = vmul.f32 %v6526, %v6548
    %v6603 = vmul.f32 %v6526, %v6555
    %v6604 = vmul.f32 %v6526, %v6562
    %v6605 = vmul.f32 %v6526, %v6569
    %v6606 = vmul.f32 %v6526, %v6576
    %v6607 = vmul.f32 %v6526, %v6583
    %v6608 = vsub.f32 1.0, %v6592
    %v6609 = vsub.f32 1.0, %v6593
    %v6610 = vsub.f32 1.0, %v6594
    %v6611 = vsub.f32 1.0, %v6595
    %v6612 = vsub.f32 1.0, %v6596
    %v6613 = vsub.f32 1.0, %v6597
    %v6614 = vsub.f32 1.0, %v6598
    %v6615 = vsub.f32 1.0, %v6599
    %v6616 = vsub.f32 1.0, %v6600
    %v6617 = vsub.f32 1.0, %v6601
    %v6618 = vsub.f32 1.0, %v6602
    %v6619 = vsub.f32 1.0, %v6603
    %v6620 = vsub.f32 1.0, %v6604
    %v6621 = vsub.f32 1.0, %v6605
    %v6622 = vsub.f32 1.0, %v6606
    %v6623 = vsub.f32 1.0, %v6607
    %v6625 = vlaneseq
    %v6626 = vshrl.u32 %v6625, 7
    %v6627 = vsub.s32 0, %v6626
    %v6628 = vrot.slane %v659, %v6627
    %6630 = vbcast.lane.b32.xlu0 %v6628, 256
    %v6631 = vpop.permute.xlu0 %6630
    %v6632 = vlaneseq
    %v6633 = vshrl.u32 %v6632, 7
    %v6634 = vsub.s32 1, %v6633
    %v6635 = vrot.slane %v659, %v6634
    %6637 = vbcast.lane.b32.xlu0 %v6635, 256
    %v6638 = vpop.permute.xlu0 %6637
    %v6639 = vlaneseq
    %v6640 = vshrl.u32 %v6639, 7
    %v6641 = vsub.s32 2, %v6640
    %v6642 = vrot.slane %v659, %v6641
    %6644 = vbcast.lane.b32.xlu0 %v6642, 256
    %v6645 = vpop.permute.xlu0 %6644
    %v6646 = vlaneseq
    %v6647 = vshrl.u32 %v6646, 7
    %v6648 = vsub.s32 3, %v6647
    %v6649 = vrot.slane %v659, %v6648
    %6651 = vbcast.lane.b32.xlu0 %v6649, 256
    %v6652 = vpop.permute.xlu0 %6651
    %v6653 = vlaneseq
    %v6654 = vshrl.u32 %v6653, 7
    %v6655 = vsub.s32 4, %v6654
    %v6656 = vrot.slane %v659, %v6655
    %6658 = vbcast.lane.b32.xlu0 %v6656, 256
    %v6659 = vpop.permute.xlu0 %6658
    %v6660 = vlaneseq
    %v6661 = vshrl.u32 %v6660, 7
    %v6662 = vsub.s32 5, %v6661
    %v6663 = vrot.slane %v659, %v6662
    %6665 = vbcast.lane.b32.xlu0 %v6663, 256
    %v6666 = vpop.permute.xlu0 %6665
    %v6667 = vlaneseq
    %v6668 = vshrl.u32 %v6667, 7
    %v6669 = vsub.s32 6, %v6668
    %v6670 = vrot.slane %v659, %v6669
    %6672 = vbcast.lane.b32.xlu0 %v6670, 256
    %v6673 = vpop.permute.xlu0 %6672
    %v6674 = vlaneseq
    %v6675 = vshrl.u32 %v6674, 7
    %v6676 = vsub.s32 7, %v6675
    %v6677 = vrot.slane %v659, %v6676
    %6679 = vbcast.lane.b32.xlu0 %v6677, 256
    %v6680 = vpop.permute.xlu0 %6679
    %v6689 = vmul.f32 %v6513, %v6631
    %v6690 = vmul.f32 %v6513, %v6638
    %v6691 = vmul.f32 %v6513, %v6645
    %v6692 = vmul.f32 %v6513, %v6652
    %v6693 = vmul.f32 %v6513, %v6659
    %v6694 = vmul.f32 %v6513, %v6666
    %v6695 = vmul.f32 %v6513, %v6673
    %v6696 = vmul.f32 %v6513, %v6680
    %v6697 = vmul.f32 %v6516, %v6631
    %v6698 = vmul.f32 %v6516, %v6638
    %v6699 = vmul.f32 %v6516, %v6645
    %v6700 = vmul.f32 %v6516, %v6652
    %v6701 = vmul.f32 %v6516, %v6659
    %v6702 = vmul.f32 %v6516, %v6666
    %v6703 = vmul.f32 %v6516, %v6673
    %v6704 = vmul.f32 %v6516, %v6680
    %v6705 = vsub.f32 1.0, %v6689
    %v6706 = vsub.f32 1.0, %v6690
    %v6707 = vsub.f32 1.0, %v6691
    %v6708 = vsub.f32 1.0, %v6692
    %v6709 = vsub.f32 1.0, %v6693
    %v6710 = vsub.f32 1.0, %v6694
    %v6711 = vsub.f32 1.0, %v6695
    %v6712 = vsub.f32 1.0, %v6696
    %v6713 = vsub.f32 1.0, %v6697
    %v6714 = vsub.f32 1.0, %v6698
    %v6715 = vsub.f32 1.0, %v6699
    %v6716 = vsub.f32 1.0, %v6700
    %v6717 = vsub.f32 1.0, %v6701
    %v6718 = vsub.f32 1.0, %v6702
    %v6719 = vsub.f32 1.0, %v6703
    %v6720 = vsub.f32 1.0, %v6704
    %6737 = vset.pattern.permute.xlu0 0
    %6738 = vperm.xlu0 %6737, %v6608
    %v6739 = vpop.permute.xlu0 %6738
    %6740 = vset.pattern.permute.xlu0 0
    %6741 = vperm.xlu0 %6740, %v6609
    %v6742 = vpop.permute.xlu0 %6741
    %6743 = vset.pattern.permute.xlu0 0
    %6744 = vperm.xlu0 %6743, %v6610
    %v6745 = vpop.permute.xlu0 %6744
    %6746 = vset.pattern.permute.xlu0 0
    %6747 = vperm.xlu0 %6746, %v6611
    %v6748 = vpop.permute.xlu0 %6747
    %6749 = vset.pattern.permute.xlu0 0
    %6750 = vperm.xlu0 %6749, %v6612
    %v6751 = vpop.permute.xlu0 %6750
    %6752 = vset.pattern.permute.xlu0 0
    %6753 = vperm.xlu0 %6752, %v6613
    %v6754 = vpop.permute.xlu0 %6753
    %6755 = vset.pattern.permute.xlu0 0
    %6756 = vperm.xlu0 %6755, %v6614
    %v6757 = vpop.permute.xlu0 %6756
    %6758 = vset.pattern.permute.xlu0 0
    %6759 = vperm.xlu0 %6758, %v6615
    %v6760 = vpop.permute.xlu0 %6759
    %6761 = vset.pattern.permute.xlu0 0
    %6762 = vperm.xlu0 %6761, %v6616
    %v6763 = vpop.permute.xlu0 %6762
    %6764 = vset.pattern.permute.xlu0 0
    %6765 = vperm.xlu0 %6764, %v6617
    %v6766 = vpop.permute.xlu0 %6765
    %6767 = vset.pattern.permute.xlu0 0
    %6768 = vperm.xlu0 %6767, %v6618
    %v6769 = vpop.permute.xlu0 %6768
    %6770 = vset.pattern.permute.xlu0 0
    %6771 = vperm.xlu0 %6770, %v6619
    %v6772 = vpop.permute.xlu0 %6771
    %6773 = vset.pattern.permute.xlu0 0
    %6774 = vperm.xlu0 %6773, %v6620
    %v6775 = vpop.permute.xlu0 %6774
    %6776 = vset.pattern.permute.xlu0 0
    %6777 = vperm.xlu0 %6776, %v6621
    %v6778 = vpop.permute.xlu0 %6777
    %6779 = vset.pattern.permute.xlu0 0
    %6780 = vperm.xlu0 %6779, %v6622
    %v6781 = vpop.permute.xlu0 %6780
    %6782 = vset.pattern.permute.xlu0 0
    %6783 = vperm.xlu0 %6782, %v6623
    %v6784 = vpop.permute.xlu0 %6783
    %v6785 = vlaneseq
    %v6786 = vshrl.u32 %v6785, 7
    %v6787 = vsub.s32 %v593, %v6786
    %v6788 = vrot.slane %v6739, %v6787
    %v6789 = vlaneseq
    %v6790 = vshrl.u32 %v6789, 7
    %v6791 = vsub.s32 %v593, %v6790
    %v6792 = vrot.slane %v6742, %v6791
    %v6793 = vlaneseq
    %v6794 = vshrl.u32 %v6793, 7
    %v6795 = vsub.s32 %v593, %v6794
    %v6796 = vrot.slane %v6745, %v6795
    %v6797 = vlaneseq
    %v6798 = vshrl.u32 %v6797, 7
    %v6799 = vsub.s32 %v593, %v6798
    %v6800 = vrot.slane %v6748, %v6799
    %v6801 = vlaneseq
    %v6802 = vshrl.u32 %v6801, 7
    %v6803 = vsub.s32 %v593, %v6802
    %v6804 = vrot.slane %v6751, %v6803
    %v6805 = vlaneseq
    %v6806 = vshrl.u32 %v6805, 7
    %v6807 = vsub.s32 %v593, %v6806
    %v6808 = vrot.slane %v6754, %v6807
    %v6809 = vlaneseq
    %v6810 = vshrl.u32 %v6809, 7
    %v6811 = vsub.s32 %v593, %v6810
    %v6812 = vrot.slane %v6757, %v6811
    %v6813 = vlaneseq
    %v6814 = vshrl.u32 %v6813, 7
    %v6815 = vsub.s32 %v593, %v6814
    %v6816 = vrot.slane %v6760, %v6815
    %v6817 = vlaneseq
    %v6818 = vshrl.u32 %v6817, 7
    %v6819 = vsub.s32 %v593, %v6818
    %v6820 = vrot.slane %v6763, %v6819
    %v6821 = vlaneseq
    %v6822 = vshrl.u32 %v6821, 7
    %v6823 = vsub.s32 %v593, %v6822
    %v6824 = vrot.slane %v6766, %v6823
    %v6825 = vlaneseq
    %v6826 = vshrl.u32 %v6825, 7
    %v6827 = vsub.s32 %v593, %v6826
    %v6828 = vrot.slane %v6769, %v6827
    %v6829 = vlaneseq
    %v6830 = vshrl.u32 %v6829, 7
    %v6831 = vsub.s32 %v593, %v6830
    %v6832 = vrot.slane %v6772, %v6831
    %v6833 = vlaneseq
    %v6834 = vshrl.u32 %v6833, 7
    %v6835 = vsub.s32 %v593, %v6834
    %v6836 = vrot.slane %v6775, %v6835
    %v6837 = vlaneseq
    %v6838 = vshrl.u32 %v6837, 7
    %v6839 = vsub.s32 %v593, %v6838
    %v6840 = vrot.slane %v6778, %v6839
    %v6841 = vlaneseq
    %v6842 = vshrl.u32 %v6841, 7
    %v6843 = vsub.s32 %v593, %v6842
    %v6844 = vrot.slane %v6781, %v6843
    %v6845 = vlaneseq
    %v6846 = vshrl.u32 %v6845, 7
    %v6847 = vsub.s32 %v593, %v6846
    %v6848 = vrot.slane %v6784, %v6847
    %v6849 = vsel %vm5908, %v6792, %v6788
    %v6850 = vsel %vm5911, %v6796, %v6849
    %v6851 = vsel %vm5914, %v6800, %v6850
    %v6852 = vsel %vm5917, %v6804, %v6851
    %v6853 = vsel %vm5920, %v6808, %v6852
    %v6854 = vsel %vm5923, %v6812, %v6853
    %v6855 = vsel %vm5926, %v6816, %v6854
    %v6856 = vsel %vm5908, %v6824, %v6820
    %v6857 = vsel %vm5911, %v6828, %v6856
    %v6858 = vsel %vm5914, %v6832, %v6857
    %v6859 = vsel %vm5917, %v6836, %v6858
    %v6860 = vsel %vm5920, %v6840, %v6859
    %v6861 = vsel %vm5923, %v6844, %v6860
    %v6862 = vsel %vm5926, %v6848, %v6861
    %v6865 = vsel %vm5957, %v6855, inf
    %6866 = vmin.xlane.f32.xlu0 %v6865
    %v6867 = vpop.xlane.xlu0 %6866
    %v6868 = vsel %vm5957, %v6862, inf
    %6869 = vmin.xlane.f32.xlu0 %v6868
    %v6870 = vpop.xlane.xlu0 %6869
    %6887 = vset.pattern.permute.xlu0 0
    %6888 = vperm.xlu0 %6887, %v6705
    %v6889 = vpop.permute.xlu0 %6888
    %6890 = vset.pattern.permute.xlu0 0
    %6891 = vperm.xlu0 %6890, %v6706
    %v6892 = vpop.permute.xlu0 %6891
    %6893 = vset.pattern.permute.xlu0 0
    %6894 = vperm.xlu0 %6893, %v6707
    %v6895 = vpop.permute.xlu0 %6894
    %6896 = vset.pattern.permute.xlu0 0
    %6897 = vperm.xlu0 %6896, %v6708
    %v6898 = vpop.permute.xlu0 %6897
    %6899 = vset.pattern.permute.xlu0 0
    %6900 = vperm.xlu0 %6899, %v6709
    %v6901 = vpop.permute.xlu0 %6900
    %6902 = vset.pattern.permute.xlu0 0
    %6903 = vperm.xlu0 %6902, %v6710
    %v6904 = vpop.permute.xlu0 %6903
    %6905 = vset.pattern.permute.xlu0 0
    %6906 = vperm.xlu0 %6905, %v6711
    %v6907 = vpop.permute.xlu0 %6906
    %6908 = vset.pattern.permute.xlu0 0
    %6909 = vperm.xlu0 %6908, %v6712
    %v6910 = vpop.permute.xlu0 %6909
    %6911 = vset.pattern.permute.xlu0 0
    %6912 = vperm.xlu0 %6911, %v6713
    %v6913 = vpop.permute.xlu0 %6912
    %6914 = vset.pattern.permute.xlu0 0
    %6915 = vperm.xlu0 %6914, %v6714
    %v6916 = vpop.permute.xlu0 %6915
    %6917 = vset.pattern.permute.xlu0 0
    %6918 = vperm.xlu0 %6917, %v6715
    %v6919 = vpop.permute.xlu0 %6918
    %6920 = vset.pattern.permute.xlu0 0
    %6921 = vperm.xlu0 %6920, %v6716
    %v6922 = vpop.permute.xlu0 %6921
    %6923 = vset.pattern.permute.xlu0 0
    %6924 = vperm.xlu0 %6923, %v6717
    %v6925 = vpop.permute.xlu0 %6924
    %6926 = vset.pattern.permute.xlu0 0
    %6927 = vperm.xlu0 %6926, %v6718
    %v6928 = vpop.permute.xlu0 %6927
    %6929 = vset.pattern.permute.xlu0 0
    %6930 = vperm.xlu0 %6929, %v6719
    %v6931 = vpop.permute.xlu0 %6930
    %6932 = vset.pattern.permute.xlu0 0
    %6933 = vperm.xlu0 %6932, %v6720
    %v6934 = vpop.permute.xlu0 %6933
    %v6935 = vlaneseq
    %v6936 = vshrl.u32 %v6935, 7
    %v6937 = vsub.s32 %v593, %v6936
    %v6938 = vrot.slane %v6889, %v6937
    %v6939 = vlaneseq
    %v6940 = vshrl.u32 %v6939, 7
    %v6941 = vsub.s32 %v593, %v6940
    %v6942 = vrot.slane %v6892, %v6941
    %v6943 = vlaneseq
    %v6944 = vshrl.u32 %v6943, 7
    %v6945 = vsub.s32 %v593, %v6944
    %v6946 = vrot.slane %v6895, %v6945
    %v6947 = vlaneseq
    %v6948 = vshrl.u32 %v6947, 7
    %v6949 = vsub.s32 %v593, %v6948
    %v6950 = vrot.slane %v6898, %v6949
    %v6951 = vlaneseq
    %v6952 = vshrl.u32 %v6951, 7
    %v6953 = vsub.s32 %v593, %v6952
    %v6954 = vrot.slane %v6901, %v6953
    %v6955 = vlaneseq
    %v6956 = vshrl.u32 %v6955, 7
    %v6957 = vsub.s32 %v593, %v6956
    %v6958 = vrot.slane %v6904, %v6957
    %v6959 = vlaneseq
    %v6960 = vshrl.u32 %v6959, 7
    %v6961 = vsub.s32 %v593, %v6960
    %v6962 = vrot.slane %v6907, %v6961
    %v6963 = vlaneseq
    %v6964 = vshrl.u32 %v6963, 7
    %v6965 = vsub.s32 %v593, %v6964
    %v6966 = vrot.slane %v6910, %v6965
    %v6967 = vlaneseq
    %v6968 = vshrl.u32 %v6967, 7
    %v6969 = vsub.s32 %v593, %v6968
    %v6970 = vrot.slane %v6913, %v6969
    %v6971 = vlaneseq
    %v6972 = vshrl.u32 %v6971, 7
    %v6973 = vsub.s32 %v593, %v6972
    %v6974 = vrot.slane %v6916, %v6973
    %v6975 = vlaneseq
    %v6976 = vshrl.u32 %v6975, 7
    %v6977 = vsub.s32 %v593, %v6976
    %v6978 = vrot.slane %v6919, %v6977
    %v6979 = vlaneseq
    %v6980 = vshrl.u32 %v6979, 7
    %v6981 = vsub.s32 %v593, %v6980
    %v6982 = vrot.slane %v6922, %v6981
    %v6983 = vlaneseq
    %v6984 = vshrl.u32 %v6983, 7
    %v6985 = vsub.s32 %v593, %v6984
    %v6986 = vrot.slane %v6925, %v6985
    %v6987 = vlaneseq
    %v6988 = vshrl.u32 %v6987, 7
    %v6989 = vsub.s32 %v593, %v6988
    %v6990 = vrot.slane %v6928, %v6989
    %v6991 = vlaneseq
    %v6992 = vshrl.u32 %v6991, 7
    %v6993 = vsub.s32 %v593, %v6992
    %v6994 = vrot.slane %v6931, %v6993
    %v6995 = vlaneseq
    %v6996 = vshrl.u32 %v6995, 7
    %v6997 = vsub.s32 %v593, %v6996
    %v6998 = vrot.slane %v6934, %v6997
    %v6999 = vsel %vm5908, %v6942, %v6938
    %v7000 = vsel %vm5911, %v6946, %v6999
    %v7001 = vsel %vm5914, %v6950, %v7000
    %v7002 = vsel %vm5917, %v6954, %v7001
    %v7003 = vsel %vm5920, %v6958, %v7002
    %v7004 = vsel %vm5923, %v6962, %v7003
    %v7005 = vsel %vm5926, %v6966, %v7004
    %v7006 = vsel %vm5908, %v6974, %v6970
    %v7007 = vsel %vm5911, %v6978, %v7006
    %v7008 = vsel %vm5914, %v6982, %v7007
    %v7009 = vsel %vm5917, %v6986, %v7008
    %v7010 = vsel %vm5920, %v6990, %v7009
    %v7011 = vsel %vm5923, %v6994, %v7010
    %v7012 = vsel %vm5926, %v6998, %v7011
    %v7015 = vsel %vm5957, %v7005, inf
    %7016 = vmin.xlane.f32.xlu0 %v7015
    %v7017 = vpop.xlane.xlu0 %7016
    %v7018 = vsel %vm5957, %v7012, inf
    %7019 = vmin.xlane.f32.xlu0 %v7018
    %v7020 = vpop.xlane.xlu0 %7019
    %v7021 = vsub.f32 1.0, %v6523
    %v7022 = vsub.f32 1.0, %v6524
    %s7024 = sor.u32 256, 8
    %7025 = vbcast.lane.b32.xlu0 %v6531, %s7024
    %v7026 = vpop.permute.xlu0 %7025
    %s7028 = sor.u32 256, 8
    %7029 = vbcast.lane.b32.xlu0 %v6538, %s7028
    %v7030 = vpop.permute.xlu0 %7029
    %s7032 = sor.u32 256, 8
    %7033 = vbcast.lane.b32.xlu0 %v6545, %s7032
    %v7034 = vpop.permute.xlu0 %7033
    %s7036 = sor.u32 256, 8
    %7037 = vbcast.lane.b32.xlu0 %v6552, %s7036
    %v7038 = vpop.permute.xlu0 %7037
    %s7040 = sor.u32 256, 8
    %7041 = vbcast.lane.b32.xlu0 %v6559, %s7040
    %v7042 = vpop.permute.xlu0 %7041
    %s7044 = sor.u32 256, 8
    %7045 = vbcast.lane.b32.xlu0 %v6566, %s7044
    %v7046 = vpop.permute.xlu0 %7045
    %s7048 = sor.u32 256, 8
    %7049 = vbcast.lane.b32.xlu0 %v6573, %s7048
    %v7050 = vpop.permute.xlu0 %7049
    %s7052 = sor.u32 256, 8
    %7053 = vbcast.lane.b32.xlu0 %v6580, %s7052
    %v7054 = vpop.permute.xlu0 %7053
    %v7063 = vmul.f32 %v7021, %v7026
    %v7064 = vmul.f32 %v7021, %v7030
    %v7065 = vmul.f32 %v7021, %v7034
    %v7066 = vmul.f32 %v7021, %v7038
    %v7067 = vmul.f32 %v7021, %v7042
    %v7068 = vmul.f32 %v7021, %v7046
    %v7069 = vmul.f32 %v7021, %v7050
    %v7070 = vmul.f32 %v7021, %v7054
    %v7071 = vmul.f32 %v7022, %v7026
    %v7072 = vmul.f32 %v7022, %v7030
    %v7073 = vmul.f32 %v7022, %v7034
    %v7074 = vmul.f32 %v7022, %v7038
    %v7075 = vmul.f32 %v7022, %v7042
    %v7076 = vmul.f32 %v7022, %v7046
    %v7077 = vmul.f32 %v7022, %v7050
    %v7078 = vmul.f32 %v7022, %v7054
    %v7079 = vsub.f32 1.0, %v7063
    %v7080 = vsub.f32 1.0, %v7064
    %v7081 = vsub.f32 1.0, %v7065
    %v7082 = vsub.f32 1.0, %v7066
    %v7083 = vsub.f32 1.0, %v7067
    %v7084 = vsub.f32 1.0, %v7068
    %v7085 = vsub.f32 1.0, %v7069
    %v7086 = vsub.f32 1.0, %v7070
    %v7087 = vsub.f32 1.0, %v7071
    %v7088 = vsub.f32 1.0, %v7072
    %v7089 = vsub.f32 1.0, %v7073
    %v7090 = vsub.f32 1.0, %v7074
    %v7091 = vsub.f32 1.0, %v7075
    %v7092 = vsub.f32 1.0, %v7076
    %v7093 = vsub.f32 1.0, %v7077
    %v7094 = vsub.f32 1.0, %v7078
    %s7096 = sor.u32 256, 8
    %7097 = vbcast.lane.b32.xlu0 %v6628, %s7096
    %v7098 = vpop.permute.xlu0 %7097
    %s7100 = sor.u32 256, 8
    %7101 = vbcast.lane.b32.xlu0 %v6635, %s7100
    %v7102 = vpop.permute.xlu0 %7101
    %s7104 = sor.u32 256, 8
    %7105 = vbcast.lane.b32.xlu0 %v6642, %s7104
    %v7106 = vpop.permute.xlu0 %7105
    %s7108 = sor.u32 256, 8
    %7109 = vbcast.lane.b32.xlu0 %v6649, %s7108
    %v7110 = vpop.permute.xlu0 %7109
    %s7112 = sor.u32 256, 8
    %7113 = vbcast.lane.b32.xlu0 %v6656, %s7112
    %v7114 = vpop.permute.xlu0 %7113
    %s7116 = sor.u32 256, 8
    %7117 = vbcast.lane.b32.xlu0 %v6663, %s7116
    %v7118 = vpop.permute.xlu0 %7117
    %s7120 = sor.u32 256, 8
    %7121 = vbcast.lane.b32.xlu0 %v6670, %s7120
    %v7122 = vpop.permute.xlu0 %7121
    %s7124 = sor.u32 256, 8
    %7125 = vbcast.lane.b32.xlu0 %v6677, %s7124
    %v7126 = vpop.permute.xlu0 %7125
    %v7135 = vmul.f32 %v6523, %v7098
    %v7136 = vmul.f32 %v6523, %v7102
    %v7137 = vmul.f32 %v6523, %v7106
    %v7138 = vmul.f32 %v6523, %v7110
    %v7139 = vmul.f32 %v6523, %v7114
    %v7140 = vmul.f32 %v6523, %v7118
    %v7141 = vmul.f32 %v6523, %v7122
    %v7142 = vmul.f32 %v6523, %v7126
    %v7143 = vmul.f32 %v6524, %v7098
    %v7144 = vmul.f32 %v6524, %v7102
    %v7145 = vmul.f32 %v6524, %v7106
    %v7146 = vmul.f32 %v6524, %v7110
    %v7147 = vmul.f32 %v6524, %v7114
    %v7148 = vmul.f32 %v6524, %v7118
    %v7149 = vmul.f32 %v6524, %v7122
    %v7150 = vmul.f32 %v6524, %v7126
    %v7151 = vsub.f32 1.0, %v7135
    %v7152 = vsub.f32 1.0, %v7136
    %v7153 = vsub.f32 1.0, %v7137
    %v7154 = vsub.f32 1.0, %v7138
    %v7155 = vsub.f32 1.0, %v7139
    %v7156 = vsub.f32 1.0, %v7140
    %v7157 = vsub.f32 1.0, %v7141
    %v7158 = vsub.f32 1.0, %v7142
    %v7159 = vsub.f32 1.0, %v7143
    %v7160 = vsub.f32 1.0, %v7144
    %v7161 = vsub.f32 1.0, %v7145
    %v7162 = vsub.f32 1.0, %v7146
    %v7163 = vsub.f32 1.0, %v7147
    %v7164 = vsub.f32 1.0, %v7148
    %v7165 = vsub.f32 1.0, %v7149
    %v7166 = vsub.f32 1.0, %v7150
    %7183 = vset.pattern.permute.xlu0 0
    %7184 = vperm.xlu0 %7183, %v7079
    %v7185 = vpop.permute.xlu0 %7184
    %7186 = vset.pattern.permute.xlu0 0
    %7187 = vperm.xlu0 %7186, %v7080
    %v7188 = vpop.permute.xlu0 %7187
    %7189 = vset.pattern.permute.xlu0 0
    %7190 = vperm.xlu0 %7189, %v7081
    %v7191 = vpop.permute.xlu0 %7190
    %7192 = vset.pattern.permute.xlu0 0
    %7193 = vperm.xlu0 %7192, %v7082
    %v7194 = vpop.permute.xlu0 %7193
    %7195 = vset.pattern.permute.xlu0 0
    %7196 = vperm.xlu0 %7195, %v7083
    %v7197 = vpop.permute.xlu0 %7196
    %7198 = vset.pattern.permute.xlu0 0
    %7199 = vperm.xlu0 %7198, %v7084
    %v7200 = vpop.permute.xlu0 %7199
    %7201 = vset.pattern.permute.xlu0 0
    %7202 = vperm.xlu0 %7201, %v7085
    %v7203 = vpop.permute.xlu0 %7202
    %7204 = vset.pattern.permute.xlu0 0
    %7205 = vperm.xlu0 %7204, %v7086
    %v7206 = vpop.permute.xlu0 %7205
    %7207 = vset.pattern.permute.xlu0 0
    %7208 = vperm.xlu0 %7207, %v7087
    %v7209 = vpop.permute.xlu0 %7208
    %7210 = vset.pattern.permute.xlu0 0
    %7211 = vperm.xlu0 %7210, %v7088
    %v7212 = vpop.permute.xlu0 %7211
    %7213 = vset.pattern.permute.xlu0 0
    %7214 = vperm.xlu0 %7213, %v7089
    %v7215 = vpop.permute.xlu0 %7214
    %7216 = vset.pattern.permute.xlu0 0
    %7217 = vperm.xlu0 %7216, %v7090
    %v7218 = vpop.permute.xlu0 %7217
    %7219 = vset.pattern.permute.xlu0 0
    %7220 = vperm.xlu0 %7219, %v7091
    %v7221 = vpop.permute.xlu0 %7220
    %7222 = vset.pattern.permute.xlu0 0
    %7223 = vperm.xlu0 %7222, %v7092
    %v7224 = vpop.permute.xlu0 %7223
    %7225 = vset.pattern.permute.xlu0 0
    %7226 = vperm.xlu0 %7225, %v7093
    %v7227 = vpop.permute.xlu0 %7226
    %7228 = vset.pattern.permute.xlu0 0
    %7229 = vperm.xlu0 %7228, %v7094
    %v7230 = vpop.permute.xlu0 %7229
    %v7231 = vlaneseq
    %v7232 = vshrl.u32 %v7231, 7
    %v7233 = vsub.s32 %v593, %v7232
    %v7234 = vrot.slane %v7185, %v7233
    %v7235 = vlaneseq
    %v7236 = vshrl.u32 %v7235, 7
    %v7237 = vsub.s32 %v593, %v7236
    %v7238 = vrot.slane %v7188, %v7237
    %v7239 = vlaneseq
    %v7240 = vshrl.u32 %v7239, 7
    %v7241 = vsub.s32 %v593, %v7240
    %v7242 = vrot.slane %v7191, %v7241
    %v7243 = vlaneseq
    %v7244 = vshrl.u32 %v7243, 7
    %v7245 = vsub.s32 %v593, %v7244
    %v7246 = vrot.slane %v7194, %v7245
    %v7247 = vlaneseq
    %v7248 = vshrl.u32 %v7247, 7
    %v7249 = vsub.s32 %v593, %v7248
    %v7250 = vrot.slane %v7197, %v7249
    %v7251 = vlaneseq
    %v7252 = vshrl.u32 %v7251, 7
    %v7253 = vsub.s32 %v593, %v7252
    %v7254 = vrot.slane %v7200, %v7253
    %v7255 = vlaneseq
    %v7256 = vshrl.u32 %v7255, 7
    %v7257 = vsub.s32 %v593, %v7256
    %v7258 = vrot.slane %v7203, %v7257
    %v7259 = vlaneseq
    %v7260 = vshrl.u32 %v7259, 7
    %v7261 = vsub.s32 %v593, %v7260
    %v7262 = vrot.slane %v7206, %v7261
    %v7263 = vlaneseq
    %v7264 = vshrl.u32 %v7263, 7
    %v7265 = vsub.s32 %v593, %v7264
    %v7266 = vrot.slane %v7209, %v7265
    %v7267 = vlaneseq
    %v7268 = vshrl.u32 %v7267, 7
    %v7269 = vsub.s32 %v593, %v7268
    %v7270 = vrot.slane %v7212, %v7269
    %v7271 = vlaneseq
    %v7272 = vshrl.u32 %v7271, 7
    %v7273 = vsub.s32 %v593, %v7272
    %v7274 = vrot.slane %v7215, %v7273
    %v7275 = vlaneseq
    %v7276 = vshrl.u32 %v7275, 7
    %v7277 = vsub.s32 %v593, %v7276
    %v7278 = vrot.slane %v7218, %v7277
    %v7279 = vlaneseq
    %v7280 = vshrl.u32 %v7279, 7
    %v7281 = vsub.s32 %v593, %v7280
    %v7282 = vrot.slane %v7221, %v7281
    %v7283 = vlaneseq
    %v7284 = vshrl.u32 %v7283, 7
    %v7285 = vsub.s32 %v593, %v7284
    %v7286 = vrot.slane %v7224, %v7285
    %v7287 = vlaneseq
    %v7288 = vshrl.u32 %v7287, 7
    %v7289 = vsub.s32 %v593, %v7288
    %v7290 = vrot.slane %v7227, %v7289
    %v7291 = vlaneseq
    %v7292 = vshrl.u32 %v7291, 7
    %v7293 = vsub.s32 %v593, %v7292
    %v7294 = vrot.slane %v7230, %v7293
    %v7295 = vsel %vm5908, %v7238, %v7234
    %v7296 = vsel %vm5911, %v7242, %v7295
    %v7297 = vsel %vm5914, %v7246, %v7296
    %v7298 = vsel %vm5917, %v7250, %v7297
    %v7299 = vsel %vm5920, %v7254, %v7298
    %v7300 = vsel %vm5923, %v7258, %v7299
    %v7301 = vsel %vm5926, %v7262, %v7300
    %v7302 = vsel %vm5908, %v7270, %v7266
    %v7303 = vsel %vm5911, %v7274, %v7302
    %v7304 = vsel %vm5914, %v7278, %v7303
    %v7305 = vsel %vm5917, %v7282, %v7304
    %v7306 = vsel %vm5920, %v7286, %v7305
    %v7307 = vsel %vm5923, %v7290, %v7306
    %v7308 = vsel %vm5926, %v7294, %v7307
    %v7311 = vsel %vm5957, %v7301, inf
    %7312 = vmin.xlane.f32.xlu0 %v7311
    %v7313 = vpop.xlane.xlu0 %7312
    %v7314 = vsel %vm5957, %v7308, inf
    %7315 = vmin.xlane.f32.xlu0 %v7314
    %v7316 = vpop.xlane.xlu0 %7315
    %7333 = vset.pattern.permute.xlu0 0
    %7334 = vperm.xlu0 %7333, %v7151
    %v7335 = vpop.permute.xlu0 %7334
    %7336 = vset.pattern.permute.xlu0 0
    %7337 = vperm.xlu0 %7336, %v7152
    %v7338 = vpop.permute.xlu0 %7337
    %7339 = vset.pattern.permute.xlu0 0
    %7340 = vperm.xlu0 %7339, %v7153
    %v7341 = vpop.permute.xlu0 %7340
    %7342 = vset.pattern.permute.xlu0 0
    %7343 = vperm.xlu0 %7342, %v7154
    %v7344 = vpop.permute.xlu0 %7343
    %7345 = vset.pattern.permute.xlu0 0
    %7346 = vperm.xlu0 %7345, %v7155
    %v7347 = vpop.permute.xlu0 %7346
    %7348 = vset.pattern.permute.xlu0 0
    %7349 = vperm.xlu0 %7348, %v7156
    %v7350 = vpop.permute.xlu0 %7349
    %7351 = vset.pattern.permute.xlu0 0
    %7352 = vperm.xlu0 %7351, %v7157
    %v7353 = vpop.permute.xlu0 %7352
    %7354 = vset.pattern.permute.xlu0 0
    %7355 = vperm.xlu0 %7354, %v7158
    %v7356 = vpop.permute.xlu0 %7355
    %7357 = vset.pattern.permute.xlu0 0
    %7358 = vperm.xlu0 %7357, %v7159
    %v7359 = vpop.permute.xlu0 %7358
    %7360 = vset.pattern.permute.xlu0 0
    %7361 = vperm.xlu0 %7360, %v7160
    %v7362 = vpop.permute.xlu0 %7361
    %7363 = vset.pattern.permute.xlu0 0
    %7364 = vperm.xlu0 %7363, %v7161
    %v7365 = vpop.permute.xlu0 %7364
    %7366 = vset.pattern.permute.xlu0 0
    %7367 = vperm.xlu0 %7366, %v7162
    %v7368 = vpop.permute.xlu0 %7367
    %7369 = vset.pattern.permute.xlu0 0
    %7370 = vperm.xlu0 %7369, %v7163
    %v7371 = vpop.permute.xlu0 %7370
    %7372 = vset.pattern.permute.xlu0 0
    %7373 = vperm.xlu0 %7372, %v7164
    %v7374 = vpop.permute.xlu0 %7373
    %7375 = vset.pattern.permute.xlu0 0
    %7376 = vperm.xlu0 %7375, %v7165
    %v7377 = vpop.permute.xlu0 %7376
    %7378 = vset.pattern.permute.xlu0 0
    %7379 = vperm.xlu0 %7378, %v7166
    %v7380 = vpop.permute.xlu0 %7379
    %v7381 = vlaneseq
    %v7382 = vshrl.u32 %v7381, 7
    %v7383 = vsub.s32 %v593, %v7382
    %v7384 = vrot.slane %v7335, %v7383
    %v7385 = vlaneseq
    %v7386 = vshrl.u32 %v7385, 7
    %v7387 = vsub.s32 %v593, %v7386
    %v7388 = vrot.slane %v7338, %v7387
    %v7389 = vlaneseq
    %v7390 = vshrl.u32 %v7389, 7
    %v7391 = vsub.s32 %v593, %v7390
    %v7392 = vrot.slane %v7341, %v7391
    %v7393 = vlaneseq
    %v7394 = vshrl.u32 %v7393, 7
    %v7395 = vsub.s32 %v593, %v7394
    %v7396 = vrot.slane %v7344, %v7395
    %v7397 = vlaneseq
    %v7398 = vshrl.u32 %v7397, 7
    %v7399 = vsub.s32 %v593, %v7398
    %v7400 = vrot.slane %v7347, %v7399
    %v7401 = vlaneseq
    %v7402 = vshrl.u32 %v7401, 7
    %v7403 = vsub.s32 %v593, %v7402
    %v7404 = vrot.slane %v7350, %v7403
    %v7405 = vlaneseq
    %v7406 = vshrl.u32 %v7405, 7
    %v7407 = vsub.s32 %v593, %v7406
    %v7408 = vrot.slane %v7353, %v7407
    %v7409 = vlaneseq
    %v7410 = vshrl.u32 %v7409, 7
    %v7411 = vsub.s32 %v593, %v7410
    %v7412 = vrot.slane %v7356, %v7411
    %v7413 = vlaneseq
    %v7414 = vshrl.u32 %v7413, 7
    %v7415 = vsub.s32 %v593, %v7414
    %v7416 = vrot.slane %v7359, %v7415
    %v7417 = vlaneseq
    %v7418 = vshrl.u32 %v7417, 7
    %v7419 = vsub.s32 %v593, %v7418
    %v7420 = vrot.slane %v7362, %v7419
    %v7421 = vlaneseq
    %v7422 = vshrl.u32 %v7421, 7
    %v7423 = vsub.s32 %v593, %v7422
    %v7424 = vrot.slane %v7365, %v7423
    %v7425 = vlaneseq
    %v7426 = vshrl.u32 %v7425, 7
    %v7427 = vsub.s32 %v593, %v7426
    %v7428 = vrot.slane %v7368, %v7427
    %v7429 = vlaneseq
    %v7430 = vshrl.u32 %v7429, 7
    %v7431 = vsub.s32 %v593, %v7430
    %v7432 = vrot.slane %v7371, %v7431
    %v7433 = vlaneseq
    %v7434 = vshrl.u32 %v7433, 7
    %v7435 = vsub.s32 %v593, %v7434
    %v7436 = vrot.slane %v7374, %v7435
    %v7437 = vlaneseq
    %v7438 = vshrl.u32 %v7437, 7
    %v7439 = vsub.s32 %v593, %v7438
    %v7440 = vrot.slane %v7377, %v7439
    %v7441 = vlaneseq
    %v7442 = vshrl.u32 %v7441, 7
    %v7443 = vsub.s32 %v593, %v7442
    %v7444 = vrot.slane %v7380, %v7443
    %v7445 = vsel %vm5908, %v7388, %v7384
    %v7446 = vsel %vm5911, %v7392, %v7445
    %v7447 = vsel %vm5914, %v7396, %v7446
    %v7448 = vsel %vm5917, %v7400, %v7447
    %v7449 = vsel %vm5920, %v7404, %v7448
    %v7450 = vsel %vm5923, %v7408, %v7449
    %v7451 = vsel %vm5926, %v7412, %v7450
    %v7452 = vsel %vm5908, %v7420, %v7416
    %v7453 = vsel %vm5911, %v7424, %v7452
    %v7454 = vsel %vm5914, %v7428, %v7453
    %v7455 = vsel %vm5917, %v7432, %v7454
    %v7456 = vsel %vm5920, %v7436, %v7455
    %v7457 = vsel %vm5923, %v7440, %v7456
    %v7458 = vsel %vm5926, %v7444, %v7457
    %v7461 = vsel %vm5957, %v7451, inf
    %7462 = vmin.xlane.f32.xlu0 %v7461
    %v7463 = vpop.xlane.xlu0 %7462
    %v7464 = vsel %vm5957, %v7458, inf
    %7465 = vmin.xlane.f32.xlu0 %v7464
    %v7466 = vpop.xlane.xlu0 %7465
    %v7467 = vmin.f32 %v6867, %v7313
    %v7468 = vmin.f32 %v6870, %v7316
    %v7469 = vmin.f32 %v7017, %v7463
    %v7470 = vmin.f32 %v7020, %v7466
    %v7471 = vsub.f32 1.0, %v7469
    %v7472 = vsub.f32 1.0, %v7470
    %v7473 = vsub.f32 1.0, %v7467
    %v7474 = vsub.f32 1.0, %v7468
    %v7476 = vlaneseq
    %v7477 = vshrl.u32 %v7476, 7
    %v7478 = vsub.s32 0, %v7477
    %v7479 = vrot.slane %v662, %v7478
    %7481 = vbcast.lane.b32.xlu0 %v7479, 256
    %v7482 = vpop.permute.xlu0 %7481
    %v7483 = vlaneseq
    %v7484 = vshrl.u32 %v7483, 7
    %v7485 = vsub.s32 1, %v7484
    %v7486 = vrot.slane %v662, %v7485
    %7488 = vbcast.lane.b32.xlu0 %v7486, 256
    %v7489 = vpop.permute.xlu0 %7488
    %v7490 = vlaneseq
    %v7491 = vshrl.u32 %v7490, 7
    %v7492 = vsub.s32 2, %v7491
    %v7493 = vrot.slane %v662, %v7492
    %7495 = vbcast.lane.b32.xlu0 %v7493, 256
    %v7496 = vpop.permute.xlu0 %7495
    %v7497 = vlaneseq
    %v7498 = vshrl.u32 %v7497, 7
    %v7499 = vsub.s32 3, %v7498
    %v7500 = vrot.slane %v662, %v7499
    %7502 = vbcast.lane.b32.xlu0 %v7500, 256
    %v7503 = vpop.permute.xlu0 %7502
    %v7504 = vlaneseq
    %v7505 = vshrl.u32 %v7504, 7
    %v7506 = vsub.s32 4, %v7505
    %v7507 = vrot.slane %v662, %v7506
    %7509 = vbcast.lane.b32.xlu0 %v7507, 256
    %v7510 = vpop.permute.xlu0 %7509
    %v7511 = vlaneseq
    %v7512 = vshrl.u32 %v7511, 7
    %v7513 = vsub.s32 5, %v7512
    %v7514 = vrot.slane %v662, %v7513
    %7516 = vbcast.lane.b32.xlu0 %v7514, 256
    %v7517 = vpop.permute.xlu0 %7516
    %v7518 = vlaneseq
    %v7519 = vshrl.u32 %v7518, 7
    %v7520 = vsub.s32 6, %v7519
    %v7521 = vrot.slane %v662, %v7520
    %7523 = vbcast.lane.b32.xlu0 %v7521, 256
    %v7524 = vpop.permute.xlu0 %7523
    %v7525 = vlaneseq
    %v7526 = vshrl.u32 %v7525, 7
    %v7527 = vsub.s32 7, %v7526
    %v7528 = vrot.slane %v662, %v7527
    %7530 = vbcast.lane.b32.xlu0 %v7528, 256
    %v7531 = vpop.permute.xlu0 %7530
    %v7540 = vmul.f32 %v7473, %v7482
    %v7541 = vmul.f32 %v7473, %v7489
    %v7542 = vmul.f32 %v7473, %v7496
    %v7543 = vmul.f32 %v7473, %v7503
    %v7544 = vmul.f32 %v7473, %v7510
    %v7545 = vmul.f32 %v7473, %v7517
    %v7546 = vmul.f32 %v7473, %v7524
    %v7547 = vmul.f32 %v7473, %v7531
    %v7548 = vmul.f32 %v7474, %v7482
    %v7549 = vmul.f32 %v7474, %v7489
    %v7550 = vmul.f32 %v7474, %v7496
    %v7551 = vmul.f32 %v7474, %v7503
    %v7552 = vmul.f32 %v7474, %v7510
    %v7553 = vmul.f32 %v7474, %v7517
    %v7554 = vmul.f32 %v7474, %v7524
    %v7555 = vmul.f32 %v7474, %v7531
    %v7556 = vsub.f32 1.0, %v7540
    %v7557 = vsub.f32 1.0, %v7541
    %v7558 = vsub.f32 1.0, %v7542
    %v7559 = vsub.f32 1.0, %v7543
    %v7560 = vsub.f32 1.0, %v7544
    %v7561 = vsub.f32 1.0, %v7545
    %v7562 = vsub.f32 1.0, %v7546
    %v7563 = vsub.f32 1.0, %v7547
    %v7564 = vsub.f32 1.0, %v7548
    %v7565 = vsub.f32 1.0, %v7549
    %v7566 = vsub.f32 1.0, %v7550
    %v7567 = vsub.f32 1.0, %v7551
    %v7568 = vsub.f32 1.0, %v7552
    %v7569 = vsub.f32 1.0, %v7553
    %v7570 = vsub.f32 1.0, %v7554
    %v7571 = vsub.f32 1.0, %v7555
    %v7573 = vlaneseq
    %v7574 = vshrl.u32 %v7573, 7
    %v7575 = vsub.s32 0, %v7574
    %v7576 = vrot.slane %v665, %v7575
    %7578 = vbcast.lane.b32.xlu0 %v7576, 256
    %v7579 = vpop.permute.xlu0 %7578
    %v7580 = vlaneseq
    %v7581 = vshrl.u32 %v7580, 7
    %v7582 = vsub.s32 1, %v7581
    %v7583 = vrot.slane %v665, %v7582
    %7585 = vbcast.lane.b32.xlu0 %v7583, 256
    %v7586 = vpop.permute.xlu0 %7585
    %v7587 = vlaneseq
    %v7588 = vshrl.u32 %v7587, 7
    %v7589 = vsub.s32 2, %v7588
    %v7590 = vrot.slane %v665, %v7589
    %7592 = vbcast.lane.b32.xlu0 %v7590, 256
    %v7593 = vpop.permute.xlu0 %7592
    %v7594 = vlaneseq
    %v7595 = vshrl.u32 %v7594, 7
    %v7596 = vsub.s32 3, %v7595
    %v7597 = vrot.slane %v665, %v7596
    %7599 = vbcast.lane.b32.xlu0 %v7597, 256
    %v7600 = vpop.permute.xlu0 %7599
    %v7601 = vlaneseq
    %v7602 = vshrl.u32 %v7601, 7
    %v7603 = vsub.s32 4, %v7602
    %v7604 = vrot.slane %v665, %v7603
    %7606 = vbcast.lane.b32.xlu0 %v7604, 256
    %v7607 = vpop.permute.xlu0 %7606
    %v7608 = vlaneseq
    %v7609 = vshrl.u32 %v7608, 7
    %v7610 = vsub.s32 5, %v7609
    %v7611 = vrot.slane %v665, %v7610
    %7613 = vbcast.lane.b32.xlu0 %v7611, 256
    %v7614 = vpop.permute.xlu0 %7613
    %v7615 = vlaneseq
    %v7616 = vshrl.u32 %v7615, 7
    %v7617 = vsub.s32 6, %v7616
    %v7618 = vrot.slane %v665, %v7617
    %7620 = vbcast.lane.b32.xlu0 %v7618, 256
    %v7621 = vpop.permute.xlu0 %7620
    %v7622 = vlaneseq
    %v7623 = vshrl.u32 %v7622, 7
    %v7624 = vsub.s32 7, %v7623
    %v7625 = vrot.slane %v665, %v7624
    %7627 = vbcast.lane.b32.xlu0 %v7625, 256
    %v7628 = vpop.permute.xlu0 %7627
    %v7637 = vmul.f32 %v7467, %v7579
    %v7638 = vmul.f32 %v7467, %v7586
    %v7639 = vmul.f32 %v7467, %v7593
    %v7640 = vmul.f32 %v7467, %v7600
    %v7641 = vmul.f32 %v7467, %v7607
    %v7642 = vmul.f32 %v7467, %v7614
    %v7643 = vmul.f32 %v7467, %v7621
    %v7644 = vmul.f32 %v7467, %v7628
    %v7645 = vmul.f32 %v7468, %v7579
    %v7646 = vmul.f32 %v7468, %v7586
    %v7647 = vmul.f32 %v7468, %v7593
    %v7648 = vmul.f32 %v7468, %v7600
    %v7649 = vmul.f32 %v7468, %v7607
    %v7650 = vmul.f32 %v7468, %v7614
    %v7651 = vmul.f32 %v7468, %v7621
    %v7652 = vmul.f32 %v7468, %v7628
    %v7653 = vsub.f32 1.0, %v7637
    %v7654 = vsub.f32 1.0, %v7638
    %v7655 = vsub.f32 1.0, %v7639
    %v7656 = vsub.f32 1.0, %v7640
    %v7657 = vsub.f32 1.0, %v7641
    %v7658 = vsub.f32 1.0, %v7642
    %v7659 = vsub.f32 1.0, %v7643
    %v7660 = vsub.f32 1.0, %v7644
    %v7661 = vsub.f32 1.0, %v7645
    %v7662 = vsub.f32 1.0, %v7646
    %v7663 = vsub.f32 1.0, %v7647
    %v7664 = vsub.f32 1.0, %v7648
    %v7665 = vsub.f32 1.0, %v7649
    %v7666 = vsub.f32 1.0, %v7650
    %v7667 = vsub.f32 1.0, %v7651
    %v7668 = vsub.f32 1.0, %v7652
    %7685 = vset.pattern.permute.xlu0 0
    %7686 = vperm.xlu0 %7685, %v7556
    %v7687 = vpop.permute.xlu0 %7686
    %7688 = vset.pattern.permute.xlu0 0
    %7689 = vperm.xlu0 %7688, %v7557
    %v7690 = vpop.permute.xlu0 %7689
    %7691 = vset.pattern.permute.xlu0 0
    %7692 = vperm.xlu0 %7691, %v7558
    %v7693 = vpop.permute.xlu0 %7692
    %7694 = vset.pattern.permute.xlu0 0
    %7695 = vperm.xlu0 %7694, %v7559
    %v7696 = vpop.permute.xlu0 %7695
    %7697 = vset.pattern.permute.xlu0 0
    %7698 = vperm.xlu0 %7697, %v7560
    %v7699 = vpop.permute.xlu0 %7698
    %7700 = vset.pattern.permute.xlu0 0
    %7701 = vperm.xlu0 %7700, %v7561
    %v7702 = vpop.permute.xlu0 %7701
    %7703 = vset.pattern.permute.xlu0 0
    %7704 = vperm.xlu0 %7703, %v7562
    %v7705 = vpop.permute.xlu0 %7704
    %7706 = vset.pattern.permute.xlu0 0
    %7707 = vperm.xlu0 %7706, %v7563
    %v7708 = vpop.permute.xlu0 %7707
    %7709 = vset.pattern.permute.xlu0 0
    %7710 = vperm.xlu0 %7709, %v7564
    %v7711 = vpop.permute.xlu0 %7710
    %7712 = vset.pattern.permute.xlu0 0
    %7713 = vperm.xlu0 %7712, %v7565
    %v7714 = vpop.permute.xlu0 %7713
    %7715 = vset.pattern.permute.xlu0 0
    %7716 = vperm.xlu0 %7715, %v7566
    %v7717 = vpop.permute.xlu0 %7716
    %7718 = vset.pattern.permute.xlu0 0
    %7719 = vperm.xlu0 %7718, %v7567
    %v7720 = vpop.permute.xlu0 %7719
    %7721 = vset.pattern.permute.xlu0 0
    %7722 = vperm.xlu0 %7721, %v7568
    %v7723 = vpop.permute.xlu0 %7722
    %7724 = vset.pattern.permute.xlu0 0
    %7725 = vperm.xlu0 %7724, %v7569
    %v7726 = vpop.permute.xlu0 %7725
    %7727 = vset.pattern.permute.xlu0 0
    %7728 = vperm.xlu0 %7727, %v7570
    %v7729 = vpop.permute.xlu0 %7728
    %7730 = vset.pattern.permute.xlu0 0
    %7731 = vperm.xlu0 %7730, %v7571
    %v7732 = vpop.permute.xlu0 %7731
    %v7733 = vlaneseq
    %v7734 = vshrl.u32 %v7733, 7
    %v7735 = vsub.s32 %v593, %v7734
    %v7736 = vrot.slane %v7687, %v7735
    %v7737 = vlaneseq
    %v7738 = vshrl.u32 %v7737, 7
    %v7739 = vsub.s32 %v593, %v7738
    %v7740 = vrot.slane %v7690, %v7739
    %v7741 = vlaneseq
    %v7742 = vshrl.u32 %v7741, 7
    %v7743 = vsub.s32 %v593, %v7742
    %v7744 = vrot.slane %v7693, %v7743
    %v7745 = vlaneseq
    %v7746 = vshrl.u32 %v7745, 7
    %v7747 = vsub.s32 %v593, %v7746
    %v7748 = vrot.slane %v7696, %v7747
    %v7749 = vlaneseq
    %v7750 = vshrl.u32 %v7749, 7
    %v7751 = vsub.s32 %v593, %v7750
    %v7752 = vrot.slane %v7699, %v7751
    %v7753 = vlaneseq
    %v7754 = vshrl.u32 %v7753, 7
    %v7755 = vsub.s32 %v593, %v7754
    %v7756 = vrot.slane %v7702, %v7755
    %v7757 = vlaneseq
    %v7758 = vshrl.u32 %v7757, 7
    %v7759 = vsub.s32 %v593, %v7758
    %v7760 = vrot.slane %v7705, %v7759
    %v7761 = vlaneseq
    %v7762 = vshrl.u32 %v7761, 7
    %v7763 = vsub.s32 %v593, %v7762
    %v7764 = vrot.slane %v7708, %v7763
    %v7765 = vlaneseq
    %v7766 = vshrl.u32 %v7765, 7
    %v7767 = vsub.s32 %v593, %v7766
    %v7768 = vrot.slane %v7711, %v7767
    %v7769 = vlaneseq
    %v7770 = vshrl.u32 %v7769, 7
    %v7771 = vsub.s32 %v593, %v7770
    %v7772 = vrot.slane %v7714, %v7771
    %v7773 = vlaneseq
    %v7774 = vshrl.u32 %v7773, 7
    %v7775 = vsub.s32 %v593, %v7774
    %v7776 = vrot.slane %v7717, %v7775
    %v7777 = vlaneseq
    %v7778 = vshrl.u32 %v7777, 7
    %v7779 = vsub.s32 %v593, %v7778
    %v7780 = vrot.slane %v7720, %v7779
    %v7781 = vlaneseq
    %v7782 = vshrl.u32 %v7781, 7
    %v7783 = vsub.s32 %v593, %v7782
    %v7784 = vrot.slane %v7723, %v7783
    %v7785 = vlaneseq
    %v7786 = vshrl.u32 %v7785, 7
    %v7787 = vsub.s32 %v593, %v7786
    %v7788 = vrot.slane %v7726, %v7787
    %v7789 = vlaneseq
    %v7790 = vshrl.u32 %v7789, 7
    %v7791 = vsub.s32 %v593, %v7790
    %v7792 = vrot.slane %v7729, %v7791
    %v7793 = vlaneseq
    %v7794 = vshrl.u32 %v7793, 7
    %v7795 = vsub.s32 %v593, %v7794
    %v7796 = vrot.slane %v7732, %v7795
    %v7797 = vsel %vm5908, %v7740, %v7736
    %v7798 = vsel %vm5911, %v7744, %v7797
    %v7799 = vsel %vm5914, %v7748, %v7798
    %v7800 = vsel %vm5917, %v7752, %v7799
    %v7801 = vsel %vm5920, %v7756, %v7800
    %v7802 = vsel %vm5923, %v7760, %v7801
    %v7803 = vsel %vm5926, %v7764, %v7802
    %v7804 = vsel %vm5908, %v7772, %v7768
    %v7805 = vsel %vm5911, %v7776, %v7804
    %v7806 = vsel %vm5914, %v7780, %v7805
    %v7807 = vsel %vm5917, %v7784, %v7806
    %v7808 = vsel %vm5920, %v7788, %v7807
    %v7809 = vsel %vm5923, %v7792, %v7808
    %v7810 = vsel %vm5926, %v7796, %v7809
    %v7813 = vsel %vm5957, %v7803, inf
    %7814 = vmin.xlane.f32.xlu0 %v7813
    %v7815 = vpop.xlane.xlu0 %7814
    %v7816 = vsel %vm5957, %v7810, inf
    %7817 = vmin.xlane.f32.xlu0 %v7816
    %v7818 = vpop.xlane.xlu0 %7817
    %7835 = vset.pattern.permute.xlu0 0
    %7836 = vperm.xlu0 %7835, %v7653
    %v7837 = vpop.permute.xlu0 %7836
    %7838 = vset.pattern.permute.xlu0 0
    %7839 = vperm.xlu0 %7838, %v7654
    %v7840 = vpop.permute.xlu0 %7839
    %7841 = vset.pattern.permute.xlu0 0
    %7842 = vperm.xlu0 %7841, %v7655
    %v7843 = vpop.permute.xlu0 %7842
    %7844 = vset.pattern.permute.xlu0 0
    %7845 = vperm.xlu0 %7844, %v7656
    %v7846 = vpop.permute.xlu0 %7845
    %7847 = vset.pattern.permute.xlu0 0
    %7848 = vperm.xlu0 %7847, %v7657
    %v7849 = vpop.permute.xlu0 %7848
    %7850 = vset.pattern.permute.xlu0 0
    %7851 = vperm.xlu0 %7850, %v7658
    %v7852 = vpop.permute.xlu0 %7851
    %7853 = vset.pattern.permute.xlu0 0
    %7854 = vperm.xlu0 %7853, %v7659
    %v7855 = vpop.permute.xlu0 %7854
    %7856 = vset.pattern.permute.xlu0 0
    %7857 = vperm.xlu0 %7856, %v7660
    %v7858 = vpop.permute.xlu0 %7857
    %7859 = vset.pattern.permute.xlu0 0
    %7860 = vperm.xlu0 %7859, %v7661
    %v7861 = vpop.permute.xlu0 %7860
    %7862 = vset.pattern.permute.xlu0 0
    %7863 = vperm.xlu0 %7862, %v7662
    %v7864 = vpop.permute.xlu0 %7863
    %7865 = vset.pattern.permute.xlu0 0
    %7866 = vperm.xlu0 %7865, %v7663
    %v7867 = vpop.permute.xlu0 %7866
    %7868 = vset.pattern.permute.xlu0 0
    %7869 = vperm.xlu0 %7868, %v7664
    %v7870 = vpop.permute.xlu0 %7869
    %7871 = vset.pattern.permute.xlu0 0
    %7872 = vperm.xlu0 %7871, %v7665
    %v7873 = vpop.permute.xlu0 %7872
    %7874 = vset.pattern.permute.xlu0 0
    %7875 = vperm.xlu0 %7874, %v7666
    %v7876 = vpop.permute.xlu0 %7875
    %7877 = vset.pattern.permute.xlu0 0
    %7878 = vperm.xlu0 %7877, %v7667
    %v7879 = vpop.permute.xlu0 %7878
    %7880 = vset.pattern.permute.xlu0 0
    %7881 = vperm.xlu0 %7880, %v7668
    %v7882 = vpop.permute.xlu0 %7881
    %v7883 = vlaneseq
    %v7884 = vshrl.u32 %v7883, 7
    %v7885 = vsub.s32 %v593, %v7884
    %v7886 = vrot.slane %v7837, %v7885
    %v7887 = vlaneseq
    %v7888 = vshrl.u32 %v7887, 7
    %v7889 = vsub.s32 %v593, %v7888
    %v7890 = vrot.slane %v7840, %v7889
    %v7891 = vlaneseq
    %v7892 = vshrl.u32 %v7891, 7
    %v7893 = vsub.s32 %v593, %v7892
    %v7894 = vrot.slane %v7843, %v7893
    %v7895 = vlaneseq
    %v7896 = vshrl.u32 %v7895, 7
    %v7897 = vsub.s32 %v593, %v7896
    %v7898 = vrot.slane %v7846, %v7897
    %v7899 = vlaneseq
    %v7900 = vshrl.u32 %v7899, 7
    %v7901 = vsub.s32 %v593, %v7900
    %v7902 = vrot.slane %v7849, %v7901
    %v7903 = vlaneseq
    %v7904 = vshrl.u32 %v7903, 7
    %v7905 = vsub.s32 %v593, %v7904
    %v7906 = vrot.slane %v7852, %v7905
    %v7907 = vlaneseq
    %v7908 = vshrl.u32 %v7907, 7
    %v7909 = vsub.s32 %v593, %v7908
    %v7910 = vrot.slane %v7855, %v7909
    %v7911 = vlaneseq
    %v7912 = vshrl.u32 %v7911, 7
    %v7913 = vsub.s32 %v593, %v7912
    %v7914 = vrot.slane %v7858, %v7913
    %v7915 = vlaneseq
    %v7916 = vshrl.u32 %v7915, 7
    %v7917 = vsub.s32 %v593, %v7916
    %v7918 = vrot.slane %v7861, %v7917
    %v7919 = vlaneseq
    %v7920 = vshrl.u32 %v7919, 7
    %v7921 = vsub.s32 %v593, %v7920
    %v7922 = vrot.slane %v7864, %v7921
    %v7923 = vlaneseq
    %v7924 = vshrl.u32 %v7923, 7
    %v7925 = vsub.s32 %v593, %v7924
    %v7926 = vrot.slane %v7867, %v7925
    %v7927 = vlaneseq
    %v7928 = vshrl.u32 %v7927, 7
    %v7929 = vsub.s32 %v593, %v7928
    %v7930 = vrot.slane %v7870, %v7929
    %v7931 = vlaneseq
    %v7932 = vshrl.u32 %v7931, 7
    %v7933 = vsub.s32 %v593, %v7932
    %v7934 = vrot.slane %v7873, %v7933
    %v7935 = vlaneseq
    %v7936 = vshrl.u32 %v7935, 7
    %v7937 = vsub.s32 %v593, %v7936
    %v7938 = vrot.slane %v7876, %v7937
    %v7939 = vlaneseq
    %v7940 = vshrl.u32 %v7939, 7
    %v7941 = vsub.s32 %v593, %v7940
    %v7942 = vrot.slane %v7879, %v7941
    %v7943 = vlaneseq
    %v7944 = vshrl.u32 %v7943, 7
    %v7945 = vsub.s32 %v593, %v7944
    %v7946 = vrot.slane %v7882, %v7945
    %v7947 = vsel %vm5908, %v7890, %v7886
    %v7948 = vsel %vm5911, %v7894, %v7947
    %v7949 = vsel %vm5914, %v7898, %v7948
    %v7950 = vsel %vm5917, %v7902, %v7949
    %v7951 = vsel %vm5920, %v7906, %v7950
    %v7952 = vsel %vm5923, %v7910, %v7951
    %v7953 = vsel %vm5926, %v7914, %v7952
    %v7954 = vsel %vm5908, %v7922, %v7918
    %v7955 = vsel %vm5911, %v7926, %v7954
    %v7956 = vsel %vm5914, %v7930, %v7955
    %v7957 = vsel %vm5917, %v7934, %v7956
    %v7958 = vsel %vm5920, %v7938, %v7957
    %v7959 = vsel %vm5923, %v7942, %v7958
    %v7960 = vsel %vm5926, %v7946, %v7959
    %v7963 = vsel %vm5957, %v7953, inf
    %7964 = vmin.xlane.f32.xlu0 %v7963
    %v7965 = vpop.xlane.xlu0 %7964
    %v7966 = vsel %vm5957, %v7960, inf
    %7967 = vmin.xlane.f32.xlu0 %v7966
    %v7968 = vpop.xlane.xlu0 %7967
    %v7969 = vsub.f32 1.0, %v7471
    %v7970 = vsub.f32 1.0, %v7472
    %s7972 = sor.u32 256, 8
    %7973 = vbcast.lane.b32.xlu0 %v7479, %s7972
    %v7974 = vpop.permute.xlu0 %7973
    %s7976 = sor.u32 256, 8
    %7977 = vbcast.lane.b32.xlu0 %v7486, %s7976
    %v7978 = vpop.permute.xlu0 %7977
    %s7980 = sor.u32 256, 8
    %7981 = vbcast.lane.b32.xlu0 %v7493, %s7980
    %v7982 = vpop.permute.xlu0 %7981
    %s7984 = sor.u32 256, 8
    %7985 = vbcast.lane.b32.xlu0 %v7500, %s7984
    %v7986 = vpop.permute.xlu0 %7985
    %s7988 = sor.u32 256, 8
    %7989 = vbcast.lane.b32.xlu0 %v7507, %s7988
    %v7990 = vpop.permute.xlu0 %7989
    %s7992 = sor.u32 256, 8
    %7993 = vbcast.lane.b32.xlu0 %v7514, %s7992
    %v7994 = vpop.permute.xlu0 %7993
    %s7996 = sor.u32 256, 8
    %7997 = vbcast.lane.b32.xlu0 %v7521, %s7996
    %v7998 = vpop.permute.xlu0 %7997
    %s8000 = sor.u32 256, 8
    %8001 = vbcast.lane.b32.xlu0 %v7528, %s8000
    %v8002 = vpop.permute.xlu0 %8001
    %v8011 = vmul.f32 %v7969, %v7974
    %v8012 = vmul.f32 %v7969, %v7978
    %v8013 = vmul.f32 %v7969, %v7982
    %v8014 = vmul.f32 %v7969, %v7986
    %v8015 = vmul.f32 %v7969, %v7990
    %v8016 = vmul.f32 %v7969, %v7994
    %v8017 = vmul.f32 %v7969, %v7998
    %v8018 = vmul.f32 %v7969, %v8002
    %v8019 = vmul.f32 %v7970, %v7974
    %v8020 = vmul.f32 %v7970, %v7978
    %v8021 = vmul.f32 %v7970, %v7982
    %v8022 = vmul.f32 %v7970, %v7986
    %v8023 = vmul.f32 %v7970, %v7990
    %v8024 = vmul.f32 %v7970, %v7994
    %v8025 = vmul.f32 %v7970, %v7998
    %v8026 = vmul.f32 %v7970, %v8002
    %v8027 = vsub.f32 1.0, %v8011
    %v8028 = vsub.f32 1.0, %v8012
    %v8029 = vsub.f32 1.0, %v8013
    %v8030 = vsub.f32 1.0, %v8014
    %v8031 = vsub.f32 1.0, %v8015
    %v8032 = vsub.f32 1.0, %v8016
    %v8033 = vsub.f32 1.0, %v8017
    %v8034 = vsub.f32 1.0, %v8018
    %v8035 = vsub.f32 1.0, %v8019
    %v8036 = vsub.f32 1.0, %v8020
    %v8037 = vsub.f32 1.0, %v8021
    %v8038 = vsub.f32 1.0, %v8022
    %v8039 = vsub.f32 1.0, %v8023
    %v8040 = vsub.f32 1.0, %v8024
    %v8041 = vsub.f32 1.0, %v8025
    %v8042 = vsub.f32 1.0, %v8026
    %s8044 = sor.u32 256, 8
    %8045 = vbcast.lane.b32.xlu0 %v7576, %s8044
    %v8046 = vpop.permute.xlu0 %8045
    %s8048 = sor.u32 256, 8
    %8049 = vbcast.lane.b32.xlu0 %v7583, %s8048
    %v8050 = vpop.permute.xlu0 %8049
    %s8052 = sor.u32 256, 8
    %8053 = vbcast.lane.b32.xlu0 %v7590, %s8052
    %v8054 = vpop.permute.xlu0 %8053
    %s8056 = sor.u32 256, 8
    %8057 = vbcast.lane.b32.xlu0 %v7597, %s8056
    %v8058 = vpop.permute.xlu0 %8057
    %s8060 = sor.u32 256, 8
    %8061 = vbcast.lane.b32.xlu0 %v7604, %s8060
    %v8062 = vpop.permute.xlu0 %8061
    %s8064 = sor.u32 256, 8
    %8065 = vbcast.lane.b32.xlu0 %v7611, %s8064
    %v8066 = vpop.permute.xlu0 %8065
    %s8068 = sor.u32 256, 8
    %8069 = vbcast.lane.b32.xlu0 %v7618, %s8068
    %v8070 = vpop.permute.xlu0 %8069
    %s8072 = sor.u32 256, 8
    %8073 = vbcast.lane.b32.xlu0 %v7625, %s8072
    %v8074 = vpop.permute.xlu0 %8073
    %v8083 = vmul.f32 %v7471, %v8046
    %v8084 = vmul.f32 %v7471, %v8050
    %v8085 = vmul.f32 %v7471, %v8054
    %v8086 = vmul.f32 %v7471, %v8058
    %v8087 = vmul.f32 %v7471, %v8062
    %v8088 = vmul.f32 %v7471, %v8066
    %v8089 = vmul.f32 %v7471, %v8070
    %v8090 = vmul.f32 %v7471, %v8074
    %v8091 = vmul.f32 %v7472, %v8046
    %v8092 = vmul.f32 %v7472, %v8050
    %v8093 = vmul.f32 %v7472, %v8054
    %v8094 = vmul.f32 %v7472, %v8058
    %v8095 = vmul.f32 %v7472, %v8062
    %v8096 = vmul.f32 %v7472, %v8066
    %v8097 = vmul.f32 %v7472, %v8070
    %v8098 = vmul.f32 %v7472, %v8074
    %v8099 = vsub.f32 1.0, %v8083
    %v8100 = vsub.f32 1.0, %v8084
    %v8101 = vsub.f32 1.0, %v8085
    %v8102 = vsub.f32 1.0, %v8086
    %v8103 = vsub.f32 1.0, %v8087
    %v8104 = vsub.f32 1.0, %v8088
    %v8105 = vsub.f32 1.0, %v8089
    %v8106 = vsub.f32 1.0, %v8090
    %v8107 = vsub.f32 1.0, %v8091
    %v8108 = vsub.f32 1.0, %v8092
    %v8109 = vsub.f32 1.0, %v8093
    %v8110 = vsub.f32 1.0, %v8094
    %v8111 = vsub.f32 1.0, %v8095
    %v8112 = vsub.f32 1.0, %v8096
    %v8113 = vsub.f32 1.0, %v8097
    %v8114 = vsub.f32 1.0, %v8098
    %8131 = vset.pattern.permute.xlu0 0
    %8132 = vperm.xlu0 %8131, %v8027
    %v8133 = vpop.permute.xlu0 %8132
    %8134 = vset.pattern.permute.xlu0 0
    %8135 = vperm.xlu0 %8134, %v8028
    %v8136 = vpop.permute.xlu0 %8135
    %8137 = vset.pattern.permute.xlu0 0
    %8138 = vperm.xlu0 %8137, %v8029
    %v8139 = vpop.permute.xlu0 %8138
    %8140 = vset.pattern.permute.xlu0 0
    %8141 = vperm.xlu0 %8140, %v8030
    %v8142 = vpop.permute.xlu0 %8141
    %8143 = vset.pattern.permute.xlu0 0
    %8144 = vperm.xlu0 %8143, %v8031
    %v8145 = vpop.permute.xlu0 %8144
    %8146 = vset.pattern.permute.xlu0 0
    %8147 = vperm.xlu0 %8146, %v8032
    %v8148 = vpop.permute.xlu0 %8147
    %8149 = vset.pattern.permute.xlu0 0
    %8150 = vperm.xlu0 %8149, %v8033
    %v8151 = vpop.permute.xlu0 %8150
    %8152 = vset.pattern.permute.xlu0 0
    %8153 = vperm.xlu0 %8152, %v8034
    %v8154 = vpop.permute.xlu0 %8153
    %8155 = vset.pattern.permute.xlu0 0
    %8156 = vperm.xlu0 %8155, %v8035
    %v8157 = vpop.permute.xlu0 %8156
    %8158 = vset.pattern.permute.xlu0 0
    %8159 = vperm.xlu0 %8158, %v8036
    %v8160 = vpop.permute.xlu0 %8159
    %8161 = vset.pattern.permute.xlu0 0
    %8162 = vperm.xlu0 %8161, %v8037
    %v8163 = vpop.permute.xlu0 %8162
    %8164 = vset.pattern.permute.xlu0 0
    %8165 = vperm.xlu0 %8164, %v8038
    %v8166 = vpop.permute.xlu0 %8165
    %8167 = vset.pattern.permute.xlu0 0
    %8168 = vperm.xlu0 %8167, %v8039
    %v8169 = vpop.permute.xlu0 %8168
    %8170 = vset.pattern.permute.xlu0 0
    %8171 = vperm.xlu0 %8170, %v8040
    %v8172 = vpop.permute.xlu0 %8171
    %8173 = vset.pattern.permute.xlu0 0
    %8174 = vperm.xlu0 %8173, %v8041
    %v8175 = vpop.permute.xlu0 %8174
    %8176 = vset.pattern.permute.xlu0 0
    %8177 = vperm.xlu0 %8176, %v8042
    %v8178 = vpop.permute.xlu0 %8177
    %v8179 = vlaneseq
    %v8180 = vshrl.u32 %v8179, 7
    %v8181 = vsub.s32 %v593, %v8180
    %v8182 = vrot.slane %v8133, %v8181
    %v8183 = vlaneseq
    %v8184 = vshrl.u32 %v8183, 7
    %v8185 = vsub.s32 %v593, %v8184
    %v8186 = vrot.slane %v8136, %v8185
    %v8187 = vlaneseq
    %v8188 = vshrl.u32 %v8187, 7
    %v8189 = vsub.s32 %v593, %v8188
    %v8190 = vrot.slane %v8139, %v8189
    %v8191 = vlaneseq
    %v8192 = vshrl.u32 %v8191, 7
    %v8193 = vsub.s32 %v593, %v8192
    %v8194 = vrot.slane %v8142, %v8193
    %v8195 = vlaneseq
    %v8196 = vshrl.u32 %v8195, 7
    %v8197 = vsub.s32 %v593, %v8196
    %v8198 = vrot.slane %v8145, %v8197
    %v8199 = vlaneseq
    %v8200 = vshrl.u32 %v8199, 7
    %v8201 = vsub.s32 %v593, %v8200
    %v8202 = vrot.slane %v8148, %v8201
    %v8203 = vlaneseq
    %v8204 = vshrl.u32 %v8203, 7
    %v8205 = vsub.s32 %v593, %v8204
    %v8206 = vrot.slane %v8151, %v8205
    %v8207 = vlaneseq
    %v8208 = vshrl.u32 %v8207, 7
    %v8209 = vsub.s32 %v593, %v8208
    %v8210 = vrot.slane %v8154, %v8209
    %v8211 = vlaneseq
    %v8212 = vshrl.u32 %v8211, 7
    %v8213 = vsub.s32 %v593, %v8212
    %v8214 = vrot.slane %v8157, %v8213
    %v8215 = vlaneseq
    %v8216 = vshrl.u32 %v8215, 7
    %v8217 = vsub.s32 %v593, %v8216
    %v8218 = vrot.slane %v8160, %v8217
    %v8219 = vlaneseq
    %v8220 = vshrl.u32 %v8219, 7
    %v8221 = vsub.s32 %v593, %v8220
    %v8222 = vrot.slane %v8163, %v8221
    %v8223 = vlaneseq
    %v8224 = vshrl.u32 %v8223, 7
    %v8225 = vsub.s32 %v593, %v8224
    %v8226 = vrot.slane %v8166, %v8225
    %v8227 = vlaneseq
    %v8228 = vshrl.u32 %v8227, 7
    %v8229 = vsub.s32 %v593, %v8228
    %v8230 = vrot.slane %v8169, %v8229
    %v8231 = vlaneseq
    %v8232 = vshrl.u32 %v8231, 7
    %v8233 = vsub.s32 %v593, %v8232
    %v8234 = vrot.slane %v8172, %v8233
    %v8235 = vlaneseq
    %v8236 = vshrl.u32 %v8235, 7
    %v8237 = vsub.s32 %v593, %v8236
    %v8238 = vrot.slane %v8175, %v8237
    %v8239 = vlaneseq
    %v8240 = vshrl.u32 %v8239, 7
    %v8241 = vsub.s32 %v593, %v8240
    %v8242 = vrot.slane %v8178, %v8241
    %v8243 = vsel %vm5908, %v8186, %v8182
    %v8244 = vsel %vm5911, %v8190, %v8243
    %v8245 = vsel %vm5914, %v8194, %v8244
    %v8246 = vsel %vm5917, %v8198, %v8245
    %v8247 = vsel %vm5920, %v8202, %v8246
    %v8248 = vsel %vm5923, %v8206, %v8247
    %v8249 = vsel %vm5926, %v8210, %v8248
    %v8250 = vsel %vm5908, %v8218, %v8214
    %v8251 = vsel %vm5911, %v8222, %v8250
    %v8252 = vsel %vm5914, %v8226, %v8251
    %v8253 = vsel %vm5917, %v8230, %v8252
    %v8254 = vsel %vm5920, %v8234, %v8253
    %v8255 = vsel %vm5923, %v8238, %v8254
    %v8256 = vsel %vm5926, %v8242, %v8255
    %v8259 = vsel %vm5957, %v8249, inf
    %8260 = vmin.xlane.f32.xlu0 %v8259
    %v8261 = vpop.xlane.xlu0 %8260
    %v8262 = vsel %vm5957, %v8256, inf
    %8263 = vmin.xlane.f32.xlu0 %v8262
    %v8264 = vpop.xlane.xlu0 %8263
    %8281 = vset.pattern.permute.xlu0 0
    %8282 = vperm.xlu0 %8281, %v8099
    %v8283 = vpop.permute.xlu0 %8282
    %8284 = vset.pattern.permute.xlu0 0
    %8285 = vperm.xlu0 %8284, %v8100
    %v8286 = vpop.permute.xlu0 %8285
    %8287 = vset.pattern.permute.xlu0 0
    %8288 = vperm.xlu0 %8287, %v8101
    %v8289 = vpop.permute.xlu0 %8288
    %8290 = vset.pattern.permute.xlu0 0
    %8291 = vperm.xlu0 %8290, %v8102
    %v8292 = vpop.permute.xlu0 %8291
    %8293 = vset.pattern.permute.xlu0 0
    %8294 = vperm.xlu0 %8293, %v8103
    %v8295 = vpop.permute.xlu0 %8294
    %8296 = vset.pattern.permute.xlu0 0
    %8297 = vperm.xlu0 %8296, %v8104
    %v8298 = vpop.permute.xlu0 %8297
    %8299 = vset.pattern.permute.xlu0 0
    %8300 = vperm.xlu0 %8299, %v8105
    %v8301 = vpop.permute.xlu0 %8300
    %8302 = vset.pattern.permute.xlu0 0
    %8303 = vperm.xlu0 %8302, %v8106
    %v8304 = vpop.permute.xlu0 %8303
    %8305 = vset.pattern.permute.xlu0 0
    %8306 = vperm.xlu0 %8305, %v8107
    %v8307 = vpop.permute.xlu0 %8306
    %8308 = vset.pattern.permute.xlu0 0
    %8309 = vperm.xlu0 %8308, %v8108
    %v8310 = vpop.permute.xlu0 %8309
    %8311 = vset.pattern.permute.xlu0 0
    %8312 = vperm.xlu0 %8311, %v8109
    %v8313 = vpop.permute.xlu0 %8312
    %8314 = vset.pattern.permute.xlu0 0
    %8315 = vperm.xlu0 %8314, %v8110
    %v8316 = vpop.permute.xlu0 %8315
    %8317 = vset.pattern.permute.xlu0 0
    %8318 = vperm.xlu0 %8317, %v8111
    %v8319 = vpop.permute.xlu0 %8318
    %8320 = vset.pattern.permute.xlu0 0
    %8321 = vperm.xlu0 %8320, %v8112
    %v8322 = vpop.permute.xlu0 %8321
    %8323 = vset.pattern.permute.xlu0 0
    %8324 = vperm.xlu0 %8323, %v8113
    %v8325 = vpop.permute.xlu0 %8324
    %8326 = vset.pattern.permute.xlu0 0
    %8327 = vperm.xlu0 %8326, %v8114
    %v8328 = vpop.permute.xlu0 %8327
    %v8329 = vlaneseq
    %v8330 = vshrl.u32 %v8329, 7
    %v8331 = vsub.s32 %v593, %v8330
    %v8332 = vrot.slane %v8283, %v8331
    %v8333 = vlaneseq
    %v8334 = vshrl.u32 %v8333, 7
    %v8335 = vsub.s32 %v593, %v8334
    %v8336 = vrot.slane %v8286, %v8335
    %v8337 = vlaneseq
    %v8338 = vshrl.u32 %v8337, 7
    %v8339 = vsub.s32 %v593, %v8338
    %v8340 = vrot.slane %v8289, %v8339
    %v8341 = vlaneseq
    %v8342 = vshrl.u32 %v8341, 7
    %v8343 = vsub.s32 %v593, %v8342
    %v8344 = vrot.slane %v8292, %v8343
    %v8345 = vlaneseq
    %v8346 = vshrl.u32 %v8345, 7
    %v8347 = vsub.s32 %v593, %v8346
    %v8348 = vrot.slane %v8295, %v8347
    %v8349 = vlaneseq
    %v8350 = vshrl.u32 %v8349, 7
    %v8351 = vsub.s32 %v593, %v8350
    %v8352 = vrot.slane %v8298, %v8351
    %v8353 = vlaneseq
    %v8354 = vshrl.u32 %v8353, 7
    %v8355 = vsub.s32 %v593, %v8354
    %v8356 = vrot.slane %v8301, %v8355
    %v8357 = vlaneseq
    %v8358 = vshrl.u32 %v8357, 7
    %v8359 = vsub.s32 %v593, %v8358
    %v8360 = vrot.slane %v8304, %v8359
    %v8361 = vlaneseq
    %v8362 = vshrl.u32 %v8361, 7
    %v8363 = vsub.s32 %v593, %v8362
    %v8364 = vrot.slane %v8307, %v8363
    %v8365 = vlaneseq
    %v8366 = vshrl.u32 %v8365, 7
    %v8367 = vsub.s32 %v593, %v8366
    %v8368 = vrot.slane %v8310, %v8367
    %v8369 = vlaneseq
    %v8370 = vshrl.u32 %v8369, 7
    %v8371 = vsub.s32 %v593, %v8370
    %v8372 = vrot.slane %v8313, %v8371
    %v8373 = vlaneseq
    %v8374 = vshrl.u32 %v8373, 7
    %v8375 = vsub.s32 %v593, %v8374
    %v8376 = vrot.slane %v8316, %v8375
    %v8377 = vlaneseq
    %v8378 = vshrl.u32 %v8377, 7
    %v8379 = vsub.s32 %v593, %v8378
    %v8380 = vrot.slane %v8319, %v8379
    %v8381 = vlaneseq
    %v8382 = vshrl.u32 %v8381, 7
    %v8383 = vsub.s32 %v593, %v8382
    %v8384 = vrot.slane %v8322, %v8383
    %v8385 = vlaneseq
    %v8386 = vshrl.u32 %v8385, 7
    %v8387 = vsub.s32 %v593, %v8386
    %v8388 = vrot.slane %v8325, %v8387
    %v8389 = vlaneseq
    %v8390 = vshrl.u32 %v8389, 7
    %v8391 = vsub.s32 %v593, %v8390
    %v8392 = vrot.slane %v8328, %v8391
    %v8393 = vsel %vm5908, %v8336, %v8332
    %v8394 = vsel %vm5911, %v8340, %v8393
    %v8395 = vsel %vm5914, %v8344, %v8394
    %v8396 = vsel %vm5917, %v8348, %v8395
    %v8397 = vsel %vm5920, %v8352, %v8396
    %v8398 = vsel %vm5923, %v8356, %v8397
    %v8399 = vsel %vm5926, %v8360, %v8398
    %v8400 = vsel %vm5908, %v8368, %v8364
    %v8401 = vsel %vm5911, %v8372, %v8400
    %v8402 = vsel %vm5914, %v8376, %v8401
    %v8403 = vsel %vm5917, %v8380, %v8402
    %v8404 = vsel %vm5920, %v8384, %v8403
    %v8405 = vsel %vm5923, %v8388, %v8404
    %v8406 = vsel %vm5926, %v8392, %v8405
    %v8409 = vsel %vm5957, %v8399, inf
    %8410 = vmin.xlane.f32.xlu0 %v8409
    %v8411 = vpop.xlane.xlu0 %8410
    %v8412 = vsel %vm5957, %v8406, inf
    %8413 = vmin.xlane.f32.xlu0 %v8412
    %v8414 = vpop.xlane.xlu0 %8413
    %v8415 = vmin.f32 %v7815, %v8261
    %v8416 = vmin.f32 %v7818, %v8264
    %v8417 = vmin.f32 %v7965, %v8411
    %v8418 = vmin.f32 %v7968, %v8414
    %v8419 = vsub.f32 1.0, %v8417
    %v8420 = vsub.f32 1.0, %v8418
    %v8423 = vlaneseq
    %v8424 = vshrl.u32 %v8423, 7
    %v8425 = vsub.s32 %v593, %v8424
    %v8426 = vrot.slane %v8415, %v8425
    %v8427 = vlaneseq
    %v8428 = vshrl.u32 %v8427, 7
    %v8429 = vsub.s32 %v593, %v8428
    %v8430 = vrot.slane %v8416, %v8429
    %v8431 = vsel %vm5908, %v8430, %v8426
    %v8432 = vsel %vm5957, %v8431, 0
    %8434 = vmatprep.subr.mxu0 0.0
    %8435 = vmatpush1.msra.mxu0 %v643
    %8436 = vmatprep.subr.mxu0 0.0
    %8437 = vmatpush1.msra.mxu0 0.0
    %8438 = vmatprep.subr.mxu0 0.0
    %8439 = vmatpush1.msra.mxu0 0.0
    %8440 = vmatprep.subr.mxu0 0.0
    %8441 = vmatpush1.msra.mxu0 0.0
    %8442 = vmatprep.subr.mxu0 0.0
    %8443 = vmatpush1.msra.mxu0 0.0
    %8444 = vmatprep.subr.mxu0 0.0
    %8445 = vmatpush1.msra.mxu0 0.0
    %8446 = vmatprep.subr.mxu0 0.0
    %8447 = vmatpush1.msra.mxu0 0.0
    %8448 = vmatprep.subr.mxu0 0.0
    %8449 = vmatpush1.msra.mxu0 0.0
    %8450 = vmatprep.subr.mxu0 0.0
    %8451 = vmatpush1.msra.mxu0 0.0
    %8452 = vmatprep.subr.mxu0 0.0
    %8453 = vmatpush1.msra.mxu0 0.0
    %8454 = vmatprep.subr.mxu0 0.0
    %8455 = vmatpush1.msra.mxu0 0.0
    %8456 = vmatprep.subr.mxu0 0.0
    %8457 = vmatpush1.msra.mxu0 0.0
    %8458 = vmatprep.subr.mxu0 0.0
    %8459 = vmatpush1.msra.mxu0 0.0
    %8460 = vmatprep.subr.mxu0 0.0
    %8461 = vmatpush1.msra.mxu0 0.0
    %8462 = vmatprep.subr.mxu0 0.0
    %8463 = vmatpush1.msra.mxu0 0.0
    %8464 = vmatprep.subr.mxu0 0.0
    %8465 = vmatpush1.msra.mxu0 0.0
    %8466 = vmatprep.subr.mxu0 0.0
    %8467 = vmatpush1.msra.mxu0 0.0
    %8468 = vmatprep.subr.mxu0 0.0
    %8469 = vmatpush1.msra.mxu0 0.0
    %8470 = vmatprep.subr.mxu0 0.0
    %8471 = vmatpush1.msra.mxu0 0.0
    %8472 = vmatprep.subr.mxu0 0.0
    %8473 = vmatpush1.msra.mxu0 0.0
    %8474 = vmatprep.subr.mxu0 0.0
    %8475 = vmatpush1.msra.mxu0 0.0
    %8476 = vmatprep.subr.mxu0 0.0
    %8477 = vmatpush1.msra.mxu0 0.0
    %8478 = vmatprep.subr.mxu0 0.0
    %8479 = vmatpush1.msra.mxu0 0.0
    %8480 = vmatprep.subr.mxu0 0.0
    %8481 = vmatpush1.msra.mxu0 0.0
    %8482 = vmatprep.subr.mxu0 0.0
    %8483 = vmatpush1.msra.mxu0 0.0
    %8484 = vmatprep.subr.mxu0 0.0
    %8485 = vmatpush1.msra.mxu0 0.0
    %8486 = vmatprep.subr.mxu0 0.0
    %8487 = vmatpush1.msra.mxu0 0.0
    %8488 = vmatprep.subr.mxu0 0.0
    %8489 = vmatpush1.msra.mxu0 0.0
    %8490 = vmatprep.subr.mxu0 0.0
    %8491 = vmatpush1.msra.mxu0 0.0
    %8492 = vmatprep.subr.mxu0 0.0
    %8493 = vmatpush1.msra.mxu0 0.0
    %8494 = vmatprep.subr.mxu0 0.0
    %8495 = vmatpush1.msra.mxu0 0.0
    %8496 = vmatprep.subr.mxu0 0.0
    %8497 = vmatpush1.msra.mxu0 0.0
    %8498 = vmatprep.mubr.f32.mxu0 0.0
    %8499 = vmatmul.mubr.f32.gmra.mrb[0].mxu0 %v8432
    %v8500 = vpop.f32.mrb[0].mxu0
    %v8501 = vadd.f32 0.0, %v8500
    %v8502 = vpop.f32.mrb[0].mxu0
    %8503 = vdwg.mxu0
    %v8504 = vadd.f32 %v6034, %v8501
    %v8507 = vlaneseq
    %v8508 = vshrl.u32 %v8507, 7
    %v8509 = vsub.s32 %v593, %v8508
    %v8510 = vrot.slane %v8419, %v8509
    %v8511 = vlaneseq
    %v8512 = vshrl.u32 %v8511, 7
    %v8513 = vsub.s32 %v593, %v8512
    %v8514 = vrot.slane %v8420, %v8513
    %v8515 = vsel %vm5908, %v8514, %v8510
    %v8516 = vsel %vm5957, %v8515, 0
    %8518 = vmatprep.subr.mxu0 0.0
    %8519 = vmatpush1.msra.mxu0 %v644
    %8520 = vmatprep.subr.mxu0 0.0
    %8521 = vmatpush1.msra.mxu0 0.0
    %8522 = vmatprep.subr.mxu0 0.0
    %8523 = vmatpush1.msra.mxu0 0.0
    %8524 = vmatprep.subr.mxu0 0.0
    %8525 = vmatpush1.msra.mxu0 0.0
    %8526 = vmatprep.subr.mxu0 0.0
    %8527 = vmatpush1.msra.mxu0 0.0
    %8528 = vmatprep.subr.mxu0 0.0
    %8529 = vmatpush1.msra.mxu0 0.0
    %8530 = vmatprep.subr.mxu0 0.0
    %8531 = vmatpush1.msra.mxu0 0.0
    %8532 = vmatprep.subr.mxu0 0.0
    %8533 = vmatpush1.msra.mxu0 0.0
    %8534 = vmatprep.subr.mxu0 0.0
    %8535 = vmatpush1.msra.mxu0 0.0
    %8536 = vmatprep.subr.mxu0 0.0
    %8537 = vmatpush1.msra.mxu0 0.0
    %8538 = vmatprep.subr.mxu0 0.0
    %8539 = vmatpush1.msra.mxu0 0.0
    %8540 = vmatprep.subr.mxu0 0.0
    %8541 = vmatpush1.msra.mxu0 0.0
    %8542 = vmatprep.subr.mxu0 0.0
    %8543 = vmatpush1.msra.mxu0 0.0
    %8544 = vmatprep.subr.mxu0 0.0
    %8545 = vmatpush1.msra.mxu0 0.0
    %8546 = vmatprep.subr.mxu0 0.0
    %8547 = vmatpush1.msra.mxu0 0.0
    %8548 = vmatprep.subr.mxu0 0.0
    %8549 = vmatpush1.msra.mxu0 0.0
    %8550 = vmatprep.subr.mxu0 0.0
    %8551 = vmatpush1.msra.mxu0 0.0
    %8552 = vmatprep.subr.mxu0 0.0
    %8553 = vmatpush1.msra.mxu0 0.0
    %8554 = vmatprep.subr.mxu0 0.0
    %8555 = vmatpush1.msra.mxu0 0.0
    %8556 = vmatprep.subr.mxu0 0.0
    %8557 = vmatpush1.msra.mxu0 0.0
    %8558 = vmatprep.subr.mxu0 0.0
    %8559 = vmatpush1.msra.mxu0 0.0
    %8560 = vmatprep.subr.mxu0 0.0
    %8561 = vmatpush1.msra.mxu0 0.0
    %8562 = vmatprep.subr.mxu0 0.0
    %8563 = vmatpush1.msra.mxu0 0.0
    %8564 = vmatprep.subr.mxu0 0.0
    %8565 = vmatpush1.msra.mxu0 0.0
    %8566 = vmatprep.subr.mxu0 0.0
    %8567 = vmatpush1.msra.mxu0 0.0
    %8568 = vmatprep.subr.mxu0 0.0
    %8569 = vmatpush1.msra.mxu0 0.0
    %8570 = vmatprep.subr.mxu0 0.0
    %8571 = vmatpush1.msra.mxu0 0.0
    %8572 = vmatprep.subr.mxu0 0.0
    %8573 = vmatpush1.msra.mxu0 0.0
    %8574 = vmatprep.subr.mxu0 0.0
    %8575 = vmatpush1.msra.mxu0 0.0
    %8576 = vmatprep.subr.mxu0 0.0
    %8577 = vmatpush1.msra.mxu0 0.0
    %8578 = vmatprep.subr.mxu0 0.0
    %8579 = vmatpush1.msra.mxu0 0.0
    %8580 = vmatprep.subr.mxu0 0.0
    %8581 = vmatpush1.msra.mxu0 0.0
    %8582 = vmatprep.mubr.f32.mxu0 0.0
    %8583 = vmatmul.mubr.f32.gmra.mrb[0].mxu0 %v8516
    %v8584 = vpop.f32.mrb[0].mxu0
    %v8585 = vadd.f32 0.0, %v8584
    %v8586 = vpop.f32.mrb[0].mxu0
    %8587 = vdwg.mxu0
    %v8588 = vadd.f32 %v8504, %v8585
    %v8591 = vlaneseq
    %v8592 = vshrl.u32 %v8591, 7
    %v8593 = vsub.s32 %v593, %v8592
    %v8594 = vrot.slane %v7467, %v8593
    %v8595 = vlaneseq
    %v8596 = vshrl.u32 %v8595, 7
    %v8597 = vsub.s32 %v593, %v8596
    %v8598 = vrot.slane %v7468, %v8597
    %v8599 = vsel %vm5908, %v8598, %v8594
    %v8600 = vsel %vm5957, %v8599, 0
    %8602 = vmatprep.subr.mxu0 0.0
    %8603 = vmatpush1.msra.mxu0 %v645
    %8604 = vmatprep.subr.mxu0 0.0
    %8605 = vmatpush1.msra.mxu0 0.0
    %8606 = vmatprep.subr.mxu0 0.0
    %8607 = vmatpush1.msra.mxu0 0.0
    %8608 = vmatprep.subr.mxu0 0.0
    %8609 = vmatpush1.msra.mxu0 0.0
    %8610 = vmatprep.subr.mxu0 0.0
    %8611 = vmatpush1.msra.mxu0 0.0
    %8612 = vmatprep.subr.mxu0 0.0
    %8613 = vmatpush1.msra.mxu0 0.0
    %8614 = vmatprep.subr.mxu0 0.0
    %8615 = vmatpush1.msra.mxu0 0.0
    %8616 = vmatprep.subr.mxu0 0.0
    %8617 = vmatpush1.msra.mxu0 0.0
    %8618 = vmatprep.subr.mxu0 0.0
    %8619 = vmatpush1.msra.mxu0 0.0
    %8620 = vmatprep.subr.mxu0 0.0
    %8621 = vmatpush1.msra.mxu0 0.0
    %8622 = vmatprep.subr.mxu0 0.0
    %8623 = vmatpush1.msra.mxu0 0.0
    %8624 = vmatprep.subr.mxu0 0.0
    %8625 = vmatpush1.msra.mxu0 0.0
    %8626 = vmatprep.subr.mxu0 0.0
    %8627 = vmatpush1.msra.mxu0 0.0
    %8628 = vmatprep.subr.mxu0 0.0
    %8629 = vmatpush1.msra.mxu0 0.0
    %8630 = vmatprep.subr.mxu0 0.0
    %8631 = vmatpush1.msra.mxu0 0.0
    %8632 = vmatprep.subr.mxu0 0.0
    %8633 = vmatpush1.msra.mxu0 0.0
    %8634 = vmatprep.subr.mxu0 0.0
    %8635 = vmatpush1.msra.mxu0 0.0
    %8636 = vmatprep.subr.mxu0 0.0
    %8637 = vmatpush1.msra.mxu0 0.0
    %8638 = vmatprep.subr.mxu0 0.0
    %8639 = vmatpush1.msra.mxu0 0.0
    %8640 = vmatprep.subr.mxu0 0.0
    %8641 = vmatpush1.msra.mxu0 0.0
    %8642 = vmatprep.subr.mxu0 0.0
    %8643 = vmatpush1.msra.mxu0 0.0
    %8644 = vmatprep.subr.mxu0 0.0
    %8645 = vmatpush1.msra.mxu0 0.0
    %8646 = vmatprep.subr.mxu0 0.0
    %8647 = vmatpush1.msra.mxu0 0.0
    %8648 = vmatprep.subr.mxu0 0.0
    %8649 = vmatpush1.msra.mxu0 0.0
    %8650 = vmatprep.subr.mxu0 0.0
    %8651 = vmatpush1.msra.mxu0 0.0
    %8652 = vmatprep.subr.mxu0 0.0
    %8653 = vmatpush1.msra.mxu0 0.0
    %8654 = vmatprep.subr.mxu0 0.0
    %8655 = vmatpush1.msra.mxu0 0.0
    %8656 = vmatprep.subr.mxu0 0.0
    %8657 = vmatpush1.msra.mxu0 0.0
    %8658 = vmatprep.subr.mxu0 0.0
    %8659 = vmatpush1.msra.mxu0 0.0
    %8660 = vmatprep.subr.mxu0 0.0
    %8661 = vmatpush1.msra.mxu0 0.0
    %8662 = vmatprep.subr.mxu0 0.0
    %8663 = vmatpush1.msra.mxu0 0.0
    %8664 = vmatprep.subr.mxu0 0.0
    %8665 = vmatpush1.msra.mxu0 0.0
    %8666 = vmatprep.mubr.f32.mxu0 0.0
    %8667 = vmatmul.mubr.f32.gmra.mrb[0].mxu0 %v8600
    %v8668 = vpop.f32.mrb[0].mxu0
    %v8669 = vadd.f32 0.0, %v8668
    %v8670 = vpop.f32.mrb[0].mxu0
    %8671 = vdwg.mxu0
    %v8672 = vadd.f32 %v8588, %v8669
    %v8675 = vlaneseq
    %v8676 = vshrl.u32 %v8675, 7
    %v8677 = vsub.s32 %v593, %v8676
    %v8678 = vrot.slane %v7471, %v8677
    %v8679 = vlaneseq
    %v8680 = vshrl.u32 %v8679, 7
    %v8681 = vsub.s32 %v593, %v8680
    %v8682 = vrot.slane %v7472, %v8681
    %v8683 = vsel %vm5908, %v8682, %v8678
    %v8684 = vsel %vm5957, %v8683, 0
    %8686 = vmatprep.subr.mxu0 0.0
    %8687 = vmatpush1.msra.mxu0 %v646
    %8688 = vmatprep.subr.mxu0 0.0
    %8689 = vmatpush1.msra.mxu0 0.0
    %8690 = vmatprep.subr.mxu0 0.0
    %8691 = vmatpush1.msra.mxu0 0.0
    %8692 = vmatprep.subr.mxu0 0.0
    %8693 = vmatpush1.msra.mxu0 0.0
    %8694 = vmatprep.subr.mxu0 0.0
    %8695 = vmatpush1.msra.mxu0 0.0
    %8696 = vmatprep.subr.mxu0 0.0
    %8697 = vmatpush1.msra.mxu0 0.0
    %8698 = vmatprep.subr.mxu0 0.0
    %8699 = vmatpush1.msra.mxu0 0.0
    %8700 = vmatprep.subr.mxu0 0.0
    %8701 = vmatpush1.msra.mxu0 0.0
    %8702 = vmatprep.subr.mxu0 0.0
    %8703 = vmatpush1.msra.mxu0 0.0
    %8704 = vmatprep.subr.mxu0 0.0
    %8705 = vmatpush1.msra.mxu0 0.0
    %8706 = vmatprep.subr.mxu0 0.0
    %8707 = vmatpush1.msra.mxu0 0.0
    %8708 = vmatprep.subr.mxu0 0.0
    %8709 = vmatpush1.msra.mxu0 0.0
    %8710 = vmatprep.subr.mxu0 0.0
    %8711 = vmatpush1.msra.mxu0 0.0
    %8712 = vmatprep.subr.mxu0 0.0
    %8713 = vmatpush1.msra.mxu0 0.0
    %8714 = vmatprep.subr.mxu0 0.0
    %8715 = vmatpush1.msra.mxu0 0.0
    %8716 = vmatprep.subr.mxu0 0.0
    %8717 = vmatpush1.msra.mxu0 0.0
    %8718 = vmatprep.subr.mxu0 0.0
    %8719 = vmatpush1.msra.mxu0 0.0
    %8720 = vmatprep.subr.mxu0 0.0
    %8721 = vmatpush1.msra.mxu0 0.0
    %8722 = vmatprep.subr.mxu0 0.0
    %8723 = vmatpush1.msra.mxu0 0.0
    %8724 = vmatprep.subr.mxu0 0.0
    %8725 = vmatpush1.msra.mxu0 0.0
    %8726 = vmatprep.subr.mxu0 0.0
    %8727 = vmatpush1.msra.mxu0 0.0
    %8728 = vmatprep.subr.mxu0 0.0
    %8729 = vmatpush1.msra.mxu0 0.0
    %8730 = vmatprep.subr.mxu0 0.0
    %8731 = vmatpush1.msra.mxu0 0.0
    %8732 = vmatprep.subr.mxu0 0.0
    %8733 = vmatpush1.msra.mxu0 0.0
    %8734 = vmatprep.subr.mxu0 0.0
    %8735 = vmatpush1.msra.mxu0 0.0
    %8736 = vmatprep.subr.mxu0 0.0
    %8737 = vmatpush1.msra.mxu0 0.0
    %8738 = vmatprep.subr.mxu0 0.0
    %8739 = vmatpush1.msra.mxu0 0.0
    %8740 = vmatprep.subr.mxu0 0.0
    %8741 = vmatpush1.msra.mxu0 0.0
    %8742 = vmatprep.subr.mxu0 0.0
    %8743 = vmatpush1.msra.mxu0 0.0
    %8744 = vmatprep.subr.mxu0 0.0
    %8745 = vmatpush1.msra.mxu0 0.0
    %8746 = vmatprep.subr.mxu0 0.0
    %8747 = vmatpush1.msra.mxu0 0.0
    %8748 = vmatprep.subr.mxu0 0.0
    %8749 = vmatpush1.msra.mxu0 0.0
    %8750 = vmatprep.mubr.f32.mxu0 0.0
    %8751 = vmatmul.mubr.f32.gmra.mrb[0].mxu0 %v8684
    %v8752 = vpop.f32.mrb[0].mxu0
    %v8753 = vadd.f32 0.0, %v8752
    %v8754 = vpop.f32.mrb[0].mxu0
    %8755 = vdwg.mxu0
    %v8756 = vadd.f32 %v8672, %v8753
    %8757 = vst.msk [vmem:[#allocation4] sm:$0x3] %vm6433, %v8756
    // Predicated region
    $region54: #{protors_forward.1} parent=1 // pred_check
      _
    $region55: #{protors_forward.1} parent=1 // pred_check_branch
      %8759 = sbr.rel (0) target = $region57
    $region56: #{protors_forward.1} parent=1 // pred_region
      %s8761 = ssub.s32 32, 32
      %8762 = vsyncadd [#allocation3], %s8761
      %s8764 = sshll.u32 [#allocation2], 4
      %s8765 = int_to_ptr.vmem [resolvable:$true] %s8764
      %8767 = dma.vmem_to_hbm [thread:$0]  %s8765, 32, %s13, [#allocation3]
    $region57: #{protors_forward.1} parent=1 // pred_fallthru
      _
    // Predicated region
    $region58: #{protors_forward.1} parent=1 // pred_check
      _
    $region59: #{protors_forward.1} parent=1 // pred_check_branch
      %8769 = sbr.rel (0) target = $region61
    $region60: #{protors_forward.1} parent=1 // pred_region
      %s8771 = ssub.s32 32, 32
      %8772 = vsyncadd [#allocation5], %s8771
      %s8774 = sshll.u32 [#allocation4], 4
      %s8775 = int_to_ptr.vmem [resolvable:$true] %s8774
      %8777 = dma.vmem_to_hbm [thread:$0]  %s8775, 32, %s14, [#allocation5]
    $region61: #{protors_forward.1} parent=1 // pred_fallthru
      _
    // Predicated region
    $region62: #{protors_forward.1} parent=1 // pred_check
      _
    $region63: #{protors_forward.1} parent=1 // pred_check_branch
      %8779 = sbr.rel (0) target = $region65
    $region64: #{protors_forward.1} parent=1 // pred_region
      %8780 = dma.done [#allocation3], 32
    $region65: #{protors_forward.1} parent=1 // pred_fallthru
      _
    // Predicated region
    $region66: #{protors_forward.1} parent=1 // pred_check
      _
    $region67: #{protors_forward.1} parent=1 // pred_check_branch
      %8782 = sbr.rel (0) target = $region69
    $region68: #{protors_forward.1} parent=1 // pred_region
      %8783 = dma.done [#allocation5], 32
    $region69: #{protors_forward.1} parent=1 // pred_fallthru
      _
    %8784 = vsyncpa [#allocation3], 1
    %8785 = vsyncpa [#allocation5], 1

</llo_original>
